<compile_context>
chip_gen: v7x
topology: tpu7x:2x2x1
jax: 0.10.0
libtpu: 0.0.40
codegen_flags: <defaults>
</compile_context>

<pallas_src>
import jax
import jax.numpy as jnp
import numpy as np
from jax.experimental import pallas as pl
from jax.experimental.pallas import tpu as pltpu


# ----------------------------------------------------------------------------
# Fused CBAM kernel
# ----------------------------------------------------------------------------
def _make_cbam_kernel(W, Cin, Cout):
    CWi = Cin * W        # input lane width  (lane = ci*W + w)
    CWo = Cout * W       # output lane width (lane = co*W + w)

    def kernel(x_ref, cband_ref, bconv_ref, w1f_ref, b1_ref, w2e_ref, b2e_ref,
               sband_ref, bsp_ref, out_ref, xpad_ref, cpad_ref):
        BB, H, _ = x_ref.shape
        mxu_dt = cband_ref.dtype

        # ---- zero only the halo rings (not the full scratches). Done every step (cheap:
        #      8 narrow rows total) so it stays correct under megacore grid sharding.
        xpad_ref[:, 0:1, :] = jnp.zeros((BB, 1, CWi), jnp.float32)
        xpad_ref[:, H + 1:H + 2, :] = jnp.zeros((BB, 1, CWi), jnp.float32)
        cpad_ref[:, 0:3, :] = jnp.zeros((BB, 3, 2 * W), jnp.float32)
        cpad_ref[:, H + 3:H + 6, :] = jnp.zeros((BB, 3, 2 * W), jnp.float32)

        # ---- 3x3 conv + ReLU: dx & ci taps folded into banded (Cin*W, Cout*W) matrices,
        #      so the conv is 3 accumulated MXU dots with K = Cin*W (instead of 9, K = Cin).
        xpad_ref[:, 1:1 + H, :] = x_ref[...]
        acc = jnp.zeros((BB * H, CWo), jnp.float32)
        for dy in range(3):
            win = xpad_ref[:, dy:dy + H, :].reshape(BB * H, CWi).astype(mxu_dt)
            acc = acc + jnp.dot(win, cband_ref[dy],
                                preferred_element_type=jnp.float32)
        y3 = jnp.maximum(acc + bconv_ref[...], 0.0).reshape(BB, H, CWo)

        # ---- SE channel gate, entirely in the lane-dense (Cout*W) domain: the 1/(H*W) of
        #      the global average pool and the broadcast back to Cout*W lanes are folded
        #      into the host-pretiled FC weights.  Tiny FCs stay f32 (v5e-friendly).
        s2 = y3.sum(axis=1)                                              # (BB, Cout*W)
        hfc = jnp.maximum(
            jnp.dot(s2, w1f_ref[...], preferred_element_type=jnp.float32)
            + b1_ref[...], 0.0)                                          # (BB, hidden)
        a_exp = jax.nn.sigmoid(
            jnp.dot(hfc, w2e_ref[...], preferred_element_type=jnp.float32)
            + b2e_ref[...])                                              # (BB, Cout*W)
        ys3 = y3 * a_exp[:, None, :]                                     # (BB, H, Cout*W)

        # ---- spatial attention: channel mean/max over contiguous W-wide lane groups
        #      (static lane slices, no lane-splitting reshape), packed side by side.
        avg = ys3[:, :, 0:W]
        mxm = ys3[:, :, 0:W]
        for c in range(1, Cout):
            sl = ys3[:, :, c * W:(c + 1) * W]
            avg = avg + sl
            mxm = jnp.maximum(mxm, sl)
        cpad_ref[:, 3:3 + H, 0:W] = avg * (1.0 / Cout)
        cpad_ref[:, 3:3 + H, W:2 * W] = mxm

        # 7x7 conv: dx taps + W padding + broadcast back to Cout*W lanes folded into banded
        # (2W, Cout*W) matrices -> 7 accumulated MXU dots.
        att = jnp.zeros((BB * H, CWo), jnp.float32)
        for dy in range(7):
            win = cpad_ref[:, dy:dy + H, :].reshape(BB * H, 2 * W).astype(mxu_dt)
            att = att + jnp.dot(win, sband_ref[dy],
                                preferred_element_type=jnp.float32)
        att = jax.nn.sigmoid(att + bsp_ref[0, 0]).reshape(BB, H, CWo)

        out_ref[...] = (ys3 * att).astype(out_ref.dtype)                 # lane-dense store

    return kernel


# ----------------------------------------------------------------------------
# Host-side helpers (tiny, data-independent weight transforms done once per call)
# ----------------------------------------------------------------------------
def _pick_block_batch(n, max_bb=8, min_grid_steps=2):
    """Largest divisor BB of n with BB <= max_bb and n // BB >= min_grid_steps so the grid
    is deep enough for DMA/compute overlap and v7x megacore sharding."""
    best = 1
    for d in range(1, n + 1):
        if n % d == 0 and d <= max_bb and (n // d) >= min_grid_steps:
            best = d
    return best


def _conv_band_matrices(w_conv, W):
    """cband[dy, ci*W + w_in, co*W + w_out] = w_conv[dy, w_in - w_out + 1, ci, co]
    when |w_in - w_out| <= 1, else 0 (also encodes the W zero padding)."""
    Cin, Cout = w_conv.shape[2], w_conv.shape[3]
    wi = jnp.arange(W)[:, None]
    wo = jnp.arange(W)[None, :]
    dx = wi - wo + 1
    valid = (dx >= 0) & (dx < 3)
    t = jnp.where(valid[None, :, :, None, None],
                  w_conv[:, jnp.clip(dx, 0, 2)], 0.0)        # (3, W_in, W_out, Cin, Cout)
    t = jnp.transpose(t, (0, 3, 1, 4, 2))                     # (3, Cin, W_in, Cout, W_out)
    return t.reshape(3, Cin * W, Cout * W).astype(jnp.float32)


def _spatial_band_matrices(w_sp, W, Cout):
    """sband[dy, c*W + w_in, co*W + w_out] = w_sp[dy, w_in - w_out + 3, c] for
    |w_in - w_out| <= 3 (c = 0: mean map, c = 1: max map); columns are replicated over co
    so the attention map lands already broadcast to the Cout*W lane layout."""
    wi = jnp.arange(W)[:, None]
    wo = jnp.arange(W)[None, :]
    dx = wi - wo + 3
    valid = (dx >= 0) & (dx < 7)
    tap = jnp.where(valid[None, :, :, None],
                    w_sp[:, jnp.clip(dx, 0, 6), :], 0.0)      # (7, W_in, W_out, 2)
    t = jnp.transpose(tap, (0, 3, 1, 2)).reshape(7, 2 * W, W)  # rows: [mean | max]
    t = jnp.broadcast_to(t[:, :, None, :], (7, 2 * W, Cout, W))
    return t.reshape(7, 2 * W, Cout * W).astype(jnp.float32)


# ----------------------------------------------------------------------------
# Parameter init (deterministic, synthetic)
# ----------------------------------------------------------------------------
def init_params(key, in_channels, channels, se_rate=0.5):
    hidden = max(1, int(channels * se_rate))
    ks = jax.random.split(key, 8)
    p = {}
    p["w_conv"] = jax.random.normal(ks[0], (3, 3, in_channels, channels), jnp.float32) * 0.1
    p["b_conv"] = jax.random.normal(ks[1], (1, channels), jnp.float32) * 0.1
    p["w_fc1"] = jax.random.normal(ks[2], (channels, hidden), jnp.float32) * 0.1
    p["b_fc1"] = jax.random.normal(ks[3], (1, hidden), jnp.float32) * 0.1
    p["w_fc2"] = jax.random.normal(ks[4], (hidden, channels), jnp.float32) * 0.1
    p["b_fc2"] = jax.random.normal(ks[5], (1, channels), jnp.float32) * 0.1
    p["w_sp"] = jax.random.normal(ks[6], (7, 7, 2), jnp.float32) * 0.1
    p["b_sp"] = jax.random.normal(ks[7], (1, 1), jnp.float32) * 0.1
    return p


# ----------------------------------------------------------------------------
# Wrapper: NCHW in -> NCHW out, one fused pallas_call (grid over batch blocks)
# ----------------------------------------------------------------------------
def cbam_block_forward(x_nchw, params, *, max_block_batch=8, min_grid_steps=2,
                       mxu_dtype=jnp.float32):
    """mxu_dtype=jnp.bfloat16 trades a little accuracy for ~3x MXU throughput on v6e/v7x
    (relax the test tolerance accordingly); keep f32 on v5e."""
    N, Cin, H, W = x_nchw.shape
    Cout = params["w_conv"].shape[-1]
    hidden = params["w_fc1"].shape[-1]
    CWi, CWo = Cin * W, Cout * W

    BB = _pick_block_batch(N, max_block_batch, min_grid_steps)

    # NCHW -> lane-dense (N, H, Cin*W); lane index = ci*W + w.
    x2 = jnp.transpose(x_nchw, (0, 2, 1, 3)).reshape(N, H, CWi).astype(jnp.float32)

    cband = _conv_band_matrices(params["w_conv"], W).astype(mxu_dtype)
    sband = _spatial_band_matrices(params["w_sp"], W, Cout).astype(mxu_dtype)
    bconv = jnp.repeat(params["b_conv"], W, axis=1)                   # (1, Cout*W)
    w1f = jnp.repeat(params["w_fc1"], W, axis=0) / float(H * W)       # (Cout*W, hidden)
    w2e = jnp.repeat(params["w_fc2"], W, axis=1)                      # (hidden, Cout*W)
    b2e = jnp.repeat(params["b_fc2"], W, axis=1)                      # (1, Cout*W)

    kernel = _make_cbam_kernel(W, Cin, Cout)
    const2 = lambda n: (0, 0)
    const3 = lambda n: (0, 0, 0)

    out2 = pl.pallas_call(
        kernel,
        out_shape=jax.ShapeDtypeStruct((N, H, CWo), jnp.float32),
        grid=(N // BB,),
        in_specs=[
            pl.BlockSpec((BB, H, CWi), lambda n: (n, 0, 0)),
            # TODO(synk): on v7x, single-buffer these constant inputs
            # (pipeline_mode=pl.Buffered(1)) to halve their VMEM footprint.
            pl.BlockSpec((3, CWi, CWo), const3),      # conv band matrices
            pl.BlockSpec((1, CWo), const2),           # conv bias (pre-tiled to lanes)
            pl.BlockSpec((CWo, hidden), const2),      # FC1 (pool folded in)
            pl.BlockSpec((1, hidden), const2),        # FC1 bias
            pl.BlockSpec((hidden, CWo), const2),      # FC2 (broadcast folded in)
            pl.BlockSpec((1, CWo), const2),           # FC2 bias (pre-tiled)
            pl.BlockSpec((7, 2 * W, CWo), const3),    # spatial band matrices
            pl.BlockSpec(memory_space=pltpu.MemorySpace.SMEM),   # b_sp scalar in SMEM
        ],
        out_specs=pl.BlockSpec((BB, H, CWo), lambda n: (n, 0, 0)),
        scratch_shapes=[
            pltpu.VMEM((BB, H + 2, CWi), jnp.float32),     # 3x3 conv H-halo buffer
            pltpu.VMEM((BB, H + 6, 2 * W), jnp.float32),   # [mean | max] maps, H-halo
        ],
        compiler_params=pltpu.CompilerParams(
            dimension_semantics=("parallel",),             # batch blocks -> v7x megacore
            vmem_limit_bytes=64 * 1024 * 1024),            # explicit budget (v7x: 64 MiB)
    )(x2, cband, bconv, w1f, params["b_fc1"], w2e, b2e, sband, params["b_sp"])

    out = out2.reshape(N, H, Cout, W)
    return jnp.transpose(out, (0, 2, 1, 3))                # back to NCHW


# ----------------------------------------------------------------------------
# Pure-JAX reference (same math, XLA) for a correctness check
# ----------------------------------------------------------------------------
def reference(x_nchw, p):
    x = jnp.transpose(x_nchw, (0, 2, 3, 1)).astype(jnp.float32)
    N, H, W, Cin = x.shape
    Cout = p["w_conv"].shape[-1]
    xpad = jnp.pad(x, ((0, 0), (1, 1), (1, 1), (0, 0)))
    conv = jnp.zeros((N, H, W, Cout), jnp.float32) + p["b_conv"]
    for dy in range(3):
        for dx in range(3):
            conv = conv + jnp.einsum("nhwc,co->nhwo",
                                     xpad[:, dy:dy + H, dx:dx + W, :],
                                     p["w_conv"][dy, dx])
    y = jnp.maximum(conv, 0.0)
    s = y.mean(axis=(1, 2))                                           # (N, Cout)
    h = jnp.maximum(s @ p["w_fc1"] + p["b_fc1"], 0.0)
    a = jax.nn.sigmoid(h @ p["w_fc2"] + p["b_fc2"])
    ys = y * a[:, None, None, :]
    maps = jnp.concatenate([ys.mean(-1, keepdims=True), ys.max(-1, keepdims=True)], axis=-1)
    mpad = jnp.pad(maps, ((0, 0), (3, 3), (3, 3), (0, 0)))
    att = p["b_sp"][0, 0]
    for dy in range(7):
        for dx in range(7):
            for c in range(2):
                att = att + mpad[:, dy:dy + H, dx:dx + W, c] * p["w_sp"][dy, dx, c]
    att = jax.nn.sigmoid(att)
    return jnp.transpose(ys * att[..., None], (0, 3, 1, 2))


if __name__ == "__main__":
    # Keep all matmuls (kernel MXU dots and the XLA reference) in accurate f32.
    jax.config.update("jax_default_matmul_precision", "highest")

    key = jax.random.PRNGKey(0)
    kx, kp = jax.random.split(key)

    N, Cin, H, W = 2, 4, 16, 16
    channels = 8
    se_rate = 0.5

    x = jax.random.normal(kx, (N, Cin, H, W), jnp.float32)
    params = init_params(kp, Cin, channels, se_rate)

    out = jax.block_until_ready(cbam_block_forward(x, params))
    assert out.shape == (N, channels, H, W)

    ref = jax.block_until_ready(reference(x, params))
    np.testing.assert_allclose(np.asarray(out), np.asarray(ref), rtol=5e-3, atol=5e-4)

    print("KERNEL_OK")
</pallas_src>

<mosaic_0001>
module attributes {stable_mosaic.version = 11 : i64} {
  func.func @kernel(%arg0: i32, %arg1: memref<1x16x64xf32, #tpu.memory_space<vmem>>, %arg2: memref<3x64x128xf32, #tpu.memory_space<vmem>>, %arg3: memref<1x128xf32, #tpu.memory_space<vmem>>, %arg4: memref<128x4xf32, #tpu.memory_space<vmem>>, %arg5: memref<1x4xf32, #tpu.memory_space<vmem>>, %arg6: memref<4x128xf32, #tpu.memory_space<vmem>>, %arg7: memref<1x128xf32, #tpu.memory_space<vmem>>, %arg8: memref<7x32x128xf32, #tpu.memory_space<vmem>>, %arg9: memref<1x1xf32, #tpu.memory_space<smem>>, %arg10: memref<1x16x128xf32, #tpu.memory_space<vmem>>, %arg11: memref<1x18x64xf32, #tpu.memory_space<vmem>>, %arg12: memref<1x22x32xf32, #tpu.memory_space<vmem>>) attributes {dimension_semantics = [#tpu.dimension_semantics<parallel>], iteration_bounds = array<i64: 2>, scalar_prefetch = 0 : i64, scratch_operands = 2 : i64, tpu.core_type = #tpu.core_type<tc>, window_params = [{transform_indices = @transform_0, window_bounds = array<i64: 1, 16, 64>}, {pipeline_mode = #tpu.pipeline_mode<synchronous>, transform_indices = @transform_1, window_bounds = array<i64: 3, 64, 128>}, {pipeline_mode = #tpu.pipeline_mode<synchronous>, transform_indices = @transform_2, window_bounds = array<i64: 1, 128>}, {pipeline_mode = #tpu.pipeline_mode<synchronous>, transform_indices = @transform_3, window_bounds = array<i64: 128, 4>}, {pipeline_mode = #tpu.pipeline_mode<synchronous>, transform_indices = @transform_4, window_bounds = array<i64: 1, 4>}, {pipeline_mode = #tpu.pipeline_mode<synchronous>, transform_indices = @transform_5, window_bounds = array<i64: 4, 128>}, {pipeline_mode = #tpu.pipeline_mode<synchronous>, transform_indices = @transform_6, window_bounds = array<i64: 1, 128>}, {pipeline_mode = #tpu.pipeline_mode<synchronous>, transform_indices = @transform_7, window_bounds = array<i64: 7, 32, 128>}, {transform_indices = @transform_8, window_bounds = array<i64: 1, 1>}, {transform_indices = @transform_9, window_bounds = array<i64: 1, 16, 128>}]} {
    %cst = arith.constant 0.000000e+00 : f32
    %0 = vector.broadcast %cst : f32 to vector<1x1x64xf32>
    %c0 = arith.constant 0 : index
    %c0_0 = arith.constant 0 : index
    %c0_1 = arith.constant 0 : index
    %1 = vector.load %arg11[%c0, %c0_0, %c0_1] : memref<1x18x64xf32, #tpu.memory_space<vmem>>, vector<1x1x64xf32>
    tpu.vector_store %arg11[%c0, %c0_0, %c0_1], %0 {strides = array<i32>} : memref<1x18x64xf32, #tpu.memory_space<vmem>>, vector<1x1x64xf32>,
    %cst_2 = arith.constant 0.000000e+00 : f32
    %2 = vector.broadcast %cst_2 : f32 to vector<1x1x64xf32>
    %c0_3 = arith.constant 0 : index
    %c17 = arith.constant 17 : index
    %c0_4 = arith.constant 0 : index
    %3 = vector.load %arg11[%c0_3, %c17, %c0_4] : memref<1x18x64xf32, #tpu.memory_space<vmem>>, vector<1x1x64xf32>
    tpu.vector_store %arg11[%c0_3, %c17, %c0_4], %2 {strides = array<i32>} : memref<1x18x64xf32, #tpu.memory_space<vmem>>, vector<1x1x64xf32>,
    %cst_5 = arith.constant 0.000000e+00 : f32
    %4 = vector.broadcast %cst_5 : f32 to vector<1x3x32xf32>
    %c0_6 = arith.constant 0 : index
    %c0_7 = arith.constant 0 : index
    %c0_8 = arith.constant 0 : index
    %5 = vector.load %arg12[%c0_6, %c0_7, %c0_8] : memref<1x22x32xf32, #tpu.memory_space<vmem>>, vector<1x3x32xf32>
    tpu.vector_store %arg12[%c0_6, %c0_7, %c0_8], %4 {strides = array<i32>} : memref<1x22x32xf32, #tpu.memory_space<vmem>>, vector<1x3x32xf32>,
    %cst_9 = arith.constant 0.000000e+00 : f32
    %6 = vector.broadcast %cst_9 : f32 to vector<1x3x32xf32>
    %c0_10 = arith.constant 0 : index
    %c19 = arith.constant 19 : index
    %c0_11 = arith.constant 0 : index
    %7 = vector.load %arg12[%c0_10, %c19, %c0_11] : memref<1x22x32xf32, #tpu.memory_space<vmem>>, vector<1x3x32xf32>
    tpu.vector_store %arg12[%c0_10, %c19, %c0_11], %6 {strides = array<i32>} : memref<1x22x32xf32, #tpu.memory_space<vmem>>, vector<1x3x32xf32>,
    %c0_12 = arith.constant 0 : index
    %c0_13 = arith.constant 0 : index
    %c0_14 = arith.constant 0 : index
    %8 = vector.load %arg1[%c0_12, %c0_13, %c0_14] : memref<1x16x64xf32, #tpu.memory_space<vmem>>, vector<1x16x64xf32>
    %c0_15 = arith.constant 0 : index
    %c1 = arith.constant 1 : index
    %c0_16 = arith.constant 0 : index
    %9 = vector.load %arg11[%c0_15, %c1, %c0_16] : memref<1x18x64xf32, #tpu.memory_space<vmem>>, vector<1x16x64xf32>
    tpu.vector_store %arg11[%c0_15, %c1, %c0_16], %8 {strides = array<i32>} : memref<1x18x64xf32, #tpu.memory_space<vmem>>, vector<1x16x64xf32>,
    %cst_17 = arith.constant 0.000000e+00 : f32
    %10 = vector.broadcast %cst_17 : f32 to vector<16x128xf32>
    %c0_18 = arith.constant 0 : index
    %c0_19 = arith.constant 0 : index
    %c0_20 = arith.constant 0 : index
    %11 = vector.load %arg11[%c0_18, %c0_19, %c0_20] : memref<1x18x64xf32, #tpu.memory_space<vmem>>, vector<1x16x64xf32>
    %12 = vector.shape_cast %11 : vector<1x16x64xf32> to vector<16x64xf32>
    %c0_21 = arith.constant 0 : index
    %c0_22 = arith.constant 0 : index
    %c0_23 = arith.constant 0 : index
    %13 = vector.load %arg2[%c0_21, %c0_22, %c0_23] : memref<3x64x128xf32, #tpu.memory_space<vmem>>, vector<1x64x128xf32>
    %14 = vector.shape_cast %13 : vector<1x64x128xf32> to vector<64x128xf32>
    %cst_24 = arith.constant dense<0.000000e+00> : vector<16x128xf32>
    %15 = tpu.matmul %12, %14, %cst_24 {dimension_numbers = #tpu.dot_dimension_numbers<[1], [0], [0], [1], [0, 0, 1, 1], [], []>, precision = #tpu.contract_precision<fp32>} : vector<16x64xf32>, vector<64x128xf32>, vector<16x128xf32> -> vector<16x128xf32>
    %16 = arith.addf %10, %15 : vector<16x128xf32>
    %c0_25 = arith.constant 0 : index
    %c1_26 = arith.constant 1 : index
    %c0_27 = arith.constant 0 : index
    %17 = vector.load %arg11[%c0_25, %c1_26, %c0_27] : memref<1x18x64xf32, #tpu.memory_space<vmem>>, vector<1x16x64xf32>
    %18 = vector.shape_cast %17 : vector<1x16x64xf32> to vector<16x64xf32>
    %c1_28 = arith.constant 1 : index
    %c0_29 = arith.constant 0 : index
    %c0_30 = arith.constant 0 : index
    %19 = vector.load %arg2[%c1_28, %c0_29, %c0_30] : memref<3x64x128xf32, #tpu.memory_space<vmem>>, vector<1x64x128xf32>
    %20 = vector.shape_cast %19 : vector<1x64x128xf32> to vector<64x128xf32>
    %cst_31 = arith.constant dense<0.000000e+00> : vector<16x128xf32>
    %21 = tpu.matmul %18, %20, %cst_31 {dimension_numbers = #tpu.dot_dimension_numbers<[1], [0], [0], [1], [0, 0, 1, 1], [], []>, precision = #tpu.contract_precision<fp32>} : vector<16x64xf32>, vector<64x128xf32>, vector<16x128xf32> -> vector<16x128xf32>
    %22 = arith.addf %16, %21 : vector<16x128xf32>
    %c0_32 = arith.constant 0 : index
    %c2 = arith.constant 2 : index
    %c0_33 = arith.constant 0 : index
    %23 = vector.load %arg11[%c0_32, %c2, %c0_33] : memref<1x18x64xf32, #tpu.memory_space<vmem>>, vector<1x16x64xf32>
    %24 = vector.shape_cast %23 : vector<1x16x64xf32> to vector<16x64xf32>
    %c2_34 = arith.constant 2 : index
    %c0_35 = arith.constant 0 : index
    %c0_36 = arith.constant 0 : index
    %25 = vector.load %arg2[%c2_34, %c0_35, %c0_36] : memref<3x64x128xf32, #tpu.memory_space<vmem>>, vector<1x64x128xf32>
    %26 = vector.shape_cast %25 : vector<1x64x128xf32> to vector<64x128xf32>
    %cst_37 = arith.constant dense<0.000000e+00> : vector<16x128xf32>
    %27 = tpu.matmul %24, %26, %cst_37 {dimension_numbers = #tpu.dot_dimension_numbers<[1], [0], [0], [1], [0, 0, 1, 1], [], []>, precision = #tpu.contract_precision<fp32>} : vector<16x64xf32>, vector<64x128xf32>, vector<16x128xf32> -> vector<16x128xf32>
    %28 = arith.addf %22, %27 : vector<16x128xf32>
    %c0_38 = arith.constant 0 : index
    %c0_39 = arith.constant 0 : index
    %29 = vector.load %arg3[%c0_38, %c0_39] : memref<1x128xf32, #tpu.memory_space<vmem>>, vector<1x128xf32>
    %30 = vector.broadcast %29 : vector<1x128xf32> to vector<16x128xf32>
    %31 = arith.addf %28, %30 : vector<16x128xf32>
    %cst_40 = arith.constant 0.000000e+00 : f32
    %32 = vector.broadcast %cst_40 : f32 to vector<16x128xf32>
    %33 = arith.maximumf %31, %32 : vector<16x128xf32>
    %34 = vector.shape_cast %33 : vector<16x128xf32> to vector<1x16x128xf32>
    %cst_41 = arith.constant dense<0.000000e+00> : vector<1x128xf32>
    %35 = vector.multi_reduction <add>, %34, %cst_41 [1] : vector<1x16x128xf32> to vector<1x128xf32>
    %c0_42 = arith.constant 0 : index
    %c0_43 = arith.constant 0 : index
    %36 = vector.load %arg4[%c0_42, %c0_43] : memref<128x4xf32, #tpu.memory_space<vmem>>, vector<128x4xf32>
    %cst_44 = arith.constant dense<0.000000e+00> : vector<1x4xf32>
    %37 = tpu.matmul %35, %36, %cst_44 {dimension_numbers = #tpu.dot_dimension_numbers<[1], [0], [0], [1], [0, 0, 1, 1], [], []>, precision = #tpu.contract_precision<fp32>} : vector<1x128xf32>, vector<128x4xf32>, vector<1x4xf32> -> vector<1x4xf32>
    %c0_45 = arith.constant 0 : index
    %c0_46 = arith.constant 0 : index
    %38 = vector.load %arg5[%c0_45, %c0_46] : memref<1x4xf32, #tpu.memory_space<vmem>>, vector<1x4xf32>
    %39 = arith.addf %37, %38 : vector<1x4xf32>
    %cst_47 = arith.constant 0.000000e+00 : f32
    %40 = vector.broadcast %cst_47 : f32 to vector<1x4xf32>
    %41 = arith.maximumf %39, %40 : vector<1x4xf32>
    %c0_48 = arith.constant 0 : index
    %c0_49 = arith.constant 0 : index
    %42 = vector.load %arg6[%c0_48, %c0_49] : memref<4x128xf32, #tpu.memory_space<vmem>>, vector<4x128xf32>
    %cst_50 = arith.constant dense<0.000000e+00> : vector<1x128xf32>
    %43 = tpu.matmul %41, %42, %cst_50 {dimension_numbers = #tpu.dot_dimension_numbers<[1], [0], [0], [1], [0, 0, 1, 1], [], []>, precision = #tpu.contract_precision<fp32>} : vector<1x4xf32>, vector<4x128xf32>, vector<1x128xf32> -> vector<1x128xf32>
    %c0_51 = arith.constant 0 : index
    %c0_52 = arith.constant 0 : index
    %44 = vector.load %arg7[%c0_51, %c0_52] : memref<1x128xf32, #tpu.memory_space<vmem>>, vector<1x128xf32>
    %45 = arith.addf %43, %44 : vector<1x128xf32>
    %46 = arith.negf %45 : vector<1x128xf32>
    %47 = math.exp %46 : vector<1x128xf32>
    %cst_53 = arith.constant 1.000000e+00 : f32
    %48 = vector.broadcast %cst_53 : f32 to vector<1x128xf32>
    %49 = arith.addf %48, %47 : vector<1x128xf32>
    %50 = arith.divf %48, %49 : vector<1x128xf32>
    %51 = vector.shape_cast %50 : vector<1x128xf32> to vector<1x1x128xf32>
    %52 = vector.broadcast %51 : vector<1x1x128xf32> to vector<1x16x128xf32>
    %53 = arith.mulf %34, %52 : vector<1x16x128xf32>
    %54 = vector.extract_strided_slice %53 {offsets = [0, 0, 0], sizes = [1, 16, 16], strides = [1, 1, 1]} : vector<1x16x128xf32> to vector<1x16x16xf32>
    %55 = vector.extract_strided_slice %53 {offsets = [0, 0, 0], sizes = [1, 16, 16], strides = [1, 1, 1]} : vector<1x16x128xf32> to vector<1x16x16xf32>
    %56 = vector.extract_strided_slice %53 {offsets = [0, 0, 16], sizes = [1, 16, 16], strides = [1, 1, 1]} : vector<1x16x128xf32> to vector<1x16x16xf32>
    %57 = arith.addf %54, %56 : vector<1x16x16xf32>
    %58 = arith.maximumf %55, %56 : vector<1x16x16xf32>
    %59 = vector.extract_strided_slice %53 {offsets = [0, 0, 32], sizes = [1, 16, 16], strides = [1, 1, 1]} : vector<1x16x128xf32> to vector<1x16x16xf32>
    %60 = arith.addf %57, %59 : vector<1x16x16xf32>
    %61 = arith.maximumf %58, %59 : vector<1x16x16xf32>
    %62 = vector.extract_strided_slice %53 {offsets = [0, 0, 48], sizes = [1, 16, 16], strides = [1, 1, 1]} : vector<1x16x128xf32> to vector<1x16x16xf32>
    %63 = arith.addf %60, %62 : vector<1x16x16xf32>
    %64 = arith.maximumf %61, %62 : vector<1x16x16xf32>
    %65 = vector.extract_strided_slice %53 {offsets = [0, 0, 64], sizes = [1, 16, 16], strides = [1, 1, 1]} : vector<1x16x128xf32> to vector<1x16x16xf32>
    %66 = arith.addf %63, %65 : vector<1x16x16xf32>
    %67 = arith.maximumf %64, %65 : vector<1x16x16xf32>
    %68 = vector.extract_strided_slice %53 {offsets = [0, 0, 80], sizes = [1, 16, 16], strides = [1, 1, 1]} : vector<1x16x128xf32> to vector<1x16x16xf32>
    %69 = arith.addf %66, %68 : vector<1x16x16xf32>
    %70 = arith.maximumf %67, %68 : vector<1x16x16xf32>
    %71 = vector.extract_strided_slice %53 {offsets = [0, 0, 96], sizes = [1, 16, 16], strides = [1, 1, 1]} : vector<1x16x128xf32> to vector<1x16x16xf32>
    %72 = arith.addf %69, %71 : vector<1x16x16xf32>
    %73 = arith.maximumf %70, %71 : vector<1x16x16xf32>
    %74 = vector.extract_strided_slice %53 {offsets = [0, 0, 112], sizes = [1, 16, 16], strides = [1, 1, 1]} : vector<1x16x128xf32> to vector<1x16x16xf32>
    %75 = arith.addf %72, %74 : vector<1x16x16xf32>
    %76 = arith.maximumf %73, %74 : vector<1x16x16xf32>
    %cst_54 = arith.constant 1.250000e-01 : f32
    %77 = vector.broadcast %cst_54 : f32 to vector<1x16x16xf32>
    %78 = arith.mulf %75, %77 : vector<1x16x16xf32>
    %c0_55 = arith.constant 0 : index
    %c3 = arith.constant 3 : index
    %c0_56 = arith.constant 0 : index
    %79 = vector.load %arg12[%c0_55, %c3, %c0_56] : memref<1x22x32xf32, #tpu.memory_space<vmem>>, vector<1x16x16xf32>
    tpu.vector_store %arg12[%c0_55, %c3, %c0_56], %78 {strides = array<i32>} : memref<1x22x32xf32, #tpu.memory_space<vmem>>, vector<1x16x16xf32>,
    %c0_57 = arith.constant 0 : index
    %c3_58 = arith.constant 3 : index
    %c16 = arith.constant 16 : index
    %80 = vector.load %arg12[%c0_57, %c3_58, %c16] : memref<1x22x32xf32, #tpu.memory_space<vmem>>, vector<1x16x16xf32>
    tpu.vector_store %arg12[%c0_57, %c3_58, %c16], %76 {strides = array<i32>} : memref<1x22x32xf32, #tpu.memory_space<vmem>>, vector<1x16x16xf32>,
    %cst_59 = arith.constant 0.000000e+00 : f32
    %81 = vector.broadcast %cst_59 : f32 to vector<16x128xf32>
    %c0_60 = arith.constant 0 : index
    %c0_61 = arith.constant 0 : index
    %c0_62 = arith.constant 0 : index
    %82 = vector.load %arg12[%c0_60, %c0_61, %c0_62] : memref<1x22x32xf32, #tpu.memory_space<vmem>>, vector<1x16x32xf32>
    %83 = vector.shape_cast %82 : vector<1x16x32xf32> to vector<16x32xf32>
    %c0_63 = arith.constant 0 : index
    %c0_64 = arith.constant 0 : index
    %c0_65 = arith.constant 0 : index
    %84 = vector.load %arg8[%c0_63, %c0_64, %c0_65] : memref<7x32x128xf32, #tpu.memory_space<vmem>>, vector<1x32x128xf32>
    %85 = vector.shape_cast %84 : vector<1x32x128xf32> to vector<32x128xf32>
    %cst_66 = arith.constant dense<0.000000e+00> : vector<16x128xf32>
    %86 = tpu.matmul %83, %85, %cst_66 {dimension_numbers = #tpu.dot_dimension_numbers<[1], [0], [0], [1], [0, 0, 1, 1], [], []>, precision = #tpu.contract_precision<fp32>} : vector<16x32xf32>, vector<32x128xf32>, vector<16x128xf32> -> vector<16x128xf32>
    %87 = arith.addf %81, %86 : vector<16x128xf32>
    %c0_67 = arith.constant 0 : index
    %c1_68 = arith.constant 1 : index
    %c0_69 = arith.constant 0 : index
    %88 = vector.load %arg12[%c0_67, %c1_68, %c0_69] : memref<1x22x32xf32, #tpu.memory_space<vmem>>, vector<1x16x32xf32>
    %89 = vector.shape_cast %88 : vector<1x16x32xf32> to vector<16x32xf32>
    %c1_70 = arith.constant 1 : index
    %c0_71 = arith.constant 0 : index
    %c0_72 = arith.constant 0 : index
    %90 = vector.load %arg8[%c1_70, %c0_71, %c0_72] : memref<7x32x128xf32, #tpu.memory_space<vmem>>, vector<1x32x128xf32>
    %91 = vector.shape_cast %90 : vector<1x32x128xf32> to vector<32x128xf32>
    %cst_73 = arith.constant dense<0.000000e+00> : vector<16x128xf32>
    %92 = tpu.matmul %89, %91, %cst_73 {dimension_numbers = #tpu.dot_dimension_numbers<[1], [0], [0], [1], [0, 0, 1, 1], [], []>, precision = #tpu.contract_precision<fp32>} : vector<16x32xf32>, vector<32x128xf32>, vector<16x128xf32> -> vector<16x128xf32>
    %93 = arith.addf %87, %92 : vector<16x128xf32>
    %c0_74 = arith.constant 0 : index
    %c2_75 = arith.constant 2 : index
    %c0_76 = arith.constant 0 : index
    %94 = vector.load %arg12[%c0_74, %c2_75, %c0_76] : memref<1x22x32xf32, #tpu.memory_space<vmem>>, vector<1x16x32xf32>
    %95 = vector.shape_cast %94 : vector<1x16x32xf32> to vector<16x32xf32>
    %c2_77 = arith.constant 2 : index
    %c0_78 = arith.constant 0 : index
    %c0_79 = arith.constant 0 : index
    %96 = vector.load %arg8[%c2_77, %c0_78, %c0_79] : memref<7x32x128xf32, #tpu.memory_space<vmem>>, vector<1x32x128xf32>
    %97 = vector.shape_cast %96 : vector<1x32x128xf32> to vector<32x128xf32>
    %cst_80 = arith.constant dense<0.000000e+00> : vector<16x128xf32>
    %98 = tpu.matmul %95, %97, %cst_80 {dimension_numbers = #tpu.dot_dimension_numbers<[1], [0], [0], [1], [0, 0, 1, 1], [], []>, precision = #tpu.contract_precision<fp32>} : vector<16x32xf32>, vector<32x128xf32>, vector<16x128xf32> -> vector<16x128xf32>
    %99 = arith.addf %93, %98 : vector<16x128xf32>
    %c0_81 = arith.constant 0 : index
    %c3_82 = arith.constant 3 : index
    %c0_83 = arith.constant 0 : index
    %100 = vector.load %arg12[%c0_81, %c3_82, %c0_83] : memref<1x22x32xf32, #tpu.memory_space<vmem>>, vector<1x16x32xf32>
    %101 = vector.shape_cast %100 : vector<1x16x32xf32> to vector<16x32xf32>
    %c3_84 = arith.constant 3 : index
    %c0_85 = arith.constant 0 : index
    %c0_86 = arith.constant 0 : index
    %102 = vector.load %arg8[%c3_84, %c0_85, %c0_86] : memref<7x32x128xf32, #tpu.memory_space<vmem>>, vector<1x32x128xf32>
    %103 = vector.shape_cast %102 : vector<1x32x128xf32> to vector<32x128xf32>
    %cst_87 = arith.constant dense<0.000000e+00> : vector<16x128xf32>
    %104 = tpu.matmul %101, %103, %cst_87 {dimension_numbers = #tpu.dot_dimension_numbers<[1], [0], [0], [1], [0, 0, 1, 1], [], []>, precision = #tpu.contract_precision<fp32>} : vector<16x32xf32>, vector<32x128xf32>, vector<16x128xf32> -> vector<16x128xf32>
    %105 = arith.addf %99, %104 : vector<16x128xf32>
    %c0_88 = arith.constant 0 : index
    %c4 = arith.constant 4 : index
    %c0_89 = arith.constant 0 : index
    %106 = vector.load %arg12[%c0_88, %c4, %c0_89] : memref<1x22x32xf32, #tpu.memory_space<vmem>>, vector<1x16x32xf32>
    %107 = vector.shape_cast %106 : vector<1x16x32xf32> to vector<16x32xf32>
    %c4_90 = arith.constant 4 : index
    %c0_91 = arith.constant 0 : index
    %c0_92 = arith.constant 0 : index
    %108 = vector.load %arg8[%c4_90, %c0_91, %c0_92] : memref<7x32x128xf32, #tpu.memory_space<vmem>>, vector<1x32x128xf32>
    %109 = vector.shape_cast %108 : vector<1x32x128xf32> to vector<32x128xf32>
    %cst_93 = arith.constant dense<0.000000e+00> : vector<16x128xf32>
    %110 = tpu.matmul %107, %109, %cst_93 {dimension_numbers = #tpu.dot_dimension_numbers<[1], [0], [0], [1], [0, 0, 1, 1], [], []>, precision = #tpu.contract_precision<fp32>} : vector<16x32xf32>, vector<32x128xf32>, vector<16x128xf32> -> vector<16x128xf32>
    %111 = arith.addf %105, %110 : vector<16x128xf32>
    %c0_94 = arith.constant 0 : index
    %c5 = arith.constant 5 : index
    %c0_95 = arith.constant 0 : index
    %112 = vector.load %arg12[%c0_94, %c5, %c0_95] : memref<1x22x32xf32, #tpu.memory_space<vmem>>, vector<1x16x32xf32>
    %113 = vector.shape_cast %112 : vector<1x16x32xf32> to vector<16x32xf32>
    %c5_96 = arith.constant 5 : index
    %c0_97 = arith.constant 0 : index
    %c0_98 = arith.constant 0 : index
    %114 = vector.load %arg8[%c5_96, %c0_97, %c0_98] : memref<7x32x128xf32, #tpu.memory_space<vmem>>, vector<1x32x128xf32>
    %115 = vector.shape_cast %114 : vector<1x32x128xf32> to vector<32x128xf32>
    %cst_99 = arith.constant dense<0.000000e+00> : vector<16x128xf32>
    %116 = tpu.matmul %113, %115, %cst_99 {dimension_numbers = #tpu.dot_dimension_numbers<[1], [0], [0], [1], [0, 0, 1, 1], [], []>, precision = #tpu.contract_precision<fp32>} : vector<16x32xf32>, vector<32x128xf32>, vector<16x128xf32> -> vector<16x128xf32>
    %117 = arith.addf %111, %116 : vector<16x128xf32>
    %c0_100 = arith.constant 0 : index
    %c6 = arith.constant 6 : index
    %c0_101 = arith.constant 0 : index
    %118 = vector.load %arg12[%c0_100, %c6, %c0_101] : memref<1x22x32xf32, #tpu.memory_space<vmem>>, vector<1x16x32xf32>
    %119 = vector.shape_cast %118 : vector<1x16x32xf32> to vector<16x32xf32>
    %c6_102 = arith.constant 6 : index
    %c0_103 = arith.constant 0 : index
    %c0_104 = arith.constant 0 : index
    %120 = vector.load %arg8[%c6_102, %c0_103, %c0_104] : memref<7x32x128xf32, #tpu.memory_space<vmem>>, vector<1x32x128xf32>
    %121 = vector.shape_cast %120 : vector<1x32x128xf32> to vector<32x128xf32>
    %cst_105 = arith.constant dense<0.000000e+00> : vector<16x128xf32>
    %122 = tpu.matmul %119, %121, %cst_105 {dimension_numbers = #tpu.dot_dimension_numbers<[1], [0], [0], [1], [0, 0, 1, 1], [], []>, precision = #tpu.contract_precision<fp32>} : vector<16x32xf32>, vector<32x128xf32>, vector<16x128xf32> -> vector<16x128xf32>
    %123 = arith.addf %117, %122 : vector<16x128xf32>
    %c0_106 = arith.constant 0 : index
    %c0_107 = arith.constant 0 : index
    %124 = memref.load %arg9[%c0_106, %c0_107] : memref<1x1xf32, #tpu.memory_space<smem>>
    %125 = vector.broadcast %124 : f32 to vector<16x128xf32>
    %126 = arith.addf %123, %125 : vector<16x128xf32>
    %127 = arith.negf %126 : vector<16x128xf32>
    %128 = math.exp %127 : vector<16x128xf32>
    %cst_108 = arith.constant 1.000000e+00 : f32
    %129 = vector.broadcast %cst_108 : f32 to vector<16x128xf32>
    %130 = arith.addf %129, %128 : vector<16x128xf32>
    %131 = arith.divf %129, %130 : vector<16x128xf32>
    %132 = vector.shape_cast %131 : vector<16x128xf32> to vector<1x16x128xf32>
    %133 = arith.mulf %53, %132 : vector<1x16x128xf32>
    %c0_109 = arith.constant 0 : index
    %c0_110 = arith.constant 0 : index
    %c0_111 = arith.constant 0 : index
    %134 = vector.load %arg10[%c0_109, %c0_110, %c0_111] : memref<1x16x128xf32, #tpu.memory_space<vmem>>, vector<1x16x128xf32>
    tpu.vector_store %arg10[%c0_109, %c0_110, %c0_111], %133 {strides = array<i32>} : memref<1x16x128xf32, #tpu.memory_space<vmem>>, vector<1x16x128xf32>,
    return
  }
  func.func @transform_0(%arg0: i32) -> (i32, i32, i32) {
    %c0_i32 = arith.constant 0 : i32
    %c0_i32_0 = arith.constant 0 : i32
    %c0_i32_1 = arith.constant 0 : i32
    return %arg0, %c0_i32, %c0_i32_0 : i32, i32, i32
  }
  func.func @transform_1(%arg0: i32) -> (i32, i32, i32) {
    %c0_i32 = arith.constant 0 : i32
    %c0_i32_0 = arith.constant 0 : i32
    %c0_i32_1 = arith.constant 0 : i32
    %c0_i32_2 = arith.constant 0 : i32
    return %c0_i32, %c0_i32_0, %c0_i32_1 : i32, i32, i32
  }
  func.func @transform_2(%arg0: i32) -> (i32, i32) {
    %c0_i32 = arith.constant 0 : i32
    %c0_i32_0 = arith.constant 0 : i32
    %c0_i32_1 = arith.constant 0 : i32
    return %c0_i32, %c0_i32_0 : i32, i32
  }
  func.func @transform_3(%arg0: i32) -> (i32, i32) {
    %c0_i32 = arith.constant 0 : i32
    %c0_i32_0 = arith.constant 0 : i32
    %c0_i32_1 = arith.constant 0 : i32
    return %c0_i32, %c0_i32_0 : i32, i32
  }
  func.func @transform_4(%arg0: i32) -> (i32, i32) {
    %c0_i32 = arith.constant 0 : i32
    %c0_i32_0 = arith.constant 0 : i32
    %c0_i32_1 = arith.constant 0 : i32
    return %c0_i32, %c0_i32_0 : i32, i32
  }
  func.func @transform_5(%arg0: i32) -> (i32, i32) {
    %c0_i32 = arith.constant 0 : i32
    %c0_i32_0 = arith.constant 0 : i32
    %c0_i32_1 = arith.constant 0 : i32
    return %c0_i32, %c0_i32_0 : i32, i32
  }
  func.func @transform_6(%arg0: i32) -> (i32, i32) {
    %c0_i32 = arith.constant 0 : i32
    %c0_i32_0 = arith.constant 0 : i32
    %c0_i32_1 = arith.constant 0 : i32
    return %c0_i32, %c0_i32_0 : i32, i32
  }
  func.func @transform_7(%arg0: i32) -> (i32, i32, i32) {
    %c0_i32 = arith.constant 0 : i32
    %c0_i32_0 = arith.constant 0 : i32
    %c0_i32_1 = arith.constant 0 : i32
    %c0_i32_2 = arith.constant 0 : i32
    return %c0_i32, %c0_i32_0, %c0_i32_1 : i32, i32, i32
  }
  func.func @transform_8(%arg0: i32) -> (i32, i32) {
    %c0_i32 = arith.constant 0 : i32
    %c0_i32_0 = arith.constant 0 : i32
    %c0_i32_1 = arith.constant 0 : i32
    return %c0_i32, %c0_i32_0 : i32, i32
  }
  func.func @transform_9(%arg0: i32) -> (i32, i32, i32) {
    %c0_i32 = arith.constant 0 : i32
    %c0_i32_0 = arith.constant 0 : i32
    %c0_i32_1 = arith.constant 0 : i32
    return %arg0, %c0_i32, %c0_i32_0 : i32, i32, i32
  }
}

</mosaic_0001>

<llo_original>
// kernel: tpu_custom_call.1
$region0: #{tpu_custom_call.1}
  #allocation0 [shape = 'u32[]', space=smem, size = 0x4, offset = 0x4, fixed_abs, tag = 'smem constant byte address 0x4 - core index']
  #allocation1 [shape = 'u32[144,128]{1,0:T(1,128)}', space=vmem, size = 0x12000, scoped, tag = 'internal scratch']
  #allocation2 [shape = 'f32[1,18,64]{2,1,0:T(8,128)}', space=vmem, size = 0x3000, scoped, tag = 'scratch operand']
  #allocation3 [shape = 'f32[1,22,32]{2,1,0:T(8,128)}', space=vmem, size = 0x3000, scoped, tag = 'scratch operand']
  #allocation4 [shape = 'f32[1,1]{1,0:T(1,128)S(6)}', space=smem, size = 0x200, scoped, tag = 'scoped memory for tpu_custom_call.1']
  %s0 = inlined_call_operand.hbm [shape: f32[2,16,64], index: 0, kind: input, shape index: {}]
  %s1 = inlined_call_operand.hbm [shape: f32[3,64,128], index: 1, kind: input, shape index: {}]
  %s2 = inlined_call_operand.hbm [shape: f32[1,128], index: 2, kind: input, shape index: {}]
  %s3 = inlined_call_operand.hbm [shape: f32[128,4], index: 3, kind: input, shape index: {}]
  %s4 = inlined_call_operand.hbm [shape: f32[1,4], index: 4, kind: input, shape index: {}]
  %s5 = inlined_call_operand.hbm [shape: f32[4,128], index: 5, kind: input, shape index: {}]
  %s6 = inlined_call_operand.hbm [shape: f32[1,128], index: 6, kind: input, shape index: {}]
  %s7 = inlined_call_operand.hbm [shape: f32[7,32,128], index: 7, kind: input, shape index: {}]
  %s8 = inlined_call_operand.<no memory space> [shape: f32[1,1], index: 8, kind: input, shape index: {}]
  %s9 = inlined_call_operand.hbm [shape: f32[2,16,128], index: 9, kind: output, shape index: {}]
  %s10 = sld [smem:[#allocation0]]
  $region101: #{tpu_custom_call.1} parent=0
    _
  %s12 = ssub.s32 1, %s10
  %s13 = scalar_select 0, %s12, %s10
  %14 = sst [smem:[#allocation4]] %s8
  $region1: #{tpu_custom_call.1} parent=0
    #allocation5 [shape = 'u8[16384]{0}', space=vmem, size = 0x4000, scoped, tag = 'input window, operand 0']
    #allocation6 [shape = 's32[2]{0}', space=sflag, size = 0x8, scoped, tag = 'scoped memory for tpu_custom_call.1']
    #allocation7 [shape = 's32[2]{0}', space=sflag, size = 0x8, scoped, tag = 'scoped memory for tpu_custom_call.1']
    #allocation8 [shape = 'u8[98304]{0}', space=vmem, size = 0x18000, scoped, tag = 'input window, operand 1, single buffered']
    #allocation9 [shape = 's32[1]{0}', space=sflag, size = 0x4, scoped, tag = 'scoped memory for tpu_custom_call.1']
    #allocation10 [shape = 'u8[512]{0}', space=vmem, size = 0x400, scoped, tag = 'input window, operand 2, single buffered']
    #allocation11 [shape = 'u8[65536]{0}', space=vmem, size = 0x10000, scoped, tag = 'input window, operand 3, single buffered']
    #allocation12 [shape = 's32[1]{0}', space=sflag, size = 0x4, scoped, tag = 'scoped memory for tpu_custom_call.1']
    #allocation13 [shape = 'u8[512]{0}', space=vmem, size = 0x400, scoped, tag = 'input window, operand 4, single buffered']
    #allocation14 [shape = 'u8[2048]{0}', space=vmem, size = 0x800, scoped, tag = 'input window, operand 5, single buffered']
    #allocation15 [shape = 's32[1]{0}', space=sflag, size = 0x4, scoped, tag = 'scoped memory for tpu_custom_call.1']
    #allocation16 [shape = 'u8[512]{0}', space=vmem, size = 0x400, scoped, tag = 'input window, operand 6, single buffered']
    #allocation17 [shape = 'u8[114688]{0}', space=vmem, size = 0x1c000, scoped, tag = 'input window, operand 7, single buffered']
    #allocation18 [shape = 's32[1]{0}', space=sflag, size = 0x4, scoped, tag = 'scoped memory for tpu_custom_call.1']
    #allocation19 [shape = 'u8[16384]{0}', space=vmem, size = 0x4000, scoped, tag = 'output window, operand 0']
    %15 = vsyncpa [#allocation6], 0
    %s16 = scalar_lea.sflag [#allocation6], 1
    %17 = vsyncpa %s16, 0
    %18 = vsyncpa [#allocation9], 0
    %19 = vsyncpa [#allocation12], 0
    %20 = vsyncpa [#allocation15], 0
    %21 = vsyncpa [#allocation18], 0
    %22 = vsyncpa [#allocation7], 0
    %s23 = scalar_lea.sflag [#allocation7], 1
    %24 = vsyncpa %s23, 0
    loop: start=0, step=1, limit=4
    $region2: #{tpu_custom_call.1} parent=1 // loop_pre_header
      _
    $region3: #{tpu_custom_call.1} parent=1 // loop_header
      %s26 = sphi 0, %s30
      %p27 = scmp.ge.s32.totalorder %s26, 4
      %s36 = sphi 0, %s38
      %s39 = sphi 0, %s36
      %s40 = sphi 0, %s39
      %s56 = sphi 0, %s40
      %s60 = sphi 0, %s60
      %s62 = sphi 0, %s60
      %s63 = sphi 0, %s62
      %s77 = sphi 0, %s63
      %s81 = sphi 0, %s81
      %s83 = sphi 0, %s81
      %s84 = sphi 0, %s83
      %s98 = sphi 0, %s84
      %s102 = sphi 0, %s102
      %s104 = sphi 0, %s102
      %s105 = sphi 0, %s104
      %s119 = sphi 0, %s105
      %s123 = sphi 0, %s123
      %s125 = sphi 0, %s123
      %s126 = sphi 0, %s125
      %s140 = sphi 0, %s126
      %s144 = sphi 0, %s144
      %s146 = sphi 0, %s144
      %s147 = sphi 0, %s146
      %s161 = sphi 0, %s147
      %s165 = sphi 0, %s165
      %s167 = sphi 0, %s165
      %s168 = sphi 0, %s167
      %s182 = sphi 0, %s168
      %s186 = sphi 0, %s186
      %s188 = sphi 0, %s186
      %s189 = sphi 0, %s188
      %s203 = sphi 0, %s189
      %s207 = sphi 0, %s207
      %s209 = sphi 0, %s207
      %s210 = sphi 0, %s209
      %s224 = sphi 0, %s210
      %s230 = sphi 0, %s232
      %s233 = sphi 0, %s230
      %s234 = sphi 0, %s233
      %s250 = sphi 0, %s234
    $region4: #{tpu_custom_call.1} parent=1 // loop_header_branch
      %29 = sbr.rel (%p27) target = $region8
    $region5: #{tpu_custom_call.1} parent=1 // loop_body
      %s31 = ssub.s32 %s26, 1
      %s32 = ssub.s32 %s26, 2
      %s33 = sadd.s32 %s26, 1
      %s34 = ssub.s32 %s26, %s33
      %p35 = scmp.eq.s32.totalorder %s34, 0
      %s37 = sadd.s32 %s36, 1
      %s38 = scalar_select %p35, %s36, %s37
      %p41 = pneg %p35
      %p42 = scmp.eq.s32.totalorder %s26, 1
      %p43 = por %p41, %p42
      %p44 = scmp.ne.s32.totalorder %s36, %s39
      %p45 = scmp.eq.s32.totalorder %s26, 0
      %p46 = por %p44, %p45
      %p47 = scmp.ne.s32.totalorder %s36, %s39
      %p48 = scmp.eq.s32.totalorder %s31, 1
      %p49 = por %p47, %p48
      %p50 = scmp.ne.s32.totalorder %s39, %s40
      %p51 = scmp.eq.s32.totalorder %s31, 0
      %p52 = por %p50, %p51
      %p53 = scmp.ne.s32.totalorder %s39, %s40
      %p54 = scmp.eq.s32.totalorder %s32, 1
      %p55 = por %p53, %p54
      %p57 = scmp.ne.s32.totalorder %s40, %s56
      %p58 = scmp.eq.s32.totalorder %s32, 0
      %p59 = por %p57, %p58
      %s61 = sadd.s32 %s60, 1
      %p64 = scmp.eq.s32.totalorder %s26, 1
      %p65 = scmp.ne.s32.totalorder %s60, %s62
      %p66 = scmp.eq.s32.totalorder %s26, 0
      %p67 = por %p65, %p66
      %p68 = scmp.ne.s32.totalorder %s60, %s62
      %p69 = scmp.eq.s32.totalorder %s31, 1
      %p70 = por %p68, %p69
      %p71 = scmp.ne.s32.totalorder %s62, %s63
      %p72 = scmp.eq.s32.totalorder %s31, 0
      %p73 = por %p71, %p72
      %p74 = scmp.ne.s32.totalorder %s62, %s63
      %p75 = scmp.eq.s32.totalorder %s32, 1
      %p76 = por %p74, %p75
      %p78 = scmp.ne.s32.totalorder %s63, %s77
      %p79 = scmp.eq.s32.totalorder %s32, 0
      %p80 = por %p78, %p79
      %s82 = sadd.s32 %s81, 1
      %p85 = scmp.eq.s32.totalorder %s26, 1
      %p86 = scmp.ne.s32.totalorder %s81, %s83
      %p87 = scmp.eq.s32.totalorder %s26, 0
      %p88 = por %p86, %p87
      %p89 = scmp.ne.s32.totalorder %s81, %s83
      %p90 = scmp.eq.s32.totalorder %s31, 1
      %p91 = por %p89, %p90
      %p92 = scmp.ne.s32.totalorder %s83, %s84
      %p93 = scmp.eq.s32.totalorder %s31, 0
      %p94 = por %p92, %p93
      %p95 = scmp.ne.s32.totalorder %s83, %s84
      %p96 = scmp.eq.s32.totalorder %s32, 1
      %p97 = por %p95, %p96
      %p99 = scmp.ne.s32.totalorder %s84, %s98
      %p100 = scmp.eq.s32.totalorder %s32, 0
      %p101 = por %p99, %p100
      %s103 = sadd.s32 %s102, 1
      %p106 = scmp.eq.s32.totalorder %s26, 1
      %p107 = scmp.ne.s32.totalorder %s102, %s104
      %p108 = scmp.eq.s32.totalorder %s26, 0
      %p109 = por %p107, %p108
      %p110 = scmp.ne.s32.totalorder %s102, %s104
      %p111 = scmp.eq.s32.totalorder %s31, 1
      %p112 = por %p110, %p111
      %p113 = scmp.ne.s32.totalorder %s104, %s105
      %p114 = scmp.eq.s32.totalorder %s31, 0
      %p115 = por %p113, %p114
      %p116 = scmp.ne.s32.totalorder %s104, %s105
      %p117 = scmp.eq.s32.totalorder %s32, 1
      %p118 = por %p116, %p117
      %p120 = scmp.ne.s32.totalorder %s105, %s119
      %p121 = scmp.eq.s32.totalorder %s32, 0
      %p122 = por %p120, %p121
      %s124 = sadd.s32 %s123, 1
      %p127 = scmp.eq.s32.totalorder %s26, 1
      %p128 = scmp.ne.s32.totalorder %s123, %s125
      %p129 = scmp.eq.s32.totalorder %s26, 0
      %p130 = por %p128, %p129
      %p131 = scmp.ne.s32.totalorder %s123, %s125
      %p132 = scmp.eq.s32.totalorder %s31, 1
      %p133 = por %p131, %p132
      %p134 = scmp.ne.s32.totalorder %s125, %s126
      %p135 = scmp.eq.s32.totalorder %s31, 0
      %p136 = por %p134, %p135
      %p137 = scmp.ne.s32.totalorder %s125, %s126
      %p138 = scmp.eq.s32.totalorder %s32, 1
      %p139 = por %p137, %p138
      %p141 = scmp.ne.s32.totalorder %s126, %s140
      %p142 = scmp.eq.s32.totalorder %s32, 0
      %p143 = por %p141, %p142
      %s145 = sadd.s32 %s144, 1
      %p148 = scmp.eq.s32.totalorder %s26, 1
      %p149 = scmp.ne.s32.totalorder %s144, %s146
      %p150 = scmp.eq.s32.totalorder %s26, 0
      %p151 = por %p149, %p150
      %p152 = scmp.ne.s32.totalorder %s144, %s146
      %p153 = scmp.eq.s32.totalorder %s31, 1
      %p154 = por %p152, %p153
      %p155 = scmp.ne.s32.totalorder %s146, %s147
      %p156 = scmp.eq.s32.totalorder %s31, 0
      %p157 = por %p155, %p156
      %p158 = scmp.ne.s32.totalorder %s146, %s147
      %p159 = scmp.eq.s32.totalorder %s32, 1
      %p160 = por %p158, %p159
      %p162 = scmp.ne.s32.totalorder %s147, %s161
      %p163 = scmp.eq.s32.totalorder %s32, 0
      %p164 = por %p162, %p163
      %s166 = sadd.s32 %s165, 1
      %p169 = scmp.eq.s32.totalorder %s26, 1
      %p170 = scmp.ne.s32.totalorder %s165, %s167
      %p171 = scmp.eq.s32.totalorder %s26, 0
      %p172 = por %p170, %p171
      %p173 = scmp.ne.s32.totalorder %s165, %s167
      %p174 = scmp.eq.s32.totalorder %s31, 1
      %p175 = por %p173, %p174
      %p176 = scmp.ne.s32.totalorder %s167, %s168
      %p177 = scmp.eq.s32.totalorder %s31, 0
      %p178 = por %p176, %p177
      %p179 = scmp.ne.s32.totalorder %s167, %s168
      %p180 = scmp.eq.s32.totalorder %s32, 1
      %p181 = por %p179, %p180
      %p183 = scmp.ne.s32.totalorder %s168, %s182
      %p184 = scmp.eq.s32.totalorder %s32, 0
      %p185 = por %p183, %p184
      %s187 = sadd.s32 %s186, 1
      %p190 = scmp.eq.s32.totalorder %s26, 1
      %p191 = scmp.ne.s32.totalorder %s186, %s188
      %p192 = scmp.eq.s32.totalorder %s26, 0
      %p193 = por %p191, %p192
      %p194 = scmp.ne.s32.totalorder %s186, %s188
      %p195 = scmp.eq.s32.totalorder %s31, 1
      %p196 = por %p194, %p195
      %p197 = scmp.ne.s32.totalorder %s188, %s189
      %p198 = scmp.eq.s32.totalorder %s31, 0
      %p199 = por %p197, %p198
      %p200 = scmp.ne.s32.totalorder %s188, %s189
      %p201 = scmp.eq.s32.totalorder %s32, 1
      %p202 = por %p200, %p201
      %p204 = scmp.ne.s32.totalorder %s189, %s203
      %p205 = scmp.eq.s32.totalorder %s32, 0
      %p206 = por %p204, %p205
      %s208 = sadd.s32 %s207, 1
      %p211 = scmp.eq.s32.totalorder %s26, 1
      %p212 = scmp.ne.s32.totalorder %s207, %s209
      %p213 = scmp.eq.s32.totalorder %s26, 0
      %p214 = por %p212, %p213
      %p215 = scmp.ne.s32.totalorder %s207, %s209
      %p216 = scmp.eq.s32.totalorder %s31, 1
      %p217 = por %p215, %p216
      %p218 = scmp.ne.s32.totalorder %s209, %s210
      %p219 = scmp.eq.s32.totalorder %s31, 0
      %p220 = por %p218, %p219
      %p221 = scmp.ne.s32.totalorder %s209, %s210
      %p222 = scmp.eq.s32.totalorder %s32, 1
      %p223 = por %p221, %p222
      %p225 = scmp.ne.s32.totalorder %s210, %s224
      %p226 = scmp.eq.s32.totalorder %s32, 0
      %p227 = por %p225, %p226
      %s228 = ssub.s32 %s26, %s33
      %p229 = scmp.eq.s32.totalorder %s228, 0
      %s231 = sadd.s32 %s230, 1
      %s232 = scalar_select %p229, %s230, %s231
      %p235 = pneg %p229
      %p236 = scmp.eq.s32.totalorder %s26, 1
      %p237 = por %p235, %p236
      %p238 = scmp.ne.s32.totalorder %s230, %s233
      %p239 = scmp.eq.s32.totalorder %s26, 0
      %p240 = por %p238, %p239
      %p241 = scmp.ne.s32.totalorder %s230, %s233
      %p242 = scmp.eq.s32.totalorder %s31, 1
      %p243 = por %p241, %p242
      %p244 = scmp.ne.s32.totalorder %s233, %s234
      %p245 = scmp.eq.s32.totalorder %s31, 0
      %p246 = por %p244, %p245
      %p247 = scmp.ne.s32.totalorder %s233, %s234
      %p248 = scmp.eq.s32.totalorder %s32, 1
      %p249 = por %p247, %p248
      %p251 = scmp.ne.s32.totalorder %s234, %s250
      %p252 = scmp.eq.s32.totalorder %s32, 0
      %p253 = por %p251, %p252
      %p254 = scmp.le.s32.totalorder 1, %s26
      %p255 = scmp.lt.s32.totalorder %s26, 3
      %p256 = pnand %p254, %p255
      %p257 = pneg %p256
      // Predicated region
      $region9: #{tpu_custom_call.1} parent=5 // pred_check
        _
      $region10: #{tpu_custom_call.1} parent=5 // pred_check_branch
        %259 = sbr.rel (%p256) target = $region12
      $region11: #{tpu_custom_call.1} parent=5 // pred_region
        %s260 = ssub.s32 %s26, 1
        // Predicated region
        $region13: #{tpu_custom_call.1} parent=11 // pred_check
          %p261 = pneg %p73
        $region14: #{tpu_custom_call.1} parent=11 // pred_check_branch
          %263 = sbr.rel (%p261) target = $region16
        $region15: #{tpu_custom_call.1} parent=11 // pred_region
          %s265 = ssub.s32 3072, 3072
          %266 = vsyncadd [#allocation9], %s265
          %s267 = sshll.u32 [#allocation8], 4
          %s268 = int_to_ptr.vmem [resolvable:$true] %s267
          %273 = dma.hbm_to_vmem [thread:$0]  %s1, 3072, %s268, [#allocation9], 128, 128, 8
        $region16: #{tpu_custom_call.1} parent=11 // pred_fallthru
          _
        // Predicated region
        $region17: #{tpu_custom_call.1} parent=11 // pred_check
          %p274 = pneg %p94
        $region18: #{tpu_custom_call.1} parent=11 // pred_check_branch
          %276 = sbr.rel (%p274) target = $region20
        $region19: #{tpu_custom_call.1} parent=11 // pred_region
          %s278 = ssub.s32 16, 16
          %279 = vsyncadd [#allocation9], %s278
          %s281 = sshll.u32 [#allocation10], 4
          %s282 = int_to_ptr.vmem [resolvable:$true] %s281
          %284 = dma.hbm_to_vmem [thread:$0]  %s2, 16, %s282, [#allocation9]
        $region20: #{tpu_custom_call.1} parent=11 // pred_fallthru
          _
        // Predicated region
        $region21: #{tpu_custom_call.1} parent=11 // pred_check
          %p285 = pneg %p115
        $region22: #{tpu_custom_call.1} parent=11 // pred_check_branch
          %287 = sbr.rel (%p285) target = $region24
        $region23: #{tpu_custom_call.1} parent=11 // pred_region
          %s289 = ssub.s32 2048, 2048
          %290 = vsyncadd [#allocation12], %s289
          %s291 = sshll.u32 [#allocation11], 4
          %s292 = int_to_ptr.vmem [resolvable:$true] %s291
          %297 = dma.hbm_to_vmem [thread:$0]  %s3, 2048, %s292, [#allocation12], 128, 128, 8
        $region24: #{tpu_custom_call.1} parent=11 // pred_fallthru
          _
        // Predicated region
        $region25: #{tpu_custom_call.1} parent=11 // pred_check
          %p298 = pneg %p136
        $region26: #{tpu_custom_call.1} parent=11 // pred_check_branch
          %300 = sbr.rel (%p298) target = $region28
        $region27: #{tpu_custom_call.1} parent=11 // pred_region
          %s302 = ssub.s32 16, 16
          %303 = vsyncadd [#allocation12], %s302
          %s305 = sshll.u32 [#allocation13], 4
          %s306 = int_to_ptr.vmem [resolvable:$true] %s305
          %308 = dma.hbm_to_vmem [thread:$0]  %s4, 16, %s306, [#allocation12]
        $region28: #{tpu_custom_call.1} parent=11 // pred_fallthru
          _
        // Predicated region
        $region29: #{tpu_custom_call.1} parent=11 // pred_check
          %p309 = pneg %p157
        $region30: #{tpu_custom_call.1} parent=11 // pred_check_branch
          %311 = sbr.rel (%p309) target = $region32
        $region31: #{tpu_custom_call.1} parent=11 // pred_region
          %s313 = ssub.s32 64, 64
          %314 = vsyncadd [#allocation15], %s313
          %s316 = sshll.u32 [#allocation14], 4
          %s317 = int_to_ptr.vmem [resolvable:$true] %s316
          %319 = dma.hbm_to_vmem [thread:$0]  %s5, 64, %s317, [#allocation15]
        $region32: #{tpu_custom_call.1} parent=11 // pred_fallthru
          _
        // Predicated region
        $region33: #{tpu_custom_call.1} parent=11 // pred_check
          %p320 = pneg %p178
        $region34: #{tpu_custom_call.1} parent=11 // pred_check_branch
          %322 = sbr.rel (%p320) target = $region36
        $region35: #{tpu_custom_call.1} parent=11 // pred_region
          %s324 = ssub.s32 16, 16
          %325 = vsyncadd [#allocation15], %s324
          %s327 = sshll.u32 [#allocation16], 4
          %s328 = int_to_ptr.vmem [resolvable:$true] %s327
          %330 = dma.hbm_to_vmem [thread:$0]  %s6, 16, %s328, [#allocation15]
        $region36: #{tpu_custom_call.1} parent=11 // pred_fallthru
          _
        // Predicated region
        $region37: #{tpu_custom_call.1} parent=11 // pred_check
          %p331 = pneg %p199
        $region38: #{tpu_custom_call.1} parent=11 // pred_check_branch
          %333 = sbr.rel (%p331) target = $region40
        $region39: #{tpu_custom_call.1} parent=11 // pred_region
          %s335 = ssub.s32 3584, 3584
          %336 = vsyncadd [#allocation18], %s335
          %s337 = sshll.u32 [#allocation17], 4
          %s338 = int_to_ptr.vmem [resolvable:$true] %s337
          %343 = dma.hbm_to_vmem [thread:$0]  %s7, 3584, %s338, [#allocation18], 128, 128, 8
        $region40: #{tpu_custom_call.1} parent=11 // pred_fallthru
          _
        // Predicated region
        $region41: #{tpu_custom_call.1} parent=11 // pred_check
          %p344 = pneg %p220
        $region42: #{tpu_custom_call.1} parent=11 // pred_check_branch
          %346 = sbr.rel (%p344) target = $region44
        $region43: #{tpu_custom_call.1} parent=11 // pred_region
          _
        $region44: #{tpu_custom_call.1} parent=11 // pred_fallthru
          _
      $region12: #{tpu_custom_call.1} parent=5 // pred_fallthru
        _
      %p347 = scmp.lt.s32.totalorder %s26, 2
      // Predicated region
      $region45: #{tpu_custom_call.1} parent=5 // pred_check
        %p348 = pneg %p347
      $region46: #{tpu_custom_call.1} parent=5 // pred_check_branch
        %350 = sbr.rel (%p348) target = $region48
      $region47: #{tpu_custom_call.1} parent=5 // pred_region
        // Predicated region
        $region49: #{tpu_custom_call.1} parent=47 // pred_check
          %p351 = pneg %p46
        $region50: #{tpu_custom_call.1} parent=47 // pred_check_branch
          %353 = sbr.rel (%p351) target = $region52
        $region51: #{tpu_custom_call.1} parent=47 // pred_region
          %s354 = sand.u32 %s36, 1
          %s355 = scalar_lea.sflag [#allocation6], %s354
          %s356 = sand.u32 %s36, 1
          %s357 = smul.addr %s356, 16
          %s358 = scalar_lea.vmem [#allocation5], %s357
          %s360 = ssub.s32 256, 256
          %361 = vsyncadd %s355, %s360
          %s362 = smul.addr %s26, 2
          %s363 = smul.addr %s362, 128
          %s364 = scalar_lea.hbm %s0, %s363
          %s365 = sshll.u32 %s358, 4
          %s366 = int_to_ptr.vmem [resolvable:$true] %s365
          %371 = dma.hbm_to_vmem [thread:$0]  %s364, 256, %s366, %s355, 128, 128, 8
        $region52: #{tpu_custom_call.1} parent=47 // pred_fallthru
          _
      $region48: #{tpu_custom_call.1} parent=5 // pred_fallthru
        _
      %p372 = scmp.le.s32.totalorder 1, %s26
      %p373 = scmp.lt.s32.totalorder %s26, 3
      %p374 = pnand %p372, %p373
      %p375 = pneg %p374
      // Predicated region
      $region53: #{tpu_custom_call.1} parent=5 // pred_check
        _
      $region54: #{tpu_custom_call.1} parent=5 // pred_check_branch
        %377 = sbr.rel (%p374) target = $region56
      $region55: #{tpu_custom_call.1} parent=5 // pred_region
        %s378 = ssub.s32 %s26, 1
        %s379 = sand.u32 %s39, 1
        %s380 = scalar_lea.sflag [#allocation6], %s379
        %s381 = sand.u32 %s39, 1
        %s382 = smul.addr %s381, 16
        %s383 = scalar_lea.vmem [#allocation5], %s382
        // Predicated region
        $region57: #{tpu_custom_call.1} parent=55 // pred_check
          %p384 = pneg %p52
        $region58: #{tpu_custom_call.1} parent=55 // pred_check_branch
          %386 = sbr.rel (%p384) target = $region60
        $region59: #{tpu_custom_call.1} parent=55 // pred_region
          %387 = dma.done %s380, 256
        $region60: #{tpu_custom_call.1} parent=55 // pred_fallthru
          _
        // Predicated region
        $region61: #{tpu_custom_call.1} parent=55 // pred_check
          %p388 = pneg %p73
        $region62: #{tpu_custom_call.1} parent=55 // pred_check_branch
          %390 = sbr.rel (%p388) target = $region64
        $region63: #{tpu_custom_call.1} parent=55 // pred_region
          %391 = dma.done [#allocation9], 3072
        $region64: #{tpu_custom_call.1} parent=55 // pred_fallthru
          _
        // Predicated region
        $region65: #{tpu_custom_call.1} parent=55 // pred_check
          %p392 = pneg %p94
        $region66: #{tpu_custom_call.1} parent=55 // pred_check_branch
          %394 = sbr.rel (%p392) target = $region68
        $region67: #{tpu_custom_call.1} parent=55 // pred_region
          %395 = dma.done [#allocation9], 16
        $region68: #{tpu_custom_call.1} parent=55 // pred_fallthru
          _
        // Predicated region
        $region69: #{tpu_custom_call.1} parent=55 // pred_check
          %p396 = pneg %p115
        $region70: #{tpu_custom_call.1} parent=55 // pred_check_branch
          %398 = sbr.rel (%p396) target = $region72
        $region71: #{tpu_custom_call.1} parent=55 // pred_region
          %399 = dma.done [#allocation12], 2048
        $region72: #{tpu_custom_call.1} parent=55 // pred_fallthru
          _
        // Predicated region
        $region73: #{tpu_custom_call.1} parent=55 // pred_check
          %p400 = pneg %p136
        $region74: #{tpu_custom_call.1} parent=55 // pred_check_branch
          %402 = sbr.rel (%p400) target = $region76
        $region75: #{tpu_custom_call.1} parent=55 // pred_region
          %403 = dma.done [#allocation12], 16
        $region76: #{tpu_custom_call.1} parent=55 // pred_fallthru
          _
        // Predicated region
        $region77: #{tpu_custom_call.1} parent=55 // pred_check
          %p404 = pneg %p157
        $region78: #{tpu_custom_call.1} parent=55 // pred_check_branch
          %406 = sbr.rel (%p404) target = $region80
        $region79: #{tpu_custom_call.1} parent=55 // pred_region
          %407 = dma.done [#allocation15], 64
        $region80: #{tpu_custom_call.1} parent=55 // pred_fallthru
          _
        // Predicated region
        $region81: #{tpu_custom_call.1} parent=55 // pred_check
          %p408 = pneg %p178
        $region82: #{tpu_custom_call.1} parent=55 // pred_check_branch
          %410 = sbr.rel (%p408) target = $region84
        $region83: #{tpu_custom_call.1} parent=55 // pred_region
          %411 = dma.done [#allocation15], 16
        $region84: #{tpu_custom_call.1} parent=55 // pred_fallthru
          _
        // Predicated region
        $region85: #{tpu_custom_call.1} parent=55 // pred_check
          %p412 = pneg %p199
        $region86: #{tpu_custom_call.1} parent=55 // pred_check_branch
          %414 = sbr.rel (%p412) target = $region88
        $region87: #{tpu_custom_call.1} parent=55 // pred_region
          %415 = dma.done [#allocation18], 3584
        $region88: #{tpu_custom_call.1} parent=55 // pred_fallthru
          _
        %s416 = sand.u32 %s39, 1
        %s417 = scalar_lea.sflag [#allocation6], %s416
        %s418 = sand.u32 %s39, 1
        %s419 = smul.addr %s418, 16
        %s420 = scalar_lea.vmem [#allocation5], %s419
        %p421 = pneg %p52
        %p422 = pneg %p49
        %p423 = pneg %p73
        %p424 = pneg %p70
        %p425 = pneg %p94
        %p426 = pneg %p91
        %p427 = pneg %p115
        %p428 = pneg %p112
        %p429 = pneg %p136
        %p430 = pneg %p133
        %p431 = pneg %p157
        %p432 = pneg %p154
        %p433 = pneg %p178
        %p434 = pneg %p175
        %p435 = pneg %p199
        %p436 = pneg %p196
        %p437 = pneg %p220
        %p438 = pneg %p217
        %p439 = pneg %p246
        %p440 = pneg %p243
        %s441 = sand.u32 %s233, 1
        %s442 = scalar_lea.sflag [#allocation7], %s441
        %s443 = sand.u32 %s233, 1
        %s444 = smul.addr %s443, 16
        %s445 = scalar_lea.vmem [#allocation19], %s444
        %vm446 = vcmask 516096
        %447 = vst.msk [vmem:[#allocation2] sm:$0x1] %vm446, 0.0
        %448 = vst.msk [vmem:[#allocation2 + $0x11] sm:$0x1] %vm446, 0.0
        %vm449 = vcmask 256000
        %450 = vst.msk [vmem:[#allocation3] sm:$0x7] %vm449, 0.0
        %451 = vst.msk [vmem:[#allocation3 + $0x13] sm:$0x7] %vm449, 0.0
        %v452 = vld [vmem:[%s383] sm:$0xff]
        %v453 = vld [vmem:[%s383 + $0x8] sm:$0xff]
        %vm454 = vcmask 523264
        %455 = vst.msk [vmem:[#allocation2 + $0x1] sm:$0xff] %vm454, %v452
        %456 = vst.msk [vmem:[#allocation2 + $0x9] sm:$0xff] %vm454, %v453
        %v457 = vld [vmem:[#allocation2] sm:$0xff]
        %v458 = vld [vmem:[#allocation2 + $0x8] sm:$0xff]
        %v459 = vld [vmem:[#allocation8] sm:$0xff]
        %v460 = vld [vmem:[#allocation8 + $0x8] sm:$0xff]
        %v461 = vld [vmem:[#allocation8 + $0x10] sm:$0xff]
        %v462 = vld [vmem:[#allocation8 + $0x18] sm:$0xff]
        %v463 = vld [vmem:[#allocation8 + $0x20] sm:$0xff]
        %v464 = vld [vmem:[#allocation8 + $0x28] sm:$0xff]
        %v465 = vld [vmem:[#allocation8 + $0x30] sm:$0xff]
        %v466 = vld [vmem:[#allocation8 + $0x38] sm:$0xff]
        %v467 = vld [vmem:[#allocation2 + $0x1] sm:$0xff]
        %v468 = vld [vmem:[#allocation2 + $0x9] sm:$0xff]
        %s469 = scalar_lea.vmem [#allocation8], 64
        %v470 = vld [vmem:[%s469] sm:$0xff]
        %v471 = vld [vmem:[%s469 + $0x8] sm:$0xff]
        %v472 = vld [vmem:[%s469 + $0x10] sm:$0xff]
        %v473 = vld [vmem:[%s469 + $0x18] sm:$0xff]
        %v474 = vld [vmem:[%s469 + $0x20] sm:$0xff]
        %v475 = vld [vmem:[%s469 + $0x28] sm:$0xff]
        %v476 = vld [vmem:[%s469 + $0x30] sm:$0xff]
        %v477 = vld [vmem:[%s469 + $0x38] sm:$0xff]
        %v479 = vsel %vm454, %v467, 0
        %v482 = vsel %vm454, %v468, 0
        %484 = vmatprep.subr.mxu0 0.0
        %v485 = vand.u32 %v470, 4294901760
        %486 = vmatpush1.msra.mxu0 %v485
        %487 = vmatprep.subr.mxu0 0.0
        %v488 = vand.u32 %v471, 4294901760
        %489 = vmatpush1.msra.mxu0 %v488
        %490 = vmatprep.subr.mxu0 0.0
        %v491 = vand.u32 %v472, 4294901760
        %492 = vmatpush1.msra.mxu0 %v491
        %493 = vmatprep.subr.mxu0 0.0
        %v494 = vand.u32 %v473, 4294901760
        %495 = vmatpush1.msra.mxu0 %v494
        %496 = vmatprep.subr.mxu0 0.0
        %v497 = vand.u32 %v474, 4294901760
        %498 = vmatpush1.msra.mxu0 %v497
        %499 = vmatprep.subr.mxu0 0.0
        %v500 = vand.u32 %v475, 4294901760
        %501 = vmatpush1.msra.mxu0 %v500
        %502 = vmatprep.subr.mxu0 0.0
        %v503 = vand.u32 %v476, 4294901760
        %504 = vmatpush1.msra.mxu0 %v503
        %505 = vmatprep.subr.mxu0 0.0
        %v506 = vand.u32 %v477, 4294901760
        %507 = vmatpush1.msra.mxu0 %v506
        %508 = vmatprep.subr.mxu0 0.0
        %509 = vmatpush1.msra.mxu0 0.0
        %510 = vmatprep.subr.mxu0 0.0
        %511 = vmatpush1.msra.mxu0 0.0
        %512 = vmatprep.subr.mxu0 0.0
        %513 = vmatpush1.msra.mxu0 0.0
        %514 = vmatprep.subr.mxu0 0.0
        %515 = vmatpush1.msra.mxu0 0.0
        %516 = vmatprep.subr.mxu0 0.0
        %517 = vmatpush1.msra.mxu0 0.0
        %518 = vmatprep.subr.mxu0 0.0
        %519 = vmatpush1.msra.mxu0 0.0
        %520 = vmatprep.subr.mxu0 0.0
        %521 = vmatpush1.msra.mxu0 0.0
        %522 = vmatprep.subr.mxu0 0.0
        %523 = vmatpush1.msra.mxu0 0.0
        %524 = vmatprep.subr.mxu0 0.0
        %525 = vmatpush1.msra.mxu0 0.0
        %526 = vmatprep.subr.mxu0 0.0
        %527 = vmatpush1.msra.mxu0 0.0
        %528 = vmatprep.subr.mxu0 0.0
        %529 = vmatpush1.msra.mxu0 0.0
        %530 = vmatprep.subr.mxu0 0.0
        %531 = vmatpush1.msra.mxu0 0.0
        %532 = vmatprep.subr.mxu0 0.0
        %533 = vmatpush1.msra.mxu0 0.0
        %534 = vmatprep.subr.mxu0 0.0
        %535 = vmatpush1.msra.mxu0 0.0
        %536 = vmatprep.subr.mxu0 0.0
        %537 = vmatpush1.msra.mxu0 0.0
        %538 = vmatprep.subr.mxu0 0.0
        %539 = vmatpush1.msra.mxu0 0.0
        %540 = vmatprep.subr.mxu0 0.0
        %541 = vmatpush1.msra.mxu0 0.0
        %542 = vmatprep.subr.mxu0 0.0
        %543 = vmatpush1.msra.mxu0 0.0
        %544 = vmatprep.subr.mxu0 0.0
        %545 = vmatpush1.msra.mxu0 0.0
        %546 = vmatprep.subr.mxu0 0.0
        %547 = vmatpush1.msra.mxu0 0.0
        %548 = vmatprep.subr.mxu0 0.0
        %549 = vmatpush1.msra.mxu0 0.0
        %550 = vmatprep.subr.mxu0 0.0
        %551 = vmatpush1.msra.mxu0 0.0
        %552 = vmatprep.subr.mxu0 0.0
        %553 = vmatpush1.msra.mxu0 0.0
        %554 = vmatprep.subr.mxu0 0.0
        %555 = vmatpush1.msra.mxu0 0.0
        %556 = vmatprep.mubr.f32.mxu0 0.0
        %v557 = vand.u32 %v479, 4294901760
        %v558 = vsub.f32 %v479, %v557
        %v559 = vand.u32 %v558, 4294901760
        %v560 = vsub.f32 %v558, %v559
        %v561 = vand.u32 %v560, 4294901760
        %562 = vmatmul.mubr.f32.gmra.mrb[0].mxu0 %v561
        %v563 = vpop.f32.mrb[0].mxu0
        %v564 = vadd.f32 0.0, %v563
        %v565 = vpop.f32.mrb[0].mxu0
        %566 = vmatprep.mubr.f32.mxu0 0.0
        %v567 = vand.u32 %v482, 4294901760
        %v568 = vsub.f32 %v482, %v567
        %v569 = vand.u32 %v568, 4294901760
        %v570 = vsub.f32 %v568, %v569
        %v571 = vand.u32 %v570, 4294901760
        %572 = vmatmul.mubr.f32.gmra.mrb[0].mxu0 %v571
        %v573 = vpop.f32.mrb[0].mxu0
        %v574 = vadd.f32 0.0, %v573
        %v575 = vpop.f32.mrb[0].mxu0
        %576 = vdwg.mxu0
        %577 = vmatprep.subr.mxu0 0.0
        %v578 = vand.u32 %v470, 4294901760
        %v579 = vsub.f32 %v470, %v578
        %v580 = vand.u32 %v579, 4294901760
        %v581 = vsub.f32 %v579, %v580
        %v582 = vand.u32 %v581, 4294901760
        %583 = vmatpush1.msra.mxu0 %v582
        %584 = vmatprep.subr.mxu0 0.0
        %v585 = vand.u32 %v471, 4294901760
        %v586 = vsub.f32 %v471, %v585
        %v587 = vand.u32 %v586, 4294901760
        %v588 = vsub.f32 %v586, %v587
        %v589 = vand.u32 %v588, 4294901760
        %590 = vmatpush1.msra.mxu0 %v589
        %591 = vmatprep.subr.mxu0 0.0
        %v592 = vand.u32 %v472, 4294901760
        %v593 = vsub.f32 %v472, %v592
        %v594 = vand.u32 %v593, 4294901760
        %v595 = vsub.f32 %v593, %v594
        %v596 = vand.u32 %v595, 4294901760
        %597 = vmatpush1.msra.mxu0 %v596
        %598 = vmatprep.subr.mxu0 0.0
        %v599 = vand.u32 %v473, 4294901760
        %v600 = vsub.f32 %v473, %v599
        %v601 = vand.u32 %v600, 4294901760
        %v602 = vsub.f32 %v600, %v601
        %v603 = vand.u32 %v602, 4294901760
        %604 = vmatpush1.msra.mxu0 %v603
        %605 = vmatprep.subr.mxu0 0.0
        %v606 = vand.u32 %v474, 4294901760
        %v607 = vsub.f32 %v474, %v606
        %v608 = vand.u32 %v607, 4294901760
        %v609 = vsub.f32 %v607, %v608
        %v610 = vand.u32 %v609, 4294901760
        %611 = vmatpush1.msra.mxu0 %v610
        %612 = vmatprep.subr.mxu0 0.0
        %v613 = vand.u32 %v475, 4294901760
        %v614 = vsub.f32 %v475, %v613
        %v615 = vand.u32 %v614, 4294901760
        %v616 = vsub.f32 %v614, %v615
        %v617 = vand.u32 %v616, 4294901760
        %618 = vmatpush1.msra.mxu0 %v617
        %619 = vmatprep.subr.mxu0 0.0
        %v620 = vand.u32 %v476, 4294901760
        %v621 = vsub.f32 %v476, %v620
        %v622 = vand.u32 %v621, 4294901760
        %v623 = vsub.f32 %v621, %v622
        %v624 = vand.u32 %v623, 4294901760
        %625 = vmatpush1.msra.mxu0 %v624
        %626 = vmatprep.subr.mxu0 0.0
        %v627 = vand.u32 %v477, 4294901760
        %v628 = vsub.f32 %v477, %v627
        %v629 = vand.u32 %v628, 4294901760
        %v630 = vsub.f32 %v628, %v629
        %v631 = vand.u32 %v630, 4294901760
        %632 = vmatpush1.msra.mxu0 %v631
        %633 = vmatprep.subr.mxu0 0.0
        %634 = vmatpush1.msra.mxu0 0.0
        %635 = vmatprep.subr.mxu0 0.0
        %636 = vmatpush1.msra.mxu0 0.0
        %637 = vmatprep.subr.mxu0 0.0
        %638 = vmatpush1.msra.mxu0 0.0
        %639 = vmatprep.subr.mxu0 0.0
        %640 = vmatpush1.msra.mxu0 0.0
        %641 = vmatprep.subr.mxu0 0.0
        %642 = vmatpush1.msra.mxu0 0.0
        %643 = vmatprep.subr.mxu0 0.0
        %644 = vmatpush1.msra.mxu0 0.0
        %645 = vmatprep.subr.mxu0 0.0
        %646 = vmatpush1.msra.mxu0 0.0
        %647 = vmatprep.subr.mxu0 0.0
        %648 = vmatpush1.msra.mxu0 0.0
        %649 = vmatprep.subr.mxu0 0.0
        %650 = vmatpush1.msra.mxu0 0.0
        %651 = vmatprep.subr.mxu0 0.0
        %652 = vmatpush1.msra.mxu0 0.0
        %653 = vmatprep.subr.mxu0 0.0
        %654 = vmatpush1.msra.mxu0 0.0
        %655 = vmatprep.subr.mxu0 0.0
        %656 = vmatpush1.msra.mxu0 0.0
        %657 = vmatprep.subr.mxu0 0.0
        %658 = vmatpush1.msra.mxu0 0.0
        %659 = vmatprep.subr.mxu0 0.0
        %660 = vmatpush1.msra.mxu0 0.0
        %661 = vmatprep.subr.mxu0 0.0
        %662 = vmatpush1.msra.mxu0 0.0
        %663 = vmatprep.subr.mxu0 0.0
        %664 = vmatpush1.msra.mxu0 0.0
        %665 = vmatprep.subr.mxu0 0.0
        %666 = vmatpush1.msra.mxu0 0.0
        %667 = vmatprep.subr.mxu0 0.0
        %668 = vmatpush1.msra.mxu0 0.0
        %669 = vmatprep.subr.mxu0 0.0
        %670 = vmatpush1.msra.mxu0 0.0
        %671 = vmatprep.subr.mxu0 0.0
        %672 = vmatpush1.msra.mxu0 0.0
        %673 = vmatprep.subr.mxu0 0.0
        %674 = vmatpush1.msra.mxu0 0.0
        %675 = vmatprep.subr.mxu0 0.0
        %676 = vmatpush1.msra.mxu0 0.0
        %677 = vmatprep.subr.mxu0 0.0
        %678 = vmatpush1.msra.mxu0 0.0
        %679 = vmatprep.subr.mxu0 0.0
        %680 = vmatpush1.msra.mxu0 0.0
        %681 = vmatprep.mubr.f32.mxu0 0.0
        %v682 = vand.u32 %v479, 4294901760
        %683 = vmatmul.mubr.f32.gmra.mrb[0].mxu0 %v682
        %v684 = vpop.f32.mrb[0].mxu0
        %v685 = vadd.f32 %v564, %v684
        %v686 = vpop.f32.mrb[0].mxu0
        %687 = vmatprep.mubr.f32.mxu0 0.0
        %v688 = vand.u32 %v482, 4294901760
        %689 = vmatmul.mubr.f32.gmra.mrb[0].mxu0 %v688
        %v690 = vpop.f32.mrb[0].mxu0
        %v691 = vadd.f32 %v574, %v690
        %v692 = vpop.f32.mrb[0].mxu0
        %693 = vdwg.mxu0
        %694 = vmatprep.subr.mxu0 0.0
        %v695 = vand.u32 %v470, 4294901760
        %v696 = vsub.f32 %v470, %v695
        %697 = vmatpush1.msra.mxu0 %v696
        %698 = vmatprep.subr.mxu0 0.0
        %v699 = vand.u32 %v471, 4294901760
        %v700 = vsub.f32 %v471, %v699
        %701 = vmatpush1.msra.mxu0 %v700
        %702 = vmatprep.subr.mxu0 0.0
        %v703 = vand.u32 %v472, 4294901760
        %v704 = vsub.f32 %v472, %v703
        %705 = vmatpush1.msra.mxu0 %v704
        %706 = vmatprep.subr.mxu0 0.0
        %v707 = vand.u32 %v473, 4294901760
        %v708 = vsub.f32 %v473, %v707
        %709 = vmatpush1.msra.mxu0 %v708
        %710 = vmatprep.subr.mxu0 0.0
        %v711 = vand.u32 %v474, 4294901760
        %v712 = vsub.f32 %v474, %v711
        %713 = vmatpush1.msra.mxu0 %v712
        %714 = vmatprep.subr.mxu0 0.0
        %v715 = vand.u32 %v475, 4294901760
        %v716 = vsub.f32 %v475, %v715
        %717 = vmatpush1.msra.mxu0 %v716
        %718 = vmatprep.subr.mxu0 0.0
        %v719 = vand.u32 %v476, 4294901760
        %v720 = vsub.f32 %v476, %v719
        %721 = vmatpush1.msra.mxu0 %v720
        %722 = vmatprep.subr.mxu0 0.0
        %v723 = vand.u32 %v477, 4294901760
        %v724 = vsub.f32 %v477, %v723
        %725 = vmatpush1.msra.mxu0 %v724
        %726 = vmatprep.subr.mxu0 0.0
        %727 = vmatpush1.msra.mxu0 0.0
        %728 = vmatprep.subr.mxu0 0.0
        %729 = vmatpush1.msra.mxu0 0.0
        %730 = vmatprep.subr.mxu0 0.0
        %731 = vmatpush1.msra.mxu0 0.0
        %732 = vmatprep.subr.mxu0 0.0
        %733 = vmatpush1.msra.mxu0 0.0
        %734 = vmatprep.subr.mxu0 0.0
        %735 = vmatpush1.msra.mxu0 0.0
        %736 = vmatprep.subr.mxu0 0.0
        %737 = vmatpush1.msra.mxu0 0.0
        %738 = vmatprep.subr.mxu0 0.0
        %739 = vmatpush1.msra.mxu0 0.0
        %740 = vmatprep.subr.mxu0 0.0
        %741 = vmatpush1.msra.mxu0 0.0
        %742 = vmatprep.subr.mxu0 0.0
        %743 = vmatpush1.msra.mxu0 0.0
        %744 = vmatprep.subr.mxu0 0.0
        %745 = vmatpush1.msra.mxu0 0.0
        %746 = vmatprep.subr.mxu0 0.0
        %747 = vmatpush1.msra.mxu0 0.0
        %748 = vmatprep.subr.mxu0 0.0
        %749 = vmatpush1.msra.mxu0 0.0
        %750 = vmatprep.subr.mxu0 0.0
        %751 = vmatpush1.msra.mxu0 0.0
        %752 = vmatprep.subr.mxu0 0.0
        %753 = vmatpush1.msra.mxu0 0.0
        %754 = vmatprep.subr.mxu0 0.0
        %755 = vmatpush1.msra.mxu0 0.0
        %756 = vmatprep.subr.mxu0 0.0
        %757 = vmatpush1.msra.mxu0 0.0
        %758 = vmatprep.subr.mxu0 0.0
        %759 = vmatpush1.msra.mxu0 0.0
        %760 = vmatprep.subr.mxu0 0.0
        %761 = vmatpush1.msra.mxu0 0.0
        %762 = vmatprep.subr.mxu0 0.0
        %763 = vmatpush1.msra.mxu0 0.0
        %764 = vmatprep.subr.mxu0 0.0
        %765 = vmatpush1.msra.mxu0 0.0
        %766 = vmatprep.subr.mxu0 0.0
        %767 = vmatpush1.msra.mxu0 0.0
        %768 = vmatprep.subr.mxu0 0.0
        %769 = vmatpush1.msra.mxu0 0.0
        %770 = vmatprep.subr.mxu0 0.0
        %771 = vmatpush1.msra.mxu0 0.0
        %772 = vmatprep.subr.mxu0 0.0
        %773 = vmatpush1.msra.mxu0 0.0
        %774 = vmatprep.mubr.f32.mxu0 0.0
        %v775 = vand.u32 %v479, 4294901760
        %v776 = vsub.f32 %v479, %v775
        %777 = vmatmul.mubr.f32.gmra.mrb[0].mxu0 %v776
        %v778 = vpop.f32.mrb[0].mxu0
        %v779 = vadd.f32 %v685, %v778
        %v780 = vpop.f32.mrb[0].mxu0
        %781 = vmatprep.mubr.f32.mxu0 0.0
        %v782 = vand.u32 %v482, 4294901760
        %v783 = vsub.f32 %v482, %v782
        %784 = vmatmul.mubr.f32.gmra.mrb[0].mxu0 %v783
        %v785 = vpop.f32.mrb[0].mxu0
        %v786 = vadd.f32 %v691, %v785
        %v787 = vpop.f32.mrb[0].mxu0
        %788 = vdwg.mxu0
        %789 = vmatprep.subr.mxu0 0.0
        %v790 = vand.u32 %v470, 4294901760
        %791 = vmatpush1.msra.mxu0 %v790
        %792 = vmatprep.subr.mxu0 0.0
        %v793 = vand.u32 %v471, 4294901760
        %794 = vmatpush1.msra.mxu0 %v793
        %795 = vmatprep.subr.mxu0 0.0
        %v796 = vand.u32 %v472, 4294901760
        %797 = vmatpush1.msra.mxu0 %v796
        %798 = vmatprep.subr.mxu0 0.0
        %v799 = vand.u32 %v473, 4294901760
        %800 = vmatpush1.msra.mxu0 %v799
        %801 = vmatprep.subr.mxu0 0.0
        %v802 = vand.u32 %v474, 4294901760
        %803 = vmatpush1.msra.mxu0 %v802
        %804 = vmatprep.subr.mxu0 0.0
        %v805 = vand.u32 %v475, 4294901760
        %806 = vmatpush1.msra.mxu0 %v805
        %807 = vmatprep.subr.mxu0 0.0
        %v808 = vand.u32 %v476, 4294901760
        %809 = vmatpush1.msra.mxu0 %v808
        %810 = vmatprep.subr.mxu0 0.0
        %v811 = vand.u32 %v477, 4294901760
        %812 = vmatpush1.msra.mxu0 %v811
        %813 = vmatprep.subr.mxu0 0.0
        %814 = vmatpush1.msra.mxu0 0.0
        %815 = vmatprep.subr.mxu0 0.0
        %816 = vmatpush1.msra.mxu0 0.0
        %817 = vmatprep.subr.mxu0 0.0
        %818 = vmatpush1.msra.mxu0 0.0
        %819 = vmatprep.subr.mxu0 0.0
        %820 = vmatpush1.msra.mxu0 0.0
        %821 = vmatprep.subr.mxu0 0.0
        %822 = vmatpush1.msra.mxu0 0.0
        %823 = vmatprep.subr.mxu0 0.0
        %824 = vmatpush1.msra.mxu0 0.0
        %825 = vmatprep.subr.mxu0 0.0
        %826 = vmatpush1.msra.mxu0 0.0
        %827 = vmatprep.subr.mxu0 0.0
        %828 = vmatpush1.msra.mxu0 0.0
        %829 = vmatprep.subr.mxu0 0.0
        %830 = vmatpush1.msra.mxu0 0.0
        %831 = vmatprep.subr.mxu0 0.0
        %832 = vmatpush1.msra.mxu0 0.0
        %833 = vmatprep.subr.mxu0 0.0
        %834 = vmatpush1.msra.mxu0 0.0
        %835 = vmatprep.subr.mxu0 0.0
        %836 = vmatpush1.msra.mxu0 0.0
        %837 = vmatprep.subr.mxu0 0.0
        %838 = vmatpush1.msra.mxu0 0.0
        %839 = vmatprep.subr.mxu0 0.0
        %840 = vmatpush1.msra.mxu0 0.0
        %841 = vmatprep.subr.mxu0 0.0
        %842 = vmatpush1.msra.mxu0 0.0
        %843 = vmatprep.subr.mxu0 0.0
        %844 = vmatpush1.msra.mxu0 0.0
        %845 = vmatprep.subr.mxu0 0.0
        %846 = vmatpush1.msra.mxu0 0.0
        %847 = vmatprep.subr.mxu0 0.0
        %848 = vmatpush1.msra.mxu0 0.0
        %849 = vmatprep.subr.mxu0 0.0
        %850 = vmatpush1.msra.mxu0 0.0
        %851 = vmatprep.subr.mxu0 0.0
        %852 = vmatpush1.msra.mxu0 0.0
        %853 = vmatprep.subr.mxu0 0.0
        %854 = vmatpush1.msra.mxu0 0.0
        %855 = vmatprep.subr.mxu0 0.0
        %856 = vmatpush1.msra.mxu0 0.0
        %857 = vmatprep.subr.mxu0 0.0
        %858 = vmatpush1.msra.mxu0 0.0
        %859 = vmatprep.subr.mxu0 0.0
        %860 = vmatpush1.msra.mxu0 0.0
        %861 = vmatprep.mubr.f32.mxu0 0.0
        %v862 = vand.u32 %v479, 4294901760
        %v863 = vsub.f32 %v479, %v862
        %v864 = vand.u32 %v863, 4294901760
        %865 = vmatmul.mubr.f32.gmra.mrb[0].mxu0 %v864
        %v866 = vpop.f32.mrb[0].mxu0
        %v867 = vadd.f32 %v779, %v866
        %v868 = vpop.f32.mrb[0].mxu0
        %869 = vmatprep.mubr.f32.mxu0 0.0
        %v870 = vand.u32 %v482, 4294901760
        %v871 = vsub.f32 %v482, %v870
        %v872 = vand.u32 %v871, 4294901760
        %873 = vmatmul.mubr.f32.gmra.mrb[0].mxu0 %v872
        %v874 = vpop.f32.mrb[0].mxu0
        %v875 = vadd.f32 %v786, %v874
        %v876 = vpop.f32.mrb[0].mxu0
        %877 = vdwg.mxu0
        %878 = vmatprep.subr.mxu0 0.0
        %v879 = vand.u32 %v470, 4294901760
        %v880 = vsub.f32 %v470, %v879
        %v881 = vand.u32 %v880, 4294901760
        %882 = vmatpush1.msra.mxu0 %v881
        %883 = vmatprep.subr.mxu0 0.0
        %v884 = vand.u32 %v471, 4294901760
        %v885 = vsub.f32 %v471, %v884
        %v886 = vand.u32 %v885, 4294901760
        %887 = vmatpush1.msra.mxu0 %v886
        %888 = vmatprep.subr.mxu0 0.0
        %v889 = vand.u32 %v472, 4294901760
        %v890 = vsub.f32 %v472, %v889
        %v891 = vand.u32 %v890, 4294901760
        %892 = vmatpush1.msra.mxu0 %v891
        %893 = vmatprep.subr.mxu0 0.0
        %v894 = vand.u32 %v473, 4294901760
        %v895 = vsub.f32 %v473, %v894
        %v896 = vand.u32 %v895, 4294901760
        %897 = vmatpush1.msra.mxu0 %v896
        %898 = vmatprep.subr.mxu0 0.0
        %v899 = vand.u32 %v474, 4294901760
        %v900 = vsub.f32 %v474, %v899
        %v901 = vand.u32 %v900, 4294901760
        %902 = vmatpush1.msra.mxu0 %v901
        %903 = vmatprep.subr.mxu0 0.0
        %v904 = vand.u32 %v475, 4294901760
        %v905 = vsub.f32 %v475, %v904
        %v906 = vand.u32 %v905, 4294901760
        %907 = vmatpush1.msra.mxu0 %v906
        %908 = vmatprep.subr.mxu0 0.0
        %v909 = vand.u32 %v476, 4294901760
        %v910 = vsub.f32 %v476, %v909
        %v911 = vand.u32 %v910, 4294901760
        %912 = vmatpush1.msra.mxu0 %v911
        %913 = vmatprep.subr.mxu0 0.0
        %v914 = vand.u32 %v477, 4294901760
        %v915 = vsub.f32 %v477, %v914
        %v916 = vand.u32 %v915, 4294901760
        %917 = vmatpush1.msra.mxu0 %v916
        %918 = vmatprep.subr.mxu0 0.0
        %919 = vmatpush1.msra.mxu0 0.0
        %920 = vmatprep.subr.mxu0 0.0
        %921 = vmatpush1.msra.mxu0 0.0
        %922 = vmatprep.subr.mxu0 0.0
        %923 = vmatpush1.msra.mxu0 0.0
        %924 = vmatprep.subr.mxu0 0.0
        %925 = vmatpush1.msra.mxu0 0.0
        %926 = vmatprep.subr.mxu0 0.0
        %927 = vmatpush1.msra.mxu0 0.0
        %928 = vmatprep.subr.mxu0 0.0
        %929 = vmatpush1.msra.mxu0 0.0
        %930 = vmatprep.subr.mxu0 0.0
        %931 = vmatpush1.msra.mxu0 0.0
        %932 = vmatprep.subr.mxu0 0.0
        %933 = vmatpush1.msra.mxu0 0.0
        %934 = vmatprep.subr.mxu0 0.0
        %935 = vmatpush1.msra.mxu0 0.0
        %936 = vmatprep.subr.mxu0 0.0
        %937 = vmatpush1.msra.mxu0 0.0
        %938 = vmatprep.subr.mxu0 0.0
        %939 = vmatpush1.msra.mxu0 0.0
        %940 = vmatprep.subr.mxu0 0.0
        %941 = vmatpush1.msra.mxu0 0.0
        %942 = vmatprep.subr.mxu0 0.0
        %943 = vmatpush1.msra.mxu0 0.0
        %944 = vmatprep.subr.mxu0 0.0
        %945 = vmatpush1.msra.mxu0 0.0
        %946 = vmatprep.subr.mxu0 0.0
        %947 = vmatpush1.msra.mxu0 0.0
        %948 = vmatprep.subr.mxu0 0.0
        %949 = vmatpush1.msra.mxu0 0.0
        %950 = vmatprep.subr.mxu0 0.0
        %951 = vmatpush1.msra.mxu0 0.0
        %952 = vmatprep.subr.mxu0 0.0
        %953 = vmatpush1.msra.mxu0 0.0
        %954 = vmatprep.subr.mxu0 0.0
        %955 = vmatpush1.msra.mxu0 0.0
        %956 = vmatprep.subr.mxu0 0.0
        %957 = vmatpush1.msra.mxu0 0.0
        %958 = vmatprep.subr.mxu0 0.0
        %959 = vmatpush1.msra.mxu0 0.0
        %960 = vmatprep.subr.mxu0 0.0
        %961 = vmatpush1.msra.mxu0 0.0
        %962 = vmatprep.subr.mxu0 0.0
        %963 = vmatpush1.msra.mxu0 0.0
        %964 = vmatprep.subr.mxu0 0.0
        %965 = vmatpush1.msra.mxu0 0.0
        %966 = vmatprep.mubr.f32.mxu0 0.0
        %v967 = vand.u32 %v479, 4294901760
        %968 = vmatmul.mubr.f32.gmra.mrb[0].mxu0 %v967
        %v969 = vpop.f32.mrb[0].mxu0
        %v970 = vadd.f32 %v867, %v969
        %v971 = vpop.f32.mrb[0].mxu0
        %972 = vmatprep.mubr.f32.mxu0 0.0
        %v973 = vand.u32 %v482, 4294901760
        %974 = vmatmul.mubr.f32.gmra.mrb[0].mxu0 %v973
        %v975 = vpop.f32.mrb[0].mxu0
        %v976 = vadd.f32 %v875, %v975
        %v977 = vpop.f32.mrb[0].mxu0
        %978 = vdwg.mxu0
        %979 = vmatprep.subr.mxu0 0.0
        %v980 = vand.u32 %v470, 4294901760
        %981 = vmatpush1.msra.mxu0 %v980
        %982 = vmatprep.subr.mxu0 0.0
        %v983 = vand.u32 %v471, 4294901760
        %984 = vmatpush1.msra.mxu0 %v983
        %985 = vmatprep.subr.mxu0 0.0
        %v986 = vand.u32 %v472, 4294901760
        %987 = vmatpush1.msra.mxu0 %v986
        %988 = vmatprep.subr.mxu0 0.0
        %v989 = vand.u32 %v473, 4294901760
        %990 = vmatpush1.msra.mxu0 %v989
        %991 = vmatprep.subr.mxu0 0.0
        %v992 = vand.u32 %v474, 4294901760
        %993 = vmatpush1.msra.mxu0 %v992
        %994 = vmatprep.subr.mxu0 0.0
        %v995 = vand.u32 %v475, 4294901760
        %996 = vmatpush1.msra.mxu0 %v995
        %997 = vmatprep.subr.mxu0 0.0
        %v998 = vand.u32 %v476, 4294901760
        %999 = vmatpush1.msra.mxu0 %v998
        %1000 = vmatprep.subr.mxu0 0.0
        %v1001 = vand.u32 %v477, 4294901760
        %1002 = vmatpush1.msra.mxu0 %v1001
        %1003 = vmatprep.subr.mxu0 0.0
        %1004 = vmatpush1.msra.mxu0 0.0
        %1005 = vmatprep.subr.mxu0 0.0
        %1006 = vmatpush1.msra.mxu0 0.0
        %1007 = vmatprep.subr.mxu0 0.0
        %1008 = vmatpush1.msra.mxu0 0.0
        %1009 = vmatprep.subr.mxu0 0.0
        %1010 = vmatpush1.msra.mxu0 0.0
        %1011 = vmatprep.subr.mxu0 0.0
        %1012 = vmatpush1.msra.mxu0 0.0
        %1013 = vmatprep.subr.mxu0 0.0
        %1014 = vmatpush1.msra.mxu0 0.0
        %1015 = vmatprep.subr.mxu0 0.0
        %1016 = vmatpush1.msra.mxu0 0.0
        %1017 = vmatprep.subr.mxu0 0.0
        %1018 = vmatpush1.msra.mxu0 0.0
        %1019 = vmatprep.subr.mxu0 0.0
        %1020 = vmatpush1.msra.mxu0 0.0
        %1021 = vmatprep.subr.mxu0 0.0
        %1022 = vmatpush1.msra.mxu0 0.0
        %1023 = vmatprep.subr.mxu0 0.0
        %1024 = vmatpush1.msra.mxu0 0.0
        %1025 = vmatprep.subr.mxu0 0.0
        %1026 = vmatpush1.msra.mxu0 0.0
        %1027 = vmatprep.subr.mxu0 0.0
        %1028 = vmatpush1.msra.mxu0 0.0
        %1029 = vmatprep.subr.mxu0 0.0
        %1030 = vmatpush1.msra.mxu0 0.0
        %1031 = vmatprep.subr.mxu0 0.0
        %1032 = vmatpush1.msra.mxu0 0.0
        %1033 = vmatprep.subr.mxu0 0.0
        %1034 = vmatpush1.msra.mxu0 0.0
        %1035 = vmatprep.subr.mxu0 0.0
        %1036 = vmatpush1.msra.mxu0 0.0
        %1037 = vmatprep.subr.mxu0 0.0
        %1038 = vmatpush1.msra.mxu0 0.0
        %1039 = vmatprep.subr.mxu0 0.0
        %1040 = vmatpush1.msra.mxu0 0.0
        %1041 = vmatprep.subr.mxu0 0.0
        %1042 = vmatpush1.msra.mxu0 0.0
        %1043 = vmatprep.subr.mxu0 0.0
        %1044 = vmatpush1.msra.mxu0 0.0
        %1045 = vmatprep.subr.mxu0 0.0
        %1046 = vmatpush1.msra.mxu0 0.0
        %1047 = vmatprep.subr.mxu0 0.0
        %1048 = vmatpush1.msra.mxu0 0.0
        %1049 = vmatprep.subr.mxu0 0.0
        %1050 = vmatpush1.msra.mxu0 0.0
        %1051 = vmatprep.mubr.f32.mxu0 0.0
        %v1052 = vand.u32 %v479, 4294901760
        %1053 = vmatmul.mubr.f32.gmra.mrb[0].mxu0 %v1052
        %v1054 = vpop.f32.mrb[0].mxu0
        %v1055 = vadd.f32 %v970, %v1054
        %v1056 = vpop.f32.mrb[0].mxu0
        %1057 = vmatprep.mubr.f32.mxu0 0.0
        %v1058 = vand.u32 %v482, 4294901760
        %1059 = vmatmul.mubr.f32.gmra.mrb[0].mxu0 %v1058
        %v1060 = vpop.f32.mrb[0].mxu0
        %v1061 = vadd.f32 %v976, %v1060
        %v1062 = vpop.f32.mrb[0].mxu0
        %1063 = vdwg.mxu0
        %v1065 = vsel %vm454, %v457, 0
        %v1068 = vsel %vm454, %v458, 0
        %1070 = vmatprep.subr.mxu0 0.0
        %v1071 = vand.u32 %v459, 4294901760
        %1072 = vmatpush1.msra.mxu0 %v1071
        %1073 = vmatprep.subr.mxu0 0.0
        %v1074 = vand.u32 %v460, 4294901760
        %1075 = vmatpush1.msra.mxu0 %v1074
        %1076 = vmatprep.subr.mxu0 0.0
        %v1077 = vand.u32 %v461, 4294901760
        %1078 = vmatpush1.msra.mxu0 %v1077
        %1079 = vmatprep.subr.mxu0 0.0
        %v1080 = vand.u32 %v462, 4294901760
        %1081 = vmatpush1.msra.mxu0 %v1080
        %1082 = vmatprep.subr.mxu0 0.0
        %v1083 = vand.u32 %v463, 4294901760
        %1084 = vmatpush1.msra.mxu0 %v1083
        %1085 = vmatprep.subr.mxu0 0.0
        %v1086 = vand.u32 %v464, 4294901760
        %1087 = vmatpush1.msra.mxu0 %v1086
        %1088 = vmatprep.subr.mxu0 0.0
        %v1089 = vand.u32 %v465, 4294901760
        %1090 = vmatpush1.msra.mxu0 %v1089
        %1091 = vmatprep.subr.mxu0 0.0
        %v1092 = vand.u32 %v466, 4294901760
        %1093 = vmatpush1.msra.mxu0 %v1092
        %1094 = vmatprep.subr.mxu0 0.0
        %1095 = vmatpush1.msra.mxu0 0.0
        %1096 = vmatprep.subr.mxu0 0.0
        %1097 = vmatpush1.msra.mxu0 0.0
        %1098 = vmatprep.subr.mxu0 0.0
        %1099 = vmatpush1.msra.mxu0 0.0
        %1100 = vmatprep.subr.mxu0 0.0
        %1101 = vmatpush1.msra.mxu0 0.0
        %1102 = vmatprep.subr.mxu0 0.0
        %1103 = vmatpush1.msra.mxu0 0.0
        %1104 = vmatprep.subr.mxu0 0.0
        %1105 = vmatpush1.msra.mxu0 0.0
        %1106 = vmatprep.subr.mxu0 0.0
        %1107 = vmatpush1.msra.mxu0 0.0
        %1108 = vmatprep.subr.mxu0 0.0
        %1109 = vmatpush1.msra.mxu0 0.0
        %1110 = vmatprep.subr.mxu0 0.0
        %1111 = vmatpush1.msra.mxu0 0.0
        %1112 = vmatprep.subr.mxu0 0.0
        %1113 = vmatpush1.msra.mxu0 0.0
        %1114 = vmatprep.subr.mxu0 0.0
        %1115 = vmatpush1.msra.mxu0 0.0
        %1116 = vmatprep.subr.mxu0 0.0
        %1117 = vmatpush1.msra.mxu0 0.0
        %1118 = vmatprep.subr.mxu0 0.0
        %1119 = vmatpush1.msra.mxu0 0.0
        %1120 = vmatprep.subr.mxu0 0.0
        %1121 = vmatpush1.msra.mxu0 0.0
        %1122 = vmatprep.subr.mxu0 0.0
        %1123 = vmatpush1.msra.mxu0 0.0
        %1124 = vmatprep.subr.mxu0 0.0
        %1125 = vmatpush1.msra.mxu0 0.0
        %1126 = vmatprep.subr.mxu0 0.0
        %1127 = vmatpush1.msra.mxu0 0.0
        %1128 = vmatprep.subr.mxu0 0.0
        %1129 = vmatpush1.msra.mxu0 0.0
        %1130 = vmatprep.subr.mxu0 0.0
        %1131 = vmatpush1.msra.mxu0 0.0
        %1132 = vmatprep.subr.mxu0 0.0
        %1133 = vmatpush1.msra.mxu0 0.0
        %1134 = vmatprep.subr.mxu0 0.0
        %1135 = vmatpush1.msra.mxu0 0.0
        %1136 = vmatprep.subr.mxu0 0.0
        %1137 = vmatpush1.msra.mxu0 0.0
        %1138 = vmatprep.subr.mxu0 0.0
        %1139 = vmatpush1.msra.mxu0 0.0
        %1140 = vmatprep.subr.mxu0 0.0
        %1141 = vmatpush1.msra.mxu0 0.0
        %1142 = vmatprep.mubr.f32.mxu0 0.0
        %v1143 = vand.u32 %v1065, 4294901760
        %v1144 = vsub.f32 %v1065, %v1143
        %v1145 = vand.u32 %v1144, 4294901760
        %v1146 = vsub.f32 %v1144, %v1145
        %v1147 = vand.u32 %v1146, 4294901760
        %1148 = vmatmul.mubr.f32.gmra.mrb[0].mxu0 %v1147
        %v1149 = vpop.f32.mrb[0].mxu0
        %v1150 = vadd.f32 %v1055, %v1149
        %v1151 = vpop.f32.mrb[0].mxu0
        %1152 = vmatprep.mubr.f32.mxu0 0.0
        %v1153 = vand.u32 %v1068, 4294901760
        %v1154 = vsub.f32 %v1068, %v1153
        %v1155 = vand.u32 %v1154, 4294901760
        %v1156 = vsub.f32 %v1154, %v1155
        %v1157 = vand.u32 %v1156, 4294901760
        %1158 = vmatmul.mubr.f32.gmra.mrb[0].mxu0 %v1157
        %v1159 = vpop.f32.mrb[0].mxu0
        %v1160 = vadd.f32 %v1061, %v1159
        %v1161 = vpop.f32.mrb[0].mxu0
        %1162 = vdwg.mxu0
        %1163 = vmatprep.subr.mxu0 0.0
        %v1164 = vand.u32 %v459, 4294901760
        %v1165 = vsub.f32 %v459, %v1164
        %v1166 = vand.u32 %v1165, 4294901760
        %v1167 = vsub.f32 %v1165, %v1166
        %v1168 = vand.u32 %v1167, 4294901760
        %1169 = vmatpush1.msra.mxu0 %v1168
        %1170 = vmatprep.subr.mxu0 0.0
        %v1171 = vand.u32 %v460, 4294901760
        %v1172 = vsub.f32 %v460, %v1171
        %v1173 = vand.u32 %v1172, 4294901760
        %v1174 = vsub.f32 %v1172, %v1173
        %v1175 = vand.u32 %v1174, 4294901760
        %1176 = vmatpush1.msra.mxu0 %v1175
        %1177 = vmatprep.subr.mxu0 0.0
        %v1178 = vand.u32 %v461, 4294901760
        %v1179 = vsub.f32 %v461, %v1178
        %v1180 = vand.u32 %v1179, 4294901760
        %v1181 = vsub.f32 %v1179, %v1180
        %v1182 = vand.u32 %v1181, 4294901760
        %1183 = vmatpush1.msra.mxu0 %v1182
        %1184 = vmatprep.subr.mxu0 0.0
        %v1185 = vand.u32 %v462, 4294901760
        %v1186 = vsub.f32 %v462, %v1185
        %v1187 = vand.u32 %v1186, 4294901760
        %v1188 = vsub.f32 %v1186, %v1187
        %v1189 = vand.u32 %v1188, 4294901760
        %1190 = vmatpush1.msra.mxu0 %v1189
        %1191 = vmatprep.subr.mxu0 0.0
        %v1192 = vand.u32 %v463, 4294901760
        %v1193 = vsub.f32 %v463, %v1192
        %v1194 = vand.u32 %v1193, 4294901760
        %v1195 = vsub.f32 %v1193, %v1194
        %v1196 = vand.u32 %v1195, 4294901760
        %1197 = vmatpush1.msra.mxu0 %v1196
        %1198 = vmatprep.subr.mxu0 0.0
        %v1199 = vand.u32 %v464, 4294901760
        %v1200 = vsub.f32 %v464, %v1199
        %v1201 = vand.u32 %v1200, 4294901760
        %v1202 = vsub.f32 %v1200, %v1201
        %v1203 = vand.u32 %v1202, 4294901760
        %1204 = vmatpush1.msra.mxu0 %v1203
        %1205 = vmatprep.subr.mxu0 0.0
        %v1206 = vand.u32 %v465, 4294901760
        %v1207 = vsub.f32 %v465, %v1206
        %v1208 = vand.u32 %v1207, 4294901760
        %v1209 = vsub.f32 %v1207, %v1208
        %v1210 = vand.u32 %v1209, 4294901760
        %1211 = vmatpush1.msra.mxu0 %v1210
        %1212 = vmatprep.subr.mxu0 0.0
        %v1213 = vand.u32 %v466, 4294901760
        %v1214 = vsub.f32 %v466, %v1213
        %v1215 = vand.u32 %v1214, 4294901760
        %v1216 = vsub.f32 %v1214, %v1215
        %v1217 = vand.u32 %v1216, 4294901760
        %1218 = vmatpush1.msra.mxu0 %v1217
        %1219 = vmatprep.subr.mxu0 0.0
        %1220 = vmatpush1.msra.mxu0 0.0
        %1221 = vmatprep.subr.mxu0 0.0
        %1222 = vmatpush1.msra.mxu0 0.0
        %1223 = vmatprep.subr.mxu0 0.0
        %1224 = vmatpush1.msra.mxu0 0.0
        %1225 = vmatprep.subr.mxu0 0.0
        %1226 = vmatpush1.msra.mxu0 0.0
        %1227 = vmatprep.subr.mxu0 0.0
        %1228 = vmatpush1.msra.mxu0 0.0
        %1229 = vmatprep.subr.mxu0 0.0
        %1230 = vmatpush1.msra.mxu0 0.0
        %1231 = vmatprep.subr.mxu0 0.0
        %1232 = vmatpush1.msra.mxu0 0.0
        %1233 = vmatprep.subr.mxu0 0.0
        %1234 = vmatpush1.msra.mxu0 0.0
        %1235 = vmatprep.subr.mxu0 0.0
        %1236 = vmatpush1.msra.mxu0 0.0
        %1237 = vmatprep.subr.mxu0 0.0
        %1238 = vmatpush1.msra.mxu0 0.0
        %1239 = vmatprep.subr.mxu0 0.0
        %1240 = vmatpush1.msra.mxu0 0.0
        %1241 = vmatprep.subr.mxu0 0.0
        %1242 = vmatpush1.msra.mxu0 0.0
        %1243 = vmatprep.subr.mxu0 0.0
        %1244 = vmatpush1.msra.mxu0 0.0
        %1245 = vmatprep.subr.mxu0 0.0
        %1246 = vmatpush1.msra.mxu0 0.0
        %1247 = vmatprep.subr.mxu0 0.0
        %1248 = vmatpush1.msra.mxu0 0.0
        %1249 = vmatprep.subr.mxu0 0.0
        %1250 = vmatpush1.msra.mxu0 0.0
        %1251 = vmatprep.subr.mxu0 0.0
        %1252 = vmatpush1.msra.mxu0 0.0
        %1253 = vmatprep.subr.mxu0 0.0
        %1254 = vmatpush1.msra.mxu0 0.0
        %1255 = vmatprep.subr.mxu0 0.0
        %1256 = vmatpush1.msra.mxu0 0.0
        %1257 = vmatprep.subr.mxu0 0.0
        %1258 = vmatpush1.msra.mxu0 0.0
        %1259 = vmatprep.subr.mxu0 0.0
        %1260 = vmatpush1.msra.mxu0 0.0
        %1261 = vmatprep.subr.mxu0 0.0
        %1262 = vmatpush1.msra.mxu0 0.0
        %1263 = vmatprep.subr.mxu0 0.0
        %1264 = vmatpush1.msra.mxu0 0.0
        %1265 = vmatprep.subr.mxu0 0.0
        %1266 = vmatpush1.msra.mxu0 0.0
        %1267 = vmatprep.mubr.f32.mxu0 0.0
        %v1268 = vand.u32 %v1065, 4294901760
        %1269 = vmatmul.mubr.f32.gmra.mrb[0].mxu0 %v1268
        %v1270 = vpop.f32.mrb[0].mxu0
        %v1271 = vadd.f32 %v1150, %v1270
        %v1272 = vpop.f32.mrb[0].mxu0
        %1273 = vmatprep.mubr.f32.mxu0 0.0
        %v1274 = vand.u32 %v1068, 4294901760
        %1275 = vmatmul.mubr.f32.gmra.mrb[0].mxu0 %v1274
        %v1276 = vpop.f32.mrb[0].mxu0
        %v1277 = vadd.f32 %v1160, %v1276
        %v1278 = vpop.f32.mrb[0].mxu0
        %1279 = vdwg.mxu0
        %1280 = vmatprep.subr.mxu0 0.0
        %v1281 = vand.u32 %v459, 4294901760
        %v1282 = vsub.f32 %v459, %v1281
        %1283 = vmatpush1.msra.mxu0 %v1282
        %1284 = vmatprep.subr.mxu0 0.0
        %v1285 = vand.u32 %v460, 4294901760
        %v1286 = vsub.f32 %v460, %v1285
        %1287 = vmatpush1.msra.mxu0 %v1286
        %1288 = vmatprep.subr.mxu0 0.0
        %v1289 = vand.u32 %v461, 4294901760
        %v1290 = vsub.f32 %v461, %v1289
        %1291 = vmatpush1.msra.mxu0 %v1290
        %1292 = vmatprep.subr.mxu0 0.0
        %v1293 = vand.u32 %v462, 4294901760
        %v1294 = vsub.f32 %v462, %v1293
        %1295 = vmatpush1.msra.mxu0 %v1294
        %1296 = vmatprep.subr.mxu0 0.0
        %v1297 = vand.u32 %v463, 4294901760
        %v1298 = vsub.f32 %v463, %v1297
        %1299 = vmatpush1.msra.mxu0 %v1298
        %1300 = vmatprep.subr.mxu0 0.0
        %v1301 = vand.u32 %v464, 4294901760
        %v1302 = vsub.f32 %v464, %v1301
        %1303 = vmatpush1.msra.mxu0 %v1302
        %1304 = vmatprep.subr.mxu0 0.0
        %v1305 = vand.u32 %v465, 4294901760
        %v1306 = vsub.f32 %v465, %v1305
        %1307 = vmatpush1.msra.mxu0 %v1306
        %1308 = vmatprep.subr.mxu0 0.0
        %v1309 = vand.u32 %v466, 4294901760
        %v1310 = vsub.f32 %v466, %v1309
        %1311 = vmatpush1.msra.mxu0 %v1310
        %1312 = vmatprep.subr.mxu0 0.0
        %1313 = vmatpush1.msra.mxu0 0.0
        %1314 = vmatprep.subr.mxu0 0.0
        %1315 = vmatpush1.msra.mxu0 0.0
        %1316 = vmatprep.subr.mxu0 0.0
        %1317 = vmatpush1.msra.mxu0 0.0
        %1318 = vmatprep.subr.mxu0 0.0
        %1319 = vmatpush1.msra.mxu0 0.0
        %1320 = vmatprep.subr.mxu0 0.0
        %1321 = vmatpush1.msra.mxu0 0.0
        %1322 = vmatprep.subr.mxu0 0.0
        %1323 = vmatpush1.msra.mxu0 0.0
        %1324 = vmatprep.subr.mxu0 0.0
        %1325 = vmatpush1.msra.mxu0 0.0
        %1326 = vmatprep.subr.mxu0 0.0
        %1327 = vmatpush1.msra.mxu0 0.0
        %1328 = vmatprep.subr.mxu0 0.0
        %1329 = vmatpush1.msra.mxu0 0.0
        %1330 = vmatprep.subr.mxu0 0.0
        %1331 = vmatpush1.msra.mxu0 0.0
        %1332 = vmatprep.subr.mxu0 0.0
        %1333 = vmatpush1.msra.mxu0 0.0
        %1334 = vmatprep.subr.mxu0 0.0
        %1335 = vmatpush1.msra.mxu0 0.0
        %1336 = vmatprep.subr.mxu0 0.0
        %1337 = vmatpush1.msra.mxu0 0.0
        %1338 = vmatprep.subr.mxu0 0.0
        %1339 = vmatpush1.msra.mxu0 0.0
        %1340 = vmatprep.subr.mxu0 0.0
        %1341 = vmatpush1.msra.mxu0 0.0
        %1342 = vmatprep.subr.mxu0 0.0
        %1343 = vmatpush1.msra.mxu0 0.0
        %1344 = vmatprep.subr.mxu0 0.0
        %1345 = vmatpush1.msra.mxu0 0.0
        %1346 = vmatprep.subr.mxu0 0.0
        %1347 = vmatpush1.msra.mxu0 0.0
        %1348 = vmatprep.subr.mxu0 0.0
        %1349 = vmatpush1.msra.mxu0 0.0
        %1350 = vmatprep.subr.mxu0 0.0
        %1351 = vmatpush1.msra.mxu0 0.0
        %1352 = vmatprep.subr.mxu0 0.0
        %1353 = vmatpush1.msra.mxu0 0.0
        %1354 = vmatprep.subr.mxu0 0.0
        %1355 = vmatpush1.msra.mxu0 0.0
        %1356 = vmatprep.subr.mxu0 0.0
        %1357 = vmatpush1.msra.mxu0 0.0
        %1358 = vmatprep.subr.mxu0 0.0
        %1359 = vmatpush1.msra.mxu0 0.0
        %1360 = vmatprep.mubr.f32.mxu0 0.0
        %v1361 = vand.u32 %v1065, 4294901760
        %v1362 = vsub.f32 %v1065, %v1361
        %1363 = vmatmul.mubr.f32.gmra.mrb[0].mxu0 %v1362
        %v1364 = vpop.f32.mrb[0].mxu0
        %v1365 = vadd.f32 %v1271, %v1364
        %v1366 = vpop.f32.mrb[0].mxu0
        %1367 = vmatprep.mubr.f32.mxu0 0.0
        %v1368 = vand.u32 %v1068, 4294901760
        %v1369 = vsub.f32 %v1068, %v1368
        %1370 = vmatmul.mubr.f32.gmra.mrb[0].mxu0 %v1369
        %v1371 = vpop.f32.mrb[0].mxu0
        %v1372 = vadd.f32 %v1277, %v1371
        %v1373 = vpop.f32.mrb[0].mxu0
        %1374 = vdwg.mxu0
        %1375 = vmatprep.subr.mxu0 0.0
        %v1376 = vand.u32 %v459, 4294901760
        %1377 = vmatpush1.msra.mxu0 %v1376
        %1378 = vmatprep.subr.mxu0 0.0
        %v1379 = vand.u32 %v460, 4294901760
        %1380 = vmatpush1.msra.mxu0 %v1379
        %1381 = vmatprep.subr.mxu0 0.0
        %v1382 = vand.u32 %v461, 4294901760
        %1383 = vmatpush1.msra.mxu0 %v1382
        %1384 = vmatprep.subr.mxu0 0.0
        %v1385 = vand.u32 %v462, 4294901760
        %1386 = vmatpush1.msra.mxu0 %v1385
        %1387 = vmatprep.subr.mxu0 0.0
        %v1388 = vand.u32 %v463, 4294901760
        %1389 = vmatpush1.msra.mxu0 %v1388
        %1390 = vmatprep.subr.mxu0 0.0
        %v1391 = vand.u32 %v464, 4294901760
        %1392 = vmatpush1.msra.mxu0 %v1391
        %1393 = vmatprep.subr.mxu0 0.0
        %v1394 = vand.u32 %v465, 4294901760
        %1395 = vmatpush1.msra.mxu0 %v1394
        %1396 = vmatprep.subr.mxu0 0.0
        %v1397 = vand.u32 %v466, 4294901760
        %1398 = vmatpush1.msra.mxu0 %v1397
        %1399 = vmatprep.subr.mxu0 0.0
        %1400 = vmatpush1.msra.mxu0 0.0
        %1401 = vmatprep.subr.mxu0 0.0
        %1402 = vmatpush1.msra.mxu0 0.0
        %1403 = vmatprep.subr.mxu0 0.0
        %1404 = vmatpush1.msra.mxu0 0.0
        %1405 = vmatprep.subr.mxu0 0.0
        %1406 = vmatpush1.msra.mxu0 0.0
        %1407 = vmatprep.subr.mxu0 0.0
        %1408 = vmatpush1.msra.mxu0 0.0
        %1409 = vmatprep.subr.mxu0 0.0
        %1410 = vmatpush1.msra.mxu0 0.0
        %1411 = vmatprep.subr.mxu0 0.0
        %1412 = vmatpush1.msra.mxu0 0.0
        %1413 = vmatprep.subr.mxu0 0.0
        %1414 = vmatpush1.msra.mxu0 0.0
        %1415 = vmatprep.subr.mxu0 0.0
        %1416 = vmatpush1.msra.mxu0 0.0
        %1417 = vmatprep.subr.mxu0 0.0
        %1418 = vmatpush1.msra.mxu0 0.0
        %1419 = vmatprep.subr.mxu0 0.0
        %1420 = vmatpush1.msra.mxu0 0.0
        %1421 = vmatprep.subr.mxu0 0.0
        %1422 = vmatpush1.msra.mxu0 0.0
        %1423 = vmatprep.subr.mxu0 0.0
        %1424 = vmatpush1.msra.mxu0 0.0
        %1425 = vmatprep.subr.mxu0 0.0
        %1426 = vmatpush1.msra.mxu0 0.0
        %1427 = vmatprep.subr.mxu0 0.0
        %1428 = vmatpush1.msra.mxu0 0.0
        %1429 = vmatprep.subr.mxu0 0.0
        %1430 = vmatpush1.msra.mxu0 0.0
        %1431 = vmatprep.subr.mxu0 0.0
        %1432 = vmatpush1.msra.mxu0 0.0
        %1433 = vmatprep.subr.mxu0 0.0
        %1434 = vmatpush1.msra.mxu0 0.0
        %1435 = vmatprep.subr.mxu0 0.0
        %1436 = vmatpush1.msra.mxu0 0.0
        %1437 = vmatprep.subr.mxu0 0.0
        %1438 = vmatpush1.msra.mxu0 0.0
        %1439 = vmatprep.subr.mxu0 0.0
        %1440 = vmatpush1.msra.mxu0 0.0
        %1441 = vmatprep.subr.mxu0 0.0
        %1442 = vmatpush1.msra.mxu0 0.0
        %1443 = vmatprep.subr.mxu0 0.0
        %1444 = vmatpush1.msra.mxu0 0.0
        %1445 = vmatprep.subr.mxu0 0.0
        %1446 = vmatpush1.msra.mxu0 0.0
        %1447 = vmatprep.mubr.f32.mxu0 0.0
        %v1448 = vand.u32 %v1065, 4294901760
        %v1449 = vsub.f32 %v1065, %v1448
        %v1450 = vand.u32 %v1449, 4294901760
        %1451 = vmatmul.mubr.f32.gmra.mrb[0].mxu0 %v1450
        %v1452 = vpop.f32.mrb[0].mxu0
        %v1453 = vadd.f32 %v1365, %v1452
        %v1454 = vpop.f32.mrb[0].mxu0
        %1455 = vmatprep.mubr.f32.mxu0 0.0
        %v1456 = vand.u32 %v1068, 4294901760
        %v1457 = vsub.f32 %v1068, %v1456
        %v1458 = vand.u32 %v1457, 4294901760
        %1459 = vmatmul.mubr.f32.gmra.mrb[0].mxu0 %v1458
        %v1460 = vpop.f32.mrb[0].mxu0
        %v1461 = vadd.f32 %v1372, %v1460
        %v1462 = vpop.f32.mrb[0].mxu0
        %1463 = vdwg.mxu0
        %1464 = vmatprep.subr.mxu0 0.0
        %v1465 = vand.u32 %v459, 4294901760
        %v1466 = vsub.f32 %v459, %v1465
        %v1467 = vand.u32 %v1466, 4294901760
        %1468 = vmatpush1.msra.mxu0 %v1467
        %1469 = vmatprep.subr.mxu0 0.0
        %v1470 = vand.u32 %v460, 4294901760
        %v1471 = vsub.f32 %v460, %v1470
        %v1472 = vand.u32 %v1471, 4294901760
        %1473 = vmatpush1.msra.mxu0 %v1472
        %1474 = vmatprep.subr.mxu0 0.0
        %v1475 = vand.u32 %v461, 4294901760
        %v1476 = vsub.f32 %v461, %v1475
        %v1477 = vand.u32 %v1476, 4294901760
        %1478 = vmatpush1.msra.mxu0 %v1477
        %1479 = vmatprep.subr.mxu0 0.0
        %v1480 = vand.u32 %v462, 4294901760
        %v1481 = vsub.f32 %v462, %v1480
        %v1482 = vand.u32 %v1481, 4294901760
        %1483 = vmatpush1.msra.mxu0 %v1482
        %1484 = vmatprep.subr.mxu0 0.0
        %v1485 = vand.u32 %v463, 4294901760
        %v1486 = vsub.f32 %v463, %v1485
        %v1487 = vand.u32 %v1486, 4294901760
        %1488 = vmatpush1.msra.mxu0 %v1487
        %1489 = vmatprep.subr.mxu0 0.0
        %v1490 = vand.u32 %v464, 4294901760
        %v1491 = vsub.f32 %v464, %v1490
        %v1492 = vand.u32 %v1491, 4294901760
        %1493 = vmatpush1.msra.mxu0 %v1492
        %1494 = vmatprep.subr.mxu0 0.0
        %v1495 = vand.u32 %v465, 4294901760
        %v1496 = vsub.f32 %v465, %v1495
        %v1497 = vand.u32 %v1496, 4294901760
        %1498 = vmatpush1.msra.mxu0 %v1497
        %1499 = vmatprep.subr.mxu0 0.0
        %v1500 = vand.u32 %v466, 4294901760
        %v1501 = vsub.f32 %v466, %v1500
        %v1502 = vand.u32 %v1501, 4294901760
        %1503 = vmatpush1.msra.mxu0 %v1502
        %1504 = vmatprep.subr.mxu0 0.0
        %1505 = vmatpush1.msra.mxu0 0.0
        %1506 = vmatprep.subr.mxu0 0.0
        %1507 = vmatpush1.msra.mxu0 0.0
        %1508 = vmatprep.subr.mxu0 0.0
        %1509 = vmatpush1.msra.mxu0 0.0
        %1510 = vmatprep.subr.mxu0 0.0
        %1511 = vmatpush1.msra.mxu0 0.0
        %1512 = vmatprep.subr.mxu0 0.0
        %1513 = vmatpush1.msra.mxu0 0.0
        %1514 = vmatprep.subr.mxu0 0.0
        %1515 = vmatpush1.msra.mxu0 0.0
        %1516 = vmatprep.subr.mxu0 0.0
        %1517 = vmatpush1.msra.mxu0 0.0
        %1518 = vmatprep.subr.mxu0 0.0
        %1519 = vmatpush1.msra.mxu0 0.0
        %1520 = vmatprep.subr.mxu0 0.0
        %1521 = vmatpush1.msra.mxu0 0.0
        %1522 = vmatprep.subr.mxu0 0.0
        %1523 = vmatpush1.msra.mxu0 0.0
        %1524 = vmatprep.subr.mxu0 0.0
        %1525 = vmatpush1.msra.mxu0 0.0
        %1526 = vmatprep.subr.mxu0 0.0
        %1527 = vmatpush1.msra.mxu0 0.0
        %1528 = vmatprep.subr.mxu0 0.0
        %1529 = vmatpush1.msra.mxu0 0.0
        %1530 = vmatprep.subr.mxu0 0.0
        %1531 = vmatpush1.msra.mxu0 0.0
        %1532 = vmatprep.subr.mxu0 0.0
        %1533 = vmatpush1.msra.mxu0 0.0
        %1534 = vmatprep.subr.mxu0 0.0
        %1535 = vmatpush1.msra.mxu0 0.0
        %1536 = vmatprep.subr.mxu0 0.0
        %1537 = vmatpush1.msra.mxu0 0.0
        %1538 = vmatprep.subr.mxu0 0.0
        %1539 = vmatpush1.msra.mxu0 0.0
        %1540 = vmatprep.subr.mxu0 0.0
        %1541 = vmatpush1.msra.mxu0 0.0
        %1542 = vmatprep.subr.mxu0 0.0
        %1543 = vmatpush1.msra.mxu0 0.0
        %1544 = vmatprep.subr.mxu0 0.0
        %1545 = vmatpush1.msra.mxu0 0.0
        %1546 = vmatprep.subr.mxu0 0.0
        %1547 = vmatpush1.msra.mxu0 0.0
        %1548 = vmatprep.subr.mxu0 0.0
        %1549 = vmatpush1.msra.mxu0 0.0
        %1550 = vmatprep.subr.mxu0 0.0
        %1551 = vmatpush1.msra.mxu0 0.0
        %1552 = vmatprep.mubr.f32.mxu0 0.0
        %v1553 = vand.u32 %v1065, 4294901760
        %1554 = vmatmul.mubr.f32.gmra.mrb[0].mxu0 %v1553
        %v1555 = vpop.f32.mrb[0].mxu0
        %v1556 = vadd.f32 %v1453, %v1555
        %v1557 = vpop.f32.mrb[0].mxu0
        %1558 = vmatprep.mubr.f32.mxu0 0.0
        %v1559 = vand.u32 %v1068, 4294901760
        %1560 = vmatmul.mubr.f32.gmra.mrb[0].mxu0 %v1559
        %v1561 = vpop.f32.mrb[0].mxu0
        %v1562 = vadd.f32 %v1461, %v1561
        %v1563 = vpop.f32.mrb[0].mxu0
        %1564 = vdwg.mxu0
        %1565 = vmatprep.subr.mxu0 0.0
        %v1566 = vand.u32 %v459, 4294901760
        %1567 = vmatpush1.msra.mxu0 %v1566
        %1568 = vmatprep.subr.mxu0 0.0
        %v1569 = vand.u32 %v460, 4294901760
        %1570 = vmatpush1.msra.mxu0 %v1569
        %1571 = vmatprep.subr.mxu0 0.0
        %v1572 = vand.u32 %v461, 4294901760
        %1573 = vmatpush1.msra.mxu0 %v1572
        %1574 = vmatprep.subr.mxu0 0.0
        %v1575 = vand.u32 %v462, 4294901760
        %1576 = vmatpush1.msra.mxu0 %v1575
        %1577 = vmatprep.subr.mxu0 0.0
        %v1578 = vand.u32 %v463, 4294901760
        %1579 = vmatpush1.msra.mxu0 %v1578
        %1580 = vmatprep.subr.mxu0 0.0
        %v1581 = vand.u32 %v464, 4294901760
        %1582 = vmatpush1.msra.mxu0 %v1581
        %1583 = vmatprep.subr.mxu0 0.0
        %v1584 = vand.u32 %v465, 4294901760
        %1585 = vmatpush1.msra.mxu0 %v1584
        %1586 = vmatprep.subr.mxu0 0.0
        %v1587 = vand.u32 %v466, 4294901760
        %1588 = vmatpush1.msra.mxu0 %v1587
        %1589 = vmatprep.subr.mxu0 0.0
        %1590 = vmatpush1.msra.mxu0 0.0
        %1591 = vmatprep.subr.mxu0 0.0
        %1592 = vmatpush1.msra.mxu0 0.0
        %1593 = vmatprep.subr.mxu0 0.0
        %1594 = vmatpush1.msra.mxu0 0.0
        %1595 = vmatprep.subr.mxu0 0.0
        %1596 = vmatpush1.msra.mxu0 0.0
        %1597 = vmatprep.subr.mxu0 0.0
        %1598 = vmatpush1.msra.mxu0 0.0
        %1599 = vmatprep.subr.mxu0 0.0
        %1600 = vmatpush1.msra.mxu0 0.0
        %1601 = vmatprep.subr.mxu0 0.0
        %1602 = vmatpush1.msra.mxu0 0.0
        %1603 = vmatprep.subr.mxu0 0.0
        %1604 = vmatpush1.msra.mxu0 0.0
        %1605 = vmatprep.subr.mxu0 0.0
        %1606 = vmatpush1.msra.mxu0 0.0
        %1607 = vmatprep.subr.mxu0 0.0
        %1608 = vmatpush1.msra.mxu0 0.0
        %1609 = vmatprep.subr.mxu0 0.0
        %1610 = vmatpush1.msra.mxu0 0.0
        %1611 = vmatprep.subr.mxu0 0.0
        %1612 = vmatpush1.msra.mxu0 0.0
        %1613 = vmatprep.subr.mxu0 0.0
        %1614 = vmatpush1.msra.mxu0 0.0
        %1615 = vmatprep.subr.mxu0 0.0
        %1616 = vmatpush1.msra.mxu0 0.0
        %1617 = vmatprep.subr.mxu0 0.0
        %1618 = vmatpush1.msra.mxu0 0.0
        %1619 = vmatprep.subr.mxu0 0.0
        %1620 = vmatpush1.msra.mxu0 0.0
        %1621 = vmatprep.subr.mxu0 0.0
        %1622 = vmatpush1.msra.mxu0 0.0
        %1623 = vmatprep.subr.mxu0 0.0
        %1624 = vmatpush1.msra.mxu0 0.0
        %1625 = vmatprep.subr.mxu0 0.0
        %1626 = vmatpush1.msra.mxu0 0.0
        %1627 = vmatprep.subr.mxu0 0.0
        %1628 = vmatpush1.msra.mxu0 0.0
        %1629 = vmatprep.subr.mxu0 0.0
        %1630 = vmatpush1.msra.mxu0 0.0
        %1631 = vmatprep.subr.mxu0 0.0
        %1632 = vmatpush1.msra.mxu0 0.0
        %1633 = vmatprep.subr.mxu0 0.0
        %1634 = vmatpush1.msra.mxu0 0.0
        %1635 = vmatprep.subr.mxu0 0.0
        %1636 = vmatpush1.msra.mxu0 0.0
        %1637 = vmatprep.mubr.f32.mxu0 0.0
        %v1638 = vand.u32 %v1065, 4294901760
        %1639 = vmatmul.mubr.f32.gmra.mrb[0].mxu0 %v1638
        %v1640 = vpop.f32.mrb[0].mxu0
        %v1641 = vadd.f32 %v1556, %v1640
        %v1642 = vpop.f32.mrb[0].mxu0
        %1643 = vmatprep.mubr.f32.mxu0 0.0
        %v1644 = vand.u32 %v1068, 4294901760
        %1645 = vmatmul.mubr.f32.gmra.mrb[0].mxu0 %v1644
        %v1646 = vpop.f32.mrb[0].mxu0
        %v1647 = vadd.f32 %v1562, %v1646
        %v1648 = vpop.f32.mrb[0].mxu0
        %1649 = vdwg.mxu0
        %v1650 = vld [vmem:[#allocation2 + $0x2] sm:$0xff]
        %v1651 = vld [vmem:[#allocation2 + $0xa] sm:$0xff]
        %s1652 = scalar_lea.vmem [#allocation8], 128
        %v1653 = vld [vmem:[%s1652] sm:$0xff]
        %v1654 = vld [vmem:[%s1652 + $0x8] sm:$0xff]
        %v1655 = vld [vmem:[%s1652 + $0x10] sm:$0xff]
        %v1656 = vld [vmem:[%s1652 + $0x18] sm:$0xff]
        %v1657 = vld [vmem:[%s1652 + $0x20] sm:$0xff]
        %v1658 = vld [vmem:[%s1652 + $0x28] sm:$0xff]
        %v1659 = vld [vmem:[%s1652 + $0x30] sm:$0xff]
        %v1660 = vld [vmem:[%s1652 + $0x38] sm:$0xff]
        %v1662 = vsel %vm454, %v1650, 0
        %v1665 = vsel %vm454, %v1651, 0
        %1667 = vmatprep.subr.mxu0 0.0
        %v1668 = vand.u32 %v1653, 4294901760
        %1669 = vmatpush1.msra.mxu0 %v1668
        %1670 = vmatprep.subr.mxu0 0.0
        %v1671 = vand.u32 %v1654, 4294901760
        %1672 = vmatpush1.msra.mxu0 %v1671
        %1673 = vmatprep.subr.mxu0 0.0
        %v1674 = vand.u32 %v1655, 4294901760
        %1675 = vmatpush1.msra.mxu0 %v1674
        %1676 = vmatprep.subr.mxu0 0.0
        %v1677 = vand.u32 %v1656, 4294901760
        %1678 = vmatpush1.msra.mxu0 %v1677
        %1679 = vmatprep.subr.mxu0 0.0
        %v1680 = vand.u32 %v1657, 4294901760
        %1681 = vmatpush1.msra.mxu0 %v1680
        %1682 = vmatprep.subr.mxu0 0.0
        %v1683 = vand.u32 %v1658, 4294901760
        %1684 = vmatpush1.msra.mxu0 %v1683
        %1685 = vmatprep.subr.mxu0 0.0
        %v1686 = vand.u32 %v1659, 4294901760
        %1687 = vmatpush1.msra.mxu0 %v1686
        %1688 = vmatprep.subr.mxu0 0.0
        %v1689 = vand.u32 %v1660, 4294901760
        %1690 = vmatpush1.msra.mxu0 %v1689
        %1691 = vmatprep.subr.mxu0 0.0
        %1692 = vmatpush1.msra.mxu0 0.0
        %1693 = vmatprep.subr.mxu0 0.0
        %1694 = vmatpush1.msra.mxu0 0.0
        %1695 = vmatprep.subr.mxu0 0.0
        %1696 = vmatpush1.msra.mxu0 0.0
        %1697 = vmatprep.subr.mxu0 0.0
        %1698 = vmatpush1.msra.mxu0 0.0
        %1699 = vmatprep.subr.mxu0 0.0
        %1700 = vmatpush1.msra.mxu0 0.0
        %1701 = vmatprep.subr.mxu0 0.0
        %1702 = vmatpush1.msra.mxu0 0.0
        %1703 = vmatprep.subr.mxu0 0.0
        %1704 = vmatpush1.msra.mxu0 0.0
        %1705 = vmatprep.subr.mxu0 0.0
        %1706 = vmatpush1.msra.mxu0 0.0
        %1707 = vmatprep.subr.mxu0 0.0
        %1708 = vmatpush1.msra.mxu0 0.0
        %1709 = vmatprep.subr.mxu0 0.0
        %1710 = vmatpush1.msra.mxu0 0.0
        %1711 = vmatprep.subr.mxu0 0.0
        %1712 = vmatpush1.msra.mxu0 0.0
        %1713 = vmatprep.subr.mxu0 0.0
        %1714 = vmatpush1.msra.mxu0 0.0
        %1715 = vmatprep.subr.mxu0 0.0
        %1716 = vmatpush1.msra.mxu0 0.0
        %1717 = vmatprep.subr.mxu0 0.0
        %1718 = vmatpush1.msra.mxu0 0.0
        %1719 = vmatprep.subr.mxu0 0.0
        %1720 = vmatpush1.msra.mxu0 0.0
        %1721 = vmatprep.subr.mxu0 0.0
        %1722 = vmatpush1.msra.mxu0 0.0
        %1723 = vmatprep.subr.mxu0 0.0
        %1724 = vmatpush1.msra.mxu0 0.0
        %1725 = vmatprep.subr.mxu0 0.0
        %1726 = vmatpush1.msra.mxu0 0.0
        %1727 = vmatprep.subr.mxu0 0.0
        %1728 = vmatpush1.msra.mxu0 0.0
        %1729 = vmatprep.subr.mxu0 0.0
        %1730 = vmatpush1.msra.mxu0 0.0
        %1731 = vmatprep.subr.mxu0 0.0
        %1732 = vmatpush1.msra.mxu0 0.0
        %1733 = vmatprep.subr.mxu0 0.0
        %1734 = vmatpush1.msra.mxu0 0.0
        %1735 = vmatprep.subr.mxu0 0.0
        %1736 = vmatpush1.msra.mxu0 0.0
        %1737 = vmatprep.subr.mxu0 0.0
        %1738 = vmatpush1.msra.mxu0 0.0
        %1739 = vmatprep.mubr.f32.mxu0 0.0
        %v1740 = vand.u32 %v1662, 4294901760
        %v1741 = vsub.f32 %v1662, %v1740
        %v1742 = vand.u32 %v1741, 4294901760
        %v1743 = vsub.f32 %v1741, %v1742
        %v1744 = vand.u32 %v1743, 4294901760
        %1745 = vmatmul.mubr.f32.gmra.mrb[0].mxu0 %v1744
        %v1746 = vpop.f32.mrb[0].mxu0
        %v1747 = vadd.f32 0.0, %v1746
        %v1748 = vpop.f32.mrb[0].mxu0
        %1749 = vmatprep.mubr.f32.mxu0 0.0
        %v1750 = vand.u32 %v1665, 4294901760
        %v1751 = vsub.f32 %v1665, %v1750
        %v1752 = vand.u32 %v1751, 4294901760
        %v1753 = vsub.f32 %v1751, %v1752
        %v1754 = vand.u32 %v1753, 4294901760
        %1755 = vmatmul.mubr.f32.gmra.mrb[0].mxu0 %v1754
        %v1756 = vpop.f32.mrb[0].mxu0
        %v1757 = vadd.f32 0.0, %v1756
        %v1758 = vpop.f32.mrb[0].mxu0
        %1759 = vdwg.mxu0
        %1760 = vmatprep.subr.mxu0 0.0
        %v1761 = vand.u32 %v1653, 4294901760
        %v1762 = vsub.f32 %v1653, %v1761
        %v1763 = vand.u32 %v1762, 4294901760
        %v1764 = vsub.f32 %v1762, %v1763
        %v1765 = vand.u32 %v1764, 4294901760
        %1766 = vmatpush1.msra.mxu0 %v1765
        %1767 = vmatprep.subr.mxu0 0.0
        %v1768 = vand.u32 %v1654, 4294901760
        %v1769 = vsub.f32 %v1654, %v1768
        %v1770 = vand.u32 %v1769, 4294901760
        %v1771 = vsub.f32 %v1769, %v1770
        %v1772 = vand.u32 %v1771, 4294901760
        %1773 = vmatpush1.msra.mxu0 %v1772
        %1774 = vmatprep.subr.mxu0 0.0
        %v1775 = vand.u32 %v1655, 4294901760
        %v1776 = vsub.f32 %v1655, %v1775
        %v1777 = vand.u32 %v1776, 4294901760
        %v1778 = vsub.f32 %v1776, %v1777
        %v1779 = vand.u32 %v1778, 4294901760
        %1780 = vmatpush1.msra.mxu0 %v1779
        %1781 = vmatprep.subr.mxu0 0.0
        %v1782 = vand.u32 %v1656, 4294901760
        %v1783 = vsub.f32 %v1656, %v1782
        %v1784 = vand.u32 %v1783, 4294901760
        %v1785 = vsub.f32 %v1783, %v1784
        %v1786 = vand.u32 %v1785, 4294901760
        %1787 = vmatpush1.msra.mxu0 %v1786
        %1788 = vmatprep.subr.mxu0 0.0
        %v1789 = vand.u32 %v1657, 4294901760
        %v1790 = vsub.f32 %v1657, %v1789
        %v1791 = vand.u32 %v1790, 4294901760
        %v1792 = vsub.f32 %v1790, %v1791
        %v1793 = vand.u32 %v1792, 4294901760
        %1794 = vmatpush1.msra.mxu0 %v1793
        %1795 = vmatprep.subr.mxu0 0.0
        %v1796 = vand.u32 %v1658, 4294901760
        %v1797 = vsub.f32 %v1658, %v1796
        %v1798 = vand.u32 %v1797, 4294901760
        %v1799 = vsub.f32 %v1797, %v1798
        %v1800 = vand.u32 %v1799, 4294901760
        %1801 = vmatpush1.msra.mxu0 %v1800
        %1802 = vmatprep.subr.mxu0 0.0
        %v1803 = vand.u32 %v1659, 4294901760
        %v1804 = vsub.f32 %v1659, %v1803
        %v1805 = vand.u32 %v1804, 4294901760
        %v1806 = vsub.f32 %v1804, %v1805
        %v1807 = vand.u32 %v1806, 4294901760
        %1808 = vmatpush1.msra.mxu0 %v1807
        %1809 = vmatprep.subr.mxu0 0.0
        %v1810 = vand.u32 %v1660, 4294901760
        %v1811 = vsub.f32 %v1660, %v1810
        %v1812 = vand.u32 %v1811, 4294901760
        %v1813 = vsub.f32 %v1811, %v1812
        %v1814 = vand.u32 %v1813, 4294901760
        %1815 = vmatpush1.msra.mxu0 %v1814
        %1816 = vmatprep.subr.mxu0 0.0
        %1817 = vmatpush1.msra.mxu0 0.0
        %1818 = vmatprep.subr.mxu0 0.0
        %1819 = vmatpush1.msra.mxu0 0.0
        %1820 = vmatprep.subr.mxu0 0.0
        %1821 = vmatpush1.msra.mxu0 0.0
        %1822 = vmatprep.subr.mxu0 0.0
        %1823 = vmatpush1.msra.mxu0 0.0
        %1824 = vmatprep.subr.mxu0 0.0
        %1825 = vmatpush1.msra.mxu0 0.0
        %1826 = vmatprep.subr.mxu0 0.0
        %1827 = vmatpush1.msra.mxu0 0.0
        %1828 = vmatprep.subr.mxu0 0.0
        %1829 = vmatpush1.msra.mxu0 0.0
        %1830 = vmatprep.subr.mxu0 0.0
        %1831 = vmatpush1.msra.mxu0 0.0
        %1832 = vmatprep.subr.mxu0 0.0
        %1833 = vmatpush1.msra.mxu0 0.0
        %1834 = vmatprep.subr.mxu0 0.0
        %1835 = vmatpush1.msra.mxu0 0.0
        %1836 = vmatprep.subr.mxu0 0.0
        %1837 = vmatpush1.msra.mxu0 0.0
        %1838 = vmatprep.subr.mxu0 0.0
        %1839 = vmatpush1.msra.mxu0 0.0
        %1840 = vmatprep.subr.mxu0 0.0
        %1841 = vmatpush1.msra.mxu0 0.0
        %1842 = vmatprep.subr.mxu0 0.0
        %1843 = vmatpush1.msra.mxu0 0.0
        %1844 = vmatprep.subr.mxu0 0.0
        %1845 = vmatpush1.msra.mxu0 0.0
        %1846 = vmatprep.subr.mxu0 0.0
        %1847 = vmatpush1.msra.mxu0 0.0
        %1848 = vmatprep.subr.mxu0 0.0
        %1849 = vmatpush1.msra.mxu0 0.0
        %1850 = vmatprep.subr.mxu0 0.0
        %1851 = vmatpush1.msra.mxu0 0.0
        %1852 = vmatprep.subr.mxu0 0.0
        %1853 = vmatpush1.msra.mxu0 0.0
        %1854 = vmatprep.subr.mxu0 0.0
        %1855 = vmatpush1.msra.mxu0 0.0
        %1856 = vmatprep.subr.mxu0 0.0
        %1857 = vmatpush1.msra.mxu0 0.0
        %1858 = vmatprep.subr.mxu0 0.0
        %1859 = vmatpush1.msra.mxu0 0.0
        %1860 = vmatprep.subr.mxu0 0.0
        %1861 = vmatpush1.msra.mxu0 0.0
        %1862 = vmatprep.subr.mxu0 0.0
        %1863 = vmatpush1.msra.mxu0 0.0
        %1864 = vmatprep.mubr.f32.mxu0 0.0
        %v1865 = vand.u32 %v1662, 4294901760
        %1866 = vmatmul.mubr.f32.gmra.mrb[0].mxu0 %v1865
        %v1867 = vpop.f32.mrb[0].mxu0
        %v1868 = vadd.f32 %v1747, %v1867
        %v1869 = vpop.f32.mrb[0].mxu0
        %1870 = vmatprep.mubr.f32.mxu0 0.0
        %v1871 = vand.u32 %v1665, 4294901760
        %1872 = vmatmul.mubr.f32.gmra.mrb[0].mxu0 %v1871
        %v1873 = vpop.f32.mrb[0].mxu0
        %v1874 = vadd.f32 %v1757, %v1873
        %v1875 = vpop.f32.mrb[0].mxu0
        %1876 = vdwg.mxu0
        %1877 = vmatprep.subr.mxu0 0.0
        %v1878 = vand.u32 %v1653, 4294901760
        %v1879 = vsub.f32 %v1653, %v1878
        %1880 = vmatpush1.msra.mxu0 %v1879
        %1881 = vmatprep.subr.mxu0 0.0
        %v1882 = vand.u32 %v1654, 4294901760
        %v1883 = vsub.f32 %v1654, %v1882
        %1884 = vmatpush1.msra.mxu0 %v1883
        %1885 = vmatprep.subr.mxu0 0.0
        %v1886 = vand.u32 %v1655, 4294901760
        %v1887 = vsub.f32 %v1655, %v1886
        %1888 = vmatpush1.msra.mxu0 %v1887
        %1889 = vmatprep.subr.mxu0 0.0
        %v1890 = vand.u32 %v1656, 4294901760
        %v1891 = vsub.f32 %v1656, %v1890
        %1892 = vmatpush1.msra.mxu0 %v1891
        %1893 = vmatprep.subr.mxu0 0.0
        %v1894 = vand.u32 %v1657, 4294901760
        %v1895 = vsub.f32 %v1657, %v1894
        %1896 = vmatpush1.msra.mxu0 %v1895
        %1897 = vmatprep.subr.mxu0 0.0
        %v1898 = vand.u32 %v1658, 4294901760
        %v1899 = vsub.f32 %v1658, %v1898
        %1900 = vmatpush1.msra.mxu0 %v1899
        %1901 = vmatprep.subr.mxu0 0.0
        %v1902 = vand.u32 %v1659, 4294901760
        %v1903 = vsub.f32 %v1659, %v1902
        %1904 = vmatpush1.msra.mxu0 %v1903
        %1905 = vmatprep.subr.mxu0 0.0
        %v1906 = vand.u32 %v1660, 4294901760
        %v1907 = vsub.f32 %v1660, %v1906
        %1908 = vmatpush1.msra.mxu0 %v1907
        %1909 = vmatprep.subr.mxu0 0.0
        %1910 = vmatpush1.msra.mxu0 0.0
        %1911 = vmatprep.subr.mxu0 0.0
        %1912 = vmatpush1.msra.mxu0 0.0
        %1913 = vmatprep.subr.mxu0 0.0
        %1914 = vmatpush1.msra.mxu0 0.0
        %1915 = vmatprep.subr.mxu0 0.0
        %1916 = vmatpush1.msra.mxu0 0.0
        %1917 = vmatprep.subr.mxu0 0.0
        %1918 = vmatpush1.msra.mxu0 0.0
        %1919 = vmatprep.subr.mxu0 0.0
        %1920 = vmatpush1.msra.mxu0 0.0
        %1921 = vmatprep.subr.mxu0 0.0
        %1922 = vmatpush1.msra.mxu0 0.0
        %1923 = vmatprep.subr.mxu0 0.0
        %1924 = vmatpush1.msra.mxu0 0.0
        %1925 = vmatprep.subr.mxu0 0.0
        %1926 = vmatpush1.msra.mxu0 0.0
        %1927 = vmatprep.subr.mxu0 0.0
        %1928 = vmatpush1.msra.mxu0 0.0
        %1929 = vmatprep.subr.mxu0 0.0
        %1930 = vmatpush1.msra.mxu0 0.0
        %1931 = vmatprep.subr.mxu0 0.0
        %1932 = vmatpush1.msra.mxu0 0.0
        %1933 = vmatprep.subr.mxu0 0.0
        %1934 = vmatpush1.msra.mxu0 0.0
        %1935 = vmatprep.subr.mxu0 0.0
        %1936 = vmatpush1.msra.mxu0 0.0
        %1937 = vmatprep.subr.mxu0 0.0
        %1938 = vmatpush1.msra.mxu0 0.0
        %1939 = vmatprep.subr.mxu0 0.0
        %1940 = vmatpush1.msra.mxu0 0.0
        %1941 = vmatprep.subr.mxu0 0.0
        %1942 = vmatpush1.msra.mxu0 0.0
        %1943 = vmatprep.subr.mxu0 0.0
        %1944 = vmatpush1.msra.mxu0 0.0
        %1945 = vmatprep.subr.mxu0 0.0
        %1946 = vmatpush1.msra.mxu0 0.0
        %1947 = vmatprep.subr.mxu0 0.0
        %1948 = vmatpush1.msra.mxu0 0.0
        %1949 = vmatprep.subr.mxu0 0.0
        %1950 = vmatpush1.msra.mxu0 0.0
        %1951 = vmatprep.subr.mxu0 0.0
        %1952 = vmatpush1.msra.mxu0 0.0
        %1953 = vmatprep.subr.mxu0 0.0
        %1954 = vmatpush1.msra.mxu0 0.0
        %1955 = vmatprep.subr.mxu0 0.0
        %1956 = vmatpush1.msra.mxu0 0.0
        %1957 = vmatprep.mubr.f32.mxu0 0.0
        %v1958 = vand.u32 %v1662, 4294901760
        %v1959 = vsub.f32 %v1662, %v1958
        %1960 = vmatmul.mubr.f32.gmra.mrb[0].mxu0 %v1959
        %v1961 = vpop.f32.mrb[0].mxu0
        %v1962 = vadd.f32 %v1868, %v1961
        %v1963 = vpop.f32.mrb[0].mxu0
        %1964 = vmatprep.mubr.f32.mxu0 0.0
        %v1965 = vand.u32 %v1665, 4294901760
        %v1966 = vsub.f32 %v1665, %v1965
        %1967 = vmatmul.mubr.f32.gmra.mrb[0].mxu0 %v1966
        %v1968 = vpop.f32.mrb[0].mxu0
        %v1969 = vadd.f32 %v1874, %v1968
        %v1970 = vpop.f32.mrb[0].mxu0
        %1971 = vdwg.mxu0
        %1972 = vmatprep.subr.mxu0 0.0
        %v1973 = vand.u32 %v1653, 4294901760
        %1974 = vmatpush1.msra.mxu0 %v1973
        %1975 = vmatprep.subr.mxu0 0.0
        %v1976 = vand.u32 %v1654, 4294901760
        %1977 = vmatpush1.msra.mxu0 %v1976
        %1978 = vmatprep.subr.mxu0 0.0
        %v1979 = vand.u32 %v1655, 4294901760
        %1980 = vmatpush1.msra.mxu0 %v1979
        %1981 = vmatprep.subr.mxu0 0.0
        %v1982 = vand.u32 %v1656, 4294901760
        %1983 = vmatpush1.msra.mxu0 %v1982
        %1984 = vmatprep.subr.mxu0 0.0
        %v1985 = vand.u32 %v1657, 4294901760
        %1986 = vmatpush1.msra.mxu0 %v1985
        %1987 = vmatprep.subr.mxu0 0.0
        %v1988 = vand.u32 %v1658, 4294901760
        %1989 = vmatpush1.msra.mxu0 %v1988
        %1990 = vmatprep.subr.mxu0 0.0
        %v1991 = vand.u32 %v1659, 4294901760
        %1992 = vmatpush1.msra.mxu0 %v1991
        %1993 = vmatprep.subr.mxu0 0.0
        %v1994 = vand.u32 %v1660, 4294901760
        %1995 = vmatpush1.msra.mxu0 %v1994
        %1996 = vmatprep.subr.mxu0 0.0
        %1997 = vmatpush1.msra.mxu0 0.0
        %1998 = vmatprep.subr.mxu0 0.0
        %1999 = vmatpush1.msra.mxu0 0.0
        %2000 = vmatprep.subr.mxu0 0.0
        %2001 = vmatpush1.msra.mxu0 0.0
        %2002 = vmatprep.subr.mxu0 0.0
        %2003 = vmatpush1.msra.mxu0 0.0
        %2004 = vmatprep.subr.mxu0 0.0
        %2005 = vmatpush1.msra.mxu0 0.0
        %2006 = vmatprep.subr.mxu0 0.0
        %2007 = vmatpush1.msra.mxu0 0.0
        %2008 = vmatprep.subr.mxu0 0.0
        %2009 = vmatpush1.msra.mxu0 0.0
        %2010 = vmatprep.subr.mxu0 0.0
        %2011 = vmatpush1.msra.mxu0 0.0
        %2012 = vmatprep.subr.mxu0 0.0
        %2013 = vmatpush1.msra.mxu0 0.0
        %2014 = vmatprep.subr.mxu0 0.0
        %2015 = vmatpush1.msra.mxu0 0.0
        %2016 = vmatprep.subr.mxu0 0.0
        %2017 = vmatpush1.msra.mxu0 0.0
        %2018 = vmatprep.subr.mxu0 0.0
        %2019 = vmatpush1.msra.mxu0 0.0
        %2020 = vmatprep.subr.mxu0 0.0
        %2021 = vmatpush1.msra.mxu0 0.0
        %2022 = vmatprep.subr.mxu0 0.0
        %2023 = vmatpush1.msra.mxu0 0.0
        %2024 = vmatprep.subr.mxu0 0.0
        %2025 = vmatpush1.msra.mxu0 0.0
        %2026 = vmatprep.subr.mxu0 0.0
        %2027 = vmatpush1.msra.mxu0 0.0
        %2028 = vmatprep.subr.mxu0 0.0
        %2029 = vmatpush1.msra.mxu0 0.0
        %2030 = vmatprep.subr.mxu0 0.0
        %2031 = vmatpush1.msra.mxu0 0.0
        %2032 = vmatprep.subr.mxu0 0.0
        %2033 = vmatpush1.msra.mxu0 0.0
        %2034 = vmatprep.subr.mxu0 0.0
        %2035 = vmatpush1.msra.mxu0 0.0
        %2036 = vmatprep.subr.mxu0 0.0
        %2037 = vmatpush1.msra.mxu0 0.0
        %2038 = vmatprep.subr.mxu0 0.0
        %2039 = vmatpush1.msra.mxu0 0.0
        %2040 = vmatprep.subr.mxu0 0.0
        %2041 = vmatpush1.msra.mxu0 0.0
        %2042 = vmatprep.subr.mxu0 0.0
        %2043 = vmatpush1.msra.mxu0 0.0
        %2044 = vmatprep.mubr.f32.mxu0 0.0
        %v2045 = vand.u32 %v1662, 4294901760
        %v2046 = vsub.f32 %v1662, %v2045
        %v2047 = vand.u32 %v2046, 4294901760
        %2048 = vmatmul.mubr.f32.gmra.mrb[0].mxu0 %v2047
        %v2049 = vpop.f32.mrb[0].mxu0
        %v2050 = vadd.f32 %v1962, %v2049
        %v2051 = vpop.f32.mrb[0].mxu0
        %2052 = vmatprep.mubr.f32.mxu0 0.0
        %v2053 = vand.u32 %v1665, 4294901760
        %v2054 = vsub.f32 %v1665, %v2053
        %v2055 = vand.u32 %v2054, 4294901760
        %2056 = vmatmul.mubr.f32.gmra.mrb[0].mxu0 %v2055
        %v2057 = vpop.f32.mrb[0].mxu0
        %v2058 = vadd.f32 %v1969, %v2057
        %v2059 = vpop.f32.mrb[0].mxu0
        %2060 = vdwg.mxu0
        %2061 = vmatprep.subr.mxu0 0.0
        %v2062 = vand.u32 %v1653, 4294901760
        %v2063 = vsub.f32 %v1653, %v2062
        %v2064 = vand.u32 %v2063, 4294901760
        %2065 = vmatpush1.msra.mxu0 %v2064
        %2066 = vmatprep.subr.mxu0 0.0
        %v2067 = vand.u32 %v1654, 4294901760
        %v2068 = vsub.f32 %v1654, %v2067
        %v2069 = vand.u32 %v2068, 4294901760
        %2070 = vmatpush1.msra.mxu0 %v2069
        %2071 = vmatprep.subr.mxu0 0.0
        %v2072 = vand.u32 %v1655, 4294901760
        %v2073 = vsub.f32 %v1655, %v2072
        %v2074 = vand.u32 %v2073, 4294901760
        %2075 = vmatpush1.msra.mxu0 %v2074
        %2076 = vmatprep.subr.mxu0 0.0
        %v2077 = vand.u32 %v1656, 4294901760
        %v2078 = vsub.f32 %v1656, %v2077
        %v2079 = vand.u32 %v2078, 4294901760
        %2080 = vmatpush1.msra.mxu0 %v2079
        %2081 = vmatprep.subr.mxu0 0.0
        %v2082 = vand.u32 %v1657, 4294901760
        %v2083 = vsub.f32 %v1657, %v2082
        %v2084 = vand.u32 %v2083, 4294901760
        %2085 = vmatpush1.msra.mxu0 %v2084
        %2086 = vmatprep.subr.mxu0 0.0
        %v2087 = vand.u32 %v1658, 4294901760
        %v2088 = vsub.f32 %v1658, %v2087
        %v2089 = vand.u32 %v2088, 4294901760
        %2090 = vmatpush1.msra.mxu0 %v2089
        %2091 = vmatprep.subr.mxu0 0.0
        %v2092 = vand.u32 %v1659, 4294901760
        %v2093 = vsub.f32 %v1659, %v2092
        %v2094 = vand.u32 %v2093, 4294901760
        %2095 = vmatpush1.msra.mxu0 %v2094
        %2096 = vmatprep.subr.mxu0 0.0
        %v2097 = vand.u32 %v1660, 4294901760
        %v2098 = vsub.f32 %v1660, %v2097
        %v2099 = vand.u32 %v2098, 4294901760
        %2100 = vmatpush1.msra.mxu0 %v2099
        %2101 = vmatprep.subr.mxu0 0.0
        %2102 = vmatpush1.msra.mxu0 0.0
        %2103 = vmatprep.subr.mxu0 0.0
        %2104 = vmatpush1.msra.mxu0 0.0
        %2105 = vmatprep.subr.mxu0 0.0
        %2106 = vmatpush1.msra.mxu0 0.0
        %2107 = vmatprep.subr.mxu0 0.0
        %2108 = vmatpush1.msra.mxu0 0.0
        %2109 = vmatprep.subr.mxu0 0.0
        %2110 = vmatpush1.msra.mxu0 0.0
        %2111 = vmatprep.subr.mxu0 0.0
        %2112 = vmatpush1.msra.mxu0 0.0
        %2113 = vmatprep.subr.mxu0 0.0
        %2114 = vmatpush1.msra.mxu0 0.0
        %2115 = vmatprep.subr.mxu0 0.0
        %2116 = vmatpush1.msra.mxu0 0.0
        %2117 = vmatprep.subr.mxu0 0.0
        %2118 = vmatpush1.msra.mxu0 0.0
        %2119 = vmatprep.subr.mxu0 0.0
        %2120 = vmatpush1.msra.mxu0 0.0
        %2121 = vmatprep.subr.mxu0 0.0
        %2122 = vmatpush1.msra.mxu0 0.0
        %2123 = vmatprep.subr.mxu0 0.0
        %2124 = vmatpush1.msra.mxu0 0.0
        %2125 = vmatprep.subr.mxu0 0.0
        %2126 = vmatpush1.msra.mxu0 0.0
        %2127 = vmatprep.subr.mxu0 0.0
        %2128 = vmatpush1.msra.mxu0 0.0
        %2129 = vmatprep.subr.mxu0 0.0
        %2130 = vmatpush1.msra.mxu0 0.0
        %2131 = vmatprep.subr.mxu0 0.0
        %2132 = vmatpush1.msra.mxu0 0.0
        %2133 = vmatprep.subr.mxu0 0.0
        %2134 = vmatpush1.msra.mxu0 0.0
        %2135 = vmatprep.subr.mxu0 0.0
        %2136 = vmatpush1.msra.mxu0 0.0
        %2137 = vmatprep.subr.mxu0 0.0
        %2138 = vmatpush1.msra.mxu0 0.0
        %2139 = vmatprep.subr.mxu0 0.0
        %2140 = vmatpush1.msra.mxu0 0.0
        %2141 = vmatprep.subr.mxu0 0.0
        %2142 = vmatpush1.msra.mxu0 0.0
        %2143 = vmatprep.subr.mxu0 0.0
        %2144 = vmatpush1.msra.mxu0 0.0
        %2145 = vmatprep.subr.mxu0 0.0
        %2146 = vmatpush1.msra.mxu0 0.0
        %2147 = vmatprep.subr.mxu0 0.0
        %2148 = vmatpush1.msra.mxu0 0.0
        %2149 = vmatprep.mubr.f32.mxu0 0.0
        %v2150 = vand.u32 %v1662, 4294901760
        %2151 = vmatmul.mubr.f32.gmra.mrb[0].mxu0 %v2150
        %v2152 = vpop.f32.mrb[0].mxu0
        %v2153 = vadd.f32 %v2050, %v2152
        %v2154 = vpop.f32.mrb[0].mxu0
        %2155 = vmatprep.mubr.f32.mxu0 0.0
        %v2156 = vand.u32 %v1665, 4294901760
        %2157 = vmatmul.mubr.f32.gmra.mrb[0].mxu0 %v2156
        %v2158 = vpop.f32.mrb[0].mxu0
        %v2159 = vadd.f32 %v2058, %v2158
        %v2160 = vpop.f32.mrb[0].mxu0
        %2161 = vdwg.mxu0
        %2162 = vmatprep.subr.mxu0 0.0
        %v2163 = vand.u32 %v1653, 4294901760
        %2164 = vmatpush1.msra.mxu0 %v2163
        %2165 = vmatprep.subr.mxu0 0.0
        %v2166 = vand.u32 %v1654, 4294901760
        %2167 = vmatpush1.msra.mxu0 %v2166
        %2168 = vmatprep.subr.mxu0 0.0
        %v2169 = vand.u32 %v1655, 4294901760
        %2170 = vmatpush1.msra.mxu0 %v2169
        %2171 = vmatprep.subr.mxu0 0.0
        %v2172 = vand.u32 %v1656, 4294901760
        %2173 = vmatpush1.msra.mxu0 %v2172
        %2174 = vmatprep.subr.mxu0 0.0
        %v2175 = vand.u32 %v1657, 4294901760
        %2176 = vmatpush1.msra.mxu0 %v2175
        %2177 = vmatprep.subr.mxu0 0.0
        %v2178 = vand.u32 %v1658, 4294901760
        %2179 = vmatpush1.msra.mxu0 %v2178
        %2180 = vmatprep.subr.mxu0 0.0
        %v2181 = vand.u32 %v1659, 4294901760
        %2182 = vmatpush1.msra.mxu0 %v2181
        %2183 = vmatprep.subr.mxu0 0.0
        %v2184 = vand.u32 %v1660, 4294901760
        %2185 = vmatpush1.msra.mxu0 %v2184
        %2186 = vmatprep.subr.mxu0 0.0
        %2187 = vmatpush1.msra.mxu0 0.0
        %2188 = vmatprep.subr.mxu0 0.0
        %2189 = vmatpush1.msra.mxu0 0.0
        %2190 = vmatprep.subr.mxu0 0.0
        %2191 = vmatpush1.msra.mxu0 0.0
        %2192 = vmatprep.subr.mxu0 0.0
        %2193 = vmatpush1.msra.mxu0 0.0
        %2194 = vmatprep.subr.mxu0 0.0
        %2195 = vmatpush1.msra.mxu0 0.0
        %2196 = vmatprep.subr.mxu0 0.0
        %2197 = vmatpush1.msra.mxu0 0.0
        %2198 = vmatprep.subr.mxu0 0.0
        %2199 = vmatpush1.msra.mxu0 0.0
        %2200 = vmatprep.subr.mxu0 0.0
        %2201 = vmatpush1.msra.mxu0 0.0
        %2202 = vmatprep.subr.mxu0 0.0
        %2203 = vmatpush1.msra.mxu0 0.0
        %2204 = vmatprep.subr.mxu0 0.0
        %2205 = vmatpush1.msra.mxu0 0.0
        %2206 = vmatprep.subr.mxu0 0.0
        %2207 = vmatpush1.msra.mxu0 0.0
        %2208 = vmatprep.subr.mxu0 0.0
        %2209 = vmatpush1.msra.mxu0 0.0
        %2210 = vmatprep.subr.mxu0 0.0
        %2211 = vmatpush1.msra.mxu0 0.0
        %2212 = vmatprep.subr.mxu0 0.0
        %2213 = vmatpush1.msra.mxu0 0.0
        %2214 = vmatprep.subr.mxu0 0.0
        %2215 = vmatpush1.msra.mxu0 0.0
        %2216 = vmatprep.subr.mxu0 0.0
        %2217 = vmatpush1.msra.mxu0 0.0
        %2218 = vmatprep.subr.mxu0 0.0
        %2219 = vmatpush1.msra.mxu0 0.0
        %2220 = vmatprep.subr.mxu0 0.0
        %2221 = vmatpush1.msra.mxu0 0.0
        %2222 = vmatprep.subr.mxu0 0.0
        %2223 = vmatpush1.msra.mxu0 0.0
        %2224 = vmatprep.subr.mxu0 0.0
        %2225 = vmatpush1.msra.mxu0 0.0
        %2226 = vmatprep.subr.mxu0 0.0
        %2227 = vmatpush1.msra.mxu0 0.0
        %2228 = vmatprep.subr.mxu0 0.0
        %2229 = vmatpush1.msra.mxu0 0.0
        %2230 = vmatprep.subr.mxu0 0.0
        %2231 = vmatpush1.msra.mxu0 0.0
        %2232 = vmatprep.subr.mxu0 0.0
        %2233 = vmatpush1.msra.mxu0 0.0
        %2234 = vmatprep.mubr.f32.mxu0 0.0
        %v2235 = vand.u32 %v1662, 4294901760
        %2236 = vmatmul.mubr.f32.gmra.mrb[0].mxu0 %v2235
        %v2237 = vpop.f32.mrb[0].mxu0
        %v2238 = vadd.f32 %v2153, %v2237
        %v2239 = vpop.f32.mrb[0].mxu0
        %2240 = vmatprep.mubr.f32.mxu0 0.0
        %v2241 = vand.u32 %v1665, 4294901760
        %2242 = vmatmul.mubr.f32.gmra.mrb[0].mxu0 %v2241
        %v2243 = vpop.f32.mrb[0].mxu0
        %v2244 = vadd.f32 %v2159, %v2243
        %v2245 = vpop.f32.mrb[0].mxu0
        %2246 = vdwg.mxu0
        %v2247 = vadd.f32 %v1641, %v2238
        %v2248 = vadd.f32 %v1647, %v2244
        %v2249 = vld [vmem:[#allocation10] sm:$0x1]
        %v2251 = vlaneseq
        %v2252 = vshrl.u32 %v2251, 7
        %v2253 = vsub.s32 0, %v2252
        %v2254 = vrot.slane %v2249, %v2253
        %v2256 = vadd.f32 %v2247, %v2254
        %v2257 = vadd.f32 %v2248, %v2254
        %v2258 = vmax.f32 %v2256, 0.0
        %v2259 = vmax.f32 %v2257, 0.0
        %v2260 = vadd.f32 %v2258, %v2259
        %v2261 = vrot.slane %v2260, 4
        %v2262 = vadd.f32 %v2260, %v2261
        %v2263 = vrot.slane %v2262, 2
        %v2264 = vadd.f32 %v2262, %v2263
        %v2265 = vrot.slane %v2264, 1
        %v2266 = vadd.f32 %v2264, %v2265
        %v2267 = vld [vmem:[#allocation11] sm:$0xff]
        %v2268 = vld [vmem:[#allocation11 + $0x8] sm:$0xff]
        %v2269 = vld [vmem:[#allocation11 + $0x10] sm:$0xff]
        %v2270 = vld [vmem:[#allocation11 + $0x18] sm:$0xff]
        %v2271 = vld [vmem:[#allocation11 + $0x20] sm:$0xff]
        %v2272 = vld [vmem:[#allocation11 + $0x28] sm:$0xff]
        %v2273 = vld [vmem:[#allocation11 + $0x30] sm:$0xff]
        %v2274 = vld [vmem:[#allocation11 + $0x38] sm:$0xff]
        %v2275 = vld [vmem:[#allocation11 + $0x40] sm:$0xff]
        %v2276 = vld [vmem:[#allocation11 + $0x48] sm:$0xff]
        %v2277 = vld [vmem:[#allocation11 + $0x50] sm:$0xff]
        %v2278 = vld [vmem:[#allocation11 + $0x58] sm:$0xff]
        %v2279 = vld [vmem:[#allocation11 + $0x60] sm:$0xff]
        %v2280 = vld [vmem:[#allocation11 + $0x68] sm:$0xff]
        %v2281 = vld [vmem:[#allocation11 + $0x70] sm:$0xff]
        %v2282 = vld [vmem:[#allocation11 + $0x78] sm:$0xff]
        %v2283 = vld [vmem:[#allocation13] sm:$0x1]
        %2284 = vmatprep.subr.mxu0 0.0
        %v2285 = vand.u32 %v2267, 4294901760
        %2286 = vmatpush1.msra.mxu0 %v2285
        %2287 = vmatprep.subr.mxu0 0.0
        %v2288 = vand.u32 %v2268, 4294901760
        %2289 = vmatpush1.msra.mxu0 %v2288
        %2290 = vmatprep.subr.mxu0 0.0
        %v2291 = vand.u32 %v2269, 4294901760
        %2292 = vmatpush1.msra.mxu0 %v2291
        %2293 = vmatprep.subr.mxu0 0.0
        %v2294 = vand.u32 %v2270, 4294901760
        %2295 = vmatpush1.msra.mxu0 %v2294
        %2296 = vmatprep.subr.mxu0 0.0
        %v2297 = vand.u32 %v2271, 4294901760
        %2298 = vmatpush1.msra.mxu0 %v2297
        %2299 = vmatprep.subr.mxu0 0.0
        %v2300 = vand.u32 %v2272, 4294901760
        %2301 = vmatpush1.msra.mxu0 %v2300
        %2302 = vmatprep.subr.mxu0 0.0
        %v2303 = vand.u32 %v2273, 4294901760
        %2304 = vmatpush1.msra.mxu0 %v2303
        %2305 = vmatprep.subr.mxu0 0.0
        %v2306 = vand.u32 %v2274, 4294901760
        %2307 = vmatpush1.msra.mxu0 %v2306
        %2308 = vmatprep.subr.mxu0 0.0
        %v2309 = vand.u32 %v2275, 4294901760
        %2310 = vmatpush1.msra.mxu0 %v2309
        %2311 = vmatprep.subr.mxu0 0.0
        %v2312 = vand.u32 %v2276, 4294901760
        %2313 = vmatpush1.msra.mxu0 %v2312
        %2314 = vmatprep.subr.mxu0 0.0
        %v2315 = vand.u32 %v2277, 4294901760
        %2316 = vmatpush1.msra.mxu0 %v2315
        %2317 = vmatprep.subr.mxu0 0.0
        %v2318 = vand.u32 %v2278, 4294901760
        %2319 = vmatpush1.msra.mxu0 %v2318
        %2320 = vmatprep.subr.mxu0 0.0
        %v2321 = vand.u32 %v2279, 4294901760
        %2322 = vmatpush1.msra.mxu0 %v2321
        %2323 = vmatprep.subr.mxu0 0.0
        %v2324 = vand.u32 %v2280, 4294901760
        %2325 = vmatpush1.msra.mxu0 %v2324
        %2326 = vmatprep.subr.mxu0 0.0
        %v2327 = vand.u32 %v2281, 4294901760
        %2328 = vmatpush1.msra.mxu0 %v2327
        %2329 = vmatprep.subr.mxu0 0.0
        %v2330 = vand.u32 %v2282, 4294901760
        %2331 = vmatpush1.msra.mxu0 %v2330
        %2332 = vmatprep.subr.mxu0 0.0
        %2333 = vmatpush1.msra.mxu0 0.0
        %2334 = vmatprep.subr.mxu0 0.0
        %2335 = vmatpush1.msra.mxu0 0.0
        %2336 = vmatprep.subr.mxu0 0.0
        %2337 = vmatpush1.msra.mxu0 0.0
        %2338 = vmatprep.subr.mxu0 0.0
        %2339 = vmatpush1.msra.mxu0 0.0
        %2340 = vmatprep.subr.mxu0 0.0
        %2341 = vmatpush1.msra.mxu0 0.0
        %2342 = vmatprep.subr.mxu0 0.0
        %2343 = vmatpush1.msra.mxu0 0.0
        %2344 = vmatprep.subr.mxu0 0.0
        %2345 = vmatpush1.msra.mxu0 0.0
        %2346 = vmatprep.subr.mxu0 0.0
        %2347 = vmatpush1.msra.mxu0 0.0
        %2348 = vmatprep.subr.mxu0 0.0
        %2349 = vmatpush1.msra.mxu0 0.0
        %2350 = vmatprep.subr.mxu0 0.0
        %2351 = vmatpush1.msra.mxu0 0.0
        %2352 = vmatprep.subr.mxu0 0.0
        %2353 = vmatpush1.msra.mxu0 0.0
        %2354 = vmatprep.subr.mxu0 0.0
        %2355 = vmatpush1.msra.mxu0 0.0
        %2356 = vmatprep.subr.mxu0 0.0
        %2357 = vmatpush1.msra.mxu0 0.0
        %2358 = vmatprep.subr.mxu0 0.0
        %2359 = vmatpush1.msra.mxu0 0.0
        %2360 = vmatprep.subr.mxu0 0.0
        %2361 = vmatpush1.msra.mxu0 0.0
        %2362 = vmatprep.subr.mxu0 0.0
        %2363 = vmatpush1.msra.mxu0 0.0
        %2364 = vmatprep.mubr.f32.mxu0 0.0
        %v2365 = vand.u32 %v2266, 4294901760
        %v2366 = vsub.f32 %v2266, %v2365
        %v2367 = vand.u32 %v2366, 4294901760
        %v2368 = vsub.f32 %v2366, %v2367
        %v2369 = vand.u32 %v2368, 4294901760
        %2370 = vmatmul.mubr.f32.gmra.mrb[0].mxu0 %v2369
        %v2371 = vpop.f32.mrb[0].mxu0
        %v2372 = vadd.f32 %v2283, %v2371
        %v2373 = vpop.f32.mrb[0].mxu0
        %2374 = vdwg.mxu0
        %2375 = vmatprep.subr.mxu0 0.0
        %v2376 = vand.u32 %v2267, 4294901760
        %v2377 = vsub.f32 %v2267, %v2376
        %v2378 = vand.u32 %v2377, 4294901760
        %v2379 = vsub.f32 %v2377, %v2378
        %v2380 = vand.u32 %v2379, 4294901760
        %2381 = vmatpush1.msra.mxu0 %v2380
        %2382 = vmatprep.subr.mxu0 0.0
        %v2383 = vand.u32 %v2268, 4294901760
        %v2384 = vsub.f32 %v2268, %v2383
        %v2385 = vand.u32 %v2384, 4294901760
        %v2386 = vsub.f32 %v2384, %v2385
        %v2387 = vand.u32 %v2386, 4294901760
        %2388 = vmatpush1.msra.mxu0 %v2387
        %2389 = vmatprep.subr.mxu0 0.0
        %v2390 = vand.u32 %v2269, 4294901760
        %v2391 = vsub.f32 %v2269, %v2390
        %v2392 = vand.u32 %v2391, 4294901760
        %v2393 = vsub.f32 %v2391, %v2392
        %v2394 = vand.u32 %v2393, 4294901760
        %2395 = vmatpush1.msra.mxu0 %v2394
        %2396 = vmatprep.subr.mxu0 0.0
        %v2397 = vand.u32 %v2270, 4294901760
        %v2398 = vsub.f32 %v2270, %v2397
        %v2399 = vand.u32 %v2398, 4294901760
        %v2400 = vsub.f32 %v2398, %v2399
        %v2401 = vand.u32 %v2400, 4294901760
        %2402 = vmatpush1.msra.mxu0 %v2401
        %2403 = vmatprep.subr.mxu0 0.0
        %v2404 = vand.u32 %v2271, 4294901760
        %v2405 = vsub.f32 %v2271, %v2404
        %v2406 = vand.u32 %v2405, 4294901760
        %v2407 = vsub.f32 %v2405, %v2406
        %v2408 = vand.u32 %v2407, 4294901760
        %2409 = vmatpush1.msra.mxu0 %v2408
        %2410 = vmatprep.subr.mxu0 0.0
        %v2411 = vand.u32 %v2272, 4294901760
        %v2412 = vsub.f32 %v2272, %v2411
        %v2413 = vand.u32 %v2412, 4294901760
        %v2414 = vsub.f32 %v2412, %v2413
        %v2415 = vand.u32 %v2414, 4294901760
        %2416 = vmatpush1.msra.mxu0 %v2415
        %2417 = vmatprep.subr.mxu0 0.0
        %v2418 = vand.u32 %v2273, 4294901760
        %v2419 = vsub.f32 %v2273, %v2418
        %v2420 = vand.u32 %v2419, 4294901760
        %v2421 = vsub.f32 %v2419, %v2420
        %v2422 = vand.u32 %v2421, 4294901760
        %2423 = vmatpush1.msra.mxu0 %v2422
        %2424 = vmatprep.subr.mxu0 0.0
        %v2425 = vand.u32 %v2274, 4294901760
        %v2426 = vsub.f32 %v2274, %v2425
        %v2427 = vand.u32 %v2426, 4294901760
        %v2428 = vsub.f32 %v2426, %v2427
        %v2429 = vand.u32 %v2428, 4294901760
        %2430 = vmatpush1.msra.mxu0 %v2429
        %2431 = vmatprep.subr.mxu0 0.0
        %v2432 = vand.u32 %v2275, 4294901760
        %v2433 = vsub.f32 %v2275, %v2432
        %v2434 = vand.u32 %v2433, 4294901760
        %v2435 = vsub.f32 %v2433, %v2434
        %v2436 = vand.u32 %v2435, 4294901760
        %2437 = vmatpush1.msra.mxu0 %v2436
        %2438 = vmatprep.subr.mxu0 0.0
        %v2439 = vand.u32 %v2276, 4294901760
        %v2440 = vsub.f32 %v2276, %v2439
        %v2441 = vand.u32 %v2440, 4294901760
        %v2442 = vsub.f32 %v2440, %v2441
        %v2443 = vand.u32 %v2442, 4294901760
        %2444 = vmatpush1.msra.mxu0 %v2443
        %2445 = vmatprep.subr.mxu0 0.0
        %v2446 = vand.u32 %v2277, 4294901760
        %v2447 = vsub.f32 %v2277, %v2446
        %v2448 = vand.u32 %v2447, 4294901760
        %v2449 = vsub.f32 %v2447, %v2448
        %v2450 = vand.u32 %v2449, 4294901760
        %2451 = vmatpush1.msra.mxu0 %v2450
        %2452 = vmatprep.subr.mxu0 0.0
        %v2453 = vand.u32 %v2278, 4294901760
        %v2454 = vsub.f32 %v2278, %v2453
        %v2455 = vand.u32 %v2454, 4294901760
        %v2456 = vsub.f32 %v2454, %v2455
        %v2457 = vand.u32 %v2456, 4294901760
        %2458 = vmatpush1.msra.mxu0 %v2457
        %2459 = vmatprep.subr.mxu0 0.0
        %v2460 = vand.u32 %v2279, 4294901760
        %v2461 = vsub.f32 %v2279, %v2460
        %v2462 = vand.u32 %v2461, 4294901760
        %v2463 = vsub.f32 %v2461, %v2462
        %v2464 = vand.u32 %v2463, 4294901760
        %2465 = vmatpush1.msra.mxu0 %v2464
        %2466 = vmatprep.subr.mxu0 0.0
        %v2467 = vand.u32 %v2280, 4294901760
        %v2468 = vsub.f32 %v2280, %v2467
        %v2469 = vand.u32 %v2468, 4294901760
        %v2470 = vsub.f32 %v2468, %v2469
        %v2471 = vand.u32 %v2470, 4294901760
        %2472 = vmatpush1.msra.mxu0 %v2471
        %2473 = vmatprep.subr.mxu0 0.0
        %v2474 = vand.u32 %v2281, 4294901760
        %v2475 = vsub.f32 %v2281, %v2474
        %v2476 = vand.u32 %v2475, 4294901760
        %v2477 = vsub.f32 %v2475, %v2476
        %v2478 = vand.u32 %v2477, 4294901760
        %2479 = vmatpush1.msra.mxu0 %v2478
        %2480 = vmatprep.subr.mxu0 0.0
        %v2481 = vand.u32 %v2282, 4294901760
        %v2482 = vsub.f32 %v2282, %v2481
        %v2483 = vand.u32 %v2482, 4294901760
        %v2484 = vsub.f32 %v2482, %v2483
        %v2485 = vand.u32 %v2484, 4294901760
        %2486 = vmatpush1.msra.mxu0 %v2485
        %2487 = vmatprep.subr.mxu0 0.0
        %2488 = vmatpush1.msra.mxu0 0.0
        %2489 = vmatprep.subr.mxu0 0.0
        %2490 = vmatpush1.msra.mxu0 0.0
        %2491 = vmatprep.subr.mxu0 0.0
        %2492 = vmatpush1.msra.mxu0 0.0
        %2493 = vmatprep.subr.mxu0 0.0
        %2494 = vmatpush1.msra.mxu0 0.0
        %2495 = vmatprep.subr.mxu0 0.0
        %2496 = vmatpush1.msra.mxu0 0.0
        %2497 = vmatprep.subr.mxu0 0.0
        %2498 = vmatpush1.msra.mxu0 0.0
        %2499 = vmatprep.subr.mxu0 0.0
        %2500 = vmatpush1.msra.mxu0 0.0
        %2501 = vmatprep.subr.mxu0 0.0
        %2502 = vmatpush1.msra.mxu0 0.0
        %2503 = vmatprep.subr.mxu0 0.0
        %2504 = vmatpush1.msra.mxu0 0.0
        %2505 = vmatprep.subr.mxu0 0.0
        %2506 = vmatpush1.msra.mxu0 0.0
        %2507 = vmatprep.subr.mxu0 0.0
        %2508 = vmatpush1.msra.mxu0 0.0
        %2509 = vmatprep.subr.mxu0 0.0
        %2510 = vmatpush1.msra.mxu0 0.0
        %2511 = vmatprep.subr.mxu0 0.0
        %2512 = vmatpush1.msra.mxu0 0.0
        %2513 = vmatprep.subr.mxu0 0.0
        %2514 = vmatpush1.msra.mxu0 0.0
        %2515 = vmatprep.subr.mxu0 0.0
        %2516 = vmatpush1.msra.mxu0 0.0
        %2517 = vmatprep.subr.mxu0 0.0
        %2518 = vmatpush1.msra.mxu0 0.0
        %2519 = vmatprep.mubr.f32.mxu0 0.0
        %v2520 = vand.u32 %v2266, 4294901760
        %2521 = vmatmul.mubr.f32.gmra.mrb[0].mxu0 %v2520
        %v2522 = vpop.f32.mrb[0].mxu0
        %v2523 = vadd.f32 %v2372, %v2522
        %v2524 = vpop.f32.mrb[0].mxu0
        %2525 = vdwg.mxu0
        %2526 = vmatprep.subr.mxu0 0.0
        %v2527 = vand.u32 %v2267, 4294901760
        %v2528 = vsub.f32 %v2267, %v2527
        %2529 = vmatpush1.msra.mxu0 %v2528
        %2530 = vmatprep.subr.mxu0 0.0
        %v2531 = vand.u32 %v2268, 4294901760
        %v2532 = vsub.f32 %v2268, %v2531
        %2533 = vmatpush1.msra.mxu0 %v2532
        %2534 = vmatprep.subr.mxu0 0.0
        %v2535 = vand.u32 %v2269, 4294901760
        %v2536 = vsub.f32 %v2269, %v2535
        %2537 = vmatpush1.msra.mxu0 %v2536
        %2538 = vmatprep.subr.mxu0 0.0
        %v2539 = vand.u32 %v2270, 4294901760
        %v2540 = vsub.f32 %v2270, %v2539
        %2541 = vmatpush1.msra.mxu0 %v2540
        %2542 = vmatprep.subr.mxu0 0.0
        %v2543 = vand.u32 %v2271, 4294901760
        %v2544 = vsub.f32 %v2271, %v2543
        %2545 = vmatpush1.msra.mxu0 %v2544
        %2546 = vmatprep.subr.mxu0 0.0
        %v2547 = vand.u32 %v2272, 4294901760
        %v2548 = vsub.f32 %v2272, %v2547
        %2549 = vmatpush1.msra.mxu0 %v2548
        %2550 = vmatprep.subr.mxu0 0.0
        %v2551 = vand.u32 %v2273, 4294901760
        %v2552 = vsub.f32 %v2273, %v2551
        %2553 = vmatpush1.msra.mxu0 %v2552
        %2554 = vmatprep.subr.mxu0 0.0
        %v2555 = vand.u32 %v2274, 4294901760
        %v2556 = vsub.f32 %v2274, %v2555
        %2557 = vmatpush1.msra.mxu0 %v2556
        %2558 = vmatprep.subr.mxu0 0.0
        %v2559 = vand.u32 %v2275, 4294901760
        %v2560 = vsub.f32 %v2275, %v2559
        %2561 = vmatpush1.msra.mxu0 %v2560
        %2562 = vmatprep.subr.mxu0 0.0
        %v2563 = vand.u32 %v2276, 4294901760
        %v2564 = vsub.f32 %v2276, %v2563
        %2565 = vmatpush1.msra.mxu0 %v2564
        %2566 = vmatprep.subr.mxu0 0.0
        %v2567 = vand.u32 %v2277, 4294901760
        %v2568 = vsub.f32 %v2277, %v2567
        %2569 = vmatpush1.msra.mxu0 %v2568
        %2570 = vmatprep.subr.mxu0 0.0
        %v2571 = vand.u32 %v2278, 4294901760
        %v2572 = vsub.f32 %v2278, %v2571
        %2573 = vmatpush1.msra.mxu0 %v2572
        %2574 = vmatprep.subr.mxu0 0.0
        %v2575 = vand.u32 %v2279, 4294901760
        %v2576 = vsub.f32 %v2279, %v2575
        %2577 = vmatpush1.msra.mxu0 %v2576
        %2578 = vmatprep.subr.mxu0 0.0
        %v2579 = vand.u32 %v2280, 4294901760
        %v2580 = vsub.f32 %v2280, %v2579
        %2581 = vmatpush1.msra.mxu0 %v2580
        %2582 = vmatprep.subr.mxu0 0.0
        %v2583 = vand.u32 %v2281, 4294901760
        %v2584 = vsub.f32 %v2281, %v2583
        %2585 = vmatpush1.msra.mxu0 %v2584
        %2586 = vmatprep.subr.mxu0 0.0
        %v2587 = vand.u32 %v2282, 4294901760
        %v2588 = vsub.f32 %v2282, %v2587
        %2589 = vmatpush1.msra.mxu0 %v2588
        %2590 = vmatprep.subr.mxu0 0.0
        %2591 = vmatpush1.msra.mxu0 0.0
        %2592 = vmatprep.subr.mxu0 0.0
        %2593 = vmatpush1.msra.mxu0 0.0
        %2594 = vmatprep.subr.mxu0 0.0
        %2595 = vmatpush1.msra.mxu0 0.0
        %2596 = vmatprep.subr.mxu0 0.0
        %2597 = vmatpush1.msra.mxu0 0.0
        %2598 = vmatprep.subr.mxu0 0.0
        %2599 = vmatpush1.msra.mxu0 0.0
        %2600 = vmatprep.subr.mxu0 0.0
        %2601 = vmatpush1.msra.mxu0 0.0
        %2602 = vmatprep.subr.mxu0 0.0
        %2603 = vmatpush1.msra.mxu0 0.0
        %2604 = vmatprep.subr.mxu0 0.0
        %2605 = vmatpush1.msra.mxu0 0.0
        %2606 = vmatprep.subr.mxu0 0.0
        %2607 = vmatpush1.msra.mxu0 0.0
        %2608 = vmatprep.subr.mxu0 0.0
        %2609 = vmatpush1.msra.mxu0 0.0
        %2610 = vmatprep.subr.mxu0 0.0
        %2611 = vmatpush1.msra.mxu0 0.0
        %2612 = vmatprep.subr.mxu0 0.0
        %2613 = vmatpush1.msra.mxu0 0.0
        %2614 = vmatprep.subr.mxu0 0.0
        %2615 = vmatpush1.msra.mxu0 0.0
        %2616 = vmatprep.subr.mxu0 0.0
        %2617 = vmatpush1.msra.mxu0 0.0
        %2618 = vmatprep.subr.mxu0 0.0
        %2619 = vmatpush1.msra.mxu0 0.0
        %2620 = vmatprep.subr.mxu0 0.0
        %2621 = vmatpush1.msra.mxu0 0.0
        %2622 = vmatprep.mubr.f32.mxu0 0.0
        %v2623 = vand.u32 %v2266, 4294901760
        %v2624 = vsub.f32 %v2266, %v2623
        %2625 = vmatmul.mubr.f32.gmra.mrb[0].mxu0 %v2624
        %v2626 = vpop.f32.mrb[0].mxu0
        %v2627 = vadd.f32 %v2523, %v2626
        %v2628 = vpop.f32.mrb[0].mxu0
        %2629 = vdwg.mxu0
        %2630 = vmatprep.subr.mxu0 0.0
        %v2631 = vand.u32 %v2267, 4294901760
        %2632 = vmatpush1.msra.mxu0 %v2631
        %2633 = vmatprep.subr.mxu0 0.0
        %v2634 = vand.u32 %v2268, 4294901760
        %2635 = vmatpush1.msra.mxu0 %v2634
        %2636 = vmatprep.subr.mxu0 0.0
        %v2637 = vand.u32 %v2269, 4294901760
        %2638 = vmatpush1.msra.mxu0 %v2637
        %2639 = vmatprep.subr.mxu0 0.0
        %v2640 = vand.u32 %v2270, 4294901760
        %2641 = vmatpush1.msra.mxu0 %v2640
        %2642 = vmatprep.subr.mxu0 0.0
        %v2643 = vand.u32 %v2271, 4294901760
        %2644 = vmatpush1.msra.mxu0 %v2643
        %2645 = vmatprep.subr.mxu0 0.0
        %v2646 = vand.u32 %v2272, 4294901760
        %2647 = vmatpush1.msra.mxu0 %v2646
        %2648 = vmatprep.subr.mxu0 0.0
        %v2649 = vand.u32 %v2273, 4294901760
        %2650 = vmatpush1.msra.mxu0 %v2649
        %2651 = vmatprep.subr.mxu0 0.0
        %v2652 = vand.u32 %v2274, 4294901760
        %2653 = vmatpush1.msra.mxu0 %v2652
        %2654 = vmatprep.subr.mxu0 0.0
        %v2655 = vand.u32 %v2275, 4294901760
        %2656 = vmatpush1.msra.mxu0 %v2655
        %2657 = vmatprep.subr.mxu0 0.0
        %v2658 = vand.u32 %v2276, 4294901760
        %2659 = vmatpush1.msra.mxu0 %v2658
        %2660 = vmatprep.subr.mxu0 0.0
        %v2661 = vand.u32 %v2277, 4294901760
        %2662 = vmatpush1.msra.mxu0 %v2661
        %2663 = vmatprep.subr.mxu0 0.0
        %v2664 = vand.u32 %v2278, 4294901760
        %2665 = vmatpush1.msra.mxu0 %v2664
        %2666 = vmatprep.subr.mxu0 0.0
        %v2667 = vand.u32 %v2279, 4294901760
        %2668 = vmatpush1.msra.mxu0 %v2667
        %2669 = vmatprep.subr.mxu0 0.0
        %v2670 = vand.u32 %v2280, 4294901760
        %2671 = vmatpush1.msra.mxu0 %v2670
        %2672 = vmatprep.subr.mxu0 0.0
        %v2673 = vand.u32 %v2281, 4294901760
        %2674 = vmatpush1.msra.mxu0 %v2673
        %2675 = vmatprep.subr.mxu0 0.0
        %v2676 = vand.u32 %v2282, 4294901760
        %2677 = vmatpush1.msra.mxu0 %v2676
        %2678 = vmatprep.subr.mxu0 0.0
        %2679 = vmatpush1.msra.mxu0 0.0
        %2680 = vmatprep.subr.mxu0 0.0
        %2681 = vmatpush1.msra.mxu0 0.0
        %2682 = vmatprep.subr.mxu0 0.0
        %2683 = vmatpush1.msra.mxu0 0.0
        %2684 = vmatprep.subr.mxu0 0.0
        %2685 = vmatpush1.msra.mxu0 0.0
        %2686 = vmatprep.subr.mxu0 0.0
        %2687 = vmatpush1.msra.mxu0 0.0
        %2688 = vmatprep.subr.mxu0 0.0
        %2689 = vmatpush1.msra.mxu0 0.0
        %2690 = vmatprep.subr.mxu0 0.0
        %2691 = vmatpush1.msra.mxu0 0.0
        %2692 = vmatprep.subr.mxu0 0.0
        %2693 = vmatpush1.msra.mxu0 0.0
        %2694 = vmatprep.subr.mxu0 0.0
        %2695 = vmatpush1.msra.mxu0 0.0
        %2696 = vmatprep.subr.mxu0 0.0
        %2697 = vmatpush1.msra.mxu0 0.0
        %2698 = vmatprep.subr.mxu0 0.0
        %2699 = vmatpush1.msra.mxu0 0.0
        %2700 = vmatprep.subr.mxu0 0.0
        %2701 = vmatpush1.msra.mxu0 0.0
        %2702 = vmatprep.subr.mxu0 0.0
        %2703 = vmatpush1.msra.mxu0 0.0
        %2704 = vmatprep.subr.mxu0 0.0
        %2705 = vmatpush1.msra.mxu0 0.0
        %2706 = vmatprep.subr.mxu0 0.0
        %2707 = vmatpush1.msra.mxu0 0.0
        %2708 = vmatprep.subr.mxu0 0.0
        %2709 = vmatpush1.msra.mxu0 0.0
        %2710 = vmatprep.mubr.f32.mxu0 0.0
        %v2711 = vand.u32 %v2266, 4294901760
        %v2712 = vsub.f32 %v2266, %v2711
        %v2713 = vand.u32 %v2712, 4294901760
        %2714 = vmatmul.mubr.f32.gmra.mrb[0].mxu0 %v2713
        %v2715 = vpop.f32.mrb[0].mxu0
        %v2716 = vadd.f32 %v2627, %v2715
        %v2717 = vpop.f32.mrb[0].mxu0
        %2718 = vdwg.mxu0
        %2719 = vmatprep.subr.mxu0 0.0
        %v2720 = vand.u32 %v2267, 4294901760
        %v2721 = vsub.f32 %v2267, %v2720
        %v2722 = vand.u32 %v2721, 4294901760
        %2723 = vmatpush1.msra.mxu0 %v2722
        %2724 = vmatprep.subr.mxu0 0.0
        %v2725 = vand.u32 %v2268, 4294901760
        %v2726 = vsub.f32 %v2268, %v2725
        %v2727 = vand.u32 %v2726, 4294901760
        %2728 = vmatpush1.msra.mxu0 %v2727
        %2729 = vmatprep.subr.mxu0 0.0
        %v2730 = vand.u32 %v2269, 4294901760
        %v2731 = vsub.f32 %v2269, %v2730
        %v2732 = vand.u32 %v2731, 4294901760
        %2733 = vmatpush1.msra.mxu0 %v2732
        %2734 = vmatprep.subr.mxu0 0.0
        %v2735 = vand.u32 %v2270, 4294901760
        %v2736 = vsub.f32 %v2270, %v2735
        %v2737 = vand.u32 %v2736, 4294901760
        %2738 = vmatpush1.msra.mxu0 %v2737
        %2739 = vmatprep.subr.mxu0 0.0
        %v2740 = vand.u32 %v2271, 4294901760
        %v2741 = vsub.f32 %v2271, %v2740
        %v2742 = vand.u32 %v2741, 4294901760
        %2743 = vmatpush1.msra.mxu0 %v2742
        %2744 = vmatprep.subr.mxu0 0.0
        %v2745 = vand.u32 %v2272, 4294901760
        %v2746 = vsub.f32 %v2272, %v2745
        %v2747 = vand.u32 %v2746, 4294901760
        %2748 = vmatpush1.msra.mxu0 %v2747
        %2749 = vmatprep.subr.mxu0 0.0
        %v2750 = vand.u32 %v2273, 4294901760
        %v2751 = vsub.f32 %v2273, %v2750
        %v2752 = vand.u32 %v2751, 4294901760
        %2753 = vmatpush1.msra.mxu0 %v2752
        %2754 = vmatprep.subr.mxu0 0.0
        %v2755 = vand.u32 %v2274, 4294901760
        %v2756 = vsub.f32 %v2274, %v2755
        %v2757 = vand.u32 %v2756, 4294901760
        %2758 = vmatpush1.msra.mxu0 %v2757
        %2759 = vmatprep.subr.mxu0 0.0
        %v2760 = vand.u32 %v2275, 4294901760
        %v2761 = vsub.f32 %v2275, %v2760
        %v2762 = vand.u32 %v2761, 4294901760
        %2763 = vmatpush1.msra.mxu0 %v2762
        %2764 = vmatprep.subr.mxu0 0.0
        %v2765 = vand.u32 %v2276, 4294901760
        %v2766 = vsub.f32 %v2276, %v2765
        %v2767 = vand.u32 %v2766, 4294901760
        %2768 = vmatpush1.msra.mxu0 %v2767
        %2769 = vmatprep.subr.mxu0 0.0
        %v2770 = vand.u32 %v2277, 4294901760
        %v2771 = vsub.f32 %v2277, %v2770
        %v2772 = vand.u32 %v2771, 4294901760
        %2773 = vmatpush1.msra.mxu0 %v2772
        %2774 = vmatprep.subr.mxu0 0.0
        %v2775 = vand.u32 %v2278, 4294901760
        %v2776 = vsub.f32 %v2278, %v2775
        %v2777 = vand.u32 %v2776, 4294901760
        %2778 = vmatpush1.msra.mxu0 %v2777
        %2779 = vmatprep.subr.mxu0 0.0
        %v2780 = vand.u32 %v2279, 4294901760
        %v2781 = vsub.f32 %v2279, %v2780
        %v2782 = vand.u32 %v2781, 4294901760
        %2783 = vmatpush1.msra.mxu0 %v2782
        %2784 = vmatprep.subr.mxu0 0.0
        %v2785 = vand.u32 %v2280, 4294901760
        %v2786 = vsub.f32 %v2280, %v2785
        %v2787 = vand.u32 %v2786, 4294901760
        %2788 = vmatpush1.msra.mxu0 %v2787
        %2789 = vmatprep.subr.mxu0 0.0
        %v2790 = vand.u32 %v2281, 4294901760
        %v2791 = vsub.f32 %v2281, %v2790
        %v2792 = vand.u32 %v2791, 4294901760
        %2793 = vmatpush1.msra.mxu0 %v2792
        %2794 = vmatprep.subr.mxu0 0.0
        %v2795 = vand.u32 %v2282, 4294901760
        %v2796 = vsub.f32 %v2282, %v2795
        %v2797 = vand.u32 %v2796, 4294901760
        %2798 = vmatpush1.msra.mxu0 %v2797
        %2799 = vmatprep.subr.mxu0 0.0
        %2800 = vmatpush1.msra.mxu0 0.0
        %2801 = vmatprep.subr.mxu0 0.0
        %2802 = vmatpush1.msra.mxu0 0.0
        %2803 = vmatprep.subr.mxu0 0.0
        %2804 = vmatpush1.msra.mxu0 0.0
        %2805 = vmatprep.subr.mxu0 0.0
        %2806 = vmatpush1.msra.mxu0 0.0
        %2807 = vmatprep.subr.mxu0 0.0
        %2808 = vmatpush1.msra.mxu0 0.0
        %2809 = vmatprep.subr.mxu0 0.0
        %2810 = vmatpush1.msra.mxu0 0.0
        %2811 = vmatprep.subr.mxu0 0.0
        %2812 = vmatpush1.msra.mxu0 0.0
        %2813 = vmatprep.subr.mxu0 0.0
        %2814 = vmatpush1.msra.mxu0 0.0
        %2815 = vmatprep.subr.mxu0 0.0
        %2816 = vmatpush1.msra.mxu0 0.0
        %2817 = vmatprep.subr.mxu0 0.0
        %2818 = vmatpush1.msra.mxu0 0.0
        %2819 = vmatprep.subr.mxu0 0.0
        %2820 = vmatpush1.msra.mxu0 0.0
        %2821 = vmatprep.subr.mxu0 0.0
        %2822 = vmatpush1.msra.mxu0 0.0
        %2823 = vmatprep.subr.mxu0 0.0
        %2824 = vmatpush1.msra.mxu0 0.0
        %2825 = vmatprep.subr.mxu0 0.0
        %2826 = vmatpush1.msra.mxu0 0.0
        %2827 = vmatprep.subr.mxu0 0.0
        %2828 = vmatpush1.msra.mxu0 0.0
        %2829 = vmatprep.subr.mxu0 0.0
        %2830 = vmatpush1.msra.mxu0 0.0
        %2831 = vmatprep.mubr.f32.mxu0 0.0
        %v2832 = vand.u32 %v2266, 4294901760
        %2833 = vmatmul.mubr.f32.gmra.mrb[0].mxu0 %v2832
        %v2834 = vpop.f32.mrb[0].mxu0
        %v2835 = vadd.f32 %v2716, %v2834
        %v2836 = vpop.f32.mrb[0].mxu0
        %2837 = vdwg.mxu0
        %2838 = vmatprep.subr.mxu0 0.0
        %v2839 = vand.u32 %v2267, 4294901760
        %2840 = vmatpush1.msra.mxu0 %v2839
        %2841 = vmatprep.subr.mxu0 0.0
        %v2842 = vand.u32 %v2268, 4294901760
        %2843 = vmatpush1.msra.mxu0 %v2842
        %2844 = vmatprep.subr.mxu0 0.0
        %v2845 = vand.u32 %v2269, 4294901760
        %2846 = vmatpush1.msra.mxu0 %v2845
        %2847 = vmatprep.subr.mxu0 0.0
        %v2848 = vand.u32 %v2270, 4294901760
        %2849 = vmatpush1.msra.mxu0 %v2848
        %2850 = vmatprep.subr.mxu0 0.0
        %v2851 = vand.u32 %v2271, 4294901760
        %2852 = vmatpush1.msra.mxu0 %v2851
        %2853 = vmatprep.subr.mxu0 0.0
        %v2854 = vand.u32 %v2272, 4294901760
        %2855 = vmatpush1.msra.mxu0 %v2854
        %2856 = vmatprep.subr.mxu0 0.0
        %v2857 = vand.u32 %v2273, 4294901760
        %2858 = vmatpush1.msra.mxu0 %v2857
        %2859 = vmatprep.subr.mxu0 0.0
        %v2860 = vand.u32 %v2274, 4294901760
        %2861 = vmatpush1.msra.mxu0 %v2860
        %2862 = vmatprep.subr.mxu0 0.0
        %v2863 = vand.u32 %v2275, 4294901760
        %2864 = vmatpush1.msra.mxu0 %v2863
        %2865 = vmatprep.subr.mxu0 0.0
        %v2866 = vand.u32 %v2276, 4294901760
        %2867 = vmatpush1.msra.mxu0 %v2866
        %2868 = vmatprep.subr.mxu0 0.0
        %v2869 = vand.u32 %v2277, 4294901760
        %2870 = vmatpush1.msra.mxu0 %v2869
        %2871 = vmatprep.subr.mxu0 0.0
        %v2872 = vand.u32 %v2278, 4294901760
        %2873 = vmatpush1.msra.mxu0 %v2872
        %2874 = vmatprep.subr.mxu0 0.0
        %v2875 = vand.u32 %v2279, 4294901760
        %2876 = vmatpush1.msra.mxu0 %v2875
        %2877 = vmatprep.subr.mxu0 0.0
        %v2878 = vand.u32 %v2280, 4294901760
        %2879 = vmatpush1.msra.mxu0 %v2878
        %2880 = vmatprep.subr.mxu0 0.0
        %v2881 = vand.u32 %v2281, 4294901760
        %2882 = vmatpush1.msra.mxu0 %v2881
        %2883 = vmatprep.subr.mxu0 0.0
        %v2884 = vand.u32 %v2282, 4294901760
        %2885 = vmatpush1.msra.mxu0 %v2884
        %2886 = vmatprep.subr.mxu0 0.0
        %2887 = vmatpush1.msra.mxu0 0.0
        %2888 = vmatprep.subr.mxu0 0.0
        %2889 = vmatpush1.msra.mxu0 0.0
        %2890 = vmatprep.subr.mxu0 0.0
        %2891 = vmatpush1.msra.mxu0 0.0
        %2892 = vmatprep.subr.mxu0 0.0
        %2893 = vmatpush1.msra.mxu0 0.0
        %2894 = vmatprep.subr.mxu0 0.0
        %2895 = vmatpush1.msra.mxu0 0.0
        %2896 = vmatprep.subr.mxu0 0.0
        %2897 = vmatpush1.msra.mxu0 0.0
        %2898 = vmatprep.subr.mxu0 0.0
        %2899 = vmatpush1.msra.mxu0 0.0
        %2900 = vmatprep.subr.mxu0 0.0
        %2901 = vmatpush1.msra.mxu0 0.0
        %2902 = vmatprep.subr.mxu0 0.0
        %2903 = vmatpush1.msra.mxu0 0.0
        %2904 = vmatprep.subr.mxu0 0.0
        %2905 = vmatpush1.msra.mxu0 0.0
        %2906 = vmatprep.subr.mxu0 0.0
        %2907 = vmatpush1.msra.mxu0 0.0
        %2908 = vmatprep.subr.mxu0 0.0
        %2909 = vmatpush1.msra.mxu0 0.0
        %2910 = vmatprep.subr.mxu0 0.0
        %2911 = vmatpush1.msra.mxu0 0.0
        %2912 = vmatprep.subr.mxu0 0.0
        %2913 = vmatpush1.msra.mxu0 0.0
        %2914 = vmatprep.subr.mxu0 0.0
        %2915 = vmatpush1.msra.mxu0 0.0
        %2916 = vmatprep.subr.mxu0 0.0
        %2917 = vmatpush1.msra.mxu0 0.0
        %2918 = vmatprep.mubr.f32.mxu0 0.0
        %v2919 = vand.u32 %v2266, 4294901760
        %2920 = vmatmul.mubr.f32.gmra.mrb[0].mxu0 %v2919
        %v2921 = vpop.f32.mrb[0].mxu0
        %v2922 = vadd.f32 %v2835, %v2921
        %v2923 = vpop.f32.mrb[0].mxu0
        %2924 = vdwg.mxu0
        %v2925 = vmax.f32 %v2922, 0.0
        %v2926 = vld [vmem:[#allocation14] sm:$0xf]
        %v2927 = vld [vmem:[#allocation16] sm:$0x1]
        %vm2928 = vcmask 31744
        %v2930 = vsel %vm2928, %v2925, 0
        %vm2932 = vcmask 1043456
        %v2934 = vsel %vm2932, %v2926, 0
        %2936 = vmatprep.subr.mxu0 0.0
        %v2937 = vand.u32 %v2934, 4294901760
        %2938 = vmatpush1.msra.mxu0 %v2937
        %2939 = vmatprep.subr.mxu0 0.0
        %2940 = vmatpush1.msra.mxu0 0.0
        %2941 = vmatprep.subr.mxu0 0.0
        %2942 = vmatpush1.msra.mxu0 0.0
        %2943 = vmatprep.subr.mxu0 0.0
        %2944 = vmatpush1.msra.mxu0 0.0
        %2945 = vmatprep.subr.mxu0 0.0
        %2946 = vmatpush1.msra.mxu0 0.0
        %2947 = vmatprep.subr.mxu0 0.0
        %2948 = vmatpush1.msra.mxu0 0.0
        %2949 = vmatprep.subr.mxu0 0.0
        %2950 = vmatpush1.msra.mxu0 0.0
        %2951 = vmatprep.subr.mxu0 0.0
        %2952 = vmatpush1.msra.mxu0 0.0
        %2953 = vmatprep.subr.mxu0 0.0
        %2954 = vmatpush1.msra.mxu0 0.0
        %2955 = vmatprep.subr.mxu0 0.0
        %2956 = vmatpush1.msra.mxu0 0.0
        %2957 = vmatprep.subr.mxu0 0.0
        %2958 = vmatpush1.msra.mxu0 0.0
        %2959 = vmatprep.subr.mxu0 0.0
        %2960 = vmatpush1.msra.mxu0 0.0
        %2961 = vmatprep.subr.mxu0 0.0
        %2962 = vmatpush1.msra.mxu0 0.0
        %2963 = vmatprep.subr.mxu0 0.0
        %2964 = vmatpush1.msra.mxu0 0.0
        %2965 = vmatprep.subr.mxu0 0.0
        %2966 = vmatpush1.msra.mxu0 0.0
        %2967 = vmatprep.subr.mxu0 0.0
        %2968 = vmatpush1.msra.mxu0 0.0
        %2969 = vmatprep.subr.mxu0 0.0
        %2970 = vmatpush1.msra.mxu0 0.0
        %2971 = vmatprep.subr.mxu0 0.0
        %2972 = vmatpush1.msra.mxu0 0.0
        %2973 = vmatprep.subr.mxu0 0.0
        %2974 = vmatpush1.msra.mxu0 0.0
        %2975 = vmatprep.subr.mxu0 0.0
        %2976 = vmatpush1.msra.mxu0 0.0
        %2977 = vmatprep.subr.mxu0 0.0
        %2978 = vmatpush1.msra.mxu0 0.0
        %2979 = vmatprep.subr.mxu0 0.0
        %2980 = vmatpush1.msra.mxu0 0.0
        %2981 = vmatprep.subr.mxu0 0.0
        %2982 = vmatpush1.msra.mxu0 0.0
        %2983 = vmatprep.subr.mxu0 0.0
        %2984 = vmatpush1.msra.mxu0 0.0
        %2985 = vmatprep.subr.mxu0 0.0
        %2986 = vmatpush1.msra.mxu0 0.0
        %2987 = vmatprep.subr.mxu0 0.0
        %2988 = vmatpush1.msra.mxu0 0.0
        %2989 = vmatprep.subr.mxu0 0.0
        %2990 = vmatpush1.msra.mxu0 0.0
        %2991 = vmatprep.subr.mxu0 0.0
        %2992 = vmatpush1.msra.mxu0 0.0
        %2993 = vmatprep.subr.mxu0 0.0
        %2994 = vmatpush1.msra.mxu0 0.0
        %2995 = vmatprep.subr.mxu0 0.0
        %2996 = vmatpush1.msra.mxu0 0.0
        %2997 = vmatprep.subr.mxu0 0.0
        %2998 = vmatpush1.msra.mxu0 0.0
        %2999 = vmatprep.subr.mxu0 0.0
        %3000 = vmatpush1.msra.mxu0 0.0
        %3001 = vmatprep.mubr.f32.mxu0 0.0
        %v3002 = vand.u32 %v2930, 4294901760
        %v3003 = vsub.f32 %v2930, %v3002
        %v3004 = vand.u32 %v3003, 4294901760
        %v3005 = vsub.f32 %v3003, %v3004
        %v3006 = vand.u32 %v3005, 4294901760
        %3007 = vmatmul.mubr.f32.gmra.mrb[0].mxu0 %v3006
        %v3008 = vpop.f32.mrb[0].mxu0
        %v3009 = vadd.f32 %v2927, %v3008
        %v3010 = vpop.f32.mrb[0].mxu0
        %3011 = vdwg.mxu0
        %3012 = vmatprep.subr.mxu0 0.0
        %v3013 = vand.u32 %v2934, 4294901760
        %v3014 = vsub.f32 %v2934, %v3013
        %v3015 = vand.u32 %v3014, 4294901760
        %v3016 = vsub.f32 %v3014, %v3015
        %v3017 = vand.u32 %v3016, 4294901760
        %3018 = vmatpush1.msra.mxu0 %v3017
        %3019 = vmatprep.subr.mxu0 0.0
        %3020 = vmatpush1.msra.mxu0 0.0
        %3021 = vmatprep.subr.mxu0 0.0
        %3022 = vmatpush1.msra.mxu0 0.0
        %3023 = vmatprep.subr.mxu0 0.0
        %3024 = vmatpush1.msra.mxu0 0.0
        %3025 = vmatprep.subr.mxu0 0.0
        %3026 = vmatpush1.msra.mxu0 0.0
        %3027 = vmatprep.subr.mxu0 0.0
        %3028 = vmatpush1.msra.mxu0 0.0
        %3029 = vmatprep.subr.mxu0 0.0
        %3030 = vmatpush1.msra.mxu0 0.0
        %3031 = vmatprep.subr.mxu0 0.0
        %3032 = vmatpush1.msra.mxu0 0.0
        %3033 = vmatprep.subr.mxu0 0.0
        %3034 = vmatpush1.msra.mxu0 0.0
        %3035 = vmatprep.subr.mxu0 0.0
        %3036 = vmatpush1.msra.mxu0 0.0
        %3037 = vmatprep.subr.mxu0 0.0
        %3038 = vmatpush1.msra.mxu0 0.0
        %3039 = vmatprep.subr.mxu0 0.0
        %3040 = vmatpush1.msra.mxu0 0.0
        %3041 = vmatprep.subr.mxu0 0.0
        %3042 = vmatpush1.msra.mxu0 0.0
        %3043 = vmatprep.subr.mxu0 0.0
        %3044 = vmatpush1.msra.mxu0 0.0
        %3045 = vmatprep.subr.mxu0 0.0
        %3046 = vmatpush1.msra.mxu0 0.0
        %3047 = vmatprep.subr.mxu0 0.0
        %3048 = vmatpush1.msra.mxu0 0.0
        %3049 = vmatprep.subr.mxu0 0.0
        %3050 = vmatpush1.msra.mxu0 0.0
        %3051 = vmatprep.subr.mxu0 0.0
        %3052 = vmatpush1.msra.mxu0 0.0
        %3053 = vmatprep.subr.mxu0 0.0
        %3054 = vmatpush1.msra.mxu0 0.0
        %3055 = vmatprep.subr.mxu0 0.0
        %3056 = vmatpush1.msra.mxu0 0.0
        %3057 = vmatprep.subr.mxu0 0.0
        %3058 = vmatpush1.msra.mxu0 0.0
        %3059 = vmatprep.subr.mxu0 0.0
        %3060 = vmatpush1.msra.mxu0 0.0
        %3061 = vmatprep.subr.mxu0 0.0
        %3062 = vmatpush1.msra.mxu0 0.0
        %3063 = vmatprep.subr.mxu0 0.0
        %3064 = vmatpush1.msra.mxu0 0.0
        %3065 = vmatprep.subr.mxu0 0.0
        %3066 = vmatpush1.msra.mxu0 0.0
        %3067 = vmatprep.subr.mxu0 0.0
        %3068 = vmatpush1.msra.mxu0 0.0
        %3069 = vmatprep.subr.mxu0 0.0
        %3070 = vmatpush1.msra.mxu0 0.0
        %3071 = vmatprep.subr.mxu0 0.0
        %3072 = vmatpush1.msra.mxu0 0.0
        %3073 = vmatprep.subr.mxu0 0.0
        %3074 = vmatpush1.msra.mxu0 0.0
        %3075 = vmatprep.subr.mxu0 0.0
        %3076 = vmatpush1.msra.mxu0 0.0
        %3077 = vmatprep.subr.mxu0 0.0
        %3078 = vmatpush1.msra.mxu0 0.0
        %3079 = vmatprep.subr.mxu0 0.0
        %3080 = vmatpush1.msra.mxu0 0.0
        %3081 = vmatprep.mubr.f32.mxu0 0.0
        %v3082 = vand.u32 %v2930, 4294901760
        %3083 = vmatmul.mubr.f32.gmra.mrb[0].mxu0 %v3082
        %v3084 = vpop.f32.mrb[0].mxu0
        %v3085 = vadd.f32 %v3009, %v3084
        %v3086 = vpop.f32.mrb[0].mxu0
        %3087 = vdwg.mxu0
        %3088 = vmatprep.subr.mxu0 0.0
        %v3089 = vand.u32 %v2934, 4294901760
        %v3090 = vsub.f32 %v2934, %v3089
        %3091 = vmatpush1.msra.mxu0 %v3090
        %3092 = vmatprep.subr.mxu0 0.0
        %3093 = vmatpush1.msra.mxu0 0.0
        %3094 = vmatprep.subr.mxu0 0.0
        %3095 = vmatpush1.msra.mxu0 0.0
        %3096 = vmatprep.subr.mxu0 0.0
        %3097 = vmatpush1.msra.mxu0 0.0
        %3098 = vmatprep.subr.mxu0 0.0
        %3099 = vmatpush1.msra.mxu0 0.0
        %3100 = vmatprep.subr.mxu0 0.0
        %3101 = vmatpush1.msra.mxu0 0.0
        %3102 = vmatprep.subr.mxu0 0.0
        %3103 = vmatpush1.msra.mxu0 0.0
        %3104 = vmatprep.subr.mxu0 0.0
        %3105 = vmatpush1.msra.mxu0 0.0
        %3106 = vmatprep.subr.mxu0 0.0
        %3107 = vmatpush1.msra.mxu0 0.0
        %3108 = vmatprep.subr.mxu0 0.0
        %3109 = vmatpush1.msra.mxu0 0.0
        %3110 = vmatprep.subr.mxu0 0.0
        %3111 = vmatpush1.msra.mxu0 0.0
        %3112 = vmatprep.subr.mxu0 0.0
        %3113 = vmatpush1.msra.mxu0 0.0
        %3114 = vmatprep.subr.mxu0 0.0
        %3115 = vmatpush1.msra.mxu0 0.0
        %3116 = vmatprep.subr.mxu0 0.0
        %3117 = vmatpush1.msra.mxu0 0.0
        %3118 = vmatprep.subr.mxu0 0.0
        %3119 = vmatpush1.msra.mxu0 0.0
        %3120 = vmatprep.subr.mxu0 0.0
        %3121 = vmatpush1.msra.mxu0 0.0
        %3122 = vmatprep.subr.mxu0 0.0
        %3123 = vmatpush1.msra.mxu0 0.0
        %3124 = vmatprep.subr.mxu0 0.0
        %3125 = vmatpush1.msra.mxu0 0.0
        %3126 = vmatprep.subr.mxu0 0.0
        %3127 = vmatpush1.msra.mxu0 0.0
        %3128 = vmatprep.subr.mxu0 0.0
        %3129 = vmatpush1.msra.mxu0 0.0
        %3130 = vmatprep.subr.mxu0 0.0
        %3131 = vmatpush1.msra.mxu0 0.0
        %3132 = vmatprep.subr.mxu0 0.0
        %3133 = vmatpush1.msra.mxu0 0.0
        %3134 = vmatprep.subr.mxu0 0.0
        %3135 = vmatpush1.msra.mxu0 0.0
        %3136 = vmatprep.subr.mxu0 0.0
        %3137 = vmatpush1.msra.mxu0 0.0
        %3138 = vmatprep.subr.mxu0 0.0
        %3139 = vmatpush1.msra.mxu0 0.0
        %3140 = vmatprep.subr.mxu0 0.0
        %3141 = vmatpush1.msra.mxu0 0.0
        %3142 = vmatprep.subr.mxu0 0.0
        %3143 = vmatpush1.msra.mxu0 0.0
        %3144 = vmatprep.subr.mxu0 0.0
        %3145 = vmatpush1.msra.mxu0 0.0
        %3146 = vmatprep.subr.mxu0 0.0
        %3147 = vmatpush1.msra.mxu0 0.0
        %3148 = vmatprep.subr.mxu0 0.0
        %3149 = vmatpush1.msra.mxu0 0.0
        %3150 = vmatprep.subr.mxu0 0.0
        %3151 = vmatpush1.msra.mxu0 0.0
        %3152 = vmatprep.subr.mxu0 0.0
        %3153 = vmatpush1.msra.mxu0 0.0
        %3154 = vmatprep.mubr.f32.mxu0 0.0
        %v3155 = vand.u32 %v2930, 4294901760
        %v3156 = vsub.f32 %v2930, %v3155
        %3157 = vmatmul.mubr.f32.gmra.mrb[0].mxu0 %v3156
        %v3158 = vpop.f32.mrb[0].mxu0
        %v3159 = vadd.f32 %v3085, %v3158
        %v3160 = vpop.f32.mrb[0].mxu0
        %3161 = vdwg.mxu0
        %3162 = vmatprep.subr.mxu0 0.0
        %v3163 = vand.u32 %v2934, 4294901760
        %3164 = vmatpush1.msra.mxu0 %v3163
        %3165 = vmatprep.subr.mxu0 0.0
        %3166 = vmatpush1.msra.mxu0 0.0
        %3167 = vmatprep.subr.mxu0 0.0
        %3168 = vmatpush1.msra.mxu0 0.0
        %3169 = vmatprep.subr.mxu0 0.0
        %3170 = vmatpush1.msra.mxu0 0.0
        %3171 = vmatprep.subr.mxu0 0.0
        %3172 = vmatpush1.msra.mxu0 0.0
        %3173 = vmatprep.subr.mxu0 0.0
        %3174 = vmatpush1.msra.mxu0 0.0
        %3175 = vmatprep.subr.mxu0 0.0
        %3176 = vmatpush1.msra.mxu0 0.0
        %3177 = vmatprep.subr.mxu0 0.0
        %3178 = vmatpush1.msra.mxu0 0.0
        %3179 = vmatprep.subr.mxu0 0.0
        %3180 = vmatpush1.msra.mxu0 0.0
        %3181 = vmatprep.subr.mxu0 0.0
        %3182 = vmatpush1.msra.mxu0 0.0
        %3183 = vmatprep.subr.mxu0 0.0
        %3184 = vmatpush1.msra.mxu0 0.0
        %3185 = vmatprep.subr.mxu0 0.0
        %3186 = vmatpush1.msra.mxu0 0.0
        %3187 = vmatprep.subr.mxu0 0.0
        %3188 = vmatpush1.msra.mxu0 0.0
        %3189 = vmatprep.subr.mxu0 0.0
        %3190 = vmatpush1.msra.mxu0 0.0
        %3191 = vmatprep.subr.mxu0 0.0
        %3192 = vmatpush1.msra.mxu0 0.0
        %3193 = vmatprep.subr.mxu0 0.0
        %3194 = vmatpush1.msra.mxu0 0.0
        %3195 = vmatprep.subr.mxu0 0.0
        %3196 = vmatpush1.msra.mxu0 0.0
        %3197 = vmatprep.subr.mxu0 0.0
        %3198 = vmatpush1.msra.mxu0 0.0
        %3199 = vmatprep.subr.mxu0 0.0
        %3200 = vmatpush1.msra.mxu0 0.0
        %3201 = vmatprep.subr.mxu0 0.0
        %3202 = vmatpush1.msra.mxu0 0.0
        %3203 = vmatprep.subr.mxu0 0.0
        %3204 = vmatpush1.msra.mxu0 0.0
        %3205 = vmatprep.subr.mxu0 0.0
        %3206 = vmatpush1.msra.mxu0 0.0
        %3207 = vmatprep.subr.mxu0 0.0
        %3208 = vmatpush1.msra.mxu0 0.0
        %3209 = vmatprep.subr.mxu0 0.0
        %3210 = vmatpush1.msra.mxu0 0.0
        %3211 = vmatprep.subr.mxu0 0.0
        %3212 = vmatpush1.msra.mxu0 0.0
        %3213 = vmatprep.subr.mxu0 0.0
        %3214 = vmatpush1.msra.mxu0 0.0
        %3215 = vmatprep.subr.mxu0 0.0
        %3216 = vmatpush1.msra.mxu0 0.0
        %3217 = vmatprep.subr.mxu0 0.0
        %3218 = vmatpush1.msra.mxu0 0.0
        %3219 = vmatprep.subr.mxu0 0.0
        %3220 = vmatpush1.msra.mxu0 0.0
        %3221 = vmatprep.subr.mxu0 0.0
        %3222 = vmatpush1.msra.mxu0 0.0
        %3223 = vmatprep.subr.mxu0 0.0
        %3224 = vmatpush1.msra.mxu0 0.0
        %3225 = vmatprep.subr.mxu0 0.0
        %3226 = vmatpush1.msra.mxu0 0.0
        %3227 = vmatprep.mubr.f32.mxu0 0.0
        %v3228 = vand.u32 %v2930, 4294901760
        %v3229 = vsub.f32 %v2930, %v3228
        %v3230 = vand.u32 %v3229, 4294901760
        %3231 = vmatmul.mubr.f32.gmra.mrb[0].mxu0 %v3230
        %v3232 = vpop.f32.mrb[0].mxu0
        %v3233 = vadd.f32 %v3159, %v3232
        %v3234 = vpop.f32.mrb[0].mxu0
        %3235 = vdwg.mxu0
        %3236 = vmatprep.subr.mxu0 0.0
        %v3237 = vand.u32 %v2934, 4294901760
        %v3238 = vsub.f32 %v2934, %v3237
        %v3239 = vand.u32 %v3238, 4294901760
        %3240 = vmatpush1.msra.mxu0 %v3239
        %3241 = vmatprep.subr.mxu0 0.0
        %3242 = vmatpush1.msra.mxu0 0.0
        %3243 = vmatprep.subr.mxu0 0.0
        %3244 = vmatpush1.msra.mxu0 0.0
        %3245 = vmatprep.subr.mxu0 0.0
        %3246 = vmatpush1.msra.mxu0 0.0
        %3247 = vmatprep.subr.mxu0 0.0
        %3248 = vmatpush1.msra.mxu0 0.0
        %3249 = vmatprep.subr.mxu0 0.0
        %3250 = vmatpush1.msra.mxu0 0.0
        %3251 = vmatprep.subr.mxu0 0.0
        %3252 = vmatpush1.msra.mxu0 0.0
        %3253 = vmatprep.subr.mxu0 0.0
        %3254 = vmatpush1.msra.mxu0 0.0
        %3255 = vmatprep.subr.mxu0 0.0
        %3256 = vmatpush1.msra.mxu0 0.0
        %3257 = vmatprep.subr.mxu0 0.0
        %3258 = vmatpush1.msra.mxu0 0.0
        %3259 = vmatprep.subr.mxu0 0.0
        %3260 = vmatpush1.msra.mxu0 0.0
        %3261 = vmatprep.subr.mxu0 0.0
        %3262 = vmatpush1.msra.mxu0 0.0
        %3263 = vmatprep.subr.mxu0 0.0
        %3264 = vmatpush1.msra.mxu0 0.0
        %3265 = vmatprep.subr.mxu0 0.0
        %3266 = vmatpush1.msra.mxu0 0.0
        %3267 = vmatprep.subr.mxu0 0.0
        %3268 = vmatpush1.msra.mxu0 0.0
        %3269 = vmatprep.subr.mxu0 0.0
        %3270 = vmatpush1.msra.mxu0 0.0
        %3271 = vmatprep.subr.mxu0 0.0
        %3272 = vmatpush1.msra.mxu0 0.0
        %3273 = vmatprep.subr.mxu0 0.0
        %3274 = vmatpush1.msra.mxu0 0.0
        %3275 = vmatprep.subr.mxu0 0.0
        %3276 = vmatpush1.msra.mxu0 0.0
        %3277 = vmatprep.subr.mxu0 0.0
        %3278 = vmatpush1.msra.mxu0 0.0
        %3279 = vmatprep.subr.mxu0 0.0
        %3280 = vmatpush1.msra.mxu0 0.0
        %3281 = vmatprep.subr.mxu0 0.0
        %3282 = vmatpush1.msra.mxu0 0.0
        %3283 = vmatprep.subr.mxu0 0.0
        %3284 = vmatpush1.msra.mxu0 0.0
        %3285 = vmatprep.subr.mxu0 0.0
        %3286 = vmatpush1.msra.mxu0 0.0
        %3287 = vmatprep.subr.mxu0 0.0
        %3288 = vmatpush1.msra.mxu0 0.0
        %3289 = vmatprep.subr.mxu0 0.0
        %3290 = vmatpush1.msra.mxu0 0.0
        %3291 = vmatprep.subr.mxu0 0.0
        %3292 = vmatpush1.msra.mxu0 0.0
        %3293 = vmatprep.subr.mxu0 0.0
        %3294 = vmatpush1.msra.mxu0 0.0
        %3295 = vmatprep.subr.mxu0 0.0
        %3296 = vmatpush1.msra.mxu0 0.0
        %3297 = vmatprep.subr.mxu0 0.0
        %3298 = vmatpush1.msra.mxu0 0.0
        %3299 = vmatprep.subr.mxu0 0.0
        %3300 = vmatpush1.msra.mxu0 0.0
        %3301 = vmatprep.subr.mxu0 0.0
        %3302 = vmatpush1.msra.mxu0 0.0
        %3303 = vmatprep.mubr.f32.mxu0 0.0
        %v3304 = vand.u32 %v2930, 4294901760
        %3305 = vmatmul.mubr.f32.gmra.mrb[0].mxu0 %v3304
        %v3306 = vpop.f32.mrb[0].mxu0
        %v3307 = vadd.f32 %v3233, %v3306
        %v3308 = vpop.f32.mrb[0].mxu0
        %3309 = vdwg.mxu0
        %3310 = vmatprep.subr.mxu0 0.0
        %v3311 = vand.u32 %v2934, 4294901760
        %3312 = vmatpush1.msra.mxu0 %v3311
        %3313 = vmatprep.subr.mxu0 0.0
        %3314 = vmatpush1.msra.mxu0 0.0
        %3315 = vmatprep.subr.mxu0 0.0
        %3316 = vmatpush1.msra.mxu0 0.0
        %3317 = vmatprep.subr.mxu0 0.0
        %3318 = vmatpush1.msra.mxu0 0.0
        %3319 = vmatprep.subr.mxu0 0.0
        %3320 = vmatpush1.msra.mxu0 0.0
        %3321 = vmatprep.subr.mxu0 0.0
        %3322 = vmatpush1.msra.mxu0 0.0
        %3323 = vmatprep.subr.mxu0 0.0
        %3324 = vmatpush1.msra.mxu0 0.0
        %3325 = vmatprep.subr.mxu0 0.0
        %3326 = vmatpush1.msra.mxu0 0.0
        %3327 = vmatprep.subr.mxu0 0.0
        %3328 = vmatpush1.msra.mxu0 0.0
        %3329 = vmatprep.subr.mxu0 0.0
        %3330 = vmatpush1.msra.mxu0 0.0
        %3331 = vmatprep.subr.mxu0 0.0
        %3332 = vmatpush1.msra.mxu0 0.0
        %3333 = vmatprep.subr.mxu0 0.0
        %3334 = vmatpush1.msra.mxu0 0.0
        %3335 = vmatprep.subr.mxu0 0.0
        %3336 = vmatpush1.msra.mxu0 0.0
        %3337 = vmatprep.subr.mxu0 0.0
        %3338 = vmatpush1.msra.mxu0 0.0
        %3339 = vmatprep.subr.mxu0 0.0
        %3340 = vmatpush1.msra.mxu0 0.0
        %3341 = vmatprep.subr.mxu0 0.0
        %3342 = vmatpush1.msra.mxu0 0.0
        %3343 = vmatprep.subr.mxu0 0.0
        %3344 = vmatpush1.msra.mxu0 0.0
        %3345 = vmatprep.subr.mxu0 0.0
        %3346 = vmatpush1.msra.mxu0 0.0
        %3347 = vmatprep.subr.mxu0 0.0
        %3348 = vmatpush1.msra.mxu0 0.0
        %3349 = vmatprep.subr.mxu0 0.0
        %3350 = vmatpush1.msra.mxu0 0.0
        %3351 = vmatprep.subr.mxu0 0.0
        %3352 = vmatpush1.msra.mxu0 0.0
        %3353 = vmatprep.subr.mxu0 0.0
        %3354 = vmatpush1.msra.mxu0 0.0
        %3355 = vmatprep.subr.mxu0 0.0
        %3356 = vmatpush1.msra.mxu0 0.0
        %3357 = vmatprep.subr.mxu0 0.0
        %3358 = vmatpush1.msra.mxu0 0.0
        %3359 = vmatprep.subr.mxu0 0.0
        %3360 = vmatpush1.msra.mxu0 0.0
        %3361 = vmatprep.subr.mxu0 0.0
        %3362 = vmatpush1.msra.mxu0 0.0
        %3363 = vmatprep.subr.mxu0 0.0
        %3364 = vmatpush1.msra.mxu0 0.0
        %3365 = vmatprep.subr.mxu0 0.0
        %3366 = vmatpush1.msra.mxu0 0.0
        %3367 = vmatprep.subr.mxu0 0.0
        %3368 = vmatpush1.msra.mxu0 0.0
        %3369 = vmatprep.subr.mxu0 0.0
        %3370 = vmatpush1.msra.mxu0 0.0
        %3371 = vmatprep.subr.mxu0 0.0
        %3372 = vmatpush1.msra.mxu0 0.0
        %3373 = vmatprep.subr.mxu0 0.0
        %3374 = vmatpush1.msra.mxu0 0.0
        %3375 = vmatprep.mubr.f32.mxu0 0.0
        %v3376 = vand.u32 %v2930, 4294901760
        %3377 = vmatmul.mubr.f32.gmra.mrb[0].mxu0 %v3376
        %v3378 = vpop.f32.mrb[0].mxu0
        %v3379 = vadd.f32 %v3307, %v3378
        %v3380 = vpop.f32.mrb[0].mxu0
        %3381 = vdwg.mxu0
        %v3382 = vxor.u32 %v3379, 2147483648
        %v3383 = vmul.f32 %v3382, 1.442695
        %v3384 = vpow.pop %v3383
        %v3385 = vadd.f32 %v3384, 1.0
        %v3386 = vrcp.pop %v3385
        %v3387 = vmul.f32 1.0, %v3386
        %v3388 = vlaneseq
        %v3389 = vshrl.u32 %v3388, 7
        %v3390 = vsub.s32 0, %v3389
        %v3391 = vrot.slane %v3387, %v3390
        %v3392 = vmul.f32 %v2258, %v3391
        %v3393 = vmul.f32 %v2259, %v3391
        %3396 = vrot.lane.b32.xlu0 %v3392, 112
        %v3397 = vpop.permute.xlu0 %3396
        %3398 = vrot.lane.b32.xlu0 %v3393, 112
        %v3399 = vpop.permute.xlu0 %3398
        %v3402 = vadd.f32 %v3392, %v3397
        %v3403 = vadd.f32 %v3393, %v3399
        %v3404 = vmax.f32 %v3392, %v3397
        %v3405 = vmax.f32 %v3393, %v3399
        %3406 = vrot.lane.b32.xlu0 %v3392, 96
        %v3407 = vpop.permute.xlu0 %3406
        %3408 = vrot.lane.b32.xlu0 %v3393, 96
        %v3409 = vpop.permute.xlu0 %3408
        %v3412 = vadd.f32 %v3402, %v3407
        %v3413 = vadd.f32 %v3403, %v3409
        %v3414 = vmax.f32 %v3404, %v3407
        %v3415 = vmax.f32 %v3405, %v3409
        %3416 = vrot.lane.b32.xlu0 %v3392, 80
        %v3417 = vpop.permute.xlu0 %3416
        %3418 = vrot.lane.b32.xlu0 %v3393, 80
        %v3419 = vpop.permute.xlu0 %3418
        %v3422 = vadd.f32 %v3412, %v3417
        %v3423 = vadd.f32 %v3413, %v3419
        %v3424 = vmax.f32 %v3414, %v3417
        %v3425 = vmax.f32 %v3415, %v3419
        %3426 = vrot.lane.b32.xlu0 %v3392, 64
        %v3427 = vpop.permute.xlu0 %3426
        %3428 = vrot.lane.b32.xlu0 %v3393, 64
        %v3429 = vpop.permute.xlu0 %3428
        %v3432 = vadd.f32 %v3422, %v3427
        %v3433 = vadd.f32 %v3423, %v3429
        %v3434 = vmax.f32 %v3424, %v3427
        %v3435 = vmax.f32 %v3425, %v3429
        %3436 = vrot.lane.b32.xlu0 %v3392, 48
        %v3437 = vpop.permute.xlu0 %3436
        %3438 = vrot.lane.b32.xlu0 %v3393, 48
        %v3439 = vpop.permute.xlu0 %3438
        %v3442 = vadd.f32 %v3432, %v3437
        %v3443 = vadd.f32 %v3433, %v3439
        %v3444 = vmax.f32 %v3434, %v3437
        %v3445 = vmax.f32 %v3435, %v3439
        %3446 = vrot.lane.b32.xlu0 %v3392, 32
        %v3447 = vpop.permute.xlu0 %3446
        %3448 = vrot.lane.b32.xlu0 %v3393, 32
        %v3449 = vpop.permute.xlu0 %3448
        %v3452 = vadd.f32 %v3442, %v3447
        %v3453 = vadd.f32 %v3443, %v3449
        %v3454 = vmax.f32 %v3444, %v3447
        %v3455 = vmax.f32 %v3445, %v3449
        %3456 = vrot.lane.b32.xlu0 %v3392, 16
        %v3457 = vpop.permute.xlu0 %3456
        %3458 = vrot.lane.b32.xlu0 %v3393, 16
        %v3459 = vpop.permute.xlu0 %3458
        %v3462 = vadd.f32 %v3452, %v3457
        %v3463 = vadd.f32 %v3453, %v3459
        %v3464 = vmax.f32 %v3454, %v3457
        %v3465 = vmax.f32 %v3455, %v3459
        %v3466 = vmul.f32 %v3462, 0.125
        %v3467 = vmul.f32 %v3463, 0.125
        %vm3468 = vcmask 130048
        %3469 = vst.msk [vmem:[#allocation3 + $0x3] sm:$0xff] %vm3468, %v3466
        %3470 = vst.msk [vmem:[#allocation3 + $0xb] sm:$0xff] %vm3468, %v3467
        %3473 = vrot.lane.b32.xlu0 %v3464, 16
        %v3474 = vpop.permute.xlu0 %3473
        %3475 = vrot.lane.b32.xlu0 %v3465, 16
        %v3476 = vpop.permute.xlu0 %3475
        %vm3479 = vcmask 261248
        %3480 = vst.msk [vmem:[#allocation3 + $0x3] sm:$0xff] %vm3479, %v3474
        %3481 = vst.msk [vmem:[#allocation3 + $0xb] sm:$0xff] %vm3479, %v3476
        %v3482 = vld [vmem:[#allocation3] sm:$0xff]
        %v3483 = vld [vmem:[#allocation3 + $0x8] sm:$0xff]
        %v3484 = vld [vmem:[#allocation17] sm:$0xff]
        %v3485 = vld [vmem:[#allocation17 + $0x8] sm:$0xff]
        %v3486 = vld [vmem:[#allocation17 + $0x10] sm:$0xff]
        %v3487 = vld [vmem:[#allocation17 + $0x18] sm:$0xff]
        %v3488 = vld [vmem:[#allocation3 + $0x1] sm:$0xff]
        %v3489 = vld [vmem:[#allocation3 + $0x9] sm:$0xff]
        %s3490 = scalar_lea.vmem [#allocation17], 32
        %v3491 = vld [vmem:[%s3490] sm:$0xff]
        %v3492 = vld [vmem:[%s3490 + $0x8] sm:$0xff]
        %v3493 = vld [vmem:[%s3490 + $0x10] sm:$0xff]
        %v3494 = vld [vmem:[%s3490 + $0x18] sm:$0xff]
        %vm3495 = vcmask 261120
        %v3497 = vsel %vm3495, %v3488, 0
        %v3500 = vsel %vm3495, %v3489, 0
        %3502 = vmatprep.subr.mxu0 0.0
        %v3503 = vand.u32 %v3491, 4294901760
        %3504 = vmatpush1.msra.mxu0 %v3503
        %3505 = vmatprep.subr.mxu0 0.0
        %v3506 = vand.u32 %v3492, 4294901760
        %3507 = vmatpush1.msra.mxu0 %v3506
        %3508 = vmatprep.subr.mxu0 0.0
        %v3509 = vand.u32 %v3493, 4294901760
        %3510 = vmatpush1.msra.mxu0 %v3509
        %3511 = vmatprep.subr.mxu0 0.0
        %v3512 = vand.u32 %v3494, 4294901760
        %3513 = vmatpush1.msra.mxu0 %v3512
        %3514 = vmatprep.subr.mxu0 0.0
        %3515 = vmatpush1.msra.mxu0 0.0
        %3516 = vmatprep.subr.mxu0 0.0
        %3517 = vmatpush1.msra.mxu0 0.0
        %3518 = vmatprep.subr.mxu0 0.0
        %3519 = vmatpush1.msra.mxu0 0.0
        %3520 = vmatprep.subr.mxu0 0.0
        %3521 = vmatpush1.msra.mxu0 0.0
        %3522 = vmatprep.subr.mxu0 0.0
        %3523 = vmatpush1.msra.mxu0 0.0
        %3524 = vmatprep.subr.mxu0 0.0
        %3525 = vmatpush1.msra.mxu0 0.0
        %3526 = vmatprep.subr.mxu0 0.0
        %3527 = vmatpush1.msra.mxu0 0.0
        %3528 = vmatprep.subr.mxu0 0.0
        %3529 = vmatpush1.msra.mxu0 0.0
        %3530 = vmatprep.subr.mxu0 0.0
        %3531 = vmatpush1.msra.mxu0 0.0
        %3532 = vmatprep.subr.mxu0 0.0
        %3533 = vmatpush1.msra.mxu0 0.0
        %3534 = vmatprep.subr.mxu0 0.0
        %3535 = vmatpush1.msra.mxu0 0.0
        %3536 = vmatprep.subr.mxu0 0.0
        %3537 = vmatpush1.msra.mxu0 0.0
        %3538 = vmatprep.subr.mxu0 0.0
        %3539 = vmatpush1.msra.mxu0 0.0
        %3540 = vmatprep.subr.mxu0 0.0
        %3541 = vmatpush1.msra.mxu0 0.0
        %3542 = vmatprep.subr.mxu0 0.0
        %3543 = vmatpush1.msra.mxu0 0.0
        %3544 = vmatprep.subr.mxu0 0.0
        %3545 = vmatpush1.msra.mxu0 0.0
        %3546 = vmatprep.subr.mxu0 0.0
        %3547 = vmatpush1.msra.mxu0 0.0
        %3548 = vmatprep.subr.mxu0 0.0
        %3549 = vmatpush1.msra.mxu0 0.0
        %3550 = vmatprep.subr.mxu0 0.0
        %3551 = vmatpush1.msra.mxu0 0.0
        %3552 = vmatprep.subr.mxu0 0.0
        %3553 = vmatpush1.msra.mxu0 0.0
        %3554 = vmatprep.subr.mxu0 0.0
        %3555 = vmatpush1.msra.mxu0 0.0
        %3556 = vmatprep.subr.mxu0 0.0
        %3557 = vmatpush1.msra.mxu0 0.0
        %3558 = vmatprep.subr.mxu0 0.0
        %3559 = vmatpush1.msra.mxu0 0.0
        %3560 = vmatprep.subr.mxu0 0.0
        %3561 = vmatpush1.msra.mxu0 0.0
        %3562 = vmatprep.subr.mxu0 0.0
        %3563 = vmatpush1.msra.mxu0 0.0
        %3564 = vmatprep.subr.mxu0 0.0
        %3565 = vmatpush1.msra.mxu0 0.0
        %3566 = vmatprep.subr.mxu0 0.0
        %3567 = vmatpush1.msra.mxu0 0.0
        %3568 = vmatprep.subr.mxu0 0.0
        %3569 = vmatpush1.msra.mxu0 0.0
        %3570 = vmatprep.mubr.f32.mxu0 0.0
        %v3571 = vand.u32 %v3497, 4294901760
        %v3572 = vsub.f32 %v3497, %v3571
        %v3573 = vand.u32 %v3572, 4294901760
        %v3574 = vsub.f32 %v3572, %v3573
        %v3575 = vand.u32 %v3574, 4294901760
        %3576 = vmatmul.mubr.f32.gmra.mrb[0].mxu0 %v3575
        %v3577 = vpop.f32.mrb[0].mxu0
        %v3578 = vadd.f32 0.0, %v3577
        %v3579 = vpop.f32.mrb[0].mxu0
        %3580 = vmatprep.mubr.f32.mxu0 0.0
        %v3581 = vand.u32 %v3500, 4294901760
        %v3582 = vsub.f32 %v3500, %v3581
        %v3583 = vand.u32 %v3582, 4294901760
        %v3584 = vsub.f32 %v3582, %v3583
        %v3585 = vand.u32 %v3584, 4294901760
        %3586 = vmatmul.mubr.f32.gmra.mrb[0].mxu0 %v3585
        %v3587 = vpop.f32.mrb[0].mxu0
        %v3588 = vadd.f32 0.0, %v3587
        %v3589 = vpop.f32.mrb[0].mxu0
        %3590 = vdwg.mxu0
        %3591 = vmatprep.subr.mxu0 0.0
        %v3592 = vand.u32 %v3491, 4294901760
        %v3593 = vsub.f32 %v3491, %v3592
        %v3594 = vand.u32 %v3593, 4294901760
        %v3595 = vsub.f32 %v3593, %v3594
        %v3596 = vand.u32 %v3595, 4294901760
        %3597 = vmatpush1.msra.mxu0 %v3596
        %3598 = vmatprep.subr.mxu0 0.0
        %v3599 = vand.u32 %v3492, 4294901760
        %v3600 = vsub.f32 %v3492, %v3599
        %v3601 = vand.u32 %v3600, 4294901760
        %v3602 = vsub.f32 %v3600, %v3601
        %v3603 = vand.u32 %v3602, 4294901760
        %3604 = vmatpush1.msra.mxu0 %v3603
        %3605 = vmatprep.subr.mxu0 0.0
        %v3606 = vand.u32 %v3493, 4294901760
        %v3607 = vsub.f32 %v3493, %v3606
        %v3608 = vand.u32 %v3607, 4294901760
        %v3609 = vsub.f32 %v3607, %v3608
        %v3610 = vand.u32 %v3609, 4294901760
        %3611 = vmatpush1.msra.mxu0 %v3610
        %3612 = vmatprep.subr.mxu0 0.0
        %v3613 = vand.u32 %v3494, 4294901760
        %v3614 = vsub.f32 %v3494, %v3613
        %v3615 = vand.u32 %v3614, 4294901760
        %v3616 = vsub.f32 %v3614, %v3615
        %v3617 = vand.u32 %v3616, 4294901760
        %3618 = vmatpush1.msra.mxu0 %v3617
        %3619 = vmatprep.subr.mxu0 0.0
        %3620 = vmatpush1.msra.mxu0 0.0
        %3621 = vmatprep.subr.mxu0 0.0
        %3622 = vmatpush1.msra.mxu0 0.0
        %3623 = vmatprep.subr.mxu0 0.0
        %3624 = vmatpush1.msra.mxu0 0.0
        %3625 = vmatprep.subr.mxu0 0.0
        %3626 = vmatpush1.msra.mxu0 0.0
        %3627 = vmatprep.subr.mxu0 0.0
        %3628 = vmatpush1.msra.mxu0 0.0
        %3629 = vmatprep.subr.mxu0 0.0
        %3630 = vmatpush1.msra.mxu0 0.0
        %3631 = vmatprep.subr.mxu0 0.0
        %3632 = vmatpush1.msra.mxu0 0.0
        %3633 = vmatprep.subr.mxu0 0.0
        %3634 = vmatpush1.msra.mxu0 0.0
        %3635 = vmatprep.subr.mxu0 0.0
        %3636 = vmatpush1.msra.mxu0 0.0
        %3637 = vmatprep.subr.mxu0 0.0
        %3638 = vmatpush1.msra.mxu0 0.0
        %3639 = vmatprep.subr.mxu0 0.0
        %3640 = vmatpush1.msra.mxu0 0.0
        %3641 = vmatprep.subr.mxu0 0.0
        %3642 = vmatpush1.msra.mxu0 0.0
        %3643 = vmatprep.subr.mxu0 0.0
        %3644 = vmatpush1.msra.mxu0 0.0
        %3645 = vmatprep.subr.mxu0 0.0
        %3646 = vmatpush1.msra.mxu0 0.0
        %3647 = vmatprep.subr.mxu0 0.0
        %3648 = vmatpush1.msra.mxu0 0.0
        %3649 = vmatprep.subr.mxu0 0.0
        %3650 = vmatpush1.msra.mxu0 0.0
        %3651 = vmatprep.subr.mxu0 0.0
        %3652 = vmatpush1.msra.mxu0 0.0
        %3653 = vmatprep.subr.mxu0 0.0
        %3654 = vmatpush1.msra.mxu0 0.0
        %3655 = vmatprep.subr.mxu0 0.0
        %3656 = vmatpush1.msra.mxu0 0.0
        %3657 = vmatprep.subr.mxu0 0.0
        %3658 = vmatpush1.msra.mxu0 0.0
        %3659 = vmatprep.subr.mxu0 0.0
        %3660 = vmatpush1.msra.mxu0 0.0
        %3661 = vmatprep.subr.mxu0 0.0
        %3662 = vmatpush1.msra.mxu0 0.0
        %3663 = vmatprep.subr.mxu0 0.0
        %3664 = vmatpush1.msra.mxu0 0.0
        %3665 = vmatprep.subr.mxu0 0.0
        %3666 = vmatpush1.msra.mxu0 0.0
        %3667 = vmatprep.subr.mxu0 0.0
        %3668 = vmatpush1.msra.mxu0 0.0
        %3669 = vmatprep.subr.mxu0 0.0
        %3670 = vmatpush1.msra.mxu0 0.0
        %3671 = vmatprep.subr.mxu0 0.0
        %3672 = vmatpush1.msra.mxu0 0.0
        %3673 = vmatprep.subr.mxu0 0.0
        %3674 = vmatpush1.msra.mxu0 0.0
        %3675 = vmatprep.mubr.f32.mxu0 0.0
        %v3676 = vand.u32 %v3497, 4294901760
        %3677 = vmatmul.mubr.f32.gmra.mrb[0].mxu0 %v3676
        %v3678 = vpop.f32.mrb[0].mxu0
        %v3679 = vadd.f32 %v3578, %v3678
        %v3680 = vpop.f32.mrb[0].mxu0
        %3681 = vmatprep.mubr.f32.mxu0 0.0
        %v3682 = vand.u32 %v3500, 4294901760
        %3683 = vmatmul.mubr.f32.gmra.mrb[0].mxu0 %v3682
        %v3684 = vpop.f32.mrb[0].mxu0
        %v3685 = vadd.f32 %v3588, %v3684
        %v3686 = vpop.f32.mrb[0].mxu0
        %3687 = vdwg.mxu0
        %3688 = vmatprep.subr.mxu0 0.0
        %v3689 = vand.u32 %v3491, 4294901760
        %v3690 = vsub.f32 %v3491, %v3689
        %3691 = vmatpush1.msra.mxu0 %v3690
        %3692 = vmatprep.subr.mxu0 0.0
        %v3693 = vand.u32 %v3492, 4294901760
        %v3694 = vsub.f32 %v3492, %v3693
        %3695 = vmatpush1.msra.mxu0 %v3694
        %3696 = vmatprep.subr.mxu0 0.0
        %v3697 = vand.u32 %v3493, 4294901760
        %v3698 = vsub.f32 %v3493, %v3697
        %3699 = vmatpush1.msra.mxu0 %v3698
        %3700 = vmatprep.subr.mxu0 0.0
        %v3701 = vand.u32 %v3494, 4294901760
        %v3702 = vsub.f32 %v3494, %v3701
        %3703 = vmatpush1.msra.mxu0 %v3702
        %3704 = vmatprep.subr.mxu0 0.0
        %3705 = vmatpush1.msra.mxu0 0.0
        %3706 = vmatprep.subr.mxu0 0.0
        %3707 = vmatpush1.msra.mxu0 0.0
        %3708 = vmatprep.subr.mxu0 0.0
        %3709 = vmatpush1.msra.mxu0 0.0
        %3710 = vmatprep.subr.mxu0 0.0
        %3711 = vmatpush1.msra.mxu0 0.0
        %3712 = vmatprep.subr.mxu0 0.0
        %3713 = vmatpush1.msra.mxu0 0.0
        %3714 = vmatprep.subr.mxu0 0.0
        %3715 = vmatpush1.msra.mxu0 0.0
        %3716 = vmatprep.subr.mxu0 0.0
        %3717 = vmatpush1.msra.mxu0 0.0
        %3718 = vmatprep.subr.mxu0 0.0
        %3719 = vmatpush1.msra.mxu0 0.0
        %3720 = vmatprep.subr.mxu0 0.0
        %3721 = vmatpush1.msra.mxu0 0.0
        %3722 = vmatprep.subr.mxu0 0.0
        %3723 = vmatpush1.msra.mxu0 0.0
        %3724 = vmatprep.subr.mxu0 0.0
        %3725 = vmatpush1.msra.mxu0 0.0
        %3726 = vmatprep.subr.mxu0 0.0
        %3727 = vmatpush1.msra.mxu0 0.0
        %3728 = vmatprep.subr.mxu0 0.0
        %3729 = vmatpush1.msra.mxu0 0.0
        %3730 = vmatprep.subr.mxu0 0.0
        %3731 = vmatpush1.msra.mxu0 0.0
        %3732 = vmatprep.subr.mxu0 0.0
        %3733 = vmatpush1.msra.mxu0 0.0
        %3734 = vmatprep.subr.mxu0 0.0
        %3735 = vmatpush1.msra.mxu0 0.0
        %3736 = vmatprep.subr.mxu0 0.0
        %3737 = vmatpush1.msra.mxu0 0.0
        %3738 = vmatprep.subr.mxu0 0.0
        %3739 = vmatpush1.msra.mxu0 0.0
        %3740 = vmatprep.subr.mxu0 0.0
        %3741 = vmatpush1.msra.mxu0 0.0
        %3742 = vmatprep.subr.mxu0 0.0
        %3743 = vmatpush1.msra.mxu0 0.0
        %3744 = vmatprep.subr.mxu0 0.0
        %3745 = vmatpush1.msra.mxu0 0.0
        %3746 = vmatprep.subr.mxu0 0.0
        %3747 = vmatpush1.msra.mxu0 0.0
        %3748 = vmatprep.subr.mxu0 0.0
        %3749 = vmatpush1.msra.mxu0 0.0
        %3750 = vmatprep.subr.mxu0 0.0
        %3751 = vmatpush1.msra.mxu0 0.0
        %3752 = vmatprep.subr.mxu0 0.0
        %3753 = vmatpush1.msra.mxu0 0.0
        %3754 = vmatprep.subr.mxu0 0.0
        %3755 = vmatpush1.msra.mxu0 0.0
        %3756 = vmatprep.subr.mxu0 0.0
        %3757 = vmatpush1.msra.mxu0 0.0
        %3758 = vmatprep.subr.mxu0 0.0
        %3759 = vmatpush1.msra.mxu0 0.0
        %3760 = vmatprep.mubr.f32.mxu0 0.0
        %v3761 = vand.u32 %v3497, 4294901760
        %v3762 = vsub.f32 %v3497, %v3761
        %3763 = vmatmul.mubr.f32.gmra.mrb[0].mxu0 %v3762
        %v3764 = vpop.f32.mrb[0].mxu0
        %v3765 = vadd.f32 %v3679, %v3764
        %v3766 = vpop.f32.mrb[0].mxu0
        %3767 = vmatprep.mubr.f32.mxu0 0.0
        %v3768 = vand.u32 %v3500, 4294901760
        %v3769 = vsub.f32 %v3500, %v3768
        %3770 = vmatmul.mubr.f32.gmra.mrb[0].mxu0 %v3769
        %v3771 = vpop.f32.mrb[0].mxu0
        %v3772 = vadd.f32 %v3685, %v3771
        %v3773 = vpop.f32.mrb[0].mxu0
        %3774 = vdwg.mxu0
        %3775 = vmatprep.subr.mxu0 0.0
        %v3776 = vand.u32 %v3491, 4294901760
        %3777 = vmatpush1.msra.mxu0 %v3776
        %3778 = vmatprep.subr.mxu0 0.0
        %v3779 = vand.u32 %v3492, 4294901760
        %3780 = vmatpush1.msra.mxu0 %v3779
        %3781 = vmatprep.subr.mxu0 0.0
        %v3782 = vand.u32 %v3493, 4294901760
        %3783 = vmatpush1.msra.mxu0 %v3782
        %3784 = vmatprep.subr.mxu0 0.0
        %v3785 = vand.u32 %v3494, 4294901760
        %3786 = vmatpush1.msra.mxu0 %v3785
        %3787 = vmatprep.subr.mxu0 0.0
        %3788 = vmatpush1.msra.mxu0 0.0
        %3789 = vmatprep.subr.mxu0 0.0
        %3790 = vmatpush1.msra.mxu0 0.0
        %3791 = vmatprep.subr.mxu0 0.0
        %3792 = vmatpush1.msra.mxu0 0.0
        %3793 = vmatprep.subr.mxu0 0.0
        %3794 = vmatpush1.msra.mxu0 0.0
        %3795 = vmatprep.subr.mxu0 0.0
        %3796 = vmatpush1.msra.mxu0 0.0
        %3797 = vmatprep.subr.mxu0 0.0
        %3798 = vmatpush1.msra.mxu0 0.0
        %3799 = vmatprep.subr.mxu0 0.0
        %3800 = vmatpush1.msra.mxu0 0.0
        %3801 = vmatprep.subr.mxu0 0.0
        %3802 = vmatpush1.msra.mxu0 0.0
        %3803 = vmatprep.subr.mxu0 0.0
        %3804 = vmatpush1.msra.mxu0 0.0
        %3805 = vmatprep.subr.mxu0 0.0
        %3806 = vmatpush1.msra.mxu0 0.0
        %3807 = vmatprep.subr.mxu0 0.0
        %3808 = vmatpush1.msra.mxu0 0.0
        %3809 = vmatprep.subr.mxu0 0.0
        %3810 = vmatpush1.msra.mxu0 0.0
        %3811 = vmatprep.subr.mxu0 0.0
        %3812 = vmatpush1.msra.mxu0 0.0
        %3813 = vmatprep.subr.mxu0 0.0
        %3814 = vmatpush1.msra.mxu0 0.0
        %3815 = vmatprep.subr.mxu0 0.0
        %3816 = vmatpush1.msra.mxu0 0.0
        %3817 = vmatprep.subr.mxu0 0.0
        %3818 = vmatpush1.msra.mxu0 0.0
        %3819 = vmatprep.subr.mxu0 0.0
        %3820 = vmatpush1.msra.mxu0 0.0
        %3821 = vmatprep.subr.mxu0 0.0
        %3822 = vmatpush1.msra.mxu0 0.0
        %3823 = vmatprep.subr.mxu0 0.0
        %3824 = vmatpush1.msra.mxu0 0.0
        %3825 = vmatprep.subr.mxu0 0.0
        %3826 = vmatpush1.msra.mxu0 0.0
        %3827 = vmatprep.subr.mxu0 0.0
        %3828 = vmatpush1.msra.mxu0 0.0
        %3829 = vmatprep.subr.mxu0 0.0
        %3830 = vmatpush1.msra.mxu0 0.0
        %3831 = vmatprep.subr.mxu0 0.0
        %3832 = vmatpush1.msra.mxu0 0.0
        %3833 = vmatprep.subr.mxu0 0.0
        %3834 = vmatpush1.msra.mxu0 0.0
        %3835 = vmatprep.subr.mxu0 0.0
        %3836 = vmatpush1.msra.mxu0 0.0
        %3837 = vmatprep.subr.mxu0 0.0
        %3838 = vmatpush1.msra.mxu0 0.0
        %3839 = vmatprep.subr.mxu0 0.0
        %3840 = vmatpush1.msra.mxu0 0.0
        %3841 = vmatprep.subr.mxu0 0.0
        %3842 = vmatpush1.msra.mxu0 0.0
        %3843 = vmatprep.mubr.f32.mxu0 0.0
        %v3844 = vand.u32 %v3497, 4294901760
        %v3845 = vsub.f32 %v3497, %v3844
        %v3846 = vand.u32 %v3845, 4294901760
        %3847 = vmatmul.mubr.f32.gmra.mrb[0].mxu0 %v3846
        %v3848 = vpop.f32.mrb[0].mxu0
        %v3849 = vadd.f32 %v3765, %v3848
        %v3850 = vpop.f32.mrb[0].mxu0
        %3851 = vmatprep.mubr.f32.mxu0 0.0
        %v3852 = vand.u32 %v3500, 4294901760
        %v3853 = vsub.f32 %v3500, %v3852
        %v3854 = vand.u32 %v3853, 4294901760
        %3855 = vmatmul.mubr.f32.gmra.mrb[0].mxu0 %v3854
        %v3856 = vpop.f32.mrb[0].mxu0
        %v3857 = vadd.f32 %v3772, %v3856
        %v3858 = vpop.f32.mrb[0].mxu0
        %3859 = vdwg.mxu0
        %3860 = vmatprep.subr.mxu0 0.0
        %v3861 = vand.u32 %v3491, 4294901760
        %v3862 = vsub.f32 %v3491, %v3861
        %v3863 = vand.u32 %v3862, 4294901760
        %3864 = vmatpush1.msra.mxu0 %v3863
        %3865 = vmatprep.subr.mxu0 0.0
        %v3866 = vand.u32 %v3492, 4294901760
        %v3867 = vsub.f32 %v3492, %v3866
        %v3868 = vand.u32 %v3867, 4294901760
        %3869 = vmatpush1.msra.mxu0 %v3868
        %3870 = vmatprep.subr.mxu0 0.0
        %v3871 = vand.u32 %v3493, 4294901760
        %v3872 = vsub.f32 %v3493, %v3871
        %v3873 = vand.u32 %v3872, 4294901760
        %3874 = vmatpush1.msra.mxu0 %v3873
        %3875 = vmatprep.subr.mxu0 0.0
        %v3876 = vand.u32 %v3494, 4294901760
        %v3877 = vsub.f32 %v3494, %v3876
        %v3878 = vand.u32 %v3877, 4294901760
        %3879 = vmatpush1.msra.mxu0 %v3878
        %3880 = vmatprep.subr.mxu0 0.0
        %3881 = vmatpush1.msra.mxu0 0.0
        %3882 = vmatprep.subr.mxu0 0.0
        %3883 = vmatpush1.msra.mxu0 0.0
        %3884 = vmatprep.subr.mxu0 0.0
        %3885 = vmatpush1.msra.mxu0 0.0
        %3886 = vmatprep.subr.mxu0 0.0
        %3887 = vmatpush1.msra.mxu0 0.0
        %3888 = vmatprep.subr.mxu0 0.0
        %3889 = vmatpush1.msra.mxu0 0.0
        %3890 = vmatprep.subr.mxu0 0.0
        %3891 = vmatpush1.msra.mxu0 0.0
        %3892 = vmatprep.subr.mxu0 0.0
        %3893 = vmatpush1.msra.mxu0 0.0
        %3894 = vmatprep.subr.mxu0 0.0
        %3895 = vmatpush1.msra.mxu0 0.0
        %3896 = vmatprep.subr.mxu0 0.0
        %3897 = vmatpush1.msra.mxu0 0.0
        %3898 = vmatprep.subr.mxu0 0.0
        %3899 = vmatpush1.msra.mxu0 0.0
        %3900 = vmatprep.subr.mxu0 0.0
        %3901 = vmatpush1.msra.mxu0 0.0
        %3902 = vmatprep.subr.mxu0 0.0
        %3903 = vmatpush1.msra.mxu0 0.0
        %3904 = vmatprep.subr.mxu0 0.0
        %3905 = vmatpush1.msra.mxu0 0.0
        %3906 = vmatprep.subr.mxu0 0.0
        %3907 = vmatpush1.msra.mxu0 0.0
        %3908 = vmatprep.subr.mxu0 0.0
        %3909 = vmatpush1.msra.mxu0 0.0
        %3910 = vmatprep.subr.mxu0 0.0
        %3911 = vmatpush1.msra.mxu0 0.0
        %3912 = vmatprep.subr.mxu0 0.0
        %3913 = vmatpush1.msra.mxu0 0.0
        %3914 = vmatprep.subr.mxu0 0.0
        %3915 = vmatpush1.msra.mxu0 0.0
        %3916 = vmatprep.subr.mxu0 0.0
        %3917 = vmatpush1.msra.mxu0 0.0
        %3918 = vmatprep.subr.mxu0 0.0
        %3919 = vmatpush1.msra.mxu0 0.0
        %3920 = vmatprep.subr.mxu0 0.0
        %3921 = vmatpush1.msra.mxu0 0.0
        %3922 = vmatprep.subr.mxu0 0.0
        %3923 = vmatpush1.msra.mxu0 0.0
        %3924 = vmatprep.subr.mxu0 0.0
        %3925 = vmatpush1.msra.mxu0 0.0
        %3926 = vmatprep.subr.mxu0 0.0
        %3927 = vmatpush1.msra.mxu0 0.0
        %3928 = vmatprep.subr.mxu0 0.0
        %3929 = vmatpush1.msra.mxu0 0.0
        %3930 = vmatprep.subr.mxu0 0.0
        %3931 = vmatpush1.msra.mxu0 0.0
        %3932 = vmatprep.subr.mxu0 0.0
        %3933 = vmatpush1.msra.mxu0 0.0
        %3934 = vmatprep.subr.mxu0 0.0
        %3935 = vmatpush1.msra.mxu0 0.0
        %3936 = vmatprep.mubr.f32.mxu0 0.0
        %v3937 = vand.u32 %v3497, 4294901760
        %3938 = vmatmul.mubr.f32.gmra.mrb[0].mxu0 %v3937
        %v3939 = vpop.f32.mrb[0].mxu0
        %v3940 = vadd.f32 %v3849, %v3939
        %v3941 = vpop.f32.mrb[0].mxu0
        %3942 = vmatprep.mubr.f32.mxu0 0.0
        %v3943 = vand.u32 %v3500, 4294901760
        %3944 = vmatmul.mubr.f32.gmra.mrb[0].mxu0 %v3943
        %v3945 = vpop.f32.mrb[0].mxu0
        %v3946 = vadd.f32 %v3857, %v3945
        %v3947 = vpop.f32.mrb[0].mxu0
        %3948 = vdwg.mxu0
        %3949 = vmatprep.subr.mxu0 0.0
        %v3950 = vand.u32 %v3491, 4294901760
        %3951 = vmatpush1.msra.mxu0 %v3950
        %3952 = vmatprep.subr.mxu0 0.0
        %v3953 = vand.u32 %v3492, 4294901760
        %3954 = vmatpush1.msra.mxu0 %v3953
        %3955 = vmatprep.subr.mxu0 0.0
        %v3956 = vand.u32 %v3493, 4294901760
        %3957 = vmatpush1.msra.mxu0 %v3956
        %3958 = vmatprep.subr.mxu0 0.0
        %v3959 = vand.u32 %v3494, 4294901760
        %3960 = vmatpush1.msra.mxu0 %v3959
        %3961 = vmatprep.subr.mxu0 0.0
        %3962 = vmatpush1.msra.mxu0 0.0
        %3963 = vmatprep.subr.mxu0 0.0
        %3964 = vmatpush1.msra.mxu0 0.0
        %3965 = vmatprep.subr.mxu0 0.0
        %3966 = vmatpush1.msra.mxu0 0.0
        %3967 = vmatprep.subr.mxu0 0.0
        %3968 = vmatpush1.msra.mxu0 0.0
        %3969 = vmatprep.subr.mxu0 0.0
        %3970 = vmatpush1.msra.mxu0 0.0
        %3971 = vmatprep.subr.mxu0 0.0
        %3972 = vmatpush1.msra.mxu0 0.0
        %3973 = vmatprep.subr.mxu0 0.0
        %3974 = vmatpush1.msra.mxu0 0.0
        %3975 = vmatprep.subr.mxu0 0.0
        %3976 = vmatpush1.msra.mxu0 0.0
        %3977 = vmatprep.subr.mxu0 0.0
        %3978 = vmatpush1.msra.mxu0 0.0
        %3979 = vmatprep.subr.mxu0 0.0
        %3980 = vmatpush1.msra.mxu0 0.0
        %3981 = vmatprep.subr.mxu0 0.0
        %3982 = vmatpush1.msra.mxu0 0.0
        %3983 = vmatprep.subr.mxu0 0.0
        %3984 = vmatpush1.msra.mxu0 0.0
        %3985 = vmatprep.subr.mxu0 0.0
        %3986 = vmatpush1.msra.mxu0 0.0
        %3987 = vmatprep.subr.mxu0 0.0
        %3988 = vmatpush1.msra.mxu0 0.0
        %3989 = vmatprep.subr.mxu0 0.0
        %3990 = vmatpush1.msra.mxu0 0.0
        %3991 = vmatprep.subr.mxu0 0.0
        %3992 = vmatpush1.msra.mxu0 0.0
        %3993 = vmatprep.subr.mxu0 0.0
        %3994 = vmatpush1.msra.mxu0 0.0
        %3995 = vmatprep.subr.mxu0 0.0
        %3996 = vmatpush1.msra.mxu0 0.0
        %3997 = vmatprep.subr.mxu0 0.0
        %3998 = vmatpush1.msra.mxu0 0.0
        %3999 = vmatprep.subr.mxu0 0.0
        %4000 = vmatpush1.msra.mxu0 0.0
        %4001 = vmatprep.subr.mxu0 0.0
        %4002 = vmatpush1.msra.mxu0 0.0
        %4003 = vmatprep.subr.mxu0 0.0
        %4004 = vmatpush1.msra.mxu0 0.0
        %4005 = vmatprep.subr.mxu0 0.0
        %4006 = vmatpush1.msra.mxu0 0.0
        %4007 = vmatprep.subr.mxu0 0.0
        %4008 = vmatpush1.msra.mxu0 0.0
        %4009 = vmatprep.subr.mxu0 0.0
        %4010 = vmatpush1.msra.mxu0 0.0
        %4011 = vmatprep.subr.mxu0 0.0
        %4012 = vmatpush1.msra.mxu0 0.0
        %4013 = vmatprep.subr.mxu0 0.0
        %4014 = vmatpush1.msra.mxu0 0.0
        %4015 = vmatprep.subr.mxu0 0.0
        %4016 = vmatpush1.msra.mxu0 0.0
        %4017 = vmatprep.mubr.f32.mxu0 0.0
        %v4018 = vand.u32 %v3497, 4294901760
        %4019 = vmatmul.mubr.f32.gmra.mrb[0].mxu0 %v4018
        %v4020 = vpop.f32.mrb[0].mxu0
        %v4021 = vadd.f32 %v3940, %v4020
        %v4022 = vpop.f32.mrb[0].mxu0
        %4023 = vmatprep.mubr.f32.mxu0 0.0
        %v4024 = vand.u32 %v3500, 4294901760
        %4025 = vmatmul.mubr.f32.gmra.mrb[0].mxu0 %v4024
        %v4026 = vpop.f32.mrb[0].mxu0
        %v4027 = vadd.f32 %v3946, %v4026
        %v4028 = vpop.f32.mrb[0].mxu0
        %4029 = vdwg.mxu0
        %v4031 = vsel %vm3495, %v3482, 0
        %v4034 = vsel %vm3495, %v3483, 0
        %4036 = vmatprep.subr.mxu0 0.0
        %v4037 = vand.u32 %v3484, 4294901760
        %4038 = vmatpush1.msra.mxu0 %v4037
        %4039 = vmatprep.subr.mxu0 0.0
        %v4040 = vand.u32 %v3485, 4294901760
        %4041 = vmatpush1.msra.mxu0 %v4040
        %4042 = vmatprep.subr.mxu0 0.0
        %v4043 = vand.u32 %v3486, 4294901760
        %4044 = vmatpush1.msra.mxu0 %v4043
        %4045 = vmatprep.subr.mxu0 0.0
        %v4046 = vand.u32 %v3487, 4294901760
        %4047 = vmatpush1.msra.mxu0 %v4046
        %4048 = vmatprep.subr.mxu0 0.0
        %4049 = vmatpush1.msra.mxu0 0.0
        %4050 = vmatprep.subr.mxu0 0.0
        %4051 = vmatpush1.msra.mxu0 0.0
        %4052 = vmatprep.subr.mxu0 0.0
        %4053 = vmatpush1.msra.mxu0 0.0
        %4054 = vmatprep.subr.mxu0 0.0
        %4055 = vmatpush1.msra.mxu0 0.0
        %4056 = vmatprep.subr.mxu0 0.0
        %4057 = vmatpush1.msra.mxu0 0.0
        %4058 = vmatprep.subr.mxu0 0.0
        %4059 = vmatpush1.msra.mxu0 0.0
        %4060 = vmatprep.subr.mxu0 0.0
        %4061 = vmatpush1.msra.mxu0 0.0
        %4062 = vmatprep.subr.mxu0 0.0
        %4063 = vmatpush1.msra.mxu0 0.0
        %4064 = vmatprep.subr.mxu0 0.0
        %4065 = vmatpush1.msra.mxu0 0.0
        %4066 = vmatprep.subr.mxu0 0.0
        %4067 = vmatpush1.msra.mxu0 0.0
        %4068 = vmatprep.subr.mxu0 0.0
        %4069 = vmatpush1.msra.mxu0 0.0
        %4070 = vmatprep.subr.mxu0 0.0
        %4071 = vmatpush1.msra.mxu0 0.0
        %4072 = vmatprep.subr.mxu0 0.0
        %4073 = vmatpush1.msra.mxu0 0.0
        %4074 = vmatprep.subr.mxu0 0.0
        %4075 = vmatpush1.msra.mxu0 0.0
        %4076 = vmatprep.subr.mxu0 0.0
        %4077 = vmatpush1.msra.mxu0 0.0
        %4078 = vmatprep.subr.mxu0 0.0
        %4079 = vmatpush1.msra.mxu0 0.0
        %4080 = vmatprep.subr.mxu0 0.0
        %4081 = vmatpush1.msra.mxu0 0.0
        %4082 = vmatprep.subr.mxu0 0.0
        %4083 = vmatpush1.msra.mxu0 0.0
        %4084 = vmatprep.subr.mxu0 0.0
        %4085 = vmatpush1.msra.mxu0 0.0
        %4086 = vmatprep.subr.mxu0 0.0
        %4087 = vmatpush1.msra.mxu0 0.0
        %4088 = vmatprep.subr.mxu0 0.0
        %4089 = vmatpush1.msra.mxu0 0.0
        %4090 = vmatprep.subr.mxu0 0.0
        %4091 = vmatpush1.msra.mxu0 0.0
        %4092 = vmatprep.subr.mxu0 0.0
        %4093 = vmatpush1.msra.mxu0 0.0
        %4094 = vmatprep.subr.mxu0 0.0
        %4095 = vmatpush1.msra.mxu0 0.0
        %4096 = vmatprep.subr.mxu0 0.0
        %4097 = vmatpush1.msra.mxu0 0.0
        %4098 = vmatprep.subr.mxu0 0.0
        %4099 = vmatpush1.msra.mxu0 0.0
        %4100 = vmatprep.subr.mxu0 0.0
        %4101 = vmatpush1.msra.mxu0 0.0
        %4102 = vmatprep.subr.mxu0 0.0
        %4103 = vmatpush1.msra.mxu0 0.0
        %4104 = vmatprep.mubr.f32.mxu0 0.0
        %v4105 = vand.u32 %v4031, 4294901760
        %v4106 = vsub.f32 %v4031, %v4105
        %v4107 = vand.u32 %v4106, 4294901760
        %v4108 = vsub.f32 %v4106, %v4107
        %v4109 = vand.u32 %v4108, 4294901760
        %4110 = vmatmul.mubr.f32.gmra.mrb[0].mxu0 %v4109
        %v4111 = vpop.f32.mrb[0].mxu0
        %v4112 = vadd.f32 %v4021, %v4111
        %v4113 = vpop.f32.mrb[0].mxu0
        %4114 = vmatprep.mubr.f32.mxu0 0.0
        %v4115 = vand.u32 %v4034, 4294901760
        %v4116 = vsub.f32 %v4034, %v4115
        %v4117 = vand.u32 %v4116, 4294901760
        %v4118 = vsub.f32 %v4116, %v4117
        %v4119 = vand.u32 %v4118, 4294901760
        %4120 = vmatmul.mubr.f32.gmra.mrb[0].mxu0 %v4119
        %v4121 = vpop.f32.mrb[0].mxu0
        %v4122 = vadd.f32 %v4027, %v4121
        %v4123 = vpop.f32.mrb[0].mxu0
        %4124 = vdwg.mxu0
        %4125 = vmatprep.subr.mxu0 0.0
        %v4126 = vand.u32 %v3484, 4294901760
        %v4127 = vsub.f32 %v3484, %v4126
        %v4128 = vand.u32 %v4127, 4294901760
        %v4129 = vsub.f32 %v4127, %v4128
        %v4130 = vand.u32 %v4129, 4294901760
        %4131 = vmatpush1.msra.mxu0 %v4130
        %4132 = vmatprep.subr.mxu0 0.0
        %v4133 = vand.u32 %v3485, 4294901760
        %v4134 = vsub.f32 %v3485, %v4133
        %v4135 = vand.u32 %v4134, 4294901760
        %v4136 = vsub.f32 %v4134, %v4135
        %v4137 = vand.u32 %v4136, 4294901760
        %4138 = vmatpush1.msra.mxu0 %v4137
        %4139 = vmatprep.subr.mxu0 0.0
        %v4140 = vand.u32 %v3486, 4294901760
        %v4141 = vsub.f32 %v3486, %v4140
        %v4142 = vand.u32 %v4141, 4294901760
        %v4143 = vsub.f32 %v4141, %v4142
        %v4144 = vand.u32 %v4143, 4294901760
        %4145 = vmatpush1.msra.mxu0 %v4144
        %4146 = vmatprep.subr.mxu0 0.0
        %v4147 = vand.u32 %v3487, 4294901760
        %v4148 = vsub.f32 %v3487, %v4147
        %v4149 = vand.u32 %v4148, 4294901760
        %v4150 = vsub.f32 %v4148, %v4149
        %v4151 = vand.u32 %v4150, 4294901760
        %4152 = vmatpush1.msra.mxu0 %v4151
        %4153 = vmatprep.subr.mxu0 0.0
        %4154 = vmatpush1.msra.mxu0 0.0
        %4155 = vmatprep.subr.mxu0 0.0
        %4156 = vmatpush1.msra.mxu0 0.0
        %4157 = vmatprep.subr.mxu0 0.0
        %4158 = vmatpush1.msra.mxu0 0.0
        %4159 = vmatprep.subr.mxu0 0.0
        %4160 = vmatpush1.msra.mxu0 0.0
        %4161 = vmatprep.subr.mxu0 0.0
        %4162 = vmatpush1.msra.mxu0 0.0
        %4163 = vmatprep.subr.mxu0 0.0
        %4164 = vmatpush1.msra.mxu0 0.0
        %4165 = vmatprep.subr.mxu0 0.0
        %4166 = vmatpush1.msra.mxu0 0.0
        %4167 = vmatprep.subr.mxu0 0.0
        %4168 = vmatpush1.msra.mxu0 0.0
        %4169 = vmatprep.subr.mxu0 0.0
        %4170 = vmatpush1.msra.mxu0 0.0
        %4171 = vmatprep.subr.mxu0 0.0
        %4172 = vmatpush1.msra.mxu0 0.0
        %4173 = vmatprep.subr.mxu0 0.0
        %4174 = vmatpush1.msra.mxu0 0.0
        %4175 = vmatprep.subr.mxu0 0.0
        %4176 = vmatpush1.msra.mxu0 0.0
        %4177 = vmatprep.subr.mxu0 0.0
        %4178 = vmatpush1.msra.mxu0 0.0
        %4179 = vmatprep.subr.mxu0 0.0
        %4180 = vmatpush1.msra.mxu0 0.0
        %4181 = vmatprep.subr.mxu0 0.0
        %4182 = vmatpush1.msra.mxu0 0.0
        %4183 = vmatprep.subr.mxu0 0.0
        %4184 = vmatpush1.msra.mxu0 0.0
        %4185 = vmatprep.subr.mxu0 0.0
        %4186 = vmatpush1.msra.mxu0 0.0
        %4187 = vmatprep.subr.mxu0 0.0
        %4188 = vmatpush1.msra.mxu0 0.0
        %4189 = vmatprep.subr.mxu0 0.0
        %4190 = vmatpush1.msra.mxu0 0.0
        %4191 = vmatprep.subr.mxu0 0.0
        %4192 = vmatpush1.msra.mxu0 0.0
        %4193 = vmatprep.subr.mxu0 0.0
        %4194 = vmatpush1.msra.mxu0 0.0
        %4195 = vmatprep.subr.mxu0 0.0
        %4196 = vmatpush1.msra.mxu0 0.0
        %4197 = vmatprep.subr.mxu0 0.0
        %4198 = vmatpush1.msra.mxu0 0.0
        %4199 = vmatprep.subr.mxu0 0.0
        %4200 = vmatpush1.msra.mxu0 0.0
        %4201 = vmatprep.subr.mxu0 0.0
        %4202 = vmatpush1.msra.mxu0 0.0
        %4203 = vmatprep.subr.mxu0 0.0
        %4204 = vmatpush1.msra.mxu0 0.0
        %4205 = vmatprep.subr.mxu0 0.0
        %4206 = vmatpush1.msra.mxu0 0.0
        %4207 = vmatprep.subr.mxu0 0.0
        %4208 = vmatpush1.msra.mxu0 0.0
        %4209 = vmatprep.mubr.f32.mxu0 0.0
        %v4210 = vand.u32 %v4031, 4294901760
        %4211 = vmatmul.mubr.f32.gmra.mrb[0].mxu0 %v4210
        %v4212 = vpop.f32.mrb[0].mxu0
        %v4213 = vadd.f32 %v4112, %v4212
        %v4214 = vpop.f32.mrb[0].mxu0
        %4215 = vmatprep.mubr.f32.mxu0 0.0
        %v4216 = vand.u32 %v4034, 4294901760
        %4217 = vmatmul.mubr.f32.gmra.mrb[0].mxu0 %v4216
        %v4218 = vpop.f32.mrb[0].mxu0
        %v4219 = vadd.f32 %v4122, %v4218
        %v4220 = vpop.f32.mrb[0].mxu0
        %4221 = vdwg.mxu0
        %4222 = vmatprep.subr.mxu0 0.0
        %v4223 = vand.u32 %v3484, 4294901760
        %v4224 = vsub.f32 %v3484, %v4223
        %4225 = vmatpush1.msra.mxu0 %v4224
        %4226 = vmatprep.subr.mxu0 0.0
        %v4227 = vand.u32 %v3485, 4294901760
        %v4228 = vsub.f32 %v3485, %v4227
        %4229 = vmatpush1.msra.mxu0 %v4228
        %4230 = vmatprep.subr.mxu0 0.0
        %v4231 = vand.u32 %v3486, 4294901760
        %v4232 = vsub.f32 %v3486, %v4231
        %4233 = vmatpush1.msra.mxu0 %v4232
        %4234 = vmatprep.subr.mxu0 0.0
        %v4235 = vand.u32 %v3487, 4294901760
        %v4236 = vsub.f32 %v3487, %v4235
        %4237 = vmatpush1.msra.mxu0 %v4236
        %4238 = vmatprep.subr.mxu0 0.0
        %4239 = vmatpush1.msra.mxu0 0.0
        %4240 = vmatprep.subr.mxu0 0.0
        %4241 = vmatpush1.msra.mxu0 0.0
        %4242 = vmatprep.subr.mxu0 0.0
        %4243 = vmatpush1.msra.mxu0 0.0
        %4244 = vmatprep.subr.mxu0 0.0
        %4245 = vmatpush1.msra.mxu0 0.0
        %4246 = vmatprep.subr.mxu0 0.0
        %4247 = vmatpush1.msra.mxu0 0.0
        %4248 = vmatprep.subr.mxu0 0.0
        %4249 = vmatpush1.msra.mxu0 0.0
        %4250 = vmatprep.subr.mxu0 0.0
        %4251 = vmatpush1.msra.mxu0 0.0
        %4252 = vmatprep.subr.mxu0 0.0
        %4253 = vmatpush1.msra.mxu0 0.0
        %4254 = vmatprep.subr.mxu0 0.0
        %4255 = vmatpush1.msra.mxu0 0.0
        %4256 = vmatprep.subr.mxu0 0.0
        %4257 = vmatpush1.msra.mxu0 0.0
        %4258 = vmatprep.subr.mxu0 0.0
        %4259 = vmatpush1.msra.mxu0 0.0
        %4260 = vmatprep.subr.mxu0 0.0
        %4261 = vmatpush1.msra.mxu0 0.0
        %4262 = vmatprep.subr.mxu0 0.0
        %4263 = vmatpush1.msra.mxu0 0.0
        %4264 = vmatprep.subr.mxu0 0.0
        %4265 = vmatpush1.msra.mxu0 0.0
        %4266 = vmatprep.subr.mxu0 0.0
        %4267 = vmatpush1.msra.mxu0 0.0
        %4268 = vmatprep.subr.mxu0 0.0
        %4269 = vmatpush1.msra.mxu0 0.0
        %4270 = vmatprep.subr.mxu0 0.0
        %4271 = vmatpush1.msra.mxu0 0.0
        %4272 = vmatprep.subr.mxu0 0.0
        %4273 = vmatpush1.msra.mxu0 0.0
        %4274 = vmatprep.subr.mxu0 0.0
        %4275 = vmatpush1.msra.mxu0 0.0
        %4276 = vmatprep.subr.mxu0 0.0
        %4277 = vmatpush1.msra.mxu0 0.0
        %4278 = vmatprep.subr.mxu0 0.0
        %4279 = vmatpush1.msra.mxu0 0.0
        %4280 = vmatprep.subr.mxu0 0.0
        %4281 = vmatpush1.msra.mxu0 0.0
        %4282 = vmatprep.subr.mxu0 0.0
        %4283 = vmatpush1.msra.mxu0 0.0
        %4284 = vmatprep.subr.mxu0 0.0
        %4285 = vmatpush1.msra.mxu0 0.0
        %4286 = vmatprep.subr.mxu0 0.0
        %4287 = vmatpush1.msra.mxu0 0.0
        %4288 = vmatprep.subr.mxu0 0.0
        %4289 = vmatpush1.msra.mxu0 0.0
        %4290 = vmatprep.subr.mxu0 0.0
        %4291 = vmatpush1.msra.mxu0 0.0
        %4292 = vmatprep.subr.mxu0 0.0
        %4293 = vmatpush1.msra.mxu0 0.0
        %4294 = vmatprep.mubr.f32.mxu0 0.0
        %v4295 = vand.u32 %v4031, 4294901760
        %v4296 = vsub.f32 %v4031, %v4295
        %4297 = vmatmul.mubr.f32.gmra.mrb[0].mxu0 %v4296
        %v4298 = vpop.f32.mrb[0].mxu0
        %v4299 = vadd.f32 %v4213, %v4298
        %v4300 = vpop.f32.mrb[0].mxu0
        %4301 = vmatprep.mubr.f32.mxu0 0.0
        %v4302 = vand.u32 %v4034, 4294901760
        %v4303 = vsub.f32 %v4034, %v4302
        %4304 = vmatmul.mubr.f32.gmra.mrb[0].mxu0 %v4303
        %v4305 = vpop.f32.mrb[0].mxu0
        %v4306 = vadd.f32 %v4219, %v4305
        %v4307 = vpop.f32.mrb[0].mxu0
        %4308 = vdwg.mxu0
        %4309 = vmatprep.subr.mxu0 0.0
        %v4310 = vand.u32 %v3484, 4294901760
        %4311 = vmatpush1.msra.mxu0 %v4310
        %4312 = vmatprep.subr.mxu0 0.0
        %v4313 = vand.u32 %v3485, 4294901760
        %4314 = vmatpush1.msra.mxu0 %v4313
        %4315 = vmatprep.subr.mxu0 0.0
        %v4316 = vand.u32 %v3486, 4294901760
        %4317 = vmatpush1.msra.mxu0 %v4316
        %4318 = vmatprep.subr.mxu0 0.0
        %v4319 = vand.u32 %v3487, 4294901760
        %4320 = vmatpush1.msra.mxu0 %v4319
        %4321 = vmatprep.subr.mxu0 0.0
        %4322 = vmatpush1.msra.mxu0 0.0
        %4323 = vmatprep.subr.mxu0 0.0
        %4324 = vmatpush1.msra.mxu0 0.0
        %4325 = vmatprep.subr.mxu0 0.0
        %4326 = vmatpush1.msra.mxu0 0.0
        %4327 = vmatprep.subr.mxu0 0.0
        %4328 = vmatpush1.msra.mxu0 0.0
        %4329 = vmatprep.subr.mxu0 0.0
        %4330 = vmatpush1.msra.mxu0 0.0
        %4331 = vmatprep.subr.mxu0 0.0
        %4332 = vmatpush1.msra.mxu0 0.0
        %4333 = vmatprep.subr.mxu0 0.0
        %4334 = vmatpush1.msra.mxu0 0.0
        %4335 = vmatprep.subr.mxu0 0.0
        %4336 = vmatpush1.msra.mxu0 0.0
        %4337 = vmatprep.subr.mxu0 0.0
        %4338 = vmatpush1.msra.mxu0 0.0
        %4339 = vmatprep.subr.mxu0 0.0
        %4340 = vmatpush1.msra.mxu0 0.0
        %4341 = vmatprep.subr.mxu0 0.0
        %4342 = vmatpush1.msra.mxu0 0.0
        %4343 = vmatprep.subr.mxu0 0.0
        %4344 = vmatpush1.msra.mxu0 0.0
        %4345 = vmatprep.subr.mxu0 0.0
        %4346 = vmatpush1.msra.mxu0 0.0
        %4347 = vmatprep.subr.mxu0 0.0
        %4348 = vmatpush1.msra.mxu0 0.0
        %4349 = vmatprep.subr.mxu0 0.0
        %4350 = vmatpush1.msra.mxu0 0.0
        %4351 = vmatprep.subr.mxu0 0.0
        %4352 = vmatpush1.msra.mxu0 0.0
        %4353 = vmatprep.subr.mxu0 0.0
        %4354 = vmatpush1.msra.mxu0 0.0
        %4355 = vmatprep.subr.mxu0 0.0
        %4356 = vmatpush1.msra.mxu0 0.0
        %4357 = vmatprep.subr.mxu0 0.0
        %4358 = vmatpush1.msra.mxu0 0.0
        %4359 = vmatprep.subr.mxu0 0.0
        %4360 = vmatpush1.msra.mxu0 0.0
        %4361 = vmatprep.subr.mxu0 0.0
        %4362 = vmatpush1.msra.mxu0 0.0
        %4363 = vmatprep.subr.mxu0 0.0
        %4364 = vmatpush1.msra.mxu0 0.0
        %4365 = vmatprep.subr.mxu0 0.0
        %4366 = vmatpush1.msra.mxu0 0.0
        %4367 = vmatprep.subr.mxu0 0.0
        %4368 = vmatpush1.msra.mxu0 0.0
        %4369 = vmatprep.subr.mxu0 0.0
        %4370 = vmatpush1.msra.mxu0 0.0
        %4371 = vmatprep.subr.mxu0 0.0
        %4372 = vmatpush1.msra.mxu0 0.0
        %4373 = vmatprep.subr.mxu0 0.0
        %4374 = vmatpush1.msra.mxu0 0.0
        %4375 = vmatprep.subr.mxu0 0.0
        %4376 = vmatpush1.msra.mxu0 0.0
        %4377 = vmatprep.mubr.f32.mxu0 0.0
        %v4378 = vand.u32 %v4031, 4294901760
        %v4379 = vsub.f32 %v4031, %v4378
        %v4380 = vand.u32 %v4379, 4294901760
        %4381 = vmatmul.mubr.f32.gmra.mrb[0].mxu0 %v4380
        %v4382 = vpop.f32.mrb[0].mxu0
        %v4383 = vadd.f32 %v4299, %v4382
        %v4384 = vpop.f32.mrb[0].mxu0
        %4385 = vmatprep.mubr.f32.mxu0 0.0
        %v4386 = vand.u32 %v4034, 4294901760
        %v4387 = vsub.f32 %v4034, %v4386
        %v4388 = vand.u32 %v4387, 4294901760
        %4389 = vmatmul.mubr.f32.gmra.mrb[0].mxu0 %v4388
        %v4390 = vpop.f32.mrb[0].mxu0
        %v4391 = vadd.f32 %v4306, %v4390
        %v4392 = vpop.f32.mrb[0].mxu0
        %4393 = vdwg.mxu0
        %4394 = vmatprep.subr.mxu0 0.0
        %v4395 = vand.u32 %v3484, 4294901760
        %v4396 = vsub.f32 %v3484, %v4395
        %v4397 = vand.u32 %v4396, 4294901760
        %4398 = vmatpush1.msra.mxu0 %v4397
        %4399 = vmatprep.subr.mxu0 0.0
        %v4400 = vand.u32 %v3485, 4294901760
        %v4401 = vsub.f32 %v3485, %v4400
        %v4402 = vand.u32 %v4401, 4294901760
        %4403 = vmatpush1.msra.mxu0 %v4402
        %4404 = vmatprep.subr.mxu0 0.0
        %v4405 = vand.u32 %v3486, 4294901760
        %v4406 = vsub.f32 %v3486, %v4405
        %v4407 = vand.u32 %v4406, 4294901760
        %4408 = vmatpush1.msra.mxu0 %v4407
        %4409 = vmatprep.subr.mxu0 0.0
        %v4410 = vand.u32 %v3487, 4294901760
        %v4411 = vsub.f32 %v3487, %v4410
        %v4412 = vand.u32 %v4411, 4294901760
        %4413 = vmatpush1.msra.mxu0 %v4412
        %4414 = vmatprep.subr.mxu0 0.0
        %4415 = vmatpush1.msra.mxu0 0.0
        %4416 = vmatprep.subr.mxu0 0.0
        %4417 = vmatpush1.msra.mxu0 0.0
        %4418 = vmatprep.subr.mxu0 0.0
        %4419 = vmatpush1.msra.mxu0 0.0
        %4420 = vmatprep.subr.mxu0 0.0
        %4421 = vmatpush1.msra.mxu0 0.0
        %4422 = vmatprep.subr.mxu0 0.0
        %4423 = vmatpush1.msra.mxu0 0.0
        %4424 = vmatprep.subr.mxu0 0.0
        %4425 = vmatpush1.msra.mxu0 0.0
        %4426 = vmatprep.subr.mxu0 0.0
        %4427 = vmatpush1.msra.mxu0 0.0
        %4428 = vmatprep.subr.mxu0 0.0
        %4429 = vmatpush1.msra.mxu0 0.0
        %4430 = vmatprep.subr.mxu0 0.0
        %4431 = vmatpush1.msra.mxu0 0.0
        %4432 = vmatprep.subr.mxu0 0.0
        %4433 = vmatpush1.msra.mxu0 0.0
        %4434 = vmatprep.subr.mxu0 0.0
        %4435 = vmatpush1.msra.mxu0 0.0
        %4436 = vmatprep.subr.mxu0 0.0
        %4437 = vmatpush1.msra.mxu0 0.0
        %4438 = vmatprep.subr.mxu0 0.0
        %4439 = vmatpush1.msra.mxu0 0.0
        %4440 = vmatprep.subr.mxu0 0.0
        %4441 = vmatpush1.msra.mxu0 0.0
        %4442 = vmatprep.subr.mxu0 0.0
        %4443 = vmatpush1.msra.mxu0 0.0
        %4444 = vmatprep.subr.mxu0 0.0
        %4445 = vmatpush1.msra.mxu0 0.0
        %4446 = vmatprep.subr.mxu0 0.0
        %4447 = vmatpush1.msra.mxu0 0.0
        %4448 = vmatprep.subr.mxu0 0.0
        %4449 = vmatpush1.msra.mxu0 0.0
        %4450 = vmatprep.subr.mxu0 0.0
        %4451 = vmatpush1.msra.mxu0 0.0
        %4452 = vmatprep.subr.mxu0 0.0
        %4453 = vmatpush1.msra.mxu0 0.0
        %4454 = vmatprep.subr.mxu0 0.0
        %4455 = vmatpush1.msra.mxu0 0.0
        %4456 = vmatprep.subr.mxu0 0.0
        %4457 = vmatpush1.msra.mxu0 0.0
        %4458 = vmatprep.subr.mxu0 0.0
        %4459 = vmatpush1.msra.mxu0 0.0
        %4460 = vmatprep.subr.mxu0 0.0
        %4461 = vmatpush1.msra.mxu0 0.0
        %4462 = vmatprep.subr.mxu0 0.0
        %4463 = vmatpush1.msra.mxu0 0.0
        %4464 = vmatprep.subr.mxu0 0.0
        %4465 = vmatpush1.msra.mxu0 0.0
        %4466 = vmatprep.subr.mxu0 0.0
        %4467 = vmatpush1.msra.mxu0 0.0
        %4468 = vmatprep.subr.mxu0 0.0
        %4469 = vmatpush1.msra.mxu0 0.0
        %4470 = vmatprep.mubr.f32.mxu0 0.0
        %v4471 = vand.u32 %v4031, 4294901760
        %4472 = vmatmul.mubr.f32.gmra.mrb[0].mxu0 %v4471
        %v4473 = vpop.f32.mrb[0].mxu0
        %v4474 = vadd.f32 %v4383, %v4473
        %v4475 = vpop.f32.mrb[0].mxu0
        %4476 = vmatprep.mubr.f32.mxu0 0.0
        %v4477 = vand.u32 %v4034, 4294901760
        %4478 = vmatmul.mubr.f32.gmra.mrb[0].mxu0 %v4477
        %v4479 = vpop.f32.mrb[0].mxu0
        %v4480 = vadd.f32 %v4391, %v4479
        %v4481 = vpop.f32.mrb[0].mxu0
        %4482 = vdwg.mxu0
        %4483 = vmatprep.subr.mxu0 0.0
        %v4484 = vand.u32 %v3484, 4294901760
        %4485 = vmatpush1.msra.mxu0 %v4484
        %4486 = vmatprep.subr.mxu0 0.0
        %v4487 = vand.u32 %v3485, 4294901760
        %4488 = vmatpush1.msra.mxu0 %v4487
        %4489 = vmatprep.subr.mxu0 0.0
        %v4490 = vand.u32 %v3486, 4294901760
        %4491 = vmatpush1.msra.mxu0 %v4490
        %4492 = vmatprep.subr.mxu0 0.0
        %v4493 = vand.u32 %v3487, 4294901760
        %4494 = vmatpush1.msra.mxu0 %v4493
        %4495 = vmatprep.subr.mxu0 0.0
        %4496 = vmatpush1.msra.mxu0 0.0
        %4497 = vmatprep.subr.mxu0 0.0
        %4498 = vmatpush1.msra.mxu0 0.0
        %4499 = vmatprep.subr.mxu0 0.0
        %4500 = vmatpush1.msra.mxu0 0.0
        %4501 = vmatprep.subr.mxu0 0.0
        %4502 = vmatpush1.msra.mxu0 0.0
        %4503 = vmatprep.subr.mxu0 0.0
        %4504 = vmatpush1.msra.mxu0 0.0
        %4505 = vmatprep.subr.mxu0 0.0
        %4506 = vmatpush1.msra.mxu0 0.0
        %4507 = vmatprep.subr.mxu0 0.0
        %4508 = vmatpush1.msra.mxu0 0.0
        %4509 = vmatprep.subr.mxu0 0.0
        %4510 = vmatpush1.msra.mxu0 0.0
        %4511 = vmatprep.subr.mxu0 0.0
        %4512 = vmatpush1.msra.mxu0 0.0
        %4513 = vmatprep.subr.mxu0 0.0
        %4514 = vmatpush1.msra.mxu0 0.0
        %4515 = vmatprep.subr.mxu0 0.0
        %4516 = vmatpush1.msra.mxu0 0.0
        %4517 = vmatprep.subr.mxu0 0.0
        %4518 = vmatpush1.msra.mxu0 0.0
        %4519 = vmatprep.subr.mxu0 0.0
        %4520 = vmatpush1.msra.mxu0 0.0
        %4521 = vmatprep.subr.mxu0 0.0
        %4522 = vmatpush1.msra.mxu0 0.0
        %4523 = vmatprep.subr.mxu0 0.0
        %4524 = vmatpush1.msra.mxu0 0.0
        %4525 = vmatprep.subr.mxu0 0.0
        %4526 = vmatpush1.msra.mxu0 0.0
        %4527 = vmatprep.subr.mxu0 0.0
        %4528 = vmatpush1.msra.mxu0 0.0
        %4529 = vmatprep.subr.mxu0 0.0
        %4530 = vmatpush1.msra.mxu0 0.0
        %4531 = vmatprep.subr.mxu0 0.0
        %4532 = vmatpush1.msra.mxu0 0.0
        %4533 = vmatprep.subr.mxu0 0.0
        %4534 = vmatpush1.msra.mxu0 0.0
        %4535 = vmatprep.subr.mxu0 0.0
        %4536 = vmatpush1.msra.mxu0 0.0
        %4537 = vmatprep.subr.mxu0 0.0
        %4538 = vmatpush1.msra.mxu0 0.0
        %4539 = vmatprep.subr.mxu0 0.0
        %4540 = vmatpush1.msra.mxu0 0.0
        %4541 = vmatprep.subr.mxu0 0.0
        %4542 = vmatpush1.msra.mxu0 0.0
        %4543 = vmatprep.subr.mxu0 0.0
        %4544 = vmatpush1.msra.mxu0 0.0
        %4545 = vmatprep.subr.mxu0 0.0
        %4546 = vmatpush1.msra.mxu0 0.0
        %4547 = vmatprep.subr.mxu0 0.0
        %4548 = vmatpush1.msra.mxu0 0.0
        %4549 = vmatprep.subr.mxu0 0.0
        %4550 = vmatpush1.msra.mxu0 0.0
        %4551 = vmatprep.mubr.f32.mxu0 0.0
        %v4552 = vand.u32 %v4031, 4294901760
        %4553 = vmatmul.mubr.f32.gmra.mrb[0].mxu0 %v4552
        %v4554 = vpop.f32.mrb[0].mxu0
        %v4555 = vadd.f32 %v4474, %v4554
        %v4556 = vpop.f32.mrb[0].mxu0
        %4557 = vmatprep.mubr.f32.mxu0 0.0
        %v4558 = vand.u32 %v4034, 4294901760
        %4559 = vmatmul.mubr.f32.gmra.mrb[0].mxu0 %v4558
        %v4560 = vpop.f32.mrb[0].mxu0
        %v4561 = vadd.f32 %v4480, %v4560
        %v4562 = vpop.f32.mrb[0].mxu0
        %4563 = vdwg.mxu0
        %v4564 = vld [vmem:[#allocation3 + $0x2] sm:$0xff]
        %v4565 = vld [vmem:[#allocation3 + $0xa] sm:$0xff]
        %s4566 = scalar_lea.vmem [#allocation17], 64
        %v4567 = vld [vmem:[%s4566] sm:$0xff]
        %v4568 = vld [vmem:[%s4566 + $0x8] sm:$0xff]
        %v4569 = vld [vmem:[%s4566 + $0x10] sm:$0xff]
        %v4570 = vld [vmem:[%s4566 + $0x18] sm:$0xff]
        %v4572 = vsel %vm3495, %v4564, 0
        %v4575 = vsel %vm3495, %v4565, 0
        %4577 = vmatprep.subr.mxu0 0.0
        %v4578 = vand.u32 %v4567, 4294901760
        %4579 = vmatpush1.msra.mxu0 %v4578
        %4580 = vmatprep.subr.mxu0 0.0
        %v4581 = vand.u32 %v4568, 4294901760
        %4582 = vmatpush1.msra.mxu0 %v4581
        %4583 = vmatprep.subr.mxu0 0.0
        %v4584 = vand.u32 %v4569, 4294901760
        %4585 = vmatpush1.msra.mxu0 %v4584
        %4586 = vmatprep.subr.mxu0 0.0
        %v4587 = vand.u32 %v4570, 4294901760
        %4588 = vmatpush1.msra.mxu0 %v4587
        %4589 = vmatprep.subr.mxu0 0.0
        %4590 = vmatpush1.msra.mxu0 0.0
        %4591 = vmatprep.subr.mxu0 0.0
        %4592 = vmatpush1.msra.mxu0 0.0
        %4593 = vmatprep.subr.mxu0 0.0
        %4594 = vmatpush1.msra.mxu0 0.0
        %4595 = vmatprep.subr.mxu0 0.0
        %4596 = vmatpush1.msra.mxu0 0.0
        %4597 = vmatprep.subr.mxu0 0.0
        %4598 = vmatpush1.msra.mxu0 0.0
        %4599 = vmatprep.subr.mxu0 0.0
        %4600 = vmatpush1.msra.mxu0 0.0
        %4601 = vmatprep.subr.mxu0 0.0
        %4602 = vmatpush1.msra.mxu0 0.0
        %4603 = vmatprep.subr.mxu0 0.0
        %4604 = vmatpush1.msra.mxu0 0.0
        %4605 = vmatprep.subr.mxu0 0.0
        %4606 = vmatpush1.msra.mxu0 0.0
        %4607 = vmatprep.subr.mxu0 0.0
        %4608 = vmatpush1.msra.mxu0 0.0
        %4609 = vmatprep.subr.mxu0 0.0
        %4610 = vmatpush1.msra.mxu0 0.0
        %4611 = vmatprep.subr.mxu0 0.0
        %4612 = vmatpush1.msra.mxu0 0.0
        %4613 = vmatprep.subr.mxu0 0.0
        %4614 = vmatpush1.msra.mxu0 0.0
        %4615 = vmatprep.subr.mxu0 0.0
        %4616 = vmatpush1.msra.mxu0 0.0
        %4617 = vmatprep.subr.mxu0 0.0
        %4618 = vmatpush1.msra.mxu0 0.0
        %4619 = vmatprep.subr.mxu0 0.0
        %4620 = vmatpush1.msra.mxu0 0.0
        %4621 = vmatprep.subr.mxu0 0.0
        %4622 = vmatpush1.msra.mxu0 0.0
        %4623 = vmatprep.subr.mxu0 0.0
        %4624 = vmatpush1.msra.mxu0 0.0
        %4625 = vmatprep.subr.mxu0 0.0
        %4626 = vmatpush1.msra.mxu0 0.0
        %4627 = vmatprep.subr.mxu0 0.0
        %4628 = vmatpush1.msra.mxu0 0.0
        %4629 = vmatprep.subr.mxu0 0.0
        %4630 = vmatpush1.msra.mxu0 0.0
        %4631 = vmatprep.subr.mxu0 0.0
        %4632 = vmatpush1.msra.mxu0 0.0
        %4633 = vmatprep.subr.mxu0 0.0
        %4634 = vmatpush1.msra.mxu0 0.0
        %4635 = vmatprep.subr.mxu0 0.0
        %4636 = vmatpush1.msra.mxu0 0.0
        %4637 = vmatprep.subr.mxu0 0.0
        %4638 = vmatpush1.msra.mxu0 0.0
        %4639 = vmatprep.subr.mxu0 0.0
        %4640 = vmatpush1.msra.mxu0 0.0
        %4641 = vmatprep.subr.mxu0 0.0
        %4642 = vmatpush1.msra.mxu0 0.0
        %4643 = vmatprep.subr.mxu0 0.0
        %4644 = vmatpush1.msra.mxu0 0.0
        %4645 = vmatprep.mubr.f32.mxu0 0.0
        %v4646 = vand.u32 %v4572, 4294901760
        %v4647 = vsub.f32 %v4572, %v4646
        %v4648 = vand.u32 %v4647, 4294901760
        %v4649 = vsub.f32 %v4647, %v4648
        %v4650 = vand.u32 %v4649, 4294901760
        %4651 = vmatmul.mubr.f32.gmra.mrb[0].mxu0 %v4650
        %v4652 = vpop.f32.mrb[0].mxu0
        %v4653 = vadd.f32 0.0, %v4652
        %v4654 = vpop.f32.mrb[0].mxu0
        %4655 = vmatprep.mubr.f32.mxu0 0.0
        %v4656 = vand.u32 %v4575, 4294901760
        %v4657 = vsub.f32 %v4575, %v4656
        %v4658 = vand.u32 %v4657, 4294901760
        %v4659 = vsub.f32 %v4657, %v4658
        %v4660 = vand.u32 %v4659, 4294901760
        %4661 = vmatmul.mubr.f32.gmra.mrb[0].mxu0 %v4660
        %v4662 = vpop.f32.mrb[0].mxu0
        %v4663 = vadd.f32 0.0, %v4662
        %v4664 = vpop.f32.mrb[0].mxu0
        %4665 = vdwg.mxu0
        %4666 = vmatprep.subr.mxu0 0.0
        %v4667 = vand.u32 %v4567, 4294901760
        %v4668 = vsub.f32 %v4567, %v4667
        %v4669 = vand.u32 %v4668, 4294901760
        %v4670 = vsub.f32 %v4668, %v4669
        %v4671 = vand.u32 %v4670, 4294901760
        %4672 = vmatpush1.msra.mxu0 %v4671
        %4673 = vmatprep.subr.mxu0 0.0
        %v4674 = vand.u32 %v4568, 4294901760
        %v4675 = vsub.f32 %v4568, %v4674
        %v4676 = vand.u32 %v4675, 4294901760
        %v4677 = vsub.f32 %v4675, %v4676
        %v4678 = vand.u32 %v4677, 4294901760
        %4679 = vmatpush1.msra.mxu0 %v4678
        %4680 = vmatprep.subr.mxu0 0.0
        %v4681 = vand.u32 %v4569, 4294901760
        %v4682 = vsub.f32 %v4569, %v4681
        %v4683 = vand.u32 %v4682, 4294901760
        %v4684 = vsub.f32 %v4682, %v4683
        %v4685 = vand.u32 %v4684, 4294901760
        %4686 = vmatpush1.msra.mxu0 %v4685
        %4687 = vmatprep.subr.mxu0 0.0
        %v4688 = vand.u32 %v4570, 4294901760
        %v4689 = vsub.f32 %v4570, %v4688
        %v4690 = vand.u32 %v4689, 4294901760
        %v4691 = vsub.f32 %v4689, %v4690
        %v4692 = vand.u32 %v4691, 4294901760
        %4693 = vmatpush1.msra.mxu0 %v4692
        %4694 = vmatprep.subr.mxu0 0.0
        %4695 = vmatpush1.msra.mxu0 0.0
        %4696 = vmatprep.subr.mxu0 0.0
        %4697 = vmatpush1.msra.mxu0 0.0
        %4698 = vmatprep.subr.mxu0 0.0
        %4699 = vmatpush1.msra.mxu0 0.0
        %4700 = vmatprep.subr.mxu0 0.0
        %4701 = vmatpush1.msra.mxu0 0.0
        %4702 = vmatprep.subr.mxu0 0.0
        %4703 = vmatpush1.msra.mxu0 0.0
        %4704 = vmatprep.subr.mxu0 0.0
        %4705 = vmatpush1.msra.mxu0 0.0
        %4706 = vmatprep.subr.mxu0 0.0
        %4707 = vmatpush1.msra.mxu0 0.0
        %4708 = vmatprep.subr.mxu0 0.0
        %4709 = vmatpush1.msra.mxu0 0.0
        %4710 = vmatprep.subr.mxu0 0.0
        %4711 = vmatpush1.msra.mxu0 0.0
        %4712 = vmatprep.subr.mxu0 0.0
        %4713 = vmatpush1.msra.mxu0 0.0
        %4714 = vmatprep.subr.mxu0 0.0
        %4715 = vmatpush1.msra.mxu0 0.0
        %4716 = vmatprep.subr.mxu0 0.0
        %4717 = vmatpush1.msra.mxu0 0.0
        %4718 = vmatprep.subr.mxu0 0.0
        %4719 = vmatpush1.msra.mxu0 0.0
        %4720 = vmatprep.subr.mxu0 0.0
        %4721 = vmatpush1.msra.mxu0 0.0
        %4722 = vmatprep.subr.mxu0 0.0
        %4723 = vmatpush1.msra.mxu0 0.0
        %4724 = vmatprep.subr.mxu0 0.0
        %4725 = vmatpush1.msra.mxu0 0.0
        %4726 = vmatprep.subr.mxu0 0.0
        %4727 = vmatpush1.msra.mxu0 0.0
        %4728 = vmatprep.subr.mxu0 0.0
        %4729 = vmatpush1.msra.mxu0 0.0
        %4730 = vmatprep.subr.mxu0 0.0
        %4731 = vmatpush1.msra.mxu0 0.0
        %4732 = vmatprep.subr.mxu0 0.0
        %4733 = vmatpush1.msra.mxu0 0.0
        %4734 = vmatprep.subr.mxu0 0.0
        %4735 = vmatpush1.msra.mxu0 0.0
        %4736 = vmatprep.subr.mxu0 0.0
        %4737 = vmatpush1.msra.mxu0 0.0
        %4738 = vmatprep.subr.mxu0 0.0
        %4739 = vmatpush1.msra.mxu0 0.0
        %4740 = vmatprep.subr.mxu0 0.0
        %4741 = vmatpush1.msra.mxu0 0.0
        %4742 = vmatprep.subr.mxu0 0.0
        %4743 = vmatpush1.msra.mxu0 0.0
        %4744 = vmatprep.subr.mxu0 0.0
        %4745 = vmatpush1.msra.mxu0 0.0
        %4746 = vmatprep.subr.mxu0 0.0
        %4747 = vmatpush1.msra.mxu0 0.0
        %4748 = vmatprep.subr.mxu0 0.0
        %4749 = vmatpush1.msra.mxu0 0.0
        %4750 = vmatprep.mubr.f32.mxu0 0.0
        %v4751 = vand.u32 %v4572, 4294901760
        %4752 = vmatmul.mubr.f32.gmra.mrb[0].mxu0 %v4751
        %v4753 = vpop.f32.mrb[0].mxu0
        %v4754 = vadd.f32 %v4653, %v4753
        %v4755 = vpop.f32.mrb[0].mxu0
        %4756 = vmatprep.mubr.f32.mxu0 0.0
        %v4757 = vand.u32 %v4575, 4294901760
        %4758 = vmatmul.mubr.f32.gmra.mrb[0].mxu0 %v4757
        %v4759 = vpop.f32.mrb[0].mxu0
        %v4760 = vadd.f32 %v4663, %v4759
        %v4761 = vpop.f32.mrb[0].mxu0
        %4762 = vdwg.mxu0
        %4763 = vmatprep.subr.mxu0 0.0
        %v4764 = vand.u32 %v4567, 4294901760
        %v4765 = vsub.f32 %v4567, %v4764
        %4766 = vmatpush1.msra.mxu0 %v4765
        %4767 = vmatprep.subr.mxu0 0.0
        %v4768 = vand.u32 %v4568, 4294901760
        %v4769 = vsub.f32 %v4568, %v4768
        %4770 = vmatpush1.msra.mxu0 %v4769
        %4771 = vmatprep.subr.mxu0 0.0
        %v4772 = vand.u32 %v4569, 4294901760
        %v4773 = vsub.f32 %v4569, %v4772
        %4774 = vmatpush1.msra.mxu0 %v4773
        %4775 = vmatprep.subr.mxu0 0.0
        %v4776 = vand.u32 %v4570, 4294901760
        %v4777 = vsub.f32 %v4570, %v4776
        %4778 = vmatpush1.msra.mxu0 %v4777
        %4779 = vmatprep.subr.mxu0 0.0
        %4780 = vmatpush1.msra.mxu0 0.0
        %4781 = vmatprep.subr.mxu0 0.0
        %4782 = vmatpush1.msra.mxu0 0.0
        %4783 = vmatprep.subr.mxu0 0.0
        %4784 = vmatpush1.msra.mxu0 0.0
        %4785 = vmatprep.subr.mxu0 0.0
        %4786 = vmatpush1.msra.mxu0 0.0
        %4787 = vmatprep.subr.mxu0 0.0
        %4788 = vmatpush1.msra.mxu0 0.0
        %4789 = vmatprep.subr.mxu0 0.0
        %4790 = vmatpush1.msra.mxu0 0.0
        %4791 = vmatprep.subr.mxu0 0.0
        %4792 = vmatpush1.msra.mxu0 0.0
        %4793 = vmatprep.subr.mxu0 0.0
        %4794 = vmatpush1.msra.mxu0 0.0
        %4795 = vmatprep.subr.mxu0 0.0
        %4796 = vmatpush1.msra.mxu0 0.0
        %4797 = vmatprep.subr.mxu0 0.0
        %4798 = vmatpush1.msra.mxu0 0.0
        %4799 = vmatprep.subr.mxu0 0.0
        %4800 = vmatpush1.msra.mxu0 0.0
        %4801 = vmatprep.subr.mxu0 0.0
        %4802 = vmatpush1.msra.mxu0 0.0
        %4803 = vmatprep.subr.mxu0 0.0
        %4804 = vmatpush1.msra.mxu0 0.0
        %4805 = vmatprep.subr.mxu0 0.0
        %4806 = vmatpush1.msra.mxu0 0.0
        %4807 = vmatprep.subr.mxu0 0.0
        %4808 = vmatpush1.msra.mxu0 0.0
        %4809 = vmatprep.subr.mxu0 0.0
        %4810 = vmatpush1.msra.mxu0 0.0
        %4811 = vmatprep.subr.mxu0 0.0
        %4812 = vmatpush1.msra.mxu0 0.0
        %4813 = vmatprep.subr.mxu0 0.0
        %4814 = vmatpush1.msra.mxu0 0.0
        %4815 = vmatprep.subr.mxu0 0.0
        %4816 = vmatpush1.msra.mxu0 0.0
        %4817 = vmatprep.subr.mxu0 0.0
        %4818 = vmatpush1.msra.mxu0 0.0
        %4819 = vmatprep.subr.mxu0 0.0
        %4820 = vmatpush1.msra.mxu0 0.0
        %4821 = vmatprep.subr.mxu0 0.0
        %4822 = vmatpush1.msra.mxu0 0.0
        %4823 = vmatprep.subr.mxu0 0.0
        %4824 = vmatpush1.msra.mxu0 0.0
        %4825 = vmatprep.subr.mxu0 0.0
        %4826 = vmatpush1.msra.mxu0 0.0
        %4827 = vmatprep.subr.mxu0 0.0
        %4828 = vmatpush1.msra.mxu0 0.0
        %4829 = vmatprep.subr.mxu0 0.0
        %4830 = vmatpush1.msra.mxu0 0.0
        %4831 = vmatprep.subr.mxu0 0.0
        %4832 = vmatpush1.msra.mxu0 0.0
        %4833 = vmatprep.subr.mxu0 0.0
        %4834 = vmatpush1.msra.mxu0 0.0
        %4835 = vmatprep.mubr.f32.mxu0 0.0
        %v4836 = vand.u32 %v4572, 4294901760
        %v4837 = vsub.f32 %v4572, %v4836
        %4838 = vmatmul.mubr.f32.gmra.mrb[0].mxu0 %v4837
        %v4839 = vpop.f32.mrb[0].mxu0
        %v4840 = vadd.f32 %v4754, %v4839
        %v4841 = vpop.f32.mrb[0].mxu0
        %4842 = vmatprep.mubr.f32.mxu0 0.0
        %v4843 = vand.u32 %v4575, 4294901760
        %v4844 = vsub.f32 %v4575, %v4843
        %4845 = vmatmul.mubr.f32.gmra.mrb[0].mxu0 %v4844
        %v4846 = vpop.f32.mrb[0].mxu0
        %v4847 = vadd.f32 %v4760, %v4846
        %v4848 = vpop.f32.mrb[0].mxu0
        %4849 = vdwg.mxu0
        %4850 = vmatprep.subr.mxu0 0.0
        %v4851 = vand.u32 %v4567, 4294901760
        %4852 = vmatpush1.msra.mxu0 %v4851
        %4853 = vmatprep.subr.mxu0 0.0
        %v4854 = vand.u32 %v4568, 4294901760
        %4855 = vmatpush1.msra.mxu0 %v4854
        %4856 = vmatprep.subr.mxu0 0.0
        %v4857 = vand.u32 %v4569, 4294901760
        %4858 = vmatpush1.msra.mxu0 %v4857
        %4859 = vmatprep.subr.mxu0 0.0
        %v4860 = vand.u32 %v4570, 4294901760
        %4861 = vmatpush1.msra.mxu0 %v4860
        %4862 = vmatprep.subr.mxu0 0.0
        %4863 = vmatpush1.msra.mxu0 0.0
        %4864 = vmatprep.subr.mxu0 0.0
        %4865 = vmatpush1.msra.mxu0 0.0
        %4866 = vmatprep.subr.mxu0 0.0
        %4867 = vmatpush1.msra.mxu0 0.0
        %4868 = vmatprep.subr.mxu0 0.0
        %4869 = vmatpush1.msra.mxu0 0.0
        %4870 = vmatprep.subr.mxu0 0.0
        %4871 = vmatpush1.msra.mxu0 0.0
        %4872 = vmatprep.subr.mxu0 0.0
        %4873 = vmatpush1.msra.mxu0 0.0
        %4874 = vmatprep.subr.mxu0 0.0
        %4875 = vmatpush1.msra.mxu0 0.0
        %4876 = vmatprep.subr.mxu0 0.0
        %4877 = vmatpush1.msra.mxu0 0.0
        %4878 = vmatprep.subr.mxu0 0.0
        %4879 = vmatpush1.msra.mxu0 0.0
        %4880 = vmatprep.subr.mxu0 0.0
        %4881 = vmatpush1.msra.mxu0 0.0
        %4882 = vmatprep.subr.mxu0 0.0
        %4883 = vmatpush1.msra.mxu0 0.0
        %4884 = vmatprep.subr.mxu0 0.0
        %4885 = vmatpush1.msra.mxu0 0.0
        %4886 = vmatprep.subr.mxu0 0.0
        %4887 = vmatpush1.msra.mxu0 0.0
        %4888 = vmatprep.subr.mxu0 0.0
        %4889 = vmatpush1.msra.mxu0 0.0
        %4890 = vmatprep.subr.mxu0 0.0
        %4891 = vmatpush1.msra.mxu0 0.0
        %4892 = vmatprep.subr.mxu0 0.0
        %4893 = vmatpush1.msra.mxu0 0.0
        %4894 = vmatprep.subr.mxu0 0.0
        %4895 = vmatpush1.msra.mxu0 0.0
        %4896 = vmatprep.subr.mxu0 0.0
        %4897 = vmatpush1.msra.mxu0 0.0
        %4898 = vmatprep.subr.mxu0 0.0
        %4899 = vmatpush1.msra.mxu0 0.0
        %4900 = vmatprep.subr.mxu0 0.0
        %4901 = vmatpush1.msra.mxu0 0.0
        %4902 = vmatprep.subr.mxu0 0.0
        %4903 = vmatpush1.msra.mxu0 0.0
        %4904 = vmatprep.subr.mxu0 0.0
        %4905 = vmatpush1.msra.mxu0 0.0
        %4906 = vmatprep.subr.mxu0 0.0
        %4907 = vmatpush1.msra.mxu0 0.0
        %4908 = vmatprep.subr.mxu0 0.0
        %4909 = vmatpush1.msra.mxu0 0.0
        %4910 = vmatprep.subr.mxu0 0.0
        %4911 = vmatpush1.msra.mxu0 0.0
        %4912 = vmatprep.subr.mxu0 0.0
        %4913 = vmatpush1.msra.mxu0 0.0
        %4914 = vmatprep.subr.mxu0 0.0
        %4915 = vmatpush1.msra.mxu0 0.0
        %4916 = vmatprep.subr.mxu0 0.0
        %4917 = vmatpush1.msra.mxu0 0.0
        %4918 = vmatprep.mubr.f32.mxu0 0.0
        %v4919 = vand.u32 %v4572, 4294901760
        %v4920 = vsub.f32 %v4572, %v4919
        %v4921 = vand.u32 %v4920, 4294901760
        %4922 = vmatmul.mubr.f32.gmra.mrb[0].mxu0 %v4921
        %v4923 = vpop.f32.mrb[0].mxu0
        %v4924 = vadd.f32 %v4840, %v4923
        %v4925 = vpop.f32.mrb[0].mxu0
        %4926 = vmatprep.mubr.f32.mxu0 0.0
        %v4927 = vand.u32 %v4575, 4294901760
        %v4928 = vsub.f32 %v4575, %v4927
        %v4929 = vand.u32 %v4928, 4294901760
        %4930 = vmatmul.mubr.f32.gmra.mrb[0].mxu0 %v4929
        %v4931 = vpop.f32.mrb[0].mxu0
        %v4932 = vadd.f32 %v4847, %v4931
        %v4933 = vpop.f32.mrb[0].mxu0
        %4934 = vdwg.mxu0
        %4935 = vmatprep.subr.mxu0 0.0
        %v4936 = vand.u32 %v4567, 4294901760
        %v4937 = vsub.f32 %v4567, %v4936
        %v4938 = vand.u32 %v4937, 4294901760
        %4939 = vmatpush1.msra.mxu0 %v4938
        %4940 = vmatprep.subr.mxu0 0.0
        %v4941 = vand.u32 %v4568, 4294901760
        %v4942 = vsub.f32 %v4568, %v4941
        %v4943 = vand.u32 %v4942, 4294901760
        %4944 = vmatpush1.msra.mxu0 %v4943
        %4945 = vmatprep.subr.mxu0 0.0
        %v4946 = vand.u32 %v4569, 4294901760
        %v4947 = vsub.f32 %v4569, %v4946
        %v4948 = vand.u32 %v4947, 4294901760
        %4949 = vmatpush1.msra.mxu0 %v4948
        %4950 = vmatprep.subr.mxu0 0.0
        %v4951 = vand.u32 %v4570, 4294901760
        %v4952 = vsub.f32 %v4570, %v4951
        %v4953 = vand.u32 %v4952, 4294901760
        %4954 = vmatpush1.msra.mxu0 %v4953
        %4955 = vmatprep.subr.mxu0 0.0
        %4956 = vmatpush1.msra.mxu0 0.0
        %4957 = vmatprep.subr.mxu0 0.0
        %4958 = vmatpush1.msra.mxu0 0.0
        %4959 = vmatprep.subr.mxu0 0.0
        %4960 = vmatpush1.msra.mxu0 0.0
        %4961 = vmatprep.subr.mxu0 0.0
        %4962 = vmatpush1.msra.mxu0 0.0
        %4963 = vmatprep.subr.mxu0 0.0
        %4964 = vmatpush1.msra.mxu0 0.0
        %4965 = vmatprep.subr.mxu0 0.0
        %4966 = vmatpush1.msra.mxu0 0.0
        %4967 = vmatprep.subr.mxu0 0.0
        %4968 = vmatpush1.msra.mxu0 0.0
        %4969 = vmatprep.subr.mxu0 0.0
        %4970 = vmatpush1.msra.mxu0 0.0
        %4971 = vmatprep.subr.mxu0 0.0
        %4972 = vmatpush1.msra.mxu0 0.0
        %4973 = vmatprep.subr.mxu0 0.0
        %4974 = vmatpush1.msra.mxu0 0.0
        %4975 = vmatprep.subr.mxu0 0.0
        %4976 = vmatpush1.msra.mxu0 0.0
        %4977 = vmatprep.subr.mxu0 0.0
        %4978 = vmatpush1.msra.mxu0 0.0
        %4979 = vmatprep.subr.mxu0 0.0
        %4980 = vmatpush1.msra.mxu0 0.0
        %4981 = vmatprep.subr.mxu0 0.0
        %4982 = vmatpush1.msra.mxu0 0.0
        %4983 = vmatprep.subr.mxu0 0.0
        %4984 = vmatpush1.msra.mxu0 0.0
        %4985 = vmatprep.subr.mxu0 0.0
        %4986 = vmatpush1.msra.mxu0 0.0
        %4987 = vmatprep.subr.mxu0 0.0
        %4988 = vmatpush1.msra.mxu0 0.0
        %4989 = vmatprep.subr.mxu0 0.0
        %4990 = vmatpush1.msra.mxu0 0.0
        %4991 = vmatprep.subr.mxu0 0.0
        %4992 = vmatpush1.msra.mxu0 0.0
        %4993 = vmatprep.subr.mxu0 0.0
        %4994 = vmatpush1.msra.mxu0 0.0
        %4995 = vmatprep.subr.mxu0 0.0
        %4996 = vmatpush1.msra.mxu0 0.0
        %4997 = vmatprep.subr.mxu0 0.0
        %4998 = vmatpush1.msra.mxu0 0.0
        %4999 = vmatprep.subr.mxu0 0.0
        %5000 = vmatpush1.msra.mxu0 0.0
        %5001 = vmatprep.subr.mxu0 0.0
        %5002 = vmatpush1.msra.mxu0 0.0
        %5003 = vmatprep.subr.mxu0 0.0
        %5004 = vmatpush1.msra.mxu0 0.0
        %5005 = vmatprep.subr.mxu0 0.0
        %5006 = vmatpush1.msra.mxu0 0.0
        %5007 = vmatprep.subr.mxu0 0.0
        %5008 = vmatpush1.msra.mxu0 0.0
        %5009 = vmatprep.subr.mxu0 0.0
        %5010 = vmatpush1.msra.mxu0 0.0
        %5011 = vmatprep.mubr.f32.mxu0 0.0
        %v5012 = vand.u32 %v4572, 4294901760
        %5013 = vmatmul.mubr.f32.gmra.mrb[0].mxu0 %v5012
        %v5014 = vpop.f32.mrb[0].mxu0
        %v5015 = vadd.f32 %v4924, %v5014
        %v5016 = vpop.f32.mrb[0].mxu0
        %5017 = vmatprep.mubr.f32.mxu0 0.0
        %v5018 = vand.u32 %v4575, 4294901760
        %5019 = vmatmul.mubr.f32.gmra.mrb[0].mxu0 %v5018
        %v5020 = vpop.f32.mrb[0].mxu0
        %v5021 = vadd.f32 %v4932, %v5020
        %v5022 = vpop.f32.mrb[0].mxu0
        %5023 = vdwg.mxu0
        %5024 = vmatprep.subr.mxu0 0.0
        %v5025 = vand.u32 %v4567, 4294901760
        %5026 = vmatpush1.msra.mxu0 %v5025
        %5027 = vmatprep.subr.mxu0 0.0
        %v5028 = vand.u32 %v4568, 4294901760
        %5029 = vmatpush1.msra.mxu0 %v5028
        %5030 = vmatprep.subr.mxu0 0.0
        %v5031 = vand.u32 %v4569, 4294901760
        %5032 = vmatpush1.msra.mxu0 %v5031
        %5033 = vmatprep.subr.mxu0 0.0
        %v5034 = vand.u32 %v4570, 4294901760
        %5035 = vmatpush1.msra.mxu0 %v5034
        %5036 = vmatprep.subr.mxu0 0.0
        %5037 = vmatpush1.msra.mxu0 0.0
        %5038 = vmatprep.subr.mxu0 0.0
        %5039 = vmatpush1.msra.mxu0 0.0
        %5040 = vmatprep.subr.mxu0 0.0
        %5041 = vmatpush1.msra.mxu0 0.0
        %5042 = vmatprep.subr.mxu0 0.0
        %5043 = vmatpush1.msra.mxu0 0.0
        %5044 = vmatprep.subr.mxu0 0.0
        %5045 = vmatpush1.msra.mxu0 0.0
        %5046 = vmatprep.subr.mxu0 0.0
        %5047 = vmatpush1.msra.mxu0 0.0
        %5048 = vmatprep.subr.mxu0 0.0
        %5049 = vmatpush1.msra.mxu0 0.0
        %5050 = vmatprep.subr.mxu0 0.0
        %5051 = vmatpush1.msra.mxu0 0.0
        %5052 = vmatprep.subr.mxu0 0.0
        %5053 = vmatpush1.msra.mxu0 0.0
        %5054 = vmatprep.subr.mxu0 0.0
        %5055 = vmatpush1.msra.mxu0 0.0
        %5056 = vmatprep.subr.mxu0 0.0
        %5057 = vmatpush1.msra.mxu0 0.0
        %5058 = vmatprep.subr.mxu0 0.0
        %5059 = vmatpush1.msra.mxu0 0.0
        %5060 = vmatprep.subr.mxu0 0.0
        %5061 = vmatpush1.msra.mxu0 0.0
        %5062 = vmatprep.subr.mxu0 0.0
        %5063 = vmatpush1.msra.mxu0 0.0
        %5064 = vmatprep.subr.mxu0 0.0
        %5065 = vmatpush1.msra.mxu0 0.0
        %5066 = vmatprep.subr.mxu0 0.0
        %5067 = vmatpush1.msra.mxu0 0.0
        %5068 = vmatprep.subr.mxu0 0.0
        %5069 = vmatpush1.msra.mxu0 0.0
        %5070 = vmatprep.subr.mxu0 0.0
        %5071 = vmatpush1.msra.mxu0 0.0
        %5072 = vmatprep.subr.mxu0 0.0
        %5073 = vmatpush1.msra.mxu0 0.0
        %5074 = vmatprep.subr.mxu0 0.0
        %5075 = vmatpush1.msra.mxu0 0.0
        %5076 = vmatprep.subr.mxu0 0.0
        %5077 = vmatpush1.msra.mxu0 0.0
        %5078 = vmatprep.subr.mxu0 0.0
        %5079 = vmatpush1.msra.mxu0 0.0
        %5080 = vmatprep.subr.mxu0 0.0
        %5081 = vmatpush1.msra.mxu0 0.0
        %5082 = vmatprep.subr.mxu0 0.0
        %5083 = vmatpush1.msra.mxu0 0.0
        %5084 = vmatprep.subr.mxu0 0.0
        %5085 = vmatpush1.msra.mxu0 0.0
        %5086 = vmatprep.subr.mxu0 0.0
        %5087 = vmatpush1.msra.mxu0 0.0
        %5088 = vmatprep.subr.mxu0 0.0
        %5089 = vmatpush1.msra.mxu0 0.0
        %5090 = vmatprep.subr.mxu0 0.0
        %5091 = vmatpush1.msra.mxu0 0.0
        %5092 = vmatprep.mubr.f32.mxu0 0.0
        %v5093 = vand.u32 %v4572, 4294901760
        %5094 = vmatmul.mubr.f32.gmra.mrb[0].mxu0 %v5093
        %v5095 = vpop.f32.mrb[0].mxu0
        %v5096 = vadd.f32 %v5015, %v5095
        %v5097 = vpop.f32.mrb[0].mxu0
        %5098 = vmatprep.mubr.f32.mxu0 0.0
        %v5099 = vand.u32 %v4575, 4294901760
        %5100 = vmatmul.mubr.f32.gmra.mrb[0].mxu0 %v5099
        %v5101 = vpop.f32.mrb[0].mxu0
        %v5102 = vadd.f32 %v5021, %v5101
        %v5103 = vpop.f32.mrb[0].mxu0
        %5104 = vdwg.mxu0
        %v5105 = vadd.f32 %v4555, %v5096
        %v5106 = vadd.f32 %v4561, %v5102
        %v5107 = vld [vmem:[#allocation3 + $0x3] sm:$0xff]
        %v5108 = vld [vmem:[#allocation3 + $0xb] sm:$0xff]
        %s5109 = scalar_lea.vmem [#allocation17], 96
        %v5110 = vld [vmem:[%s5109] sm:$0xff]
        %v5111 = vld [vmem:[%s5109 + $0x8] sm:$0xff]
        %v5112 = vld [vmem:[%s5109 + $0x10] sm:$0xff]
        %v5113 = vld [vmem:[%s5109 + $0x18] sm:$0xff]
        %v5115 = vsel %vm3495, %v5107, 0
        %v5118 = vsel %vm3495, %v5108, 0
        %5120 = vmatprep.subr.mxu0 0.0
        %v5121 = vand.u32 %v5110, 4294901760
        %5122 = vmatpush1.msra.mxu0 %v5121
        %5123 = vmatprep.subr.mxu0 0.0
        %v5124 = vand.u32 %v5111, 4294901760
        %5125 = vmatpush1.msra.mxu0 %v5124
        %5126 = vmatprep.subr.mxu0 0.0
        %v5127 = vand.u32 %v5112, 4294901760
        %5128 = vmatpush1.msra.mxu0 %v5127
        %5129 = vmatprep.subr.mxu0 0.0
        %v5130 = vand.u32 %v5113, 4294901760
        %5131 = vmatpush1.msra.mxu0 %v5130
        %5132 = vmatprep.subr.mxu0 0.0
        %5133 = vmatpush1.msra.mxu0 0.0
        %5134 = vmatprep.subr.mxu0 0.0
        %5135 = vmatpush1.msra.mxu0 0.0
        %5136 = vmatprep.subr.mxu0 0.0
        %5137 = vmatpush1.msra.mxu0 0.0
        %5138 = vmatprep.subr.mxu0 0.0
        %5139 = vmatpush1.msra.mxu0 0.0
        %5140 = vmatprep.subr.mxu0 0.0
        %5141 = vmatpush1.msra.mxu0 0.0
        %5142 = vmatprep.subr.mxu0 0.0
        %5143 = vmatpush1.msra.mxu0 0.0
        %5144 = vmatprep.subr.mxu0 0.0
        %5145 = vmatpush1.msra.mxu0 0.0
        %5146 = vmatprep.subr.mxu0 0.0
        %5147 = vmatpush1.msra.mxu0 0.0
        %5148 = vmatprep.subr.mxu0 0.0
        %5149 = vmatpush1.msra.mxu0 0.0
        %5150 = vmatprep.subr.mxu0 0.0
        %5151 = vmatpush1.msra.mxu0 0.0
        %5152 = vmatprep.subr.mxu0 0.0
        %5153 = vmatpush1.msra.mxu0 0.0
        %5154 = vmatprep.subr.mxu0 0.0
        %5155 = vmatpush1.msra.mxu0 0.0
        %5156 = vmatprep.subr.mxu0 0.0
        %5157 = vmatpush1.msra.mxu0 0.0
        %5158 = vmatprep.subr.mxu0 0.0
        %5159 = vmatpush1.msra.mxu0 0.0
        %5160 = vmatprep.subr.mxu0 0.0
        %5161 = vmatpush1.msra.mxu0 0.0
        %5162 = vmatprep.subr.mxu0 0.0
        %5163 = vmatpush1.msra.mxu0 0.0
        %5164 = vmatprep.subr.mxu0 0.0
        %5165 = vmatpush1.msra.mxu0 0.0
        %5166 = vmatprep.subr.mxu0 0.0
        %5167 = vmatpush1.msra.mxu0 0.0
        %5168 = vmatprep.subr.mxu0 0.0
        %5169 = vmatpush1.msra.mxu0 0.0
        %5170 = vmatprep.subr.mxu0 0.0
        %5171 = vmatpush1.msra.mxu0 0.0
        %5172 = vmatprep.subr.mxu0 0.0
        %5173 = vmatpush1.msra.mxu0 0.0
        %5174 = vmatprep.subr.mxu0 0.0
        %5175 = vmatpush1.msra.mxu0 0.0
        %5176 = vmatprep.subr.mxu0 0.0
        %5177 = vmatpush1.msra.mxu0 0.0
        %5178 = vmatprep.subr.mxu0 0.0
        %5179 = vmatpush1.msra.mxu0 0.0
        %5180 = vmatprep.subr.mxu0 0.0
        %5181 = vmatpush1.msra.mxu0 0.0
        %5182 = vmatprep.subr.mxu0 0.0
        %5183 = vmatpush1.msra.mxu0 0.0
        %5184 = vmatprep.subr.mxu0 0.0
        %5185 = vmatpush1.msra.mxu0 0.0
        %5186 = vmatprep.subr.mxu0 0.0
        %5187 = vmatpush1.msra.mxu0 0.0
        %5188 = vmatprep.mubr.f32.mxu0 0.0
        %v5189 = vand.u32 %v5115, 4294901760
        %v5190 = vsub.f32 %v5115, %v5189
        %v5191 = vand.u32 %v5190, 4294901760
        %v5192 = vsub.f32 %v5190, %v5191
        %v5193 = vand.u32 %v5192, 4294901760
        %5194 = vmatmul.mubr.f32.gmra.mrb[0].mxu0 %v5193
        %v5195 = vpop.f32.mrb[0].mxu0
        %v5196 = vadd.f32 0.0, %v5195
        %v5197 = vpop.f32.mrb[0].mxu0
        %5198 = vmatprep.mubr.f32.mxu0 0.0
        %v5199 = vand.u32 %v5118, 4294901760
        %v5200 = vsub.f32 %v5118, %v5199
        %v5201 = vand.u32 %v5200, 4294901760
        %v5202 = vsub.f32 %v5200, %v5201
        %v5203 = vand.u32 %v5202, 4294901760
        %5204 = vmatmul.mubr.f32.gmra.mrb[0].mxu0 %v5203
        %v5205 = vpop.f32.mrb[0].mxu0
        %v5206 = vadd.f32 0.0, %v5205
        %v5207 = vpop.f32.mrb[0].mxu0
        %5208 = vdwg.mxu0
        %5209 = vmatprep.subr.mxu0 0.0
        %v5210 = vand.u32 %v5110, 4294901760
        %v5211 = vsub.f32 %v5110, %v5210
        %v5212 = vand.u32 %v5211, 4294901760
        %v5213 = vsub.f32 %v5211, %v5212
        %v5214 = vand.u32 %v5213, 4294901760
        %5215 = vmatpush1.msra.mxu0 %v5214
        %5216 = vmatprep.subr.mxu0 0.0
        %v5217 = vand.u32 %v5111, 4294901760
        %v5218 = vsub.f32 %v5111, %v5217
        %v5219 = vand.u32 %v5218, 4294901760
        %v5220 = vsub.f32 %v5218, %v5219
        %v5221 = vand.u32 %v5220, 4294901760
        %5222 = vmatpush1.msra.mxu0 %v5221
        %5223 = vmatprep.subr.mxu0 0.0
        %v5224 = vand.u32 %v5112, 4294901760
        %v5225 = vsub.f32 %v5112, %v5224
        %v5226 = vand.u32 %v5225, 4294901760
        %v5227 = vsub.f32 %v5225, %v5226
        %v5228 = vand.u32 %v5227, 4294901760
        %5229 = vmatpush1.msra.mxu0 %v5228
        %5230 = vmatprep.subr.mxu0 0.0
        %v5231 = vand.u32 %v5113, 4294901760
        %v5232 = vsub.f32 %v5113, %v5231
        %v5233 = vand.u32 %v5232, 4294901760
        %v5234 = vsub.f32 %v5232, %v5233
        %v5235 = vand.u32 %v5234, 4294901760
        %5236 = vmatpush1.msra.mxu0 %v5235
        %5237 = vmatprep.subr.mxu0 0.0
        %5238 = vmatpush1.msra.mxu0 0.0
        %5239 = vmatprep.subr.mxu0 0.0
        %5240 = vmatpush1.msra.mxu0 0.0
        %5241 = vmatprep.subr.mxu0 0.0
        %5242 = vmatpush1.msra.mxu0 0.0
        %5243 = vmatprep.subr.mxu0 0.0
        %5244 = vmatpush1.msra.mxu0 0.0
        %5245 = vmatprep.subr.mxu0 0.0
        %5246 = vmatpush1.msra.mxu0 0.0
        %5247 = vmatprep.subr.mxu0 0.0
        %5248 = vmatpush1.msra.mxu0 0.0
        %5249 = vmatprep.subr.mxu0 0.0
        %5250 = vmatpush1.msra.mxu0 0.0
        %5251 = vmatprep.subr.mxu0 0.0
        %5252 = vmatpush1.msra.mxu0 0.0
        %5253 = vmatprep.subr.mxu0 0.0
        %5254 = vmatpush1.msra.mxu0 0.0
        %5255 = vmatprep.subr.mxu0 0.0
        %5256 = vmatpush1.msra.mxu0 0.0
        %5257 = vmatprep.subr.mxu0 0.0
        %5258 = vmatpush1.msra.mxu0 0.0
        %5259 = vmatprep.subr.mxu0 0.0
        %5260 = vmatpush1.msra.mxu0 0.0
        %5261 = vmatprep.subr.mxu0 0.0
        %5262 = vmatpush1.msra.mxu0 0.0
        %5263 = vmatprep.subr.mxu0 0.0
        %5264 = vmatpush1.msra.mxu0 0.0
        %5265 = vmatprep.subr.mxu0 0.0
        %5266 = vmatpush1.msra.mxu0 0.0
        %5267 = vmatprep.subr.mxu0 0.0
        %5268 = vmatpush1.msra.mxu0 0.0
        %5269 = vmatprep.subr.mxu0 0.0
        %5270 = vmatpush1.msra.mxu0 0.0
        %5271 = vmatprep.subr.mxu0 0.0
        %5272 = vmatpush1.msra.mxu0 0.0
        %5273 = vmatprep.subr.mxu0 0.0
        %5274 = vmatpush1.msra.mxu0 0.0
        %5275 = vmatprep.subr.mxu0 0.0
        %5276 = vmatpush1.msra.mxu0 0.0
        %5277 = vmatprep.subr.mxu0 0.0
        %5278 = vmatpush1.msra.mxu0 0.0
        %5279 = vmatprep.subr.mxu0 0.0
        %5280 = vmatpush1.msra.mxu0 0.0
        %5281 = vmatprep.subr.mxu0 0.0
        %5282 = vmatpush1.msra.mxu0 0.0
        %5283 = vmatprep.subr.mxu0 0.0
        %5284 = vmatpush1.msra.mxu0 0.0
        %5285 = vmatprep.subr.mxu0 0.0
        %5286 = vmatpush1.msra.mxu0 0.0
        %5287 = vmatprep.subr.mxu0 0.0
        %5288 = vmatpush1.msra.mxu0 0.0
        %5289 = vmatprep.subr.mxu0 0.0
        %5290 = vmatpush1.msra.mxu0 0.0
        %5291 = vmatprep.subr.mxu0 0.0
        %5292 = vmatpush1.msra.mxu0 0.0
        %5293 = vmatprep.mubr.f32.mxu0 0.0
        %v5294 = vand.u32 %v5115, 4294901760
        %5295 = vmatmul.mubr.f32.gmra.mrb[0].mxu0 %v5294
        %v5296 = vpop.f32.mrb[0].mxu0
        %v5297 = vadd.f32 %v5196, %v5296
        %v5298 = vpop.f32.mrb[0].mxu0
        %5299 = vmatprep.mubr.f32.mxu0 0.0
        %v5300 = vand.u32 %v5118, 4294901760
        %5301 = vmatmul.mubr.f32.gmra.mrb[0].mxu0 %v5300
        %v5302 = vpop.f32.mrb[0].mxu0
        %v5303 = vadd.f32 %v5206, %v5302
        %v5304 = vpop.f32.mrb[0].mxu0
        %5305 = vdwg.mxu0
        %5306 = vmatprep.subr.mxu0 0.0
        %v5307 = vand.u32 %v5110, 4294901760
        %v5308 = vsub.f32 %v5110, %v5307
        %5309 = vmatpush1.msra.mxu0 %v5308
        %5310 = vmatprep.subr.mxu0 0.0
        %v5311 = vand.u32 %v5111, 4294901760
        %v5312 = vsub.f32 %v5111, %v5311
        %5313 = vmatpush1.msra.mxu0 %v5312
        %5314 = vmatprep.subr.mxu0 0.0
        %v5315 = vand.u32 %v5112, 4294901760
        %v5316 = vsub.f32 %v5112, %v5315
        %5317 = vmatpush1.msra.mxu0 %v5316
        %5318 = vmatprep.subr.mxu0 0.0
        %v5319 = vand.u32 %v5113, 4294901760
        %v5320 = vsub.f32 %v5113, %v5319
        %5321 = vmatpush1.msra.mxu0 %v5320
        %5322 = vmatprep.subr.mxu0 0.0
        %5323 = vmatpush1.msra.mxu0 0.0
        %5324 = vmatprep.subr.mxu0 0.0
        %5325 = vmatpush1.msra.mxu0 0.0
        %5326 = vmatprep.subr.mxu0 0.0
        %5327 = vmatpush1.msra.mxu0 0.0
        %5328 = vmatprep.subr.mxu0 0.0
        %5329 = vmatpush1.msra.mxu0 0.0
        %5330 = vmatprep.subr.mxu0 0.0
        %5331 = vmatpush1.msra.mxu0 0.0
        %5332 = vmatprep.subr.mxu0 0.0
        %5333 = vmatpush1.msra.mxu0 0.0
        %5334 = vmatprep.subr.mxu0 0.0
        %5335 = vmatpush1.msra.mxu0 0.0
        %5336 = vmatprep.subr.mxu0 0.0
        %5337 = vmatpush1.msra.mxu0 0.0
        %5338 = vmatprep.subr.mxu0 0.0
        %5339 = vmatpush1.msra.mxu0 0.0
        %5340 = vmatprep.subr.mxu0 0.0
        %5341 = vmatpush1.msra.mxu0 0.0
        %5342 = vmatprep.subr.mxu0 0.0
        %5343 = vmatpush1.msra.mxu0 0.0
        %5344 = vmatprep.subr.mxu0 0.0
        %5345 = vmatpush1.msra.mxu0 0.0
        %5346 = vmatprep.subr.mxu0 0.0
        %5347 = vmatpush1.msra.mxu0 0.0
        %5348 = vmatprep.subr.mxu0 0.0
        %5349 = vmatpush1.msra.mxu0 0.0
        %5350 = vmatprep.subr.mxu0 0.0
        %5351 = vmatpush1.msra.mxu0 0.0
        %5352 = vmatprep.subr.mxu0 0.0
        %5353 = vmatpush1.msra.mxu0 0.0
        %5354 = vmatprep.subr.mxu0 0.0
        %5355 = vmatpush1.msra.mxu0 0.0
        %5356 = vmatprep.subr.mxu0 0.0
        %5357 = vmatpush1.msra.mxu0 0.0
        %5358 = vmatprep.subr.mxu0 0.0
        %5359 = vmatpush1.msra.mxu0 0.0
        %5360 = vmatprep.subr.mxu0 0.0
        %5361 = vmatpush1.msra.mxu0 0.0
        %5362 = vmatprep.subr.mxu0 0.0
        %5363 = vmatpush1.msra.mxu0 0.0
        %5364 = vmatprep.subr.mxu0 0.0
        %5365 = vmatpush1.msra.mxu0 0.0
        %5366 = vmatprep.subr.mxu0 0.0
        %5367 = vmatpush1.msra.mxu0 0.0
        %5368 = vmatprep.subr.mxu0 0.0
        %5369 = vmatpush1.msra.mxu0 0.0
        %5370 = vmatprep.subr.mxu0 0.0
        %5371 = vmatpush1.msra.mxu0 0.0
        %5372 = vmatprep.subr.mxu0 0.0
        %5373 = vmatpush1.msra.mxu0 0.0
        %5374 = vmatprep.subr.mxu0 0.0
        %5375 = vmatpush1.msra.mxu0 0.0
        %5376 = vmatprep.subr.mxu0 0.0
        %5377 = vmatpush1.msra.mxu0 0.0
        %5378 = vmatprep.mubr.f32.mxu0 0.0
        %v5379 = vand.u32 %v5115, 4294901760
        %v5380 = vsub.f32 %v5115, %v5379
        %5381 = vmatmul.mubr.f32.gmra.mrb[0].mxu0 %v5380
        %v5382 = vpop.f32.mrb[0].mxu0
        %v5383 = vadd.f32 %v5297, %v5382
        %v5384 = vpop.f32.mrb[0].mxu0
        %5385 = vmatprep.mubr.f32.mxu0 0.0
        %v5386 = vand.u32 %v5118, 4294901760
        %v5387 = vsub.f32 %v5118, %v5386
        %5388 = vmatmul.mubr.f32.gmra.mrb[0].mxu0 %v5387
        %v5389 = vpop.f32.mrb[0].mxu0
        %v5390 = vadd.f32 %v5303, %v5389
        %v5391 = vpop.f32.mrb[0].mxu0
        %5392 = vdwg.mxu0
        %5393 = vmatprep.subr.mxu0 0.0
        %v5394 = vand.u32 %v5110, 4294901760
        %5395 = vmatpush1.msra.mxu0 %v5394
        %5396 = vmatprep.subr.mxu0 0.0
        %v5397 = vand.u32 %v5111, 4294901760
        %5398 = vmatpush1.msra.mxu0 %v5397
        %5399 = vmatprep.subr.mxu0 0.0
        %v5400 = vand.u32 %v5112, 4294901760
        %5401 = vmatpush1.msra.mxu0 %v5400
        %5402 = vmatprep.subr.mxu0 0.0
        %v5403 = vand.u32 %v5113, 4294901760
        %5404 = vmatpush1.msra.mxu0 %v5403
        %5405 = vmatprep.subr.mxu0 0.0
        %5406 = vmatpush1.msra.mxu0 0.0
        %5407 = vmatprep.subr.mxu0 0.0
        %5408 = vmatpush1.msra.mxu0 0.0
        %5409 = vmatprep.subr.mxu0 0.0
        %5410 = vmatpush1.msra.mxu0 0.0
        %5411 = vmatprep.subr.mxu0 0.0
        %5412 = vmatpush1.msra.mxu0 0.0
        %5413 = vmatprep.subr.mxu0 0.0
        %5414 = vmatpush1.msra.mxu0 0.0
        %5415 = vmatprep.subr.mxu0 0.0
        %5416 = vmatpush1.msra.mxu0 0.0
        %5417 = vmatprep.subr.mxu0 0.0
        %5418 = vmatpush1.msra.mxu0 0.0
        %5419 = vmatprep.subr.mxu0 0.0
        %5420 = vmatpush1.msra.mxu0 0.0
        %5421 = vmatprep.subr.mxu0 0.0
        %5422 = vmatpush1.msra.mxu0 0.0
        %5423 = vmatprep.subr.mxu0 0.0
        %5424 = vmatpush1.msra.mxu0 0.0
        %5425 = vmatprep.subr.mxu0 0.0
        %5426 = vmatpush1.msra.mxu0 0.0
        %5427 = vmatprep.subr.mxu0 0.0
        %5428 = vmatpush1.msra.mxu0 0.0
        %5429 = vmatprep.subr.mxu0 0.0
        %5430 = vmatpush1.msra.mxu0 0.0
        %5431 = vmatprep.subr.mxu0 0.0
        %5432 = vmatpush1.msra.mxu0 0.0
        %5433 = vmatprep.subr.mxu0 0.0
        %5434 = vmatpush1.msra.mxu0 0.0
        %5435 = vmatprep.subr.mxu0 0.0
        %5436 = vmatpush1.msra.mxu0 0.0
        %5437 = vmatprep.subr.mxu0 0.0
        %5438 = vmatpush1.msra.mxu0 0.0
        %5439 = vmatprep.subr.mxu0 0.0
        %5440 = vmatpush1.msra.mxu0 0.0
        %5441 = vmatprep.subr.mxu0 0.0
        %5442 = vmatpush1.msra.mxu0 0.0
        %5443 = vmatprep.subr.mxu0 0.0
        %5444 = vmatpush1.msra.mxu0 0.0
        %5445 = vmatprep.subr.mxu0 0.0
        %5446 = vmatpush1.msra.mxu0 0.0
        %5447 = vmatprep.subr.mxu0 0.0
        %5448 = vmatpush1.msra.mxu0 0.0
        %5449 = vmatprep.subr.mxu0 0.0
        %5450 = vmatpush1.msra.mxu0 0.0
        %5451 = vmatprep.subr.mxu0 0.0
        %5452 = vmatpush1.msra.mxu0 0.0
        %5453 = vmatprep.subr.mxu0 0.0
        %5454 = vmatpush1.msra.mxu0 0.0
        %5455 = vmatprep.subr.mxu0 0.0
        %5456 = vmatpush1.msra.mxu0 0.0
        %5457 = vmatprep.subr.mxu0 0.0
        %5458 = vmatpush1.msra.mxu0 0.0
        %5459 = vmatprep.subr.mxu0 0.0
        %5460 = vmatpush1.msra.mxu0 0.0
        %5461 = vmatprep.mubr.f32.mxu0 0.0
        %v5462 = vand.u32 %v5115, 4294901760
        %v5463 = vsub.f32 %v5115, %v5462
        %v5464 = vand.u32 %v5463, 4294901760
        %5465 = vmatmul.mubr.f32.gmra.mrb[0].mxu0 %v5464
        %v5466 = vpop.f32.mrb[0].mxu0
        %v5467 = vadd.f32 %v5383, %v5466
        %v5468 = vpop.f32.mrb[0].mxu0
        %5469 = vmatprep.mubr.f32.mxu0 0.0
        %v5470 = vand.u32 %v5118, 4294901760
        %v5471 = vsub.f32 %v5118, %v5470
        %v5472 = vand.u32 %v5471, 4294901760
        %5473 = vmatmul.mubr.f32.gmra.mrb[0].mxu0 %v5472
        %v5474 = vpop.f32.mrb[0].mxu0
        %v5475 = vadd.f32 %v5390, %v5474
        %v5476 = vpop.f32.mrb[0].mxu0
        %5477 = vdwg.mxu0
        %5478 = vmatprep.subr.mxu0 0.0
        %v5479 = vand.u32 %v5110, 4294901760
        %v5480 = vsub.f32 %v5110, %v5479
        %v5481 = vand.u32 %v5480, 4294901760
        %5482 = vmatpush1.msra.mxu0 %v5481
        %5483 = vmatprep.subr.mxu0 0.0
        %v5484 = vand.u32 %v5111, 4294901760
        %v5485 = vsub.f32 %v5111, %v5484
        %v5486 = vand.u32 %v5485, 4294901760
        %5487 = vmatpush1.msra.mxu0 %v5486
        %5488 = vmatprep.subr.mxu0 0.0
        %v5489 = vand.u32 %v5112, 4294901760
        %v5490 = vsub.f32 %v5112, %v5489
        %v5491 = vand.u32 %v5490, 4294901760
        %5492 = vmatpush1.msra.mxu0 %v5491
        %5493 = vmatprep.subr.mxu0 0.0
        %v5494 = vand.u32 %v5113, 4294901760
        %v5495 = vsub.f32 %v5113, %v5494
        %v5496 = vand.u32 %v5495, 4294901760
        %5497 = vmatpush1.msra.mxu0 %v5496
        %5498 = vmatprep.subr.mxu0 0.0
        %5499 = vmatpush1.msra.mxu0 0.0
        %5500 = vmatprep.subr.mxu0 0.0
        %5501 = vmatpush1.msra.mxu0 0.0
        %5502 = vmatprep.subr.mxu0 0.0
        %5503 = vmatpush1.msra.mxu0 0.0
        %5504 = vmatprep.subr.mxu0 0.0
        %5505 = vmatpush1.msra.mxu0 0.0
        %5506 = vmatprep.subr.mxu0 0.0
        %5507 = vmatpush1.msra.mxu0 0.0
        %5508 = vmatprep.subr.mxu0 0.0
        %5509 = vmatpush1.msra.mxu0 0.0
        %5510 = vmatprep.subr.mxu0 0.0
        %5511 = vmatpush1.msra.mxu0 0.0
        %5512 = vmatprep.subr.mxu0 0.0
        %5513 = vmatpush1.msra.mxu0 0.0
        %5514 = vmatprep.subr.mxu0 0.0
        %5515 = vmatpush1.msra.mxu0 0.0
        %5516 = vmatprep.subr.mxu0 0.0
        %5517 = vmatpush1.msra.mxu0 0.0
        %5518 = vmatprep.subr.mxu0 0.0
        %5519 = vmatpush1.msra.mxu0 0.0
        %5520 = vmatprep.subr.mxu0 0.0
        %5521 = vmatpush1.msra.mxu0 0.0
        %5522 = vmatprep.subr.mxu0 0.0
        %5523 = vmatpush1.msra.mxu0 0.0
        %5524 = vmatprep.subr.mxu0 0.0
        %5525 = vmatpush1.msra.mxu0 0.0
        %5526 = vmatprep.subr.mxu0 0.0
        %5527 = vmatpush1.msra.mxu0 0.0
        %5528 = vmatprep.subr.mxu0 0.0
        %5529 = vmatpush1.msra.mxu0 0.0
        %5530 = vmatprep.subr.mxu0 0.0
        %5531 = vmatpush1.msra.mxu0 0.0
        %5532 = vmatprep.subr.mxu0 0.0
        %5533 = vmatpush1.msra.mxu0 0.0
        %5534 = vmatprep.subr.mxu0 0.0
        %5535 = vmatpush1.msra.mxu0 0.0
        %5536 = vmatprep.subr.mxu0 0.0
        %5537 = vmatpush1.msra.mxu0 0.0
        %5538 = vmatprep.subr.mxu0 0.0
        %5539 = vmatpush1.msra.mxu0 0.0
        %5540 = vmatprep.subr.mxu0 0.0
        %5541 = vmatpush1.msra.mxu0 0.0
        %5542 = vmatprep.subr.mxu0 0.0
        %5543 = vmatpush1.msra.mxu0 0.0
        %5544 = vmatprep.subr.mxu0 0.0
        %5545 = vmatpush1.msra.mxu0 0.0
        %5546 = vmatprep.subr.mxu0 0.0
        %5547 = vmatpush1.msra.mxu0 0.0
        %5548 = vmatprep.subr.mxu0 0.0
        %5549 = vmatpush1.msra.mxu0 0.0
        %5550 = vmatprep.subr.mxu0 0.0
        %5551 = vmatpush1.msra.mxu0 0.0
        %5552 = vmatprep.subr.mxu0 0.0
        %5553 = vmatpush1.msra.mxu0 0.0
        %5554 = vmatprep.mubr.f32.mxu0 0.0
        %v5555 = vand.u32 %v5115, 4294901760
        %5556 = vmatmul.mubr.f32.gmra.mrb[0].mxu0 %v5555
        %v5557 = vpop.f32.mrb[0].mxu0
        %v5558 = vadd.f32 %v5467, %v5557
        %v5559 = vpop.f32.mrb[0].mxu0
        %5560 = vmatprep.mubr.f32.mxu0 0.0
        %v5561 = vand.u32 %v5118, 4294901760
        %5562 = vmatmul.mubr.f32.gmra.mrb[0].mxu0 %v5561
        %v5563 = vpop.f32.mrb[0].mxu0
        %v5564 = vadd.f32 %v5475, %v5563
        %v5565 = vpop.f32.mrb[0].mxu0
        %5566 = vdwg.mxu0
        %5567 = vmatprep.subr.mxu0 0.0
        %v5568 = vand.u32 %v5110, 4294901760
        %5569 = vmatpush1.msra.mxu0 %v5568
        %5570 = vmatprep.subr.mxu0 0.0
        %v5571 = vand.u32 %v5111, 4294901760
        %5572 = vmatpush1.msra.mxu0 %v5571
        %5573 = vmatprep.subr.mxu0 0.0
        %v5574 = vand.u32 %v5112, 4294901760
        %5575 = vmatpush1.msra.mxu0 %v5574
        %5576 = vmatprep.subr.mxu0 0.0
        %v5577 = vand.u32 %v5113, 4294901760
        %5578 = vmatpush1.msra.mxu0 %v5577
        %5579 = vmatprep.subr.mxu0 0.0
        %5580 = vmatpush1.msra.mxu0 0.0
        %5581 = vmatprep.subr.mxu0 0.0
        %5582 = vmatpush1.msra.mxu0 0.0
        %5583 = vmatprep.subr.mxu0 0.0
        %5584 = vmatpush1.msra.mxu0 0.0
        %5585 = vmatprep.subr.mxu0 0.0
        %5586 = vmatpush1.msra.mxu0 0.0
        %5587 = vmatprep.subr.mxu0 0.0
        %5588 = vmatpush1.msra.mxu0 0.0
        %5589 = vmatprep.subr.mxu0 0.0
        %5590 = vmatpush1.msra.mxu0 0.0
        %5591 = vmatprep.subr.mxu0 0.0
        %5592 = vmatpush1.msra.mxu0 0.0
        %5593 = vmatprep.subr.mxu0 0.0
        %5594 = vmatpush1.msra.mxu0 0.0
        %5595 = vmatprep.subr.mxu0 0.0
        %5596 = vmatpush1.msra.mxu0 0.0
        %5597 = vmatprep.subr.mxu0 0.0
        %5598 = vmatpush1.msra.mxu0 0.0
        %5599 = vmatprep.subr.mxu0 0.0
        %5600 = vmatpush1.msra.mxu0 0.0
        %5601 = vmatprep.subr.mxu0 0.0
        %5602 = vmatpush1.msra.mxu0 0.0
        %5603 = vmatprep.subr.mxu0 0.0
        %5604 = vmatpush1.msra.mxu0 0.0
        %5605 = vmatprep.subr.mxu0 0.0
        %5606 = vmatpush1.msra.mxu0 0.0
        %5607 = vmatprep.subr.mxu0 0.0
        %5608 = vmatpush1.msra.mxu0 0.0
        %5609 = vmatprep.subr.mxu0 0.0
        %5610 = vmatpush1.msra.mxu0 0.0
        %5611 = vmatprep.subr.mxu0 0.0
        %5612 = vmatpush1.msra.mxu0 0.0
        %5613 = vmatprep.subr.mxu0 0.0
        %5614 = vmatpush1.msra.mxu0 0.0
        %5615 = vmatprep.subr.mxu0 0.0
        %5616 = vmatpush1.msra.mxu0 0.0
        %5617 = vmatprep.subr.mxu0 0.0
        %5618 = vmatpush1.msra.mxu0 0.0
        %5619 = vmatprep.subr.mxu0 0.0
        %5620 = vmatpush1.msra.mxu0 0.0
        %5621 = vmatprep.subr.mxu0 0.0
        %5622 = vmatpush1.msra.mxu0 0.0
        %5623 = vmatprep.subr.mxu0 0.0
        %5624 = vmatpush1.msra.mxu0 0.0
        %5625 = vmatprep.subr.mxu0 0.0
        %5626 = vmatpush1.msra.mxu0 0.0
        %5627 = vmatprep.subr.mxu0 0.0
        %5628 = vmatpush1.msra.mxu0 0.0
        %5629 = vmatprep.subr.mxu0 0.0
        %5630 = vmatpush1.msra.mxu0 0.0
        %5631 = vmatprep.subr.mxu0 0.0
        %5632 = vmatpush1.msra.mxu0 0.0
        %5633 = vmatprep.subr.mxu0 0.0
        %5634 = vmatpush1.msra.mxu0 0.0
        %5635 = vmatprep.mubr.f32.mxu0 0.0
        %v5636 = vand.u32 %v5115, 4294901760
        %5637 = vmatmul.mubr.f32.gmra.mrb[0].mxu0 %v5636
        %v5638 = vpop.f32.mrb[0].mxu0
        %v5639 = vadd.f32 %v5558, %v5638
        %v5640 = vpop.f32.mrb[0].mxu0
        %5641 = vmatprep.mubr.f32.mxu0 0.0
        %v5642 = vand.u32 %v5118, 4294901760
        %5643 = vmatmul.mubr.f32.gmra.mrb[0].mxu0 %v5642
        %v5644 = vpop.f32.mrb[0].mxu0
        %v5645 = vadd.f32 %v5564, %v5644
        %v5646 = vpop.f32.mrb[0].mxu0
        %5647 = vdwg.mxu0
        %v5648 = vadd.f32 %v5105, %v5639
        %v5649 = vadd.f32 %v5106, %v5645
        %v5650 = vld [vmem:[#allocation3 + $0x4] sm:$0xff]
        %v5651 = vld [vmem:[#allocation3 + $0xc] sm:$0xff]
        %s5652 = scalar_lea.vmem [#allocation17], 128
        %v5653 = vld [vmem:[%s5652] sm:$0xff]
        %v5654 = vld [vmem:[%s5652 + $0x8] sm:$0xff]
        %v5655 = vld [vmem:[%s5652 + $0x10] sm:$0xff]
        %v5656 = vld [vmem:[%s5652 + $0x18] sm:$0xff]
        %v5658 = vsel %vm3495, %v5650, 0
        %v5661 = vsel %vm3495, %v5651, 0
        %5663 = vmatprep.subr.mxu0 0.0
        %v5664 = vand.u32 %v5653, 4294901760
        %5665 = vmatpush1.msra.mxu0 %v5664
        %5666 = vmatprep.subr.mxu0 0.0
        %v5667 = vand.u32 %v5654, 4294901760
        %5668 = vmatpush1.msra.mxu0 %v5667
        %5669 = vmatprep.subr.mxu0 0.0
        %v5670 = vand.u32 %v5655, 4294901760
        %5671 = vmatpush1.msra.mxu0 %v5670
        %5672 = vmatprep.subr.mxu0 0.0
        %v5673 = vand.u32 %v5656, 4294901760
        %5674 = vmatpush1.msra.mxu0 %v5673
        %5675 = vmatprep.subr.mxu0 0.0
        %5676 = vmatpush1.msra.mxu0 0.0
        %5677 = vmatprep.subr.mxu0 0.0
        %5678 = vmatpush1.msra.mxu0 0.0
        %5679 = vmatprep.subr.mxu0 0.0
        %5680 = vmatpush1.msra.mxu0 0.0
        %5681 = vmatprep.subr.mxu0 0.0
        %5682 = vmatpush1.msra.mxu0 0.0
        %5683 = vmatprep.subr.mxu0 0.0
        %5684 = vmatpush1.msra.mxu0 0.0
        %5685 = vmatprep.subr.mxu0 0.0
        %5686 = vmatpush1.msra.mxu0 0.0
        %5687 = vmatprep.subr.mxu0 0.0
        %5688 = vmatpush1.msra.mxu0 0.0
        %5689 = vmatprep.subr.mxu0 0.0
        %5690 = vmatpush1.msra.mxu0 0.0
        %5691 = vmatprep.subr.mxu0 0.0
        %5692 = vmatpush1.msra.mxu0 0.0
        %5693 = vmatprep.subr.mxu0 0.0
        %5694 = vmatpush1.msra.mxu0 0.0
        %5695 = vmatprep.subr.mxu0 0.0
        %5696 = vmatpush1.msra.mxu0 0.0
        %5697 = vmatprep.subr.mxu0 0.0
        %5698 = vmatpush1.msra.mxu0 0.0
        %5699 = vmatprep.subr.mxu0 0.0
        %5700 = vmatpush1.msra.mxu0 0.0
        %5701 = vmatprep.subr.mxu0 0.0
        %5702 = vmatpush1.msra.mxu0 0.0
        %5703 = vmatprep.subr.mxu0 0.0
        %5704 = vmatpush1.msra.mxu0 0.0
        %5705 = vmatprep.subr.mxu0 0.0
        %5706 = vmatpush1.msra.mxu0 0.0
        %5707 = vmatprep.subr.mxu0 0.0
        %5708 = vmatpush1.msra.mxu0 0.0
        %5709 = vmatprep.subr.mxu0 0.0
        %5710 = vmatpush1.msra.mxu0 0.0
        %5711 = vmatprep.subr.mxu0 0.0
        %5712 = vmatpush1.msra.mxu0 0.0
        %5713 = vmatprep.subr.mxu0 0.0
        %5714 = vmatpush1.msra.mxu0 0.0
        %5715 = vmatprep.subr.mxu0 0.0
        %5716 = vmatpush1.msra.mxu0 0.0
        %5717 = vmatprep.subr.mxu0 0.0
        %5718 = vmatpush1.msra.mxu0 0.0
        %5719 = vmatprep.subr.mxu0 0.0
        %5720 = vmatpush1.msra.mxu0 0.0
        %5721 = vmatprep.subr.mxu0 0.0
        %5722 = vmatpush1.msra.mxu0 0.0
        %5723 = vmatprep.subr.mxu0 0.0
        %5724 = vmatpush1.msra.mxu0 0.0
        %5725 = vmatprep.subr.mxu0 0.0
        %5726 = vmatpush1.msra.mxu0 0.0
        %5727 = vmatprep.subr.mxu0 0.0
        %5728 = vmatpush1.msra.mxu0 0.0
        %5729 = vmatprep.subr.mxu0 0.0
        %5730 = vmatpush1.msra.mxu0 0.0
        %5731 = vmatprep.mubr.f32.mxu0 0.0
        %v5732 = vand.u32 %v5658, 4294901760
        %v5733 = vsub.f32 %v5658, %v5732
        %v5734 = vand.u32 %v5733, 4294901760
        %v5735 = vsub.f32 %v5733, %v5734
        %v5736 = vand.u32 %v5735, 4294901760
        %5737 = vmatmul.mubr.f32.gmra.mrb[0].mxu0 %v5736
        %v5738 = vpop.f32.mrb[0].mxu0
        %v5739 = vadd.f32 0.0, %v5738
        %v5740 = vpop.f32.mrb[0].mxu0
        %5741 = vmatprep.mubr.f32.mxu0 0.0
        %v5742 = vand.u32 %v5661, 4294901760
        %v5743 = vsub.f32 %v5661, %v5742
        %v5744 = vand.u32 %v5743, 4294901760
        %v5745 = vsub.f32 %v5743, %v5744
        %v5746 = vand.u32 %v5745, 4294901760
        %5747 = vmatmul.mubr.f32.gmra.mrb[0].mxu0 %v5746
        %v5748 = vpop.f32.mrb[0].mxu0
        %v5749 = vadd.f32 0.0, %v5748
        %v5750 = vpop.f32.mrb[0].mxu0
        %5751 = vdwg.mxu0
        %5752 = vmatprep.subr.mxu0 0.0
        %v5753 = vand.u32 %v5653, 4294901760
        %v5754 = vsub.f32 %v5653, %v5753
        %v5755 = vand.u32 %v5754, 4294901760
        %v5756 = vsub.f32 %v5754, %v5755
        %v5757 = vand.u32 %v5756, 4294901760
        %5758 = vmatpush1.msra.mxu0 %v5757
        %5759 = vmatprep.subr.mxu0 0.0
        %v5760 = vand.u32 %v5654, 4294901760
        %v5761 = vsub.f32 %v5654, %v5760
        %v5762 = vand.u32 %v5761, 4294901760
        %v5763 = vsub.f32 %v5761, %v5762
        %v5764 = vand.u32 %v5763, 4294901760
        %5765 = vmatpush1.msra.mxu0 %v5764
        %5766 = vmatprep.subr.mxu0 0.0
        %v5767 = vand.u32 %v5655, 4294901760
        %v5768 = vsub.f32 %v5655, %v5767
        %v5769 = vand.u32 %v5768, 4294901760
        %v5770 = vsub.f32 %v5768, %v5769
        %v5771 = vand.u32 %v5770, 4294901760
        %5772 = vmatpush1.msra.mxu0 %v5771
        %5773 = vmatprep.subr.mxu0 0.0
        %v5774 = vand.u32 %v5656, 4294901760
        %v5775 = vsub.f32 %v5656, %v5774
        %v5776 = vand.u32 %v5775, 4294901760
        %v5777 = vsub.f32 %v5775, %v5776
        %v5778 = vand.u32 %v5777, 4294901760
        %5779 = vmatpush1.msra.mxu0 %v5778
        %5780 = vmatprep.subr.mxu0 0.0
        %5781 = vmatpush1.msra.mxu0 0.0
        %5782 = vmatprep.subr.mxu0 0.0
        %5783 = vmatpush1.msra.mxu0 0.0
        %5784 = vmatprep.subr.mxu0 0.0
        %5785 = vmatpush1.msra.mxu0 0.0
        %5786 = vmatprep.subr.mxu0 0.0
        %5787 = vmatpush1.msra.mxu0 0.0
        %5788 = vmatprep.subr.mxu0 0.0
        %5789 = vmatpush1.msra.mxu0 0.0
        %5790 = vmatprep.subr.mxu0 0.0
        %5791 = vmatpush1.msra.mxu0 0.0
        %5792 = vmatprep.subr.mxu0 0.0
        %5793 = vmatpush1.msra.mxu0 0.0
        %5794 = vmatprep.subr.mxu0 0.0
        %5795 = vmatpush1.msra.mxu0 0.0
        %5796 = vmatprep.subr.mxu0 0.0
        %5797 = vmatpush1.msra.mxu0 0.0
        %5798 = vmatprep.subr.mxu0 0.0
        %5799 = vmatpush1.msra.mxu0 0.0
        %5800 = vmatprep.subr.mxu0 0.0
        %5801 = vmatpush1.msra.mxu0 0.0
        %5802 = vmatprep.subr.mxu0 0.0
        %5803 = vmatpush1.msra.mxu0 0.0
        %5804 = vmatprep.subr.mxu0 0.0
        %5805 = vmatpush1.msra.mxu0 0.0
        %5806 = vmatprep.subr.mxu0 0.0
        %5807 = vmatpush1.msra.mxu0 0.0
        %5808 = vmatprep.subr.mxu0 0.0
        %5809 = vmatpush1.msra.mxu0 0.0
        %5810 = vmatprep.subr.mxu0 0.0
        %5811 = vmatpush1.msra.mxu0 0.0
        %5812 = vmatprep.subr.mxu0 0.0
        %5813 = vmatpush1.msra.mxu0 0.0
        %5814 = vmatprep.subr.mxu0 0.0
        %5815 = vmatpush1.msra.mxu0 0.0
        %5816 = vmatprep.subr.mxu0 0.0
        %5817 = vmatpush1.msra.mxu0 0.0
        %5818 = vmatprep.subr.mxu0 0.0
        %5819 = vmatpush1.msra.mxu0 0.0
        %5820 = vmatprep.subr.mxu0 0.0
        %5821 = vmatpush1.msra.mxu0 0.0
        %5822 = vmatprep.subr.mxu0 0.0
        %5823 = vmatpush1.msra.mxu0 0.0
        %5824 = vmatprep.subr.mxu0 0.0
        %5825 = vmatpush1.msra.mxu0 0.0
        %5826 = vmatprep.subr.mxu0 0.0
        %5827 = vmatpush1.msra.mxu0 0.0
        %5828 = vmatprep.subr.mxu0 0.0
        %5829 = vmatpush1.msra.mxu0 0.0
        %5830 = vmatprep.subr.mxu0 0.0
        %5831 = vmatpush1.msra.mxu0 0.0
        %5832 = vmatprep.subr.mxu0 0.0
        %5833 = vmatpush1.msra.mxu0 0.0
        %5834 = vmatprep.subr.mxu0 0.0
        %5835 = vmatpush1.msra.mxu0 0.0
        %5836 = vmatprep.mubr.f32.mxu0 0.0
        %v5837 = vand.u32 %v5658, 4294901760
        %5838 = vmatmul.mubr.f32.gmra.mrb[0].mxu0 %v5837
        %v5839 = vpop.f32.mrb[0].mxu0
        %v5840 = vadd.f32 %v5739, %v5839
        %v5841 = vpop.f32.mrb[0].mxu0
        %5842 = vmatprep.mubr.f32.mxu0 0.0
        %v5843 = vand.u32 %v5661, 4294901760
        %5844 = vmatmul.mubr.f32.gmra.mrb[0].mxu0 %v5843
        %v5845 = vpop.f32.mrb[0].mxu0
        %v5846 = vadd.f32 %v5749, %v5845
        %v5847 = vpop.f32.mrb[0].mxu0
        %5848 = vdwg.mxu0
        %5849 = vmatprep.subr.mxu0 0.0
        %v5850 = vand.u32 %v5653, 4294901760
        %v5851 = vsub.f32 %v5653, %v5850
        %5852 = vmatpush1.msra.mxu0 %v5851
        %5853 = vmatprep.subr.mxu0 0.0
        %v5854 = vand.u32 %v5654, 4294901760
        %v5855 = vsub.f32 %v5654, %v5854
        %5856 = vmatpush1.msra.mxu0 %v5855
        %5857 = vmatprep.subr.mxu0 0.0
        %v5858 = vand.u32 %v5655, 4294901760
        %v5859 = vsub.f32 %v5655, %v5858
        %5860 = vmatpush1.msra.mxu0 %v5859
        %5861 = vmatprep.subr.mxu0 0.0
        %v5862 = vand.u32 %v5656, 4294901760
        %v5863 = vsub.f32 %v5656, %v5862
        %5864 = vmatpush1.msra.mxu0 %v5863
        %5865 = vmatprep.subr.mxu0 0.0
        %5866 = vmatpush1.msra.mxu0 0.0
        %5867 = vmatprep.subr.mxu0 0.0
        %5868 = vmatpush1.msra.mxu0 0.0
        %5869 = vmatprep.subr.mxu0 0.0
        %5870 = vmatpush1.msra.mxu0 0.0
        %5871 = vmatprep.subr.mxu0 0.0
        %5872 = vmatpush1.msra.mxu0 0.0
        %5873 = vmatprep.subr.mxu0 0.0
        %5874 = vmatpush1.msra.mxu0 0.0
        %5875 = vmatprep.subr.mxu0 0.0
        %5876 = vmatpush1.msra.mxu0 0.0
        %5877 = vmatprep.subr.mxu0 0.0
        %5878 = vmatpush1.msra.mxu0 0.0
        %5879 = vmatprep.subr.mxu0 0.0
        %5880 = vmatpush1.msra.mxu0 0.0
        %5881 = vmatprep.subr.mxu0 0.0
        %5882 = vmatpush1.msra.mxu0 0.0
        %5883 = vmatprep.subr.mxu0 0.0
        %5884 = vmatpush1.msra.mxu0 0.0
        %5885 = vmatprep.subr.mxu0 0.0
        %5886 = vmatpush1.msra.mxu0 0.0
        %5887 = vmatprep.subr.mxu0 0.0
        %5888 = vmatpush1.msra.mxu0 0.0
        %5889 = vmatprep.subr.mxu0 0.0
        %5890 = vmatpush1.msra.mxu0 0.0
        %5891 = vmatprep.subr.mxu0 0.0
        %5892 = vmatpush1.msra.mxu0 0.0
        %5893 = vmatprep.subr.mxu0 0.0
        %5894 = vmatpush1.msra.mxu0 0.0
        %5895 = vmatprep.subr.mxu0 0.0
        %5896 = vmatpush1.msra.mxu0 0.0
        %5897 = vmatprep.subr.mxu0 0.0
        %5898 = vmatpush1.msra.mxu0 0.0
        %5899 = vmatprep.subr.mxu0 0.0
        %5900 = vmatpush1.msra.mxu0 0.0
        %5901 = vmatprep.subr.mxu0 0.0
        %5902 = vmatpush1.msra.mxu0 0.0
        %5903 = vmatprep.subr.mxu0 0.0
        %5904 = vmatpush1.msra.mxu0 0.0
        %5905 = vmatprep.subr.mxu0 0.0
        %5906 = vmatpush1.msra.mxu0 0.0
        %5907 = vmatprep.subr.mxu0 0.0
        %5908 = vmatpush1.msra.mxu0 0.0
        %5909 = vmatprep.subr.mxu0 0.0
        %5910 = vmatpush1.msra.mxu0 0.0
        %5911 = vmatprep.subr.mxu0 0.0
        %5912 = vmatpush1.msra.mxu0 0.0
        %5913 = vmatprep.subr.mxu0 0.0
        %5914 = vmatpush1.msra.mxu0 0.0
        %5915 = vmatprep.subr.mxu0 0.0
        %5916 = vmatpush1.msra.mxu0 0.0
        %5917 = vmatprep.subr.mxu0 0.0
        %5918 = vmatpush1.msra.mxu0 0.0
        %5919 = vmatprep.subr.mxu0 0.0
        %5920 = vmatpush1.msra.mxu0 0.0
        %5921 = vmatprep.mubr.f32.mxu0 0.0
        %v5922 = vand.u32 %v5658, 4294901760
        %v5923 = vsub.f32 %v5658, %v5922
        %5924 = vmatmul.mubr.f32.gmra.mrb[0].mxu0 %v5923
        %v5925 = vpop.f32.mrb[0].mxu0
        %v5926 = vadd.f32 %v5840, %v5925
        %v5927 = vpop.f32.mrb[0].mxu0
        %5928 = vmatprep.mubr.f32.mxu0 0.0
        %v5929 = vand.u32 %v5661, 4294901760
        %v5930 = vsub.f32 %v5661, %v5929
        %5931 = vmatmul.mubr.f32.gmra.mrb[0].mxu0 %v5930
        %v5932 = vpop.f32.mrb[0].mxu0
        %v5933 = vadd.f32 %v5846, %v5932
        %v5934 = vpop.f32.mrb[0].mxu0
        %5935 = vdwg.mxu0
        %5936 = vmatprep.subr.mxu0 0.0
        %v5937 = vand.u32 %v5653, 4294901760
        %5938 = vmatpush1.msra.mxu0 %v5937
        %5939 = vmatprep.subr.mxu0 0.0
        %v5940 = vand.u32 %v5654, 4294901760
        %5941 = vmatpush1.msra.mxu0 %v5940
        %5942 = vmatprep.subr.mxu0 0.0
        %v5943 = vand.u32 %v5655, 4294901760
        %5944 = vmatpush1.msra.mxu0 %v5943
        %5945 = vmatprep.subr.mxu0 0.0
        %v5946 = vand.u32 %v5656, 4294901760
        %5947 = vmatpush1.msra.mxu0 %v5946
        %5948 = vmatprep.subr.mxu0 0.0
        %5949 = vmatpush1.msra.mxu0 0.0
        %5950 = vmatprep.subr.mxu0 0.0
        %5951 = vmatpush1.msra.mxu0 0.0
        %5952 = vmatprep.subr.mxu0 0.0
        %5953 = vmatpush1.msra.mxu0 0.0
        %5954 = vmatprep.subr.mxu0 0.0
        %5955 = vmatpush1.msra.mxu0 0.0
        %5956 = vmatprep.subr.mxu0 0.0
        %5957 = vmatpush1.msra.mxu0 0.0
        %5958 = vmatprep.subr.mxu0 0.0
        %5959 = vmatpush1.msra.mxu0 0.0
        %5960 = vmatprep.subr.mxu0 0.0
        %5961 = vmatpush1.msra.mxu0 0.0
        %5962 = vmatprep.subr.mxu0 0.0
        %5963 = vmatpush1.msra.mxu0 0.0
        %5964 = vmatprep.subr.mxu0 0.0
        %5965 = vmatpush1.msra.mxu0 0.0
        %5966 = vmatprep.subr.mxu0 0.0
        %5967 = vmatpush1.msra.mxu0 0.0
        %5968 = vmatprep.subr.mxu0 0.0
        %5969 = vmatpush1.msra.mxu0 0.0
        %5970 = vmatprep.subr.mxu0 0.0
        %5971 = vmatpush1.msra.mxu0 0.0
        %5972 = vmatprep.subr.mxu0 0.0
        %5973 = vmatpush1.msra.mxu0 0.0
        %5974 = vmatprep.subr.mxu0 0.0
        %5975 = vmatpush1.msra.mxu0 0.0
        %5976 = vmatprep.subr.mxu0 0.0
        %5977 = vmatpush1.msra.mxu0 0.0
        %5978 = vmatprep.subr.mxu0 0.0
        %5979 = vmatpush1.msra.mxu0 0.0
        %5980 = vmatprep.subr.mxu0 0.0
        %5981 = vmatpush1.msra.mxu0 0.0
        %5982 = vmatprep.subr.mxu0 0.0
        %5983 = vmatpush1.msra.mxu0 0.0
        %5984 = vmatprep.subr.mxu0 0.0
        %5985 = vmatpush1.msra.mxu0 0.0
        %5986 = vmatprep.subr.mxu0 0.0
        %5987 = vmatpush1.msra.mxu0 0.0
        %5988 = vmatprep.subr.mxu0 0.0
        %5989 = vmatpush1.msra.mxu0 0.0
        %5990 = vmatprep.subr.mxu0 0.0
        %5991 = vmatpush1.msra.mxu0 0.0
        %5992 = vmatprep.subr.mxu0 0.0
        %5993 = vmatpush1.msra.mxu0 0.0
        %5994 = vmatprep.subr.mxu0 0.0
        %5995 = vmatpush1.msra.mxu0 0.0
        %5996 = vmatprep.subr.mxu0 0.0
        %5997 = vmatpush1.msra.mxu0 0.0
        %5998 = vmatprep.subr.mxu0 0.0
        %5999 = vmatpush1.msra.mxu0 0.0
        %6000 = vmatprep.subr.mxu0 0.0
        %6001 = vmatpush1.msra.mxu0 0.0
        %6002 = vmatprep.subr.mxu0 0.0
        %6003 = vmatpush1.msra.mxu0 0.0
        %6004 = vmatprep.mubr.f32.mxu0 0.0
        %v6005 = vand.u32 %v5658, 4294901760
        %v6006 = vsub.f32 %v5658, %v6005
        %v6007 = vand.u32 %v6006, 4294901760
        %6008 = vmatmul.mubr.f32.gmra.mrb[0].mxu0 %v6007
        %v6009 = vpop.f32.mrb[0].mxu0
        %v6010 = vadd.f32 %v5926, %v6009
        %v6011 = vpop.f32.mrb[0].mxu0
        %6012 = vmatprep.mubr.f32.mxu0 0.0
        %v6013 = vand.u32 %v5661, 4294901760
        %v6014 = vsub.f32 %v5661, %v6013
        %v6015 = vand.u32 %v6014, 4294901760
        %6016 = vmatmul.mubr.f32.gmra.mrb[0].mxu0 %v6015
        %v6017 = vpop.f32.mrb[0].mxu0
        %v6018 = vadd.f32 %v5933, %v6017
        %v6019 = vpop.f32.mrb[0].mxu0
        %6020 = vdwg.mxu0
        %6021 = vmatprep.subr.mxu0 0.0
        %v6022 = vand.u32 %v5653, 4294901760
        %v6023 = vsub.f32 %v5653, %v6022
        %v6024 = vand.u32 %v6023, 4294901760
        %6025 = vmatpush1.msra.mxu0 %v6024
        %6026 = vmatprep.subr.mxu0 0.0
        %v6027 = vand.u32 %v5654, 4294901760
        %v6028 = vsub.f32 %v5654, %v6027
        %v6029 = vand.u32 %v6028, 4294901760
        %6030 = vmatpush1.msra.mxu0 %v6029
        %6031 = vmatprep.subr.mxu0 0.0
        %v6032 = vand.u32 %v5655, 4294901760
        %v6033 = vsub.f32 %v5655, %v6032
        %v6034 = vand.u32 %v6033, 4294901760
        %6035 = vmatpush1.msra.mxu0 %v6034
        %6036 = vmatprep.subr.mxu0 0.0
        %v6037 = vand.u32 %v5656, 4294901760
        %v6038 = vsub.f32 %v5656, %v6037
        %v6039 = vand.u32 %v6038, 4294901760
        %6040 = vmatpush1.msra.mxu0 %v6039
        %6041 = vmatprep.subr.mxu0 0.0
        %6042 = vmatpush1.msra.mxu0 0.0
        %6043 = vmatprep.subr.mxu0 0.0
        %6044 = vmatpush1.msra.mxu0 0.0
        %6045 = vmatprep.subr.mxu0 0.0
        %6046 = vmatpush1.msra.mxu0 0.0
        %6047 = vmatprep.subr.mxu0 0.0
        %6048 = vmatpush1.msra.mxu0 0.0
        %6049 = vmatprep.subr.mxu0 0.0
        %6050 = vmatpush1.msra.mxu0 0.0
        %6051 = vmatprep.subr.mxu0 0.0
        %6052 = vmatpush1.msra.mxu0 0.0
        %6053 = vmatprep.subr.mxu0 0.0
        %6054 = vmatpush1.msra.mxu0 0.0
        %6055 = vmatprep.subr.mxu0 0.0
        %6056 = vmatpush1.msra.mxu0 0.0
        %6057 = vmatprep.subr.mxu0 0.0
        %6058 = vmatpush1.msra.mxu0 0.0
        %6059 = vmatprep.subr.mxu0 0.0
        %6060 = vmatpush1.msra.mxu0 0.0
        %6061 = vmatprep.subr.mxu0 0.0
        %6062 = vmatpush1.msra.mxu0 0.0
        %6063 = vmatprep.subr.mxu0 0.0
        %6064 = vmatpush1.msra.mxu0 0.0
        %6065 = vmatprep.subr.mxu0 0.0
        %6066 = vmatpush1.msra.mxu0 0.0
        %6067 = vmatprep.subr.mxu0 0.0
        %6068 = vmatpush1.msra.mxu0 0.0
        %6069 = vmatprep.subr.mxu0 0.0
        %6070 = vmatpush1.msra.mxu0 0.0
        %6071 = vmatprep.subr.mxu0 0.0
        %6072 = vmatpush1.msra.mxu0 0.0
        %6073 = vmatprep.subr.mxu0 0.0
        %6074 = vmatpush1.msra.mxu0 0.0
        %6075 = vmatprep.subr.mxu0 0.0
        %6076 = vmatpush1.msra.mxu0 0.0
        %6077 = vmatprep.subr.mxu0 0.0
        %6078 = vmatpush1.msra.mxu0 0.0
        %6079 = vmatprep.subr.mxu0 0.0
        %6080 = vmatpush1.msra.mxu0 0.0
        %6081 = vmatprep.subr.mxu0 0.0
        %6082 = vmatpush1.msra.mxu0 0.0
        %6083 = vmatprep.subr.mxu0 0.0
        %6084 = vmatpush1.msra.mxu0 0.0
        %6085 = vmatprep.subr.mxu0 0.0
        %6086 = vmatpush1.msra.mxu0 0.0
        %6087 = vmatprep.subr.mxu0 0.0
        %6088 = vmatpush1.msra.mxu0 0.0
        %6089 = vmatprep.subr.mxu0 0.0
        %6090 = vmatpush1.msra.mxu0 0.0
        %6091 = vmatprep.subr.mxu0 0.0
        %6092 = vmatpush1.msra.mxu0 0.0
        %6093 = vmatprep.subr.mxu0 0.0
        %6094 = vmatpush1.msra.mxu0 0.0
        %6095 = vmatprep.subr.mxu0 0.0
        %6096 = vmatpush1.msra.mxu0 0.0
        %6097 = vmatprep.mubr.f32.mxu0 0.0
        %v6098 = vand.u32 %v5658, 4294901760
        %6099 = vmatmul.mubr.f32.gmra.mrb[0].mxu0 %v6098
        %v6100 = vpop.f32.mrb[0].mxu0
        %v6101 = vadd.f32 %v6010, %v6100
        %v6102 = vpop.f32.mrb[0].mxu0
        %6103 = vmatprep.mubr.f32.mxu0 0.0
        %v6104 = vand.u32 %v5661, 4294901760
        %6105 = vmatmul.mubr.f32.gmra.mrb[0].mxu0 %v6104
        %v6106 = vpop.f32.mrb[0].mxu0
        %v6107 = vadd.f32 %v6018, %v6106
        %v6108 = vpop.f32.mrb[0].mxu0
        %6109 = vdwg.mxu0
        %6110 = vmatprep.subr.mxu0 0.0
        %v6111 = vand.u32 %v5653, 4294901760
        %6112 = vmatpush1.msra.mxu0 %v6111
        %6113 = vmatprep.subr.mxu0 0.0
        %v6114 = vand.u32 %v5654, 4294901760
        %6115 = vmatpush1.msra.mxu0 %v6114
        %6116 = vmatprep.subr.mxu0 0.0
        %v6117 = vand.u32 %v5655, 4294901760
        %6118 = vmatpush1.msra.mxu0 %v6117
        %6119 = vmatprep.subr.mxu0 0.0
        %v6120 = vand.u32 %v5656, 4294901760
        %6121 = vmatpush1.msra.mxu0 %v6120
        %6122 = vmatprep.subr.mxu0 0.0
        %6123 = vmatpush1.msra.mxu0 0.0
        %6124 = vmatprep.subr.mxu0 0.0
        %6125 = vmatpush1.msra.mxu0 0.0
        %6126 = vmatprep.subr.mxu0 0.0
        %6127 = vmatpush1.msra.mxu0 0.0
        %6128 = vmatprep.subr.mxu0 0.0
        %6129 = vmatpush1.msra.mxu0 0.0
        %6130 = vmatprep.subr.mxu0 0.0
        %6131 = vmatpush1.msra.mxu0 0.0
        %6132 = vmatprep.subr.mxu0 0.0
        %6133 = vmatpush1.msra.mxu0 0.0
        %6134 = vmatprep.subr.mxu0 0.0
        %6135 = vmatpush1.msra.mxu0 0.0
        %6136 = vmatprep.subr.mxu0 0.0
        %6137 = vmatpush1.msra.mxu0 0.0
        %6138 = vmatprep.subr.mxu0 0.0
        %6139 = vmatpush1.msra.mxu0 0.0
        %6140 = vmatprep.subr.mxu0 0.0
        %6141 = vmatpush1.msra.mxu0 0.0
        %6142 = vmatprep.subr.mxu0 0.0
        %6143 = vmatpush1.msra.mxu0 0.0
        %6144 = vmatprep.subr.mxu0 0.0
        %6145 = vmatpush1.msra.mxu0 0.0
        %6146 = vmatprep.subr.mxu0 0.0
        %6147 = vmatpush1.msra.mxu0 0.0
        %6148 = vmatprep.subr.mxu0 0.0
        %6149 = vmatpush1.msra.mxu0 0.0
        %6150 = vmatprep.subr.mxu0 0.0
        %6151 = vmatpush1.msra.mxu0 0.0
        %6152 = vmatprep.subr.mxu0 0.0
        %6153 = vmatpush1.msra.mxu0 0.0
        %6154 = vmatprep.subr.mxu0 0.0
        %6155 = vmatpush1.msra.mxu0 0.0
        %6156 = vmatprep.subr.mxu0 0.0
        %6157 = vmatpush1.msra.mxu0 0.0
        %6158 = vmatprep.subr.mxu0 0.0
        %6159 = vmatpush1.msra.mxu0 0.0
        %6160 = vmatprep.subr.mxu0 0.0
        %6161 = vmatpush1.msra.mxu0 0.0
        %6162 = vmatprep.subr.mxu0 0.0
        %6163 = vmatpush1.msra.mxu0 0.0
        %6164 = vmatprep.subr.mxu0 0.0
        %6165 = vmatpush1.msra.mxu0 0.0
        %6166 = vmatprep.subr.mxu0 0.0
        %6167 = vmatpush1.msra.mxu0 0.0
        %6168 = vmatprep.subr.mxu0 0.0
        %6169 = vmatpush1.msra.mxu0 0.0
        %6170 = vmatprep.subr.mxu0 0.0
        %6171 = vmatpush1.msra.mxu0 0.0
        %6172 = vmatprep.subr.mxu0 0.0
        %6173 = vmatpush1.msra.mxu0 0.0
        %6174 = vmatprep.subr.mxu0 0.0
        %6175 = vmatpush1.msra.mxu0 0.0
        %6176 = vmatprep.subr.mxu0 0.0
        %6177 = vmatpush1.msra.mxu0 0.0
        %6178 = vmatprep.mubr.f32.mxu0 0.0
        %v6179 = vand.u32 %v5658, 4294901760
        %6180 = vmatmul.mubr.f32.gmra.mrb[0].mxu0 %v6179
        %v6181 = vpop.f32.mrb[0].mxu0
        %v6182 = vadd.f32 %v6101, %v6181
        %v6183 = vpop.f32.mrb[0].mxu0
        %6184 = vmatprep.mubr.f32.mxu0 0.0
        %v6185 = vand.u32 %v5661, 4294901760
        %6186 = vmatmul.mubr.f32.gmra.mrb[0].mxu0 %v6185
        %v6187 = vpop.f32.mrb[0].mxu0
        %v6188 = vadd.f32 %v6107, %v6187
        %v6189 = vpop.f32.mrb[0].mxu0
        %6190 = vdwg.mxu0
        %v6191 = vadd.f32 %v5648, %v6182
        %v6192 = vadd.f32 %v5649, %v6188
        %v6193 = vld [vmem:[#allocation3 + $0x5] sm:$0xff]
        %v6194 = vld [vmem:[#allocation3 + $0xd] sm:$0xff]
        %s6195 = scalar_lea.vmem [#allocation17], 160
        %v6196 = vld [vmem:[%s6195] sm:$0xff]
        %v6197 = vld [vmem:[%s6195 + $0x8] sm:$0xff]
        %v6198 = vld [vmem:[%s6195 + $0x10] sm:$0xff]
        %v6199 = vld [vmem:[%s6195 + $0x18] sm:$0xff]
        %v6201 = vsel %vm3495, %v6193, 0
        %v6204 = vsel %vm3495, %v6194, 0
        %6206 = vmatprep.subr.mxu0 0.0
        %v6207 = vand.u32 %v6196, 4294901760
        %6208 = vmatpush1.msra.mxu0 %v6207
        %6209 = vmatprep.subr.mxu0 0.0
        %v6210 = vand.u32 %v6197, 4294901760
        %6211 = vmatpush1.msra.mxu0 %v6210
        %6212 = vmatprep.subr.mxu0 0.0
        %v6213 = vand.u32 %v6198, 4294901760
        %6214 = vmatpush1.msra.mxu0 %v6213
        %6215 = vmatprep.subr.mxu0 0.0
        %v6216 = vand.u32 %v6199, 4294901760
        %6217 = vmatpush1.msra.mxu0 %v6216
        %6218 = vmatprep.subr.mxu0 0.0
        %6219 = vmatpush1.msra.mxu0 0.0
        %6220 = vmatprep.subr.mxu0 0.0
        %6221 = vmatpush1.msra.mxu0 0.0
        %6222 = vmatprep.subr.mxu0 0.0
        %6223 = vmatpush1.msra.mxu0 0.0
        %6224 = vmatprep.subr.mxu0 0.0
        %6225 = vmatpush1.msra.mxu0 0.0
        %6226 = vmatprep.subr.mxu0 0.0
        %6227 = vmatpush1.msra.mxu0 0.0
        %6228 = vmatprep.subr.mxu0 0.0
        %6229 = vmatpush1.msra.mxu0 0.0
        %6230 = vmatprep.subr.mxu0 0.0
        %6231 = vmatpush1.msra.mxu0 0.0
        %6232 = vmatprep.subr.mxu0 0.0
        %6233 = vmatpush1.msra.mxu0 0.0
        %6234 = vmatprep.subr.mxu0 0.0
        %6235 = vmatpush1.msra.mxu0 0.0
        %6236 = vmatprep.subr.mxu0 0.0
        %6237 = vmatpush1.msra.mxu0 0.0
        %6238 = vmatprep.subr.mxu0 0.0
        %6239 = vmatpush1.msra.mxu0 0.0
        %6240 = vmatprep.subr.mxu0 0.0
        %6241 = vmatpush1.msra.mxu0 0.0
        %6242 = vmatprep.subr.mxu0 0.0
        %6243 = vmatpush1.msra.mxu0 0.0
        %6244 = vmatprep.subr.mxu0 0.0
        %6245 = vmatpush1.msra.mxu0 0.0
        %6246 = vmatprep.subr.mxu0 0.0
        %6247 = vmatpush1.msra.mxu0 0.0
        %6248 = vmatprep.subr.mxu0 0.0
        %6249 = vmatpush1.msra.mxu0 0.0
        %6250 = vmatprep.subr.mxu0 0.0
        %6251 = vmatpush1.msra.mxu0 0.0
        %6252 = vmatprep.subr.mxu0 0.0
        %6253 = vmatpush1.msra.mxu0 0.0
        %6254 = vmatprep.subr.mxu0 0.0
        %6255 = vmatpush1.msra.mxu0 0.0
        %6256 = vmatprep.subr.mxu0 0.0
        %6257 = vmatpush1.msra.mxu0 0.0
        %6258 = vmatprep.subr.mxu0 0.0
        %6259 = vmatpush1.msra.mxu0 0.0
        %6260 = vmatprep.subr.mxu0 0.0
        %6261 = vmatpush1.msra.mxu0 0.0
        %6262 = vmatprep.subr.mxu0 0.0
        %6263 = vmatpush1.msra.mxu0 0.0
        %6264 = vmatprep.subr.mxu0 0.0
        %6265 = vmatpush1.msra.mxu0 0.0
        %6266 = vmatprep.subr.mxu0 0.0
        %6267 = vmatpush1.msra.mxu0 0.0
        %6268 = vmatprep.subr.mxu0 0.0
        %6269 = vmatpush1.msra.mxu0 0.0
        %6270 = vmatprep.subr.mxu0 0.0
        %6271 = vmatpush1.msra.mxu0 0.0
        %6272 = vmatprep.subr.mxu0 0.0
        %6273 = vmatpush1.msra.mxu0 0.0
        %6274 = vmatprep.mubr.f32.mxu0 0.0
        %v6275 = vand.u32 %v6201, 4294901760
        %v6276 = vsub.f32 %v6201, %v6275
        %v6277 = vand.u32 %v6276, 4294901760
        %v6278 = vsub.f32 %v6276, %v6277
        %v6279 = vand.u32 %v6278, 4294901760
        %6280 = vmatmul.mubr.f32.gmra.mrb[0].mxu0 %v6279
        %v6281 = vpop.f32.mrb[0].mxu0
        %v6282 = vadd.f32 0.0, %v6281
        %v6283 = vpop.f32.mrb[0].mxu0
        %6284 = vmatprep.mubr.f32.mxu0 0.0
        %v6285 = vand.u32 %v6204, 4294901760
        %v6286 = vsub.f32 %v6204, %v6285
        %v6287 = vand.u32 %v6286, 4294901760
        %v6288 = vsub.f32 %v6286, %v6287
        %v6289 = vand.u32 %v6288, 4294901760
        %6290 = vmatmul.mubr.f32.gmra.mrb[0].mxu0 %v6289
        %v6291 = vpop.f32.mrb[0].mxu0
        %v6292 = vadd.f32 0.0, %v6291
        %v6293 = vpop.f32.mrb[0].mxu0
        %6294 = vdwg.mxu0
        %6295 = vmatprep.subr.mxu0 0.0
        %v6296 = vand.u32 %v6196, 4294901760
        %v6297 = vsub.f32 %v6196, %v6296
        %v6298 = vand.u32 %v6297, 4294901760
        %v6299 = vsub.f32 %v6297, %v6298
        %v6300 = vand.u32 %v6299, 4294901760
        %6301 = vmatpush1.msra.mxu0 %v6300
        %6302 = vmatprep.subr.mxu0 0.0
        %v6303 = vand.u32 %v6197, 4294901760
        %v6304 = vsub.f32 %v6197, %v6303
        %v6305 = vand.u32 %v6304, 4294901760
        %v6306 = vsub.f32 %v6304, %v6305
        %v6307 = vand.u32 %v6306, 4294901760
        %6308 = vmatpush1.msra.mxu0 %v6307
        %6309 = vmatprep.subr.mxu0 0.0
        %v6310 = vand.u32 %v6198, 4294901760
        %v6311 = vsub.f32 %v6198, %v6310
        %v6312 = vand.u32 %v6311, 4294901760
        %v6313 = vsub.f32 %v6311, %v6312
        %v6314 = vand.u32 %v6313, 4294901760
        %6315 = vmatpush1.msra.mxu0 %v6314
        %6316 = vmatprep.subr.mxu0 0.0
        %v6317 = vand.u32 %v6199, 4294901760
        %v6318 = vsub.f32 %v6199, %v6317
        %v6319 = vand.u32 %v6318, 4294901760
        %v6320 = vsub.f32 %v6318, %v6319
        %v6321 = vand.u32 %v6320, 4294901760
        %6322 = vmatpush1.msra.mxu0 %v6321
        %6323 = vmatprep.subr.mxu0 0.0
        %6324 = vmatpush1.msra.mxu0 0.0
        %6325 = vmatprep.subr.mxu0 0.0
        %6326 = vmatpush1.msra.mxu0 0.0
        %6327 = vmatprep.subr.mxu0 0.0
        %6328 = vmatpush1.msra.mxu0 0.0
        %6329 = vmatprep.subr.mxu0 0.0
        %6330 = vmatpush1.msra.mxu0 0.0
        %6331 = vmatprep.subr.mxu0 0.0
        %6332 = vmatpush1.msra.mxu0 0.0
        %6333 = vmatprep.subr.mxu0 0.0
        %6334 = vmatpush1.msra.mxu0 0.0
        %6335 = vmatprep.subr.mxu0 0.0
        %6336 = vmatpush1.msra.mxu0 0.0
        %6337 = vmatprep.subr.mxu0 0.0
        %6338 = vmatpush1.msra.mxu0 0.0
        %6339 = vmatprep.subr.mxu0 0.0
        %6340 = vmatpush1.msra.mxu0 0.0
        %6341 = vmatprep.subr.mxu0 0.0
        %6342 = vmatpush1.msra.mxu0 0.0
        %6343 = vmatprep.subr.mxu0 0.0
        %6344 = vmatpush1.msra.mxu0 0.0
        %6345 = vmatprep.subr.mxu0 0.0
        %6346 = vmatpush1.msra.mxu0 0.0
        %6347 = vmatprep.subr.mxu0 0.0
        %6348 = vmatpush1.msra.mxu0 0.0
        %6349 = vmatprep.subr.mxu0 0.0
        %6350 = vmatpush1.msra.mxu0 0.0
        %6351 = vmatprep.subr.mxu0 0.0
        %6352 = vmatpush1.msra.mxu0 0.0
        %6353 = vmatprep.subr.mxu0 0.0
        %6354 = vmatpush1.msra.mxu0 0.0
        %6355 = vmatprep.subr.mxu0 0.0
        %6356 = vmatpush1.msra.mxu0 0.0
        %6357 = vmatprep.subr.mxu0 0.0
        %6358 = vmatpush1.msra.mxu0 0.0
        %6359 = vmatprep.subr.mxu0 0.0
        %6360 = vmatpush1.msra.mxu0 0.0
        %6361 = vmatprep.subr.mxu0 0.0
        %6362 = vmatpush1.msra.mxu0 0.0
        %6363 = vmatprep.subr.mxu0 0.0
        %6364 = vmatpush1.msra.mxu0 0.0
        %6365 = vmatprep.subr.mxu0 0.0
        %6366 = vmatpush1.msra.mxu0 0.0
        %6367 = vmatprep.subr.mxu0 0.0
        %6368 = vmatpush1.msra.mxu0 0.0
        %6369 = vmatprep.subr.mxu0 0.0
        %6370 = vmatpush1.msra.mxu0 0.0
        %6371 = vmatprep.subr.mxu0 0.0
        %6372 = vmatpush1.msra.mxu0 0.0
        %6373 = vmatprep.subr.mxu0 0.0
        %6374 = vmatpush1.msra.mxu0 0.0
        %6375 = vmatprep.subr.mxu0 0.0
        %6376 = vmatpush1.msra.mxu0 0.0
        %6377 = vmatprep.subr.mxu0 0.0
        %6378 = vmatpush1.msra.mxu0 0.0
        %6379 = vmatprep.mubr.f32.mxu0 0.0
        %v6380 = vand.u32 %v6201, 4294901760
        %6381 = vmatmul.mubr.f32.gmra.mrb[0].mxu0 %v6380
        %v6382 = vpop.f32.mrb[0].mxu0
        %v6383 = vadd.f32 %v6282, %v6382
        %v6384 = vpop.f32.mrb[0].mxu0
        %6385 = vmatprep.mubr.f32.mxu0 0.0
        %v6386 = vand.u32 %v6204, 4294901760
        %6387 = vmatmul.mubr.f32.gmra.mrb[0].mxu0 %v6386
        %v6388 = vpop.f32.mrb[0].mxu0
        %v6389 = vadd.f32 %v6292, %v6388
        %v6390 = vpop.f32.mrb[0].mxu0
        %6391 = vdwg.mxu0
        %6392 = vmatprep.subr.mxu0 0.0
        %v6393 = vand.u32 %v6196, 4294901760
        %v6394 = vsub.f32 %v6196, %v6393
        %6395 = vmatpush1.msra.mxu0 %v6394
        %6396 = vmatprep.subr.mxu0 0.0
        %v6397 = vand.u32 %v6197, 4294901760
        %v6398 = vsub.f32 %v6197, %v6397
        %6399 = vmatpush1.msra.mxu0 %v6398
        %6400 = vmatprep.subr.mxu0 0.0
        %v6401 = vand.u32 %v6198, 4294901760
        %v6402 = vsub.f32 %v6198, %v6401
        %6403 = vmatpush1.msra.mxu0 %v6402
        %6404 = vmatprep.subr.mxu0 0.0
        %v6405 = vand.u32 %v6199, 4294901760
        %v6406 = vsub.f32 %v6199, %v6405
        %6407 = vmatpush1.msra.mxu0 %v6406
        %6408 = vmatprep.subr.mxu0 0.0
        %6409 = vmatpush1.msra.mxu0 0.0
        %6410 = vmatprep.subr.mxu0 0.0
        %6411 = vmatpush1.msra.mxu0 0.0
        %6412 = vmatprep.subr.mxu0 0.0
        %6413 = vmatpush1.msra.mxu0 0.0
        %6414 = vmatprep.subr.mxu0 0.0
        %6415 = vmatpush1.msra.mxu0 0.0
        %6416 = vmatprep.subr.mxu0 0.0
        %6417 = vmatpush1.msra.mxu0 0.0
        %6418 = vmatprep.subr.mxu0 0.0
        %6419 = vmatpush1.msra.mxu0 0.0
        %6420 = vmatprep.subr.mxu0 0.0
        %6421 = vmatpush1.msra.mxu0 0.0
        %6422 = vmatprep.subr.mxu0 0.0
        %6423 = vmatpush1.msra.mxu0 0.0
        %6424 = vmatprep.subr.mxu0 0.0
        %6425 = vmatpush1.msra.mxu0 0.0
        %6426 = vmatprep.subr.mxu0 0.0
        %6427 = vmatpush1.msra.mxu0 0.0
        %6428 = vmatprep.subr.mxu0 0.0
        %6429 = vmatpush1.msra.mxu0 0.0
        %6430 = vmatprep.subr.mxu0 0.0
        %6431 = vmatpush1.msra.mxu0 0.0
        %6432 = vmatprep.subr.mxu0 0.0
        %6433 = vmatpush1.msra.mxu0 0.0
        %6434 = vmatprep.subr.mxu0 0.0
        %6435 = vmatpush1.msra.mxu0 0.0
        %6436 = vmatprep.subr.mxu0 0.0
        %6437 = vmatpush1.msra.mxu0 0.0
        %6438 = vmatprep.subr.mxu0 0.0
        %6439 = vmatpush1.msra.mxu0 0.0
        %6440 = vmatprep.subr.mxu0 0.0
        %6441 = vmatpush1.msra.mxu0 0.0
        %6442 = vmatprep.subr.mxu0 0.0
        %6443 = vmatpush1.msra.mxu0 0.0
        %6444 = vmatprep.subr.mxu0 0.0
        %6445 = vmatpush1.msra.mxu0 0.0
        %6446 = vmatprep.subr.mxu0 0.0
        %6447 = vmatpush1.msra.mxu0 0.0
        %6448 = vmatprep.subr.mxu0 0.0
        %6449 = vmatpush1.msra.mxu0 0.0
        %6450 = vmatprep.subr.mxu0 0.0
        %6451 = vmatpush1.msra.mxu0 0.0
        %6452 = vmatprep.subr.mxu0 0.0
        %6453 = vmatpush1.msra.mxu0 0.0
        %6454 = vmatprep.subr.mxu0 0.0
        %6455 = vmatpush1.msra.mxu0 0.0
        %6456 = vmatprep.subr.mxu0 0.0
        %6457 = vmatpush1.msra.mxu0 0.0
        %6458 = vmatprep.subr.mxu0 0.0
        %6459 = vmatpush1.msra.mxu0 0.0
        %6460 = vmatprep.subr.mxu0 0.0
        %6461 = vmatpush1.msra.mxu0 0.0
        %6462 = vmatprep.subr.mxu0 0.0
        %6463 = vmatpush1.msra.mxu0 0.0
        %6464 = vmatprep.mubr.f32.mxu0 0.0
        %v6465 = vand.u32 %v6201, 4294901760
        %v6466 = vsub.f32 %v6201, %v6465
        %6467 = vmatmul.mubr.f32.gmra.mrb[0].mxu0 %v6466
        %v6468 = vpop.f32.mrb[0].mxu0
        %v6469 = vadd.f32 %v6383, %v6468
        %v6470 = vpop.f32.mrb[0].mxu0
        %6471 = vmatprep.mubr.f32.mxu0 0.0
        %v6472 = vand.u32 %v6204, 4294901760
        %v6473 = vsub.f32 %v6204, %v6472
        %6474 = vmatmul.mubr.f32.gmra.mrb[0].mxu0 %v6473
        %v6475 = vpop.f32.mrb[0].mxu0
        %v6476 = vadd.f32 %v6389, %v6475
        %v6477 = vpop.f32.mrb[0].mxu0
        %6478 = vdwg.mxu0
        %6479 = vmatprep.subr.mxu0 0.0
        %v6480 = vand.u32 %v6196, 4294901760
        %6481 = vmatpush1.msra.mxu0 %v6480
        %6482 = vmatprep.subr.mxu0 0.0
        %v6483 = vand.u32 %v6197, 4294901760
        %6484 = vmatpush1.msra.mxu0 %v6483
        %6485 = vmatprep.subr.mxu0 0.0
        %v6486 = vand.u32 %v6198, 4294901760
        %6487 = vmatpush1.msra.mxu0 %v6486
        %6488 = vmatprep.subr.mxu0 0.0
        %v6489 = vand.u32 %v6199, 4294901760
        %6490 = vmatpush1.msra.mxu0 %v6489
        %6491 = vmatprep.subr.mxu0 0.0
        %6492 = vmatpush1.msra.mxu0 0.0
        %6493 = vmatprep.subr.mxu0 0.0
        %6494 = vmatpush1.msra.mxu0 0.0
        %6495 = vmatprep.subr.mxu0 0.0
        %6496 = vmatpush1.msra.mxu0 0.0
        %6497 = vmatprep.subr.mxu0 0.0
        %6498 = vmatpush1.msra.mxu0 0.0
        %6499 = vmatprep.subr.mxu0 0.0
        %6500 = vmatpush1.msra.mxu0 0.0
        %6501 = vmatprep.subr.mxu0 0.0
        %6502 = vmatpush1.msra.mxu0 0.0
        %6503 = vmatprep.subr.mxu0 0.0
        %6504 = vmatpush1.msra.mxu0 0.0
        %6505 = vmatprep.subr.mxu0 0.0
        %6506 = vmatpush1.msra.mxu0 0.0
        %6507 = vmatprep.subr.mxu0 0.0
        %6508 = vmatpush1.msra.mxu0 0.0
        %6509 = vmatprep.subr.mxu0 0.0
        %6510 = vmatpush1.msra.mxu0 0.0
        %6511 = vmatprep.subr.mxu0 0.0
        %6512 = vmatpush1.msra.mxu0 0.0
        %6513 = vmatprep.subr.mxu0 0.0
        %6514 = vmatpush1.msra.mxu0 0.0
        %6515 = vmatprep.subr.mxu0 0.0
        %6516 = vmatpush1.msra.mxu0 0.0
        %6517 = vmatprep.subr.mxu0 0.0
        %6518 = vmatpush1.msra.mxu0 0.0
        %6519 = vmatprep.subr.mxu0 0.0
        %6520 = vmatpush1.msra.mxu0 0.0
        %6521 = vmatprep.subr.mxu0 0.0
        %6522 = vmatpush1.msra.mxu0 0.0
        %6523 = vmatprep.subr.mxu0 0.0
        %6524 = vmatpush1.msra.mxu0 0.0
        %6525 = vmatprep.subr.mxu0 0.0
        %6526 = vmatpush1.msra.mxu0 0.0
        %6527 = vmatprep.subr.mxu0 0.0
        %6528 = vmatpush1.msra.mxu0 0.0
        %6529 = vmatprep.subr.mxu0 0.0
        %6530 = vmatpush1.msra.mxu0 0.0
        %6531 = vmatprep.subr.mxu0 0.0
        %6532 = vmatpush1.msra.mxu0 0.0
        %6533 = vmatprep.subr.mxu0 0.0
        %6534 = vmatpush1.msra.mxu0 0.0
        %6535 = vmatprep.subr.mxu0 0.0
        %6536 = vmatpush1.msra.mxu0 0.0
        %6537 = vmatprep.subr.mxu0 0.0
        %6538 = vmatpush1.msra.mxu0 0.0
        %6539 = vmatprep.subr.mxu0 0.0
        %6540 = vmatpush1.msra.mxu0 0.0
        %6541 = vmatprep.subr.mxu0 0.0
        %6542 = vmatpush1.msra.mxu0 0.0
        %6543 = vmatprep.subr.mxu0 0.0
        %6544 = vmatpush1.msra.mxu0 0.0
        %6545 = vmatprep.subr.mxu0 0.0
        %6546 = vmatpush1.msra.mxu0 0.0
        %6547 = vmatprep.mubr.f32.mxu0 0.0
        %v6548 = vand.u32 %v6201, 4294901760
        %v6549 = vsub.f32 %v6201, %v6548
        %v6550 = vand.u32 %v6549, 4294901760
        %6551 = vmatmul.mubr.f32.gmra.mrb[0].mxu0 %v6550
        %v6552 = vpop.f32.mrb[0].mxu0
        %v6553 = vadd.f32 %v6469, %v6552
        %v6554 = vpop.f32.mrb[0].mxu0
        %6555 = vmatprep.mubr.f32.mxu0 0.0
        %v6556 = vand.u32 %v6204, 4294901760
        %v6557 = vsub.f32 %v6204, %v6556
        %v6558 = vand.u32 %v6557, 4294901760
        %6559 = vmatmul.mubr.f32.gmra.mrb[0].mxu0 %v6558
        %v6560 = vpop.f32.mrb[0].mxu0
        %v6561 = vadd.f32 %v6476, %v6560
        %v6562 = vpop.f32.mrb[0].mxu0
        %6563 = vdwg.mxu0
        %6564 = vmatprep.subr.mxu0 0.0
        %v6565 = vand.u32 %v6196, 4294901760
        %v6566 = vsub.f32 %v6196, %v6565
        %v6567 = vand.u32 %v6566, 4294901760
        %6568 = vmatpush1.msra.mxu0 %v6567
        %6569 = vmatprep.subr.mxu0 0.0
        %v6570 = vand.u32 %v6197, 4294901760
        %v6571 = vsub.f32 %v6197, %v6570
        %v6572 = vand.u32 %v6571, 4294901760
        %6573 = vmatpush1.msra.mxu0 %v6572
        %6574 = vmatprep.subr.mxu0 0.0
        %v6575 = vand.u32 %v6198, 4294901760
        %v6576 = vsub.f32 %v6198, %v6575
        %v6577 = vand.u32 %v6576, 4294901760
        %6578 = vmatpush1.msra.mxu0 %v6577
        %6579 = vmatprep.subr.mxu0 0.0
        %v6580 = vand.u32 %v6199, 4294901760
        %v6581 = vsub.f32 %v6199, %v6580
        %v6582 = vand.u32 %v6581, 4294901760
        %6583 = vmatpush1.msra.mxu0 %v6582
        %6584 = vmatprep.subr.mxu0 0.0
        %6585 = vmatpush1.msra.mxu0 0.0
        %6586 = vmatprep.subr.mxu0 0.0
        %6587 = vmatpush1.msra.mxu0 0.0
        %6588 = vmatprep.subr.mxu0 0.0
        %6589 = vmatpush1.msra.mxu0 0.0
        %6590 = vmatprep.subr.mxu0 0.0
        %6591 = vmatpush1.msra.mxu0 0.0
        %6592 = vmatprep.subr.mxu0 0.0
        %6593 = vmatpush1.msra.mxu0 0.0
        %6594 = vmatprep.subr.mxu0 0.0
        %6595 = vmatpush1.msra.mxu0 0.0
        %6596 = vmatprep.subr.mxu0 0.0
        %6597 = vmatpush1.msra.mxu0 0.0
        %6598 = vmatprep.subr.mxu0 0.0
        %6599 = vmatpush1.msra.mxu0 0.0
        %6600 = vmatprep.subr.mxu0 0.0
        %6601 = vmatpush1.msra.mxu0 0.0
        %6602 = vmatprep.subr.mxu0 0.0
        %6603 = vmatpush1.msra.mxu0 0.0
        %6604 = vmatprep.subr.mxu0 0.0
        %6605 = vmatpush1.msra.mxu0 0.0
        %6606 = vmatprep.subr.mxu0 0.0
        %6607 = vmatpush1.msra.mxu0 0.0
        %6608 = vmatprep.subr.mxu0 0.0
        %6609 = vmatpush1.msra.mxu0 0.0
        %6610 = vmatprep.subr.mxu0 0.0
        %6611 = vmatpush1.msra.mxu0 0.0
        %6612 = vmatprep.subr.mxu0 0.0
        %6613 = vmatpush1.msra.mxu0 0.0
        %6614 = vmatprep.subr.mxu0 0.0
        %6615 = vmatpush1.msra.mxu0 0.0
        %6616 = vmatprep.subr.mxu0 0.0
        %6617 = vmatpush1.msra.mxu0 0.0
        %6618 = vmatprep.subr.mxu0 0.0
        %6619 = vmatpush1.msra.mxu0 0.0
        %6620 = vmatprep.subr.mxu0 0.0
        %6621 = vmatpush1.msra.mxu0 0.0
        %6622 = vmatprep.subr.mxu0 0.0
        %6623 = vmatpush1.msra.mxu0 0.0
        %6624 = vmatprep.subr.mxu0 0.0
        %6625 = vmatpush1.msra.mxu0 0.0
        %6626 = vmatprep.subr.mxu0 0.0
        %6627 = vmatpush1.msra.mxu0 0.0
        %6628 = vmatprep.subr.mxu0 0.0
        %6629 = vmatpush1.msra.mxu0 0.0
        %6630 = vmatprep.subr.mxu0 0.0
        %6631 = vmatpush1.msra.mxu0 0.0
        %6632 = vmatprep.subr.mxu0 0.0
        %6633 = vmatpush1.msra.mxu0 0.0
        %6634 = vmatprep.subr.mxu0 0.0
        %6635 = vmatpush1.msra.mxu0 0.0
        %6636 = vmatprep.subr.mxu0 0.0
        %6637 = vmatpush1.msra.mxu0 0.0
        %6638 = vmatprep.subr.mxu0 0.0
        %6639 = vmatpush1.msra.mxu0 0.0
        %6640 = vmatprep.mubr.f32.mxu0 0.0
        %v6641 = vand.u32 %v6201, 4294901760
        %6642 = vmatmul.mubr.f32.gmra.mrb[0].mxu0 %v6641
        %v6643 = vpop.f32.mrb[0].mxu0
        %v6644 = vadd.f32 %v6553, %v6643
        %v6645 = vpop.f32.mrb[0].mxu0
        %6646 = vmatprep.mubr.f32.mxu0 0.0
        %v6647 = vand.u32 %v6204, 4294901760
        %6648 = vmatmul.mubr.f32.gmra.mrb[0].mxu0 %v6647
        %v6649 = vpop.f32.mrb[0].mxu0
        %v6650 = vadd.f32 %v6561, %v6649
        %v6651 = vpop.f32.mrb[0].mxu0
        %6652 = vdwg.mxu0
        %6653 = vmatprep.subr.mxu0 0.0
        %v6654 = vand.u32 %v6196, 4294901760
        %6655 = vmatpush1.msra.mxu0 %v6654
        %6656 = vmatprep.subr.mxu0 0.0
        %v6657 = vand.u32 %v6197, 4294901760
        %6658 = vmatpush1.msra.mxu0 %v6657
        %6659 = vmatprep.subr.mxu0 0.0
        %v6660 = vand.u32 %v6198, 4294901760
        %6661 = vmatpush1.msra.mxu0 %v6660
        %6662 = vmatprep.subr.mxu0 0.0
        %v6663 = vand.u32 %v6199, 4294901760
        %6664 = vmatpush1.msra.mxu0 %v6663
        %6665 = vmatprep.subr.mxu0 0.0
        %6666 = vmatpush1.msra.mxu0 0.0
        %6667 = vmatprep.subr.mxu0 0.0
        %6668 = vmatpush1.msra.mxu0 0.0
        %6669 = vmatprep.subr.mxu0 0.0
        %6670 = vmatpush1.msra.mxu0 0.0
        %6671 = vmatprep.subr.mxu0 0.0
        %6672 = vmatpush1.msra.mxu0 0.0
        %6673 = vmatprep.subr.mxu0 0.0
        %6674 = vmatpush1.msra.mxu0 0.0
        %6675 = vmatprep.subr.mxu0 0.0
        %6676 = vmatpush1.msra.mxu0 0.0
        %6677 = vmatprep.subr.mxu0 0.0
        %6678 = vmatpush1.msra.mxu0 0.0
        %6679 = vmatprep.subr.mxu0 0.0
        %6680 = vmatpush1.msra.mxu0 0.0
        %6681 = vmatprep.subr.mxu0 0.0
        %6682 = vmatpush1.msra.mxu0 0.0
        %6683 = vmatprep.subr.mxu0 0.0
        %6684 = vmatpush1.msra.mxu0 0.0
        %6685 = vmatprep.subr.mxu0 0.0
        %6686 = vmatpush1.msra.mxu0 0.0
        %6687 = vmatprep.subr.mxu0 0.0
        %6688 = vmatpush1.msra.mxu0 0.0
        %6689 = vmatprep.subr.mxu0 0.0
        %6690 = vmatpush1.msra.mxu0 0.0
        %6691 = vmatprep.subr.mxu0 0.0
        %6692 = vmatpush1.msra.mxu0 0.0
        %6693 = vmatprep.subr.mxu0 0.0
        %6694 = vmatpush1.msra.mxu0 0.0
        %6695 = vmatprep.subr.mxu0 0.0
        %6696 = vmatpush1.msra.mxu0 0.0
        %6697 = vmatprep.subr.mxu0 0.0
        %6698 = vmatpush1.msra.mxu0 0.0
        %6699 = vmatprep.subr.mxu0 0.0
        %6700 = vmatpush1.msra.mxu0 0.0
        %6701 = vmatprep.subr.mxu0 0.0
        %6702 = vmatpush1.msra.mxu0 0.0
        %6703 = vmatprep.subr.mxu0 0.0
        %6704 = vmatpush1.msra.mxu0 0.0
        %6705 = vmatprep.subr.mxu0 0.0
        %6706 = vmatpush1.msra.mxu0 0.0
        %6707 = vmatprep.subr.mxu0 0.0
        %6708 = vmatpush1.msra.mxu0 0.0
        %6709 = vmatprep.subr.mxu0 0.0
        %6710 = vmatpush1.msra.mxu0 0.0
        %6711 = vmatprep.subr.mxu0 0.0
        %6712 = vmatpush1.msra.mxu0 0.0
        %6713 = vmatprep.subr.mxu0 0.0
        %6714 = vmatpush1.msra.mxu0 0.0
        %6715 = vmatprep.subr.mxu0 0.0
        %6716 = vmatpush1.msra.mxu0 0.0
        %6717 = vmatprep.subr.mxu0 0.0
        %6718 = vmatpush1.msra.mxu0 0.0
        %6719 = vmatprep.subr.mxu0 0.0
        %6720 = vmatpush1.msra.mxu0 0.0
        %6721 = vmatprep.mubr.f32.mxu0 0.0
        %v6722 = vand.u32 %v6201, 4294901760
        %6723 = vmatmul.mubr.f32.gmra.mrb[0].mxu0 %v6722
        %v6724 = vpop.f32.mrb[0].mxu0
        %v6725 = vadd.f32 %v6644, %v6724
        %v6726 = vpop.f32.mrb[0].mxu0
        %6727 = vmatprep.mubr.f32.mxu0 0.0
        %v6728 = vand.u32 %v6204, 4294901760
        %6729 = vmatmul.mubr.f32.gmra.mrb[0].mxu0 %v6728
        %v6730 = vpop.f32.mrb[0].mxu0
        %v6731 = vadd.f32 %v6650, %v6730
        %v6732 = vpop.f32.mrb[0].mxu0
        %6733 = vdwg.mxu0
        %v6734 = vadd.f32 %v6191, %v6725
        %v6735 = vadd.f32 %v6192, %v6731
        %v6736 = vld [vmem:[#allocation3 + $0x6] sm:$0xff]
        %v6737 = vld [vmem:[#allocation3 + $0xe] sm:$0xff]
        %s6738 = scalar_lea.vmem [#allocation17], 192
        %v6739 = vld [vmem:[%s6738] sm:$0xff]
        %v6740 = vld [vmem:[%s6738 + $0x8] sm:$0xff]
        %v6741 = vld [vmem:[%s6738 + $0x10] sm:$0xff]
        %v6742 = vld [vmem:[%s6738 + $0x18] sm:$0xff]
        %v6744 = vsel %vm3495, %v6736, 0
        %v6747 = vsel %vm3495, %v6737, 0
        %6749 = vmatprep.subr.mxu0 0.0
        %v6750 = vand.u32 %v6739, 4294901760
        %6751 = vmatpush1.msra.mxu0 %v6750
        %6752 = vmatprep.subr.mxu0 0.0
        %v6753 = vand.u32 %v6740, 4294901760
        %6754 = vmatpush1.msra.mxu0 %v6753
        %6755 = vmatprep.subr.mxu0 0.0
        %v6756 = vand.u32 %v6741, 4294901760
        %6757 = vmatpush1.msra.mxu0 %v6756
        %6758 = vmatprep.subr.mxu0 0.0
        %v6759 = vand.u32 %v6742, 4294901760
        %6760 = vmatpush1.msra.mxu0 %v6759
        %6761 = vmatprep.subr.mxu0 0.0
        %6762 = vmatpush1.msra.mxu0 0.0
        %6763 = vmatprep.subr.mxu0 0.0
        %6764 = vmatpush1.msra.mxu0 0.0
        %6765 = vmatprep.subr.mxu0 0.0
        %6766 = vmatpush1.msra.mxu0 0.0
        %6767 = vmatprep.subr.mxu0 0.0
        %6768 = vmatpush1.msra.mxu0 0.0
        %6769 = vmatprep.subr.mxu0 0.0
        %6770 = vmatpush1.msra.mxu0 0.0
        %6771 = vmatprep.subr.mxu0 0.0
        %6772 = vmatpush1.msra.mxu0 0.0
        %6773 = vmatprep.subr.mxu0 0.0
        %6774 = vmatpush1.msra.mxu0 0.0
        %6775 = vmatprep.subr.mxu0 0.0
        %6776 = vmatpush1.msra.mxu0 0.0
        %6777 = vmatprep.subr.mxu0 0.0
        %6778 = vmatpush1.msra.mxu0 0.0
        %6779 = vmatprep.subr.mxu0 0.0
        %6780 = vmatpush1.msra.mxu0 0.0
        %6781 = vmatprep.subr.mxu0 0.0
        %6782 = vmatpush1.msra.mxu0 0.0
        %6783 = vmatprep.subr.mxu0 0.0
        %6784 = vmatpush1.msra.mxu0 0.0
        %6785 = vmatprep.subr.mxu0 0.0
        %6786 = vmatpush1.msra.mxu0 0.0
        %6787 = vmatprep.subr.mxu0 0.0
        %6788 = vmatpush1.msra.mxu0 0.0
        %6789 = vmatprep.subr.mxu0 0.0
        %6790 = vmatpush1.msra.mxu0 0.0
        %6791 = vmatprep.subr.mxu0 0.0
        %6792 = vmatpush1.msra.mxu0 0.0
        %6793 = vmatprep.subr.mxu0 0.0
        %6794 = vmatpush1.msra.mxu0 0.0
        %6795 = vmatprep.subr.mxu0 0.0
        %6796 = vmatpush1.msra.mxu0 0.0
        %6797 = vmatprep.subr.mxu0 0.0
        %6798 = vmatpush1.msra.mxu0 0.0
        %6799 = vmatprep.subr.mxu0 0.0
        %6800 = vmatpush1.msra.mxu0 0.0
        %6801 = vmatprep.subr.mxu0 0.0
        %6802 = vmatpush1.msra.mxu0 0.0
        %6803 = vmatprep.subr.mxu0 0.0
        %6804 = vmatpush1.msra.mxu0 0.0
        %6805 = vmatprep.subr.mxu0 0.0
        %6806 = vmatpush1.msra.mxu0 0.0
        %6807 = vmatprep.subr.mxu0 0.0
        %6808 = vmatpush1.msra.mxu0 0.0
        %6809 = vmatprep.subr.mxu0 0.0
        %6810 = vmatpush1.msra.mxu0 0.0
        %6811 = vmatprep.subr.mxu0 0.0
        %6812 = vmatpush1.msra.mxu0 0.0
        %6813 = vmatprep.subr.mxu0 0.0
        %6814 = vmatpush1.msra.mxu0 0.0
        %6815 = vmatprep.subr.mxu0 0.0
        %6816 = vmatpush1.msra.mxu0 0.0
        %6817 = vmatprep.mubr.f32.mxu0 0.0
        %v6818 = vand.u32 %v6744, 4294901760
        %v6819 = vsub.f32 %v6744, %v6818
        %v6820 = vand.u32 %v6819, 4294901760
        %v6821 = vsub.f32 %v6819, %v6820
        %v6822 = vand.u32 %v6821, 4294901760
        %6823 = vmatmul.mubr.f32.gmra.mrb[0].mxu0 %v6822
        %v6824 = vpop.f32.mrb[0].mxu0
        %v6825 = vadd.f32 0.0, %v6824
        %v6826 = vpop.f32.mrb[0].mxu0
        %6827 = vmatprep.mubr.f32.mxu0 0.0
        %v6828 = vand.u32 %v6747, 4294901760
        %v6829 = vsub.f32 %v6747, %v6828
        %v6830 = vand.u32 %v6829, 4294901760
        %v6831 = vsub.f32 %v6829, %v6830
        %v6832 = vand.u32 %v6831, 4294901760
        %6833 = vmatmul.mubr.f32.gmra.mrb[0].mxu0 %v6832
        %v6834 = vpop.f32.mrb[0].mxu0
        %v6835 = vadd.f32 0.0, %v6834
        %v6836 = vpop.f32.mrb[0].mxu0
        %6837 = vdwg.mxu0
        %6838 = vmatprep.subr.mxu0 0.0
        %v6839 = vand.u32 %v6739, 4294901760
        %v6840 = vsub.f32 %v6739, %v6839
        %v6841 = vand.u32 %v6840, 4294901760
        %v6842 = vsub.f32 %v6840, %v6841
        %v6843 = vand.u32 %v6842, 4294901760
        %6844 = vmatpush1.msra.mxu0 %v6843
        %6845 = vmatprep.subr.mxu0 0.0
        %v6846 = vand.u32 %v6740, 4294901760
        %v6847 = vsub.f32 %v6740, %v6846
        %v6848 = vand.u32 %v6847, 4294901760
        %v6849 = vsub.f32 %v6847, %v6848
        %v6850 = vand.u32 %v6849, 4294901760
        %6851 = vmatpush1.msra.mxu0 %v6850
        %6852 = vmatprep.subr.mxu0 0.0
        %v6853 = vand.u32 %v6741, 4294901760
        %v6854 = vsub.f32 %v6741, %v6853
        %v6855 = vand.u32 %v6854, 4294901760
        %v6856 = vsub.f32 %v6854, %v6855
        %v6857 = vand.u32 %v6856, 4294901760
        %6858 = vmatpush1.msra.mxu0 %v6857
        %6859 = vmatprep.subr.mxu0 0.0
        %v6860 = vand.u32 %v6742, 4294901760
        %v6861 = vsub.f32 %v6742, %v6860
        %v6862 = vand.u32 %v6861, 4294901760
        %v6863 = vsub.f32 %v6861, %v6862
        %v6864 = vand.u32 %v6863, 4294901760
        %6865 = vmatpush1.msra.mxu0 %v6864
        %6866 = vmatprep.subr.mxu0 0.0
        %6867 = vmatpush1.msra.mxu0 0.0
        %6868 = vmatprep.subr.mxu0 0.0
        %6869 = vmatpush1.msra.mxu0 0.0
        %6870 = vmatprep.subr.mxu0 0.0
        %6871 = vmatpush1.msra.mxu0 0.0
        %6872 = vmatprep.subr.mxu0 0.0
        %6873 = vmatpush1.msra.mxu0 0.0
        %6874 = vmatprep.subr.mxu0 0.0
        %6875 = vmatpush1.msra.mxu0 0.0
        %6876 = vmatprep.subr.mxu0 0.0
        %6877 = vmatpush1.msra.mxu0 0.0
        %6878 = vmatprep.subr.mxu0 0.0
        %6879 = vmatpush1.msra.mxu0 0.0
        %6880 = vmatprep.subr.mxu0 0.0
        %6881 = vmatpush1.msra.mxu0 0.0
        %6882 = vmatprep.subr.mxu0 0.0
        %6883 = vmatpush1.msra.mxu0 0.0
        %6884 = vmatprep.subr.mxu0 0.0
        %6885 = vmatpush1.msra.mxu0 0.0
        %6886 = vmatprep.subr.mxu0 0.0
        %6887 = vmatpush1.msra.mxu0 0.0
        %6888 = vmatprep.subr.mxu0 0.0
        %6889 = vmatpush1.msra.mxu0 0.0
        %6890 = vmatprep.subr.mxu0 0.0
        %6891 = vmatpush1.msra.mxu0 0.0
        %6892 = vmatprep.subr.mxu0 0.0
        %6893 = vmatpush1.msra.mxu0 0.0
        %6894 = vmatprep.subr.mxu0 0.0
        %6895 = vmatpush1.msra.mxu0 0.0
        %6896 = vmatprep.subr.mxu0 0.0
        %6897 = vmatpush1.msra.mxu0 0.0
        %6898 = vmatprep.subr.mxu0 0.0
        %6899 = vmatpush1.msra.mxu0 0.0
        %6900 = vmatprep.subr.mxu0 0.0
        %6901 = vmatpush1.msra.mxu0 0.0
        %6902 = vmatprep.subr.mxu0 0.0
        %6903 = vmatpush1.msra.mxu0 0.0
        %6904 = vmatprep.subr.mxu0 0.0
        %6905 = vmatpush1.msra.mxu0 0.0
        %6906 = vmatprep.subr.mxu0 0.0
        %6907 = vmatpush1.msra.mxu0 0.0
        %6908 = vmatprep.subr.mxu0 0.0
        %6909 = vmatpush1.msra.mxu0 0.0
        %6910 = vmatprep.subr.mxu0 0.0
        %6911 = vmatpush1.msra.mxu0 0.0
        %6912 = vmatprep.subr.mxu0 0.0
        %6913 = vmatpush1.msra.mxu0 0.0
        %6914 = vmatprep.subr.mxu0 0.0
        %6915 = vmatpush1.msra.mxu0 0.0
        %6916 = vmatprep.subr.mxu0 0.0
        %6917 = vmatpush1.msra.mxu0 0.0
        %6918 = vmatprep.subr.mxu0 0.0
        %6919 = vmatpush1.msra.mxu0 0.0
        %6920 = vmatprep.subr.mxu0 0.0
        %6921 = vmatpush1.msra.mxu0 0.0
        %6922 = vmatprep.mubr.f32.mxu0 0.0
        %v6923 = vand.u32 %v6744, 4294901760
        %6924 = vmatmul.mubr.f32.gmra.mrb[0].mxu0 %v6923
        %v6925 = vpop.f32.mrb[0].mxu0
        %v6926 = vadd.f32 %v6825, %v6925
        %v6927 = vpop.f32.mrb[0].mxu0
        %6928 = vmatprep.mubr.f32.mxu0 0.0
        %v6929 = vand.u32 %v6747, 4294901760
        %6930 = vmatmul.mubr.f32.gmra.mrb[0].mxu0 %v6929
        %v6931 = vpop.f32.mrb[0].mxu0
        %v6932 = vadd.f32 %v6835, %v6931
        %v6933 = vpop.f32.mrb[0].mxu0
        %6934 = vdwg.mxu0
        %6935 = vmatprep.subr.mxu0 0.0
        %v6936 = vand.u32 %v6739, 4294901760
        %v6937 = vsub.f32 %v6739, %v6936
        %6938 = vmatpush1.msra.mxu0 %v6937
        %6939 = vmatprep.subr.mxu0 0.0
        %v6940 = vand.u32 %v6740, 4294901760
        %v6941 = vsub.f32 %v6740, %v6940
        %6942 = vmatpush1.msra.mxu0 %v6941
        %6943 = vmatprep.subr.mxu0 0.0
        %v6944 = vand.u32 %v6741, 4294901760
        %v6945 = vsub.f32 %v6741, %v6944
        %6946 = vmatpush1.msra.mxu0 %v6945
        %6947 = vmatprep.subr.mxu0 0.0
        %v6948 = vand.u32 %v6742, 4294901760
        %v6949 = vsub.f32 %v6742, %v6948
        %6950 = vmatpush1.msra.mxu0 %v6949
        %6951 = vmatprep.subr.mxu0 0.0
        %6952 = vmatpush1.msra.mxu0 0.0
        %6953 = vmatprep.subr.mxu0 0.0
        %6954 = vmatpush1.msra.mxu0 0.0
        %6955 = vmatprep.subr.mxu0 0.0
        %6956 = vmatpush1.msra.mxu0 0.0
        %6957 = vmatprep.subr.mxu0 0.0
        %6958 = vmatpush1.msra.mxu0 0.0
        %6959 = vmatprep.subr.mxu0 0.0
        %6960 = vmatpush1.msra.mxu0 0.0
        %6961 = vmatprep.subr.mxu0 0.0
        %6962 = vmatpush1.msra.mxu0 0.0
        %6963 = vmatprep.subr.mxu0 0.0
        %6964 = vmatpush1.msra.mxu0 0.0
        %6965 = vmatprep.subr.mxu0 0.0
        %6966 = vmatpush1.msra.mxu0 0.0
        %6967 = vmatprep.subr.mxu0 0.0
        %6968 = vmatpush1.msra.mxu0 0.0
        %6969 = vmatprep.subr.mxu0 0.0
        %6970 = vmatpush1.msra.mxu0 0.0
        %6971 = vmatprep.subr.mxu0 0.0
        %6972 = vmatpush1.msra.mxu0 0.0
        %6973 = vmatprep.subr.mxu0 0.0
        %6974 = vmatpush1.msra.mxu0 0.0
        %6975 = vmatprep.subr.mxu0 0.0
        %6976 = vmatpush1.msra.mxu0 0.0
        %6977 = vmatprep.subr.mxu0 0.0
        %6978 = vmatpush1.msra.mxu0 0.0
        %6979 = vmatprep.subr.mxu0 0.0
        %6980 = vmatpush1.msra.mxu0 0.0
        %6981 = vmatprep.subr.mxu0 0.0
        %6982 = vmatpush1.msra.mxu0 0.0
        %6983 = vmatprep.subr.mxu0 0.0
        %6984 = vmatpush1.msra.mxu0 0.0
        %6985 = vmatprep.subr.mxu0 0.0
        %6986 = vmatpush1.msra.mxu0 0.0
        %6987 = vmatprep.subr.mxu0 0.0
        %6988 = vmatpush1.msra.mxu0 0.0
        %6989 = vmatprep.subr.mxu0 0.0
        %6990 = vmatpush1.msra.mxu0 0.0
        %6991 = vmatprep.subr.mxu0 0.0
        %6992 = vmatpush1.msra.mxu0 0.0
        %6993 = vmatprep.subr.mxu0 0.0
        %6994 = vmatpush1.msra.mxu0 0.0
        %6995 = vmatprep.subr.mxu0 0.0
        %6996 = vmatpush1.msra.mxu0 0.0
        %6997 = vmatprep.subr.mxu0 0.0
        %6998 = vmatpush1.msra.mxu0 0.0
        %6999 = vmatprep.subr.mxu0 0.0
        %7000 = vmatpush1.msra.mxu0 0.0
        %7001 = vmatprep.subr.mxu0 0.0
        %7002 = vmatpush1.msra.mxu0 0.0
        %7003 = vmatprep.subr.mxu0 0.0
        %7004 = vmatpush1.msra.mxu0 0.0
        %7005 = vmatprep.subr.mxu0 0.0
        %7006 = vmatpush1.msra.mxu0 0.0
        %7007 = vmatprep.mubr.f32.mxu0 0.0
        %v7008 = vand.u32 %v6744, 4294901760
        %v7009 = vsub.f32 %v6744, %v7008
        %7010 = vmatmul.mubr.f32.gmra.mrb[0].mxu0 %v7009
        %v7011 = vpop.f32.mrb[0].mxu0
        %v7012 = vadd.f32 %v6926, %v7011
        %v7013 = vpop.f32.mrb[0].mxu0
        %7014 = vmatprep.mubr.f32.mxu0 0.0
        %v7015 = vand.u32 %v6747, 4294901760
        %v7016 = vsub.f32 %v6747, %v7015
        %7017 = vmatmul.mubr.f32.gmra.mrb[0].mxu0 %v7016
        %v7018 = vpop.f32.mrb[0].mxu0
        %v7019 = vadd.f32 %v6932, %v7018
        %v7020 = vpop.f32.mrb[0].mxu0
        %7021 = vdwg.mxu0
        %7022 = vmatprep.subr.mxu0 0.0
        %v7023 = vand.u32 %v6739, 4294901760
        %7024 = vmatpush1.msra.mxu0 %v7023
        %7025 = vmatprep.subr.mxu0 0.0
        %v7026 = vand.u32 %v6740, 4294901760
        %7027 = vmatpush1.msra.mxu0 %v7026
        %7028 = vmatprep.subr.mxu0 0.0
        %v7029 = vand.u32 %v6741, 4294901760
        %7030 = vmatpush1.msra.mxu0 %v7029
        %7031 = vmatprep.subr.mxu0 0.0
        %v7032 = vand.u32 %v6742, 4294901760
        %7033 = vmatpush1.msra.mxu0 %v7032
        %7034 = vmatprep.subr.mxu0 0.0
        %7035 = vmatpush1.msra.mxu0 0.0
        %7036 = vmatprep.subr.mxu0 0.0
        %7037 = vmatpush1.msra.mxu0 0.0
        %7038 = vmatprep.subr.mxu0 0.0
        %7039 = vmatpush1.msra.mxu0 0.0
        %7040 = vmatprep.subr.mxu0 0.0
        %7041 = vmatpush1.msra.mxu0 0.0
        %7042 = vmatprep.subr.mxu0 0.0
        %7043 = vmatpush1.msra.mxu0 0.0
        %7044 = vmatprep.subr.mxu0 0.0
        %7045 = vmatpush1.msra.mxu0 0.0
        %7046 = vmatprep.subr.mxu0 0.0
        %7047 = vmatpush1.msra.mxu0 0.0
        %7048 = vmatprep.subr.mxu0 0.0
        %7049 = vmatpush1.msra.mxu0 0.0
        %7050 = vmatprep.subr.mxu0 0.0
        %7051 = vmatpush1.msra.mxu0 0.0
        %7052 = vmatprep.subr.mxu0 0.0
        %7053 = vmatpush1.msra.mxu0 0.0
        %7054 = vmatprep.subr.mxu0 0.0
        %7055 = vmatpush1.msra.mxu0 0.0
        %7056 = vmatprep.subr.mxu0 0.0
        %7057 = vmatpush1.msra.mxu0 0.0
        %7058 = vmatprep.subr.mxu0 0.0
        %7059 = vmatpush1.msra.mxu0 0.0
        %7060 = vmatprep.subr.mxu0 0.0
        %7061 = vmatpush1.msra.mxu0 0.0
        %7062 = vmatprep.subr.mxu0 0.0
        %7063 = vmatpush1.msra.mxu0 0.0
        %7064 = vmatprep.subr.mxu0 0.0
        %7065 = vmatpush1.msra.mxu0 0.0
        %7066 = vmatprep.subr.mxu0 0.0
        %7067 = vmatpush1.msra.mxu0 0.0
        %7068 = vmatprep.subr.mxu0 0.0
        %7069 = vmatpush1.msra.mxu0 0.0
        %7070 = vmatprep.subr.mxu0 0.0
        %7071 = vmatpush1.msra.mxu0 0.0
        %7072 = vmatprep.subr.mxu0 0.0
        %7073 = vmatpush1.msra.mxu0 0.0
        %7074 = vmatprep.subr.mxu0 0.0
        %7075 = vmatpush1.msra.mxu0 0.0
        %7076 = vmatprep.subr.mxu0 0.0
        %7077 = vmatpush1.msra.mxu0 0.0
        %7078 = vmatprep.subr.mxu0 0.0
        %7079 = vmatpush1.msra.mxu0 0.0
        %7080 = vmatprep.subr.mxu0 0.0
        %7081 = vmatpush1.msra.mxu0 0.0
        %7082 = vmatprep.subr.mxu0 0.0
        %7083 = vmatpush1.msra.mxu0 0.0
        %7084 = vmatprep.subr.mxu0 0.0
        %7085 = vmatpush1.msra.mxu0 0.0
        %7086 = vmatprep.subr.mxu0 0.0
        %7087 = vmatpush1.msra.mxu0 0.0
        %7088 = vmatprep.subr.mxu0 0.0
        %7089 = vmatpush1.msra.mxu0 0.0
        %7090 = vmatprep.mubr.f32.mxu0 0.0
        %v7091 = vand.u32 %v6744, 4294901760
        %v7092 = vsub.f32 %v6744, %v7091
        %v7093 = vand.u32 %v7092, 4294901760
        %7094 = vmatmul.mubr.f32.gmra.mrb[0].mxu0 %v7093
        %v7095 = vpop.f32.mrb[0].mxu0
        %v7096 = vadd.f32 %v7012, %v7095
        %v7097 = vpop.f32.mrb[0].mxu0
        %7098 = vmatprep.mubr.f32.mxu0 0.0
        %v7099 = vand.u32 %v6747, 4294901760
        %v7100 = vsub.f32 %v6747, %v7099
        %v7101 = vand.u32 %v7100, 4294901760
        %7102 = vmatmul.mubr.f32.gmra.mrb[0].mxu0 %v7101
        %v7103 = vpop.f32.mrb[0].mxu0
        %v7104 = vadd.f32 %v7019, %v7103
        %v7105 = vpop.f32.mrb[0].mxu0
        %7106 = vdwg.mxu0
        %7107 = vmatprep.subr.mxu0 0.0
        %v7108 = vand.u32 %v6739, 4294901760
        %v7109 = vsub.f32 %v6739, %v7108
        %v7110 = vand.u32 %v7109, 4294901760
        %7111 = vmatpush1.msra.mxu0 %v7110
        %7112 = vmatprep.subr.mxu0 0.0
        %v7113 = vand.u32 %v6740, 4294901760
        %v7114 = vsub.f32 %v6740, %v7113
        %v7115 = vand.u32 %v7114, 4294901760
        %7116 = vmatpush1.msra.mxu0 %v7115
        %7117 = vmatprep.subr.mxu0 0.0
        %v7118 = vand.u32 %v6741, 4294901760
        %v7119 = vsub.f32 %v6741, %v7118
        %v7120 = vand.u32 %v7119, 4294901760
        %7121 = vmatpush1.msra.mxu0 %v7120
        %7122 = vmatprep.subr.mxu0 0.0
        %v7123 = vand.u32 %v6742, 4294901760
        %v7124 = vsub.f32 %v6742, %v7123
        %v7125 = vand.u32 %v7124, 4294901760
        %7126 = vmatpush1.msra.mxu0 %v7125
        %7127 = vmatprep.subr.mxu0 0.0
        %7128 = vmatpush1.msra.mxu0 0.0
        %7129 = vmatprep.subr.mxu0 0.0
        %7130 = vmatpush1.msra.mxu0 0.0
        %7131 = vmatprep.subr.mxu0 0.0
        %7132 = vmatpush1.msra.mxu0 0.0
        %7133 = vmatprep.subr.mxu0 0.0
        %7134 = vmatpush1.msra.mxu0 0.0
        %7135 = vmatprep.subr.mxu0 0.0
        %7136 = vmatpush1.msra.mxu0 0.0
        %7137 = vmatprep.subr.mxu0 0.0
        %7138 = vmatpush1.msra.mxu0 0.0
        %7139 = vmatprep.subr.mxu0 0.0
        %7140 = vmatpush1.msra.mxu0 0.0
        %7141 = vmatprep.subr.mxu0 0.0
        %7142 = vmatpush1.msra.mxu0 0.0
        %7143 = vmatprep.subr.mxu0 0.0
        %7144 = vmatpush1.msra.mxu0 0.0
        %7145 = vmatprep.subr.mxu0 0.0
        %7146 = vmatpush1.msra.mxu0 0.0
        %7147 = vmatprep.subr.mxu0 0.0
        %7148 = vmatpush1.msra.mxu0 0.0
        %7149 = vmatprep.subr.mxu0 0.0
        %7150 = vmatpush1.msra.mxu0 0.0
        %7151 = vmatprep.subr.mxu0 0.0
        %7152 = vmatpush1.msra.mxu0 0.0
        %7153 = vmatprep.subr.mxu0 0.0
        %7154 = vmatpush1.msra.mxu0 0.0
        %7155 = vmatprep.subr.mxu0 0.0
        %7156 = vmatpush1.msra.mxu0 0.0
        %7157 = vmatprep.subr.mxu0 0.0
        %7158 = vmatpush1.msra.mxu0 0.0
        %7159 = vmatprep.subr.mxu0 0.0
        %7160 = vmatpush1.msra.mxu0 0.0
        %7161 = vmatprep.subr.mxu0 0.0
        %7162 = vmatpush1.msra.mxu0 0.0
        %7163 = vmatprep.subr.mxu0 0.0
        %7164 = vmatpush1.msra.mxu0 0.0
        %7165 = vmatprep.subr.mxu0 0.0
        %7166 = vmatpush1.msra.mxu0 0.0
        %7167 = vmatprep.subr.mxu0 0.0
        %7168 = vmatpush1.msra.mxu0 0.0
        %7169 = vmatprep.subr.mxu0 0.0
        %7170 = vmatpush1.msra.mxu0 0.0
        %7171 = vmatprep.subr.mxu0 0.0
        %7172 = vmatpush1.msra.mxu0 0.0
        %7173 = vmatprep.subr.mxu0 0.0
        %7174 = vmatpush1.msra.mxu0 0.0
        %7175 = vmatprep.subr.mxu0 0.0
        %7176 = vmatpush1.msra.mxu0 0.0
        %7177 = vmatprep.subr.mxu0 0.0
        %7178 = vmatpush1.msra.mxu0 0.0
        %7179 = vmatprep.subr.mxu0 0.0
        %7180 = vmatpush1.msra.mxu0 0.0
        %7181 = vmatprep.subr.mxu0 0.0
        %7182 = vmatpush1.msra.mxu0 0.0
        %7183 = vmatprep.mubr.f32.mxu0 0.0
        %v7184 = vand.u32 %v6744, 4294901760
        %7185 = vmatmul.mubr.f32.gmra.mrb[0].mxu0 %v7184
        %v7186 = vpop.f32.mrb[0].mxu0
        %v7187 = vadd.f32 %v7096, %v7186
        %v7188 = vpop.f32.mrb[0].mxu0
        %7189 = vmatprep.mubr.f32.mxu0 0.0
        %v7190 = vand.u32 %v6747, 4294901760
        %7191 = vmatmul.mubr.f32.gmra.mrb[0].mxu0 %v7190
        %v7192 = vpop.f32.mrb[0].mxu0
        %v7193 = vadd.f32 %v7104, %v7192
        %v7194 = vpop.f32.mrb[0].mxu0
        %7195 = vdwg.mxu0
        %7196 = vmatprep.subr.mxu0 0.0
        %v7197 = vand.u32 %v6739, 4294901760
        %7198 = vmatpush1.msra.mxu0 %v7197
        %7199 = vmatprep.subr.mxu0 0.0
        %v7200 = vand.u32 %v6740, 4294901760
        %7201 = vmatpush1.msra.mxu0 %v7200
        %7202 = vmatprep.subr.mxu0 0.0
        %v7203 = vand.u32 %v6741, 4294901760
        %7204 = vmatpush1.msra.mxu0 %v7203
        %7205 = vmatprep.subr.mxu0 0.0
        %v7206 = vand.u32 %v6742, 4294901760
        %7207 = vmatpush1.msra.mxu0 %v7206
        %7208 = vmatprep.subr.mxu0 0.0
        %7209 = vmatpush1.msra.mxu0 0.0
        %7210 = vmatprep.subr.mxu0 0.0
        %7211 = vmatpush1.msra.mxu0 0.0
        %7212 = vmatprep.subr.mxu0 0.0
        %7213 = vmatpush1.msra.mxu0 0.0
        %7214 = vmatprep.subr.mxu0 0.0
        %7215 = vmatpush1.msra.mxu0 0.0
        %7216 = vmatprep.subr.mxu0 0.0
        %7217 = vmatpush1.msra.mxu0 0.0
        %7218 = vmatprep.subr.mxu0 0.0
        %7219 = vmatpush1.msra.mxu0 0.0
        %7220 = vmatprep.subr.mxu0 0.0
        %7221 = vmatpush1.msra.mxu0 0.0
        %7222 = vmatprep.subr.mxu0 0.0
        %7223 = vmatpush1.msra.mxu0 0.0
        %7224 = vmatprep.subr.mxu0 0.0
        %7225 = vmatpush1.msra.mxu0 0.0
        %7226 = vmatprep.subr.mxu0 0.0
        %7227 = vmatpush1.msra.mxu0 0.0
        %7228 = vmatprep.subr.mxu0 0.0
        %7229 = vmatpush1.msra.mxu0 0.0
        %7230 = vmatprep.subr.mxu0 0.0
        %7231 = vmatpush1.msra.mxu0 0.0
        %7232 = vmatprep.subr.mxu0 0.0
        %7233 = vmatpush1.msra.mxu0 0.0
        %7234 = vmatprep.subr.mxu0 0.0
        %7235 = vmatpush1.msra.mxu0 0.0
        %7236 = vmatprep.subr.mxu0 0.0
        %7237 = vmatpush1.msra.mxu0 0.0
        %7238 = vmatprep.subr.mxu0 0.0
        %7239 = vmatpush1.msra.mxu0 0.0
        %7240 = vmatprep.subr.mxu0 0.0
        %7241 = vmatpush1.msra.mxu0 0.0
        %7242 = vmatprep.subr.mxu0 0.0
        %7243 = vmatpush1.msra.mxu0 0.0
        %7244 = vmatprep.subr.mxu0 0.0
        %7245 = vmatpush1.msra.mxu0 0.0
        %7246 = vmatprep.subr.mxu0 0.0
        %7247 = vmatpush1.msra.mxu0 0.0
        %7248 = vmatprep.subr.mxu0 0.0
        %7249 = vmatpush1.msra.mxu0 0.0
        %7250 = vmatprep.subr.mxu0 0.0
        %7251 = vmatpush1.msra.mxu0 0.0
        %7252 = vmatprep.subr.mxu0 0.0
        %7253 = vmatpush1.msra.mxu0 0.0
        %7254 = vmatprep.subr.mxu0 0.0
        %7255 = vmatpush1.msra.mxu0 0.0
        %7256 = vmatprep.subr.mxu0 0.0
        %7257 = vmatpush1.msra.mxu0 0.0
        %7258 = vmatprep.subr.mxu0 0.0
        %7259 = vmatpush1.msra.mxu0 0.0
        %7260 = vmatprep.subr.mxu0 0.0
        %7261 = vmatpush1.msra.mxu0 0.0
        %7262 = vmatprep.subr.mxu0 0.0
        %7263 = vmatpush1.msra.mxu0 0.0
        %7264 = vmatprep.mubr.f32.mxu0 0.0
        %v7265 = vand.u32 %v6744, 4294901760
        %7266 = vmatmul.mubr.f32.gmra.mrb[0].mxu0 %v7265
        %v7267 = vpop.f32.mrb[0].mxu0
        %v7268 = vadd.f32 %v7187, %v7267
        %v7269 = vpop.f32.mrb[0].mxu0
        %7270 = vmatprep.mubr.f32.mxu0 0.0
        %v7271 = vand.u32 %v6747, 4294901760
        %7272 = vmatmul.mubr.f32.gmra.mrb[0].mxu0 %v7271
        %v7273 = vpop.f32.mrb[0].mxu0
        %v7274 = vadd.f32 %v7193, %v7273
        %v7275 = vpop.f32.mrb[0].mxu0
        %7276 = vdwg.mxu0
        %v7277 = vadd.f32 %v6734, %v7268
        %v7278 = vadd.f32 %v6735, %v7274
        %s7279 = sld [smem:[#allocation4]]
        %v7280 = vstv %s7279
        %v7281 = vadd.f32 %v7277, %v7280
        %v7282 = vadd.f32 %v7278, %v7280
        %v7283 = vxor.u32 %v7281, 2147483648
        %v7284 = vxor.u32 %v7282, 2147483648
        %v7285 = vmul.f32 %v7283, 1.442695
        %v7286 = vpow.pop %v7285
        %v7287 = vmul.f32 %v7284, 1.442695
        %v7288 = vpow.pop %v7287
        %v7289 = vadd.f32 %v7286, 1.0
        %v7290 = vadd.f32 %v7288, 1.0
        %v7291 = vrcp.pop %v7289
        %v7292 = vmul.f32 1.0, %v7291
        %v7293 = vrcp.pop %v7290
        %v7294 = vmul.f32 1.0, %v7293
        %v7295 = vmul.f32 %v3392, %v7292
        %v7296 = vmul.f32 %v3393, %v7294
        %7297 = vst [vmem:[%s445] sm:$0xff] %v7295
        %7298 = vst [vmem:[%s445 + $0x8] sm:$0xff] %v7296
        %s7299 = sand.u32 %s233, 1
        %s7300 = scalar_lea.sflag [#allocation7], %s7299
        %s7301 = sand.u32 %s233, 1
        %s7302 = smul.addr %s7301, 16
        %s7303 = scalar_lea.vmem [#allocation19], %s7302
        // Predicated region
        $region89: #{tpu_custom_call.1} parent=55 // pred_check
          %p7304 = pneg %p243
        $region90: #{tpu_custom_call.1} parent=55 // pred_check_branch
          %7306 = sbr.rel (%p7304) target = $region92
        $region91: #{tpu_custom_call.1} parent=55 // pred_region
          %s7308 = ssub.s32 256, 256
          %7309 = vsyncadd %s7300, %s7308
          %s7310 = smul.addr %s31, 2
          %s7311 = smul.addr %s7310, 128
          %s7312 = scalar_lea.hbm %s9, %s7311
          %s7313 = sshll.u32 %s7303, 4
          %s7314 = int_to_ptr.vmem [resolvable:$true] %s7313
          %7319 = dma.vmem_to_hbm [thread:$0]  %s7314, 256, %s7312, %s7300, 128, 128, 8
        $region92: #{tpu_custom_call.1} parent=55 // pred_fallthru
          _
      $region56: #{tpu_custom_call.1} parent=5 // pred_fallthru
        _
      %p7320 = scmp.le.s32.totalorder 2, %s26
      // Predicated region
      $region93: #{tpu_custom_call.1} parent=5 // pred_check
        %p7321 = pneg %p7320
      $region94: #{tpu_custom_call.1} parent=5 // pred_check_branch
        %7323 = sbr.rel (%p7321) target = $region96
      $region95: #{tpu_custom_call.1} parent=5 // pred_region
        %s7324 = ssub.s32 %s26, 2
        // Predicated region
        $region97: #{tpu_custom_call.1} parent=95 // pred_check
          %p7325 = pneg %p249
        $region98: #{tpu_custom_call.1} parent=95 // pred_check_branch
          %7327 = sbr.rel (%p7325) target = $region100
        $region99: #{tpu_custom_call.1} parent=95 // pred_region
          %s7328 = sand.u32 %s234, 1
          %s7329 = scalar_lea.sflag [#allocation7], %s7328
          %s7330 = sand.u32 %s234, 1
          %s7331 = smul.addr %s7330, 16
          %s7332 = scalar_lea.vmem [#allocation19], %s7331
          %7333 = dma.done %s7329, 256
        $region100: #{tpu_custom_call.1} parent=95 // pred_fallthru
          _
      $region96: #{tpu_custom_call.1} parent=5 // pred_fallthru
        _
    $region6: #{tpu_custom_call.1} parent=1 // loop_footer
      %s30 = sadd.s32 1, %s26
    $region7: #{tpu_custom_call.1} parent=1 // loop_footer_branch
      %25 = sbr.rel target = $region3
    $region8: #{tpu_custom_call.1} parent=1 // loop_exit
      _
    %7334 = vsyncpa [#allocation6], 1
    %s7335 = scalar_lea.sflag [#allocation6], 1
    %7336 = vsyncpa %s7335, 1
    %7337 = vsyncpa [#allocation9], 1
    %7338 = vsyncpa [#allocation12], 1
    %7339 = vsyncpa [#allocation15], 1
    %7340 = vsyncpa [#allocation18], 1
    %7341 = vsyncpa [#allocation7], 1
    %s7342 = scalar_lea.sflag [#allocation7], 1
    %7343 = vsyncpa %s7342, 1

</llo_original>
